<compile_context>
chip_gen: v5e
topology: v5e:2x2
jax: 0.10.0
libtpu: 0.0.40
codegen_flags: <defaults>
</compile_context>

<pallas_src>
import functools

import jax
import jax.numpy as jnp
from jax.experimental import pallas as pl
from jax.experimental.pallas import tpu as pltpu

BN_EPS = 1e-5
FEAT = 512
HID2 = 64          # logical second hidden width
HID2_PAD = 128     # padded to a full lane width
OUT = 2
OUT_PAD = 128      # lane-dense output slab
LANE = 128
TK_MAX = 2048      # max K (in_features) tile streamed per grid step


def _round_up(x, m):
    return ((x + m - 1) // m) * m


def _device_kind():
    try:
        return jax.devices()[0].device_kind.lower()
    except Exception:
        return ""


# ---------------------------------------------------------------------------
# Kernel
# ---------------------------------------------------------------------------
def triple_siamese_kernel(
    x1_ref, x2_ref, x3_ref,
    wf1_ref, wf2_ref, wf3_ref,
    bf1_ref, bf2_ref, bf3_ref,
    w1a_ref, w1b_ref, w1c_ref, b1_ref,
    w2_ref, b2_ref,
    w3_ref, b3_ref,
    out_ref,
    acc1_ref, acc2_ref, acc3_ref,
    *, elemwise_bf16: bool,
):
    k = pl.program_id(1)
    nk = pl.num_programs(1)

    @pl.when(k == 0)
    def _():
        acc1_ref[...] = jnp.zeros_like(acc1_ref)
        acc2_ref[...] = jnp.zeros_like(acc2_ref)
        acc3_ref[...] = jnp.zeros_like(acc3_ref)

    # --- per-branch backbone stand-in: K-tiled Linear(in_features, 512), f32 acc
    acc1_ref[...] += jnp.dot(x1_ref[...], wf1_ref[...],
                             preferred_element_type=jnp.float32)
    acc2_ref[...] += jnp.dot(x2_ref[...], wf2_ref[...],
                             preferred_element_type=jnp.float32)
    acc3_ref[...] += jnp.dot(x3_ref[...], wf3_ref[...],
                             preferred_element_type=jnp.float32)

    @pl.when(k == nk - 1)
    def _():
        mxu_dt = w1a_ref.dtype

        # bias + ReLU finish of the branch features
        v1 = jnp.maximum(acc1_ref[...] + bf1_ref[...], 0.0)
        v2 = jnp.maximum(acc2_ref[...] + bf2_ref[...], 0.0)
        v3 = jnp.maximum(acc3_ref[...] + bf3_ref[...], 0.0)

        # pairwise |diff|; bf16 elementwise on v6e/v7x, f32 on older parts
        if elemwise_bf16:
            v1 = v1.astype(mxu_dt)
            v2 = v2.astype(mxu_dt)
            v3 = v3.astype(mxu_dt)
            d1 = jnp.abs(v1 - v2)
            d2 = jnp.abs(v2 - v3)
            d3 = jnp.abs(v3 - v1)
        else:
            d1 = jnp.abs(v1 - v2).astype(mxu_dt)
            d2 = jnp.abs(v2 - v3).astype(mxu_dt)
            d3 = jnp.abs(v3 - v1).astype(mxu_dt)

        # cls_head (Dropout = id, BN folded into the Linears):
        # Linear(1536, 512) as three accumulated slab dots (no lane-concat)
        h = jnp.dot(d1, w1a_ref[...], preferred_element_type=jnp.float32)
        h = h + jnp.dot(d2, w1b_ref[...], preferred_element_type=jnp.float32)
        h = h + jnp.dot(d3, w1c_ref[...], preferred_element_type=jnp.float32)
        h = jnp.maximum(h + b1_ref[...], 0.0)                  # BN1 folded -> ReLU

        # Linear(512, 64) padded to 128 lanes; BN2 folded -> Sigmoid
        h = jnp.dot(h.astype(mxu_dt), w2_ref[...],
                    preferred_element_type=jnp.float32)
        h = jax.nn.sigmoid(h + b2_ref[...])

        # Linear(64, 2) zero-padded to (128, 128); Sigmoid.  Real logits in cols [:2].
        h = jnp.dot(h.astype(mxu_dt), w3_ref[...],
                    preferred_element_type=jnp.float32)
        out_ref[...] = jax.nn.sigmoid(h + b3_ref[...]).astype(out_ref.dtype)


# ---------------------------------------------------------------------------
# Parameters
# ---------------------------------------------------------------------------
def make_params(key, in_features):
    keys = jax.random.split(key, 8)

    def lin(k, fan_in, fan_out, scale=0.05):
        kw, kb = jax.random.split(k)
        w = scale * jax.random.normal(kw, (fan_in, fan_out), jnp.float32)
        b = scale * jax.random.normal(kb, (1, fan_out), jnp.float32)
        return w, b

    def bn(k, n):
        kg, kb, km, kv = jax.random.split(k, 4)
        g = 1.0 + 0.1 * jax.random.normal(kg, (1, n), jnp.float32)
        be = 0.1 * jax.random.normal(kb, (1, n), jnp.float32)
        m = 0.1 * jax.random.normal(km, (1, n), jnp.float32)
        v = jnp.abs(jax.random.normal(kv, (1, n), jnp.float32)) + 0.5
        return g, be, m, v

    wf1, bf1 = lin(keys[0], in_features, FEAT)
    wf2, bf2 = lin(keys[1], in_features, FEAT)
    wf3, bf3 = lin(keys[2], in_features, FEAT)
    w1, b1 = lin(keys[3], 3 * FEAT, FEAT)
    w2, b2 = lin(keys[4], FEAT, HID2)
    w3, b3 = lin(keys[5], HID2, OUT)
    g1, be1, m1, va1 = bn(keys[6], FEAT)
    g2, be2, m2, va2 = bn(keys[7], HID2)

    return (wf1, bf1, wf2, bf2, wf3, bf3,
            w1, b1, g1, be1, m1, va1,
            w2, b2, g2, be2, m2, va2,
            w3, b3)


def _fold_bn(w, b, gamma, beta, mean, var):
    """Fold an inference BatchNorm1d into the preceding Linear (f32 math)."""
    scale = gamma * jax.lax.rsqrt(var + BN_EPS)        # (1, N)
    return w * scale, (b - mean) * scale + beta


def _prepare_kernel_params(params, in_features, k_pad):
    (wf1, bf1, wf2, bf2, wf3, bf3,
     w1, b1, g1, be1, m1, va1,
     w2, b2, g2, be2, m2, va2,
     w3, b3) = params

    # Fold the two inference BatchNorms into Linear1 / Linear2.
    w1f, b1f = _fold_bn(w1, b1, g1, be1, m1, va1)
    w2f, b2f = _fold_bn(w2, b2, g2, be2, m2, va2)

    # Split w1 (1536, 512) into three 512-row slabs -> no concat in the kernel.
    w1a, w1b, w1c = w1f[:FEAT], w1f[FEAT:2 * FEAT], w1f[2 * FEAT:]

    # Zero-pad the 64-wide hidden and the 2-wide output to full 128 lanes.
    w2p = jnp.pad(w2f, ((0, 0), (0, HID2_PAD - HID2)))
    b2p = jnp.pad(b2f, ((0, 0), (0, HID2_PAD - HID2)))
    w3p = jnp.pad(w3, ((0, HID2_PAD - HID2), (0, OUT_PAD - OUT)))
    b3p = jnp.pad(b3, ((0, 0), (0, OUT_PAD - OUT)))

    # Zero-pad the backbone weights along K to the tiled extent.
    kp = k_pad - in_features
    if kp:
        wf1 = jnp.pad(wf1, ((0, kp), (0, 0)))
        wf2 = jnp.pad(wf2, ((0, kp), (0, 0)))
        wf3 = jnp.pad(wf3, ((0, kp), (0, 0)))

    bf16 = lambda a: a.astype(jnp.bfloat16)   # MXU operands only; biases stay f32
    return (bf16(wf1), bf16(wf2), bf16(wf3),
            bf1, bf2, bf3,
            bf16(w1a), bf16(w1b), bf16(w1c), b1f,
            bf16(w2p), b2p,
            bf16(w3p), b3p)


# ---------------------------------------------------------------------------
# Wrapper
# ---------------------------------------------------------------------------
def _pick_bm(B, bm_max, min_steps):
    """Batch-tile size: <= bm_max rows, >= min_steps grid steps, modest padding."""
    steps = max(min_steps, -(-B // bm_max))
    bm = _round_up(max(1, -(-B // steps)), 16)
    return max(16, min(bm, bm_max))


def triple_siamese_forward(img1, img2, img3, params):
    B = img1.shape[0]
    x1 = img1.reshape(B, -1).astype(jnp.bfloat16)
    x2 = img2.reshape(B, -1).astype(jnp.bfloat16)
    x3 = img3.reshape(B, -1).astype(jnp.bfloat16)
    in_features = x1.shape[1]

    kind = _device_kind()
    is_v5e = ("v5e" in kind) or ("v5 lite" in kind) or ("v5litepod" in kind)
    is_v7 = "v7" in kind
    elemwise_bf16 = ("v6" in kind) or is_v7     # v5e & older: no bf16 VPU
    bm_max = 128 if is_v5e else 256
    min_steps = 2 if is_v7 else 1               # keep both v7x TensorCores busy
    vmem_limit = (32 << 20) if is_v7 else (64 << 20)

    # --- K (in_features) tiling for the backbone stand-in weights.
    k_pad = _round_up(in_features, LANE)
    tk = k_pad if k_pad <= TK_MAX else TK_MAX
    k_pad = _round_up(k_pad, tk)
    nk = k_pad // tk
    if k_pad > in_features:
        x1 = jnp.pad(x1, ((0, 0), (0, k_pad - in_features)))
        x2 = jnp.pad(x2, ((0, 0), (0, k_pad - in_features)))
        x3 = jnp.pad(x3, ((0, 0), (0, k_pad - in_features)))

    kparams = _prepare_kernel_params(params, in_features, k_pad)

    # --- batch tiling
    BM = _pick_bm(B, bm_max, min_steps)
    B_pad = _round_up(B, BM)
    if B_pad > B:
        pad = B_pad - B
        x1 = jnp.pad(x1, ((0, pad), (0, 0)))
        x2 = jnp.pad(x2, ((0, pad), (0, 0)))
        x3 = jnp.pad(x3, ((0, pad), (0, 0)))
    nb = B_pad // BM
    grid = (nb, nk)

    x_spec = pl.BlockSpec((BM, tk), lambda i, k: (i, k))
    if nk == 1:
        # constant index across the whole grid -> single-buffer, DMA'd once
        wf_spec = pl.BlockSpec((tk, FEAT), lambda i, k: (k, 0),
                               pipeline_mode=pl.Buffered(1))
    else:
        wf_spec = pl.BlockSpec((tk, FEAT), lambda i, k: (k, 0))

    # Constant index_map + single buffer: weights/biases DMA'd once, stay resident.
    def const_spec(a):
        return pl.BlockSpec(a.shape, lambda i, k: (0, 0),
                            pipeline_mode=pl.Buffered(1))

    in_specs = [x_spec, x_spec, x_spec] + [wf_spec] * 3 \
        + [const_spec(p) for p in kparams[3:]]
    out_spec = pl.BlockSpec((BM, OUT_PAD), lambda i, k: (i, 0))

    kernel = functools.partial(triple_siamese_kernel, elemwise_bf16=elemwise_bf16)

    out_padded = pl.pallas_call(
        kernel,
        out_shape=jax.ShapeDtypeStruct((B_pad, OUT_PAD), jnp.bfloat16),
        grid_spec=pltpu.PrefetchScalarGridSpec(
            num_scalar_prefetch=0,
            grid=grid,
            in_specs=in_specs,
            out_specs=out_spec,
            scratch_shapes=[pltpu.VMEM((BM, FEAT), jnp.float32)] * 3,
        ),
        compiler_params=pltpu.CompilerParams(
            dimension_semantics=("parallel", "arbitrary"),
            vmem_limit_bytes=vmem_limit,
        ),
    )(x1, x2, x3, *kparams)

    return out_padded[:B, :OUT].astype(jnp.float32)


# ---------------------------------------------------------------------------
# Pure-JAX reference (f32, inference semantics) for a tolerance check
# ---------------------------------------------------------------------------
def reference_forward(img1, img2, img3, params):
    (wf1, bf1, wf2, bf2, wf3, bf3,
     w1, b1, g1, be1, m1, va1,
     w2, b2, g2, be2, m2, va2,
     w3, b3) = params
    B = img1.shape[0]

    def feat(x, w, b):
        return jnp.maximum(x.reshape(B, -1) @ w + b, 0.0)

    def bn(x, g, be, m, v):
        return (x - m) * g * jax.lax.rsqrt(v + BN_EPS) + be

    v1 = feat(img1, wf1, bf1)
    v2 = feat(img2, wf2, bf2)
    v3 = feat(img3, wf3, bf3)
    d = jnp.concatenate([jnp.abs(v1 - v2), jnp.abs(v2 - v3), jnp.abs(v3 - v1)], axis=1)
    h = jnp.maximum(bn(d @ w1 + b1, g1, be1, m1, va1), 0.0)
    h = jax.nn.sigmoid(bn(h @ w2 + b2, g2, be2, m2, va2))
    return jax.nn.sigmoid(h @ w3 + b3)


if __name__ == "__main__":
    B, C, H, W = 2, 3, 16, 16     # small shapes consistent with 3-channel image input
    key = jax.random.PRNGKey(0)
    k1, k2, k3, kp = jax.random.split(key, 4)

    img1 = jax.random.normal(k1, (B, C, H, W), jnp.float32)
    img2 = jax.random.normal(k2, (B, C, H, W), jnp.float32)
    img3 = jax.random.normal(k3, (B, C, H, W), jnp.float32)

    params = make_params(kp, C * H * W)

    out = triple_siamese_forward(img1, img2, img3, params)
    jax.block_until_ready(out)
    assert out.shape == (B, OUT) and out.dtype == jnp.float32
    assert bool(jnp.all(jnp.isfinite(out)))

    ref = reference_forward(img1, img2, img3, params)
    assert bool(jnp.max(jnp.abs(out - ref)) < 0.1)   # bf16-MXU tolerance
    print("KERNEL_OK")
</pallas_src>

<mosaic_0001>
module attributes {stable_mosaic.version = 11 : i64} {
  func.func @triple_siamese_kernel(%arg0: i32, %arg1: i32, %arg2: memref<16x768xbf16, #tpu.memory_space<vmem>>, %arg3: memref<16x768xbf16, #tpu.memory_space<vmem>>, %arg4: memref<16x768xbf16, #tpu.memory_space<vmem>>, %arg5: memref<768x512xbf16, #tpu.memory_space<vmem>>, %arg6: memref<768x512xbf16, #tpu.memory_space<vmem>>, %arg7: memref<768x512xbf16, #tpu.memory_space<vmem>>, %arg8: memref<1x512xf32, #tpu.memory_space<vmem>>, %arg9: memref<1x512xf32, #tpu.memory_space<vmem>>, %arg10: memref<1x512xf32, #tpu.memory_space<vmem>>, %arg11: memref<512x512xbf16, #tpu.memory_space<vmem>>, %arg12: memref<512x512xbf16, #tpu.memory_space<vmem>>, %arg13: memref<512x512xbf16, #tpu.memory_space<vmem>>, %arg14: memref<1x512xf32, #tpu.memory_space<vmem>>, %arg15: memref<512x128xbf16, #tpu.memory_space<vmem>>, %arg16: memref<1x128xf32, #tpu.memory_space<vmem>>, %arg17: memref<128x128xbf16, #tpu.memory_space<vmem>>, %arg18: memref<1x128xf32, #tpu.memory_space<vmem>>, %arg19: memref<16x128xbf16, #tpu.memory_space<vmem>>, %arg20: memref<16x512xf32, #tpu.memory_space<vmem>>, %arg21: memref<16x512xf32, #tpu.memory_space<vmem>>, %arg22: memref<16x512xf32, #tpu.memory_space<vmem>>) attributes {dimension_semantics = [#tpu.dimension_semantics<parallel>, #tpu.dimension_semantics<arbitrary>], iteration_bounds = array<i64: 1, 1>, scalar_prefetch = 0 : i64, scratch_operands = 3 : i64, tpu.core_type = #tpu.core_type<tc>, window_params = [{transform_indices = @transform_0, window_bounds = array<i64: 16, 768>}, {transform_indices = @transform_1, window_bounds = array<i64: 16, 768>}, {transform_indices = @transform_2, window_bounds = array<i64: 16, 768>}, {pipeline_mode = #tpu.pipeline_mode<synchronous>, transform_indices = @transform_3, window_bounds = array<i64: 768, 512>}, {pipeline_mode = #tpu.pipeline_mode<synchronous>, transform_indices = @transform_4, window_bounds = array<i64: 768, 512>}, {pipeline_mode = #tpu.pipeline_mode<synchronous>, transform_indices = @transform_5, window_bounds = array<i64: 768, 512>}, {pipeline_mode = #tpu.pipeline_mode<synchronous>, transform_indices = @transform_6, window_bounds = array<i64: 1, 512>}, {pipeline_mode = #tpu.pipeline_mode<synchronous>, transform_indices = @transform_7, window_bounds = array<i64: 1, 512>}, {pipeline_mode = #tpu.pipeline_mode<synchronous>, transform_indices = @transform_8, window_bounds = array<i64: 1, 512>}, {pipeline_mode = #tpu.pipeline_mode<synchronous>, transform_indices = @transform_9, window_bounds = array<i64: 512, 512>}, {pipeline_mode = #tpu.pipeline_mode<synchronous>, transform_indices = @transform_10, window_bounds = array<i64: 512, 512>}, {pipeline_mode = #tpu.pipeline_mode<synchronous>, transform_indices = @transform_11, window_bounds = array<i64: 512, 512>}, {pipeline_mode = #tpu.pipeline_mode<synchronous>, transform_indices = @transform_12, window_bounds = array<i64: 1, 512>}, {pipeline_mode = #tpu.pipeline_mode<synchronous>, transform_indices = @transform_13, window_bounds = array<i64: 512, 128>}, {pipeline_mode = #tpu.pipeline_mode<synchronous>, transform_indices = @transform_14, window_bounds = array<i64: 1, 128>}, {pipeline_mode = #tpu.pipeline_mode<synchronous>, transform_indices = @transform_15, window_bounds = array<i64: 128, 128>}, {pipeline_mode = #tpu.pipeline_mode<synchronous>, transform_indices = @transform_16, window_bounds = array<i64: 1, 128>}, {transform_indices = @transform_17, window_bounds = array<i64: 16, 128>}]} {
    %c0_i32 = arith.constant 0 : i32
    %0 = arith.cmpi eq, %arg1, %c0_i32 : i32
    %1 = arith.extui %0 : i1 to i32
    %c0_i32_0 = arith.constant 0 : i32
    %2 = arith.cmpi ne, %1, %c0_i32_0 : i32
    scf.if %2 {
      %cst_28 = arith.constant 0.000000e+00 : f32
      %24 = vector.broadcast %cst_28 : f32 to vector<16x512xf32>
      %c0_29 = arith.constant 0 : index
      %c0_30 = arith.constant 0 : index
      %25 = vector.load %arg20[%c0_29, %c0_30] : memref<16x512xf32, #tpu.memory_space<vmem>>, vector<16x512xf32>
      tpu.vector_store %arg20[%c0_29, %c0_30], %24 {strides = array<i32>} : memref<16x512xf32, #tpu.memory_space<vmem>>, vector<16x512xf32>,
      %cst_31 = arith.constant 0.000000e+00 : f32
      %26 = vector.broadcast %cst_31 : f32 to vector<16x512xf32>
      %c0_32 = arith.constant 0 : index
      %c0_33 = arith.constant 0 : index
      %27 = vector.load %arg21[%c0_32, %c0_33] : memref<16x512xf32, #tpu.memory_space<vmem>>, vector<16x512xf32>
      tpu.vector_store %arg21[%c0_32, %c0_33], %26 {strides = array<i32>} : memref<16x512xf32, #tpu.memory_space<vmem>>, vector<16x512xf32>,
      %cst_34 = arith.constant 0.000000e+00 : f32
      %28 = vector.broadcast %cst_34 : f32 to vector<16x512xf32>
      %c0_35 = arith.constant 0 : index
      %c0_36 = arith.constant 0 : index
      %29 = vector.load %arg22[%c0_35, %c0_36] : memref<16x512xf32, #tpu.memory_space<vmem>>, vector<16x512xf32>
      tpu.vector_store %arg22[%c0_35, %c0_36], %28 {strides = array<i32>} : memref<16x512xf32, #tpu.memory_space<vmem>>, vector<16x512xf32>,
    } else {
    }
    %c0 = arith.constant 0 : index
    %c0_1 = arith.constant 0 : index
    %3 = vector.load %arg20[%c0, %c0_1] : memref<16x512xf32, #tpu.memory_space<vmem>>, vector<16x512xf32>
    %c0_2 = arith.constant 0 : index
    %c0_3 = arith.constant 0 : index
    %4 = vector.load %arg2[%c0_2, %c0_3] : memref<16x768xbf16, #tpu.memory_space<vmem>>, vector<16x768xbf16>
    %c0_4 = arith.constant 0 : index
    %c0_5 = arith.constant 0 : index
    %5 = vector.load %arg5[%c0_4, %c0_5] : memref<768x512xbf16, #tpu.memory_space<vmem>>, vector<768x512xbf16>
    %cst = arith.constant dense<0.000000e+00> : vector<16x512xf32>
    %6 = tpu.matmul %4, %5, %cst {dimension_numbers = #tpu.dot_dimension_numbers<[1], [0], [0], [1], [0, 0, 1, 1], [], []>} : vector<16x768xbf16>, vector<768x512xbf16>, vector<16x512xf32> -> vector<16x512xf32>
    %7 = arith.addf %3, %6 : vector<16x512xf32>
    %c0_6 = arith.constant 0 : index
    %c0_7 = arith.constant 0 : index
    %8 = vector.load %arg20[%c0_6, %c0_7] : memref<16x512xf32, #tpu.memory_space<vmem>>, vector<16x512xf32>
    tpu.vector_store %arg20[%c0_6, %c0_7], %7 {strides = array<i32>} : memref<16x512xf32, #tpu.memory_space<vmem>>, vector<16x512xf32>,
    %c0_8 = arith.constant 0 : index
    %c0_9 = arith.constant 0 : index
    %9 = vector.load %arg21[%c0_8, %c0_9] : memref<16x512xf32, #tpu.memory_space<vmem>>, vector<16x512xf32>
    %c0_10 = arith.constant 0 : index
    %c0_11 = arith.constant 0 : index
    %10 = vector.load %arg3[%c0_10, %c0_11] : memref<16x768xbf16, #tpu.memory_space<vmem>>, vector<16x768xbf16>
    %c0_12 = arith.constant 0 : index
    %c0_13 = arith.constant 0 : index
    %11 = vector.load %arg6[%c0_12, %c0_13] : memref<768x512xbf16, #tpu.memory_space<vmem>>, vector<768x512xbf16>
    %cst_14 = arith.constant dense<0.000000e+00> : vector<16x512xf32>
    %12 = tpu.matmul %10, %11, %cst_14 {dimension_numbers = #tpu.dot_dimension_numbers<[1], [0], [0], [1], [0, 0, 1, 1], [], []>} : vector<16x768xbf16>, vector<768x512xbf16>, vector<16x512xf32> -> vector<16x512xf32>
    %13 = arith.addf %9, %12 : vector<16x512xf32>
    %c0_15 = arith.constant 0 : index
    %c0_16 = arith.constant 0 : index
    %14 = vector.load %arg21[%c0_15, %c0_16] : memref<16x512xf32, #tpu.memory_space<vmem>>, vector<16x512xf32>
    tpu.vector_store %arg21[%c0_15, %c0_16], %13 {strides = array<i32>} : memref<16x512xf32, #tpu.memory_space<vmem>>, vector<16x512xf32>,
    %c0_17 = arith.constant 0 : index
    %c0_18 = arith.constant 0 : index
    %15 = vector.load %arg22[%c0_17, %c0_18] : memref<16x512xf32, #tpu.memory_space<vmem>>, vector<16x512xf32>
    %c0_19 = arith.constant 0 : index
    %c0_20 = arith.constant 0 : index
    %16 = vector.load %arg4[%c0_19, %c0_20] : memref<16x768xbf16, #tpu.memory_space<vmem>>, vector<16x768xbf16>
    %c0_21 = arith.constant 0 : index
    %c0_22 = arith.constant 0 : index
    %17 = vector.load %arg7[%c0_21, %c0_22] : memref<768x512xbf16, #tpu.memory_space<vmem>>, vector<768x512xbf16>
    %cst_23 = arith.constant dense<0.000000e+00> : vector<16x512xf32>
    %18 = tpu.matmul %16, %17, %cst_23 {dimension_numbers = #tpu.dot_dimension_numbers<[1], [0], [0], [1], [0, 0, 1, 1], [], []>} : vector<16x768xbf16>, vector<768x512xbf16>, vector<16x512xf32> -> vector<16x512xf32>
    %19 = arith.addf %15, %18 : vector<16x512xf32>
    %c0_24 = arith.constant 0 : index
    %c0_25 = arith.constant 0 : index
    %20 = vector.load %arg22[%c0_24, %c0_25] : memref<16x512xf32, #tpu.memory_space<vmem>>, vector<16x512xf32>
    tpu.vector_store %arg22[%c0_24, %c0_25], %19 {strides = array<i32>} : memref<16x512xf32, #tpu.memory_space<vmem>>, vector<16x512xf32>,
    %c0_i32_26 = arith.constant 0 : i32
    %21 = arith.cmpi eq, %arg1, %c0_i32_26 : i32
    %22 = arith.extui %21 : i1 to i32
    %c0_i32_27 = arith.constant 0 : i32
    %23 = arith.cmpi ne, %22, %c0_i32_27 : i32
    scf.if %23 {
      %c0_28 = arith.constant 0 : index
      %c0_29 = arith.constant 0 : index
      %24 = vector.load %arg20[%c0_28, %c0_29] : memref<16x512xf32, #tpu.memory_space<vmem>>, vector<16x512xf32>
      %c0_30 = arith.constant 0 : index
      %c0_31 = arith.constant 0 : index
      %25 = vector.load %arg8[%c0_30, %c0_31] : memref<1x512xf32, #tpu.memory_space<vmem>>, vector<1x512xf32>
      %26 = vector.broadcast %25 : vector<1x512xf32> to vector<16x512xf32>
      %27 = arith.addf %24, %26 : vector<16x512xf32>
      %cst_32 = arith.constant 0.000000e+00 : f32
      %28 = vector.broadcast %cst_32 : f32 to vector<16x512xf32>
      %29 = arith.maximumf %27, %28 : vector<16x512xf32>
      %c0_33 = arith.constant 0 : index
      %c0_34 = arith.constant 0 : index
      %30 = vector.load %arg21[%c0_33, %c0_34] : memref<16x512xf32, #tpu.memory_space<vmem>>, vector<16x512xf32>
      %c0_35 = arith.constant 0 : index
      %c0_36 = arith.constant 0 : index
      %31 = vector.load %arg9[%c0_35, %c0_36] : memref<1x512xf32, #tpu.memory_space<vmem>>, vector<1x512xf32>
      %32 = vector.broadcast %31 : vector<1x512xf32> to vector<16x512xf32>
      %33 = arith.addf %30, %32 : vector<16x512xf32>
      %cst_37 = arith.constant 0.000000e+00 : f32
      %34 = vector.broadcast %cst_37 : f32 to vector<16x512xf32>
      %35 = arith.maximumf %33, %34 : vector<16x512xf32>
      %c0_38 = arith.constant 0 : index
      %c0_39 = arith.constant 0 : index
      %36 = vector.load %arg22[%c0_38, %c0_39] : memref<16x512xf32, #tpu.memory_space<vmem>>, vector<16x512xf32>
      %c0_40 = arith.constant 0 : index
      %c0_41 = arith.constant 0 : index
      %37 = vector.load %arg10[%c0_40, %c0_41] : memref<1x512xf32, #tpu.memory_space<vmem>>, vector<1x512xf32>
      %38 = vector.broadcast %37 : vector<1x512xf32> to vector<16x512xf32>
      %39 = arith.addf %36, %38 : vector<16x512xf32>
      %cst_42 = arith.constant 0.000000e+00 : f32
      %40 = vector.broadcast %cst_42 : f32 to vector<16x512xf32>
      %41 = arith.maximumf %39, %40 : vector<16x512xf32>
      %42 = arith.subf %29, %35 : vector<16x512xf32>
      %43 = math.absf %42 : vector<16x512xf32>
      %44 = arith.truncf %43 : vector<16x512xf32> to vector<16x512xbf16>
      %45 = arith.subf %35, %41 : vector<16x512xf32>
      %46 = math.absf %45 : vector<16x512xf32>
      %47 = arith.truncf %46 : vector<16x512xf32> to vector<16x512xbf16>
      %48 = arith.subf %41, %29 : vector<16x512xf32>
      %49 = math.absf %48 : vector<16x512xf32>
      %50 = arith.truncf %49 : vector<16x512xf32> to vector<16x512xbf16>
      %c0_43 = arith.constant 0 : index
      %c0_44 = arith.constant 0 : index
      %51 = vector.load %arg11[%c0_43, %c0_44] : memref<512x512xbf16, #tpu.memory_space<vmem>>, vector<512x512xbf16>
      %cst_45 = arith.constant dense<0.000000e+00> : vector<16x512xf32>
      %52 = tpu.matmul %44, %51, %cst_45 {dimension_numbers = #tpu.dot_dimension_numbers<[1], [0], [0], [1], [0, 0, 1, 1], [], []>} : vector<16x512xbf16>, vector<512x512xbf16>, vector<16x512xf32> -> vector<16x512xf32>
      %c0_46 = arith.constant 0 : index
      %c0_47 = arith.constant 0 : index
      %53 = vector.load %arg12[%c0_46, %c0_47] : memref<512x512xbf16, #tpu.memory_space<vmem>>, vector<512x512xbf16>
      %cst_48 = arith.constant dense<0.000000e+00> : vector<16x512xf32>
      %54 = tpu.matmul %47, %53, %cst_48 {dimension_numbers = #tpu.dot_dimension_numbers<[1], [0], [0], [1], [0, 0, 1, 1], [], []>} : vector<16x512xbf16>, vector<512x512xbf16>, vector<16x512xf32> -> vector<16x512xf32>
      %55 = arith.addf %52, %54 : vector<16x512xf32>
      %c0_49 = arith.constant 0 : index
      %c0_50 = arith.constant 0 : index
      %56 = vector.load %arg13[%c0_49, %c0_50] : memref<512x512xbf16, #tpu.memory_space<vmem>>, vector<512x512xbf16>
      %cst_51 = arith.constant dense<0.000000e+00> : vector<16x512xf32>
      %57 = tpu.matmul %50, %56, %cst_51 {dimension_numbers = #tpu.dot_dimension_numbers<[1], [0], [0], [1], [0, 0, 1, 1], [], []>} : vector<16x512xbf16>, vector<512x512xbf16>, vector<16x512xf32> -> vector<16x512xf32>
      %58 = arith.addf %55, %57 : vector<16x512xf32>
      %c0_52 = arith.constant 0 : index
      %c0_53 = arith.constant 0 : index
      %59 = vector.load %arg14[%c0_52, %c0_53] : memref<1x512xf32, #tpu.memory_space<vmem>>, vector<1x512xf32>
      %60 = vector.broadcast %59 : vector<1x512xf32> to vector<16x512xf32>
      %61 = arith.addf %58, %60 : vector<16x512xf32>
      %cst_54 = arith.constant 0.000000e+00 : f32
      %62 = vector.broadcast %cst_54 : f32 to vector<16x512xf32>
      %63 = arith.maximumf %61, %62 : vector<16x512xf32>
      %64 = arith.truncf %63 : vector<16x512xf32> to vector<16x512xbf16>
      %c0_55 = arith.constant 0 : index
      %c0_56 = arith.constant 0 : index
      %65 = vector.load %arg15[%c0_55, %c0_56] : memref<512x128xbf16, #tpu.memory_space<vmem>>, vector<512x128xbf16>
      %cst_57 = arith.constant dense<0.000000e+00> : vector<16x128xf32>
      %66 = tpu.matmul %64, %65, %cst_57 {dimension_numbers = #tpu.dot_dimension_numbers<[1], [0], [0], [1], [0, 0, 1, 1], [], []>} : vector<16x512xbf16>, vector<512x128xbf16>, vector<16x128xf32> -> vector<16x128xf32>
      %c0_58 = arith.constant 0 : index
      %c0_59 = arith.constant 0 : index
      %67 = vector.load %arg16[%c0_58, %c0_59] : memref<1x128xf32, #tpu.memory_space<vmem>>, vector<1x128xf32>
      %68 = vector.broadcast %67 : vector<1x128xf32> to vector<16x128xf32>
      %69 = arith.addf %66, %68 : vector<16x128xf32>
      %70 = arith.negf %69 : vector<16x128xf32>
      %71 = math.exp %70 : vector<16x128xf32>
      %cst_60 = arith.constant 1.000000e+00 : f32
      %72 = vector.broadcast %cst_60 : f32 to vector<16x128xf32>
      %73 = arith.addf %72, %71 : vector<16x128xf32>
      %74 = arith.divf %72, %73 : vector<16x128xf32>
      %75 = arith.truncf %74 : vector<16x128xf32> to vector<16x128xbf16>
      %c0_61 = arith.constant 0 : index
      %c0_62 = arith.constant 0 : index
      %76 = vector.load %arg17[%c0_61, %c0_62] : memref<128x128xbf16, #tpu.memory_space<vmem>>, vector<128x128xbf16>
      %cst_63 = arith.constant dense<0.000000e+00> : vector<16x128xf32>
      %77 = tpu.matmul %75, %76, %cst_63 {dimension_numbers = #tpu.dot_dimension_numbers<[1], [0], [0], [1], [0, 0, 1, 1], [], []>} : vector<16x128xbf16>, vector<128x128xbf16>, vector<16x128xf32> -> vector<16x128xf32>
      %c0_64 = arith.constant 0 : index
      %c0_65 = arith.constant 0 : index
      %78 = vector.load %arg18[%c0_64, %c0_65] : memref<1x128xf32, #tpu.memory_space<vmem>>, vector<1x128xf32>
      %79 = vector.broadcast %78 : vector<1x128xf32> to vector<16x128xf32>
      %80 = arith.addf %77, %79 : vector<16x128xf32>
      %81 = arith.negf %80 : vector<16x128xf32>
      %82 = math.exp %81 : vector<16x128xf32>
      %cst_66 = arith.constant 1.000000e+00 : f32
      %83 = vector.broadcast %cst_66 : f32 to vector<16x128xf32>
      %84 = arith.addf %83, %82 : vector<16x128xf32>
      %85 = arith.divf %83, %84 : vector<16x128xf32>
      %86 = arith.truncf %85 : vector<16x128xf32> to vector<16x128xbf16>
      %c0_67 = arith.constant 0 : index
      %c0_68 = arith.constant 0 : index
      %87 = vector.load %arg19[%c0_67, %c0_68] : memref<16x128xbf16, #tpu.memory_space<vmem>>, vector<16x128xbf16>
      tpu.vector_store %arg19[%c0_67, %c0_68], %86 {strides = array<i32>} : memref<16x128xbf16, #tpu.memory_space<vmem>>, vector<16x128xbf16>,
    } else {
    }
    return
  }
  func.func @transform_0(%arg0: i32, %arg1: i32) -> (i32, i32) {
    %c0_i32 = arith.constant 0 : i32
    return %arg0, %arg1 : i32, i32
  }
  func.func @transform_1(%arg0: i32, %arg1: i32) -> (i32, i32) {
    %c0_i32 = arith.constant 0 : i32
    return %arg0, %arg1 : i32, i32
  }
  func.func @transform_2(%arg0: i32, %arg1: i32) -> (i32, i32) {
    %c0_i32 = arith.constant 0 : i32
    return %arg0, %arg1 : i32, i32
  }
  func.func @transform_3(%arg0: i32, %arg1: i32) -> (i32, i32) {
    %c0_i32 = arith.constant 0 : i32
    %c0_i32_0 = arith.constant 0 : i32
    return %arg1, %c0_i32 : i32, i32
  }
  func.func @transform_4(%arg0: i32, %arg1: i32) -> (i32, i32) {
    %c0_i32 = arith.constant 0 : i32
    %c0_i32_0 = arith.constant 0 : i32
    return %arg1, %c0_i32 : i32, i32
  }
  func.func @transform_5(%arg0: i32, %arg1: i32) -> (i32, i32) {
    %c0_i32 = arith.constant 0 : i32
    %c0_i32_0 = arith.constant 0 : i32
    return %arg1, %c0_i32 : i32, i32
  }
  func.func @transform_6(%arg0: i32, %arg1: i32) -> (i32, i32) {
    %c0_i32 = arith.constant 0 : i32
    %c0_i32_0 = arith.constant 0 : i32
    %c0_i32_1 = arith.constant 0 : i32
    return %c0_i32, %c0_i32_0 : i32, i32
  }
  func.func @transform_7(%arg0: i32, %arg1: i32) -> (i32, i32) {
    %c0_i32 = arith.constant 0 : i32
    %c0_i32_0 = arith.constant 0 : i32
    %c0_i32_1 = arith.constant 0 : i32
    return %c0_i32, %c0_i32_0 : i32, i32
  }
  func.func @transform_8(%arg0: i32, %arg1: i32) -> (i32, i32) {
    %c0_i32 = arith.constant 0 : i32
    %c0_i32_0 = arith.constant 0 : i32
    %c0_i32_1 = arith.constant 0 : i32
    return %c0_i32, %c0_i32_0 : i32, i32
  }
  func.func @transform_9(%arg0: i32, %arg1: i32) -> (i32, i32) {
    %c0_i32 = arith.constant 0 : i32
    %c0_i32_0 = arith.constant 0 : i32
    %c0_i32_1 = arith.constant 0 : i32
    return %c0_i32, %c0_i32_0 : i32, i32
  }
  func.func @transform_10(%arg0: i32, %arg1: i32) -> (i32, i32) {
    %c0_i32 = arith.constant 0 : i32
    %c0_i32_0 = arith.constant 0 : i32
    %c0_i32_1 = arith.constant 0 : i32
    return %c0_i32, %c0_i32_0 : i32, i32
  }
  func.func @transform_11(%arg0: i32, %arg1: i32) -> (i32, i32) {
    %c0_i32 = arith.constant 0 : i32
    %c0_i32_0 = arith.constant 0 : i32
    %c0_i32_1 = arith.constant 0 : i32
    return %c0_i32, %c0_i32_0 : i32, i32
  }
  func.func @transform_12(%arg0: i32, %arg1: i32) -> (i32, i32) {
    %c0_i32 = arith.constant 0 : i32
    %c0_i32_0 = arith.constant 0 : i32
    %c0_i32_1 = arith.constant 0 : i32
    return %c0_i32, %c0_i32_0 : i32, i32
  }
  func.func @transform_13(%arg0: i32, %arg1: i32) -> (i32, i32) {
    %c0_i32 = arith.constant 0 : i32
    %c0_i32_0 = arith.constant 0 : i32
    %c0_i32_1 = arith.constant 0 : i32
    return %c0_i32, %c0_i32_0 : i32, i32
  }
  func.func @transform_14(%arg0: i32, %arg1: i32) -> (i32, i32) {
    %c0_i32 = arith.constant 0 : i32
    %c0_i32_0 = arith.constant 0 : i32
    %c0_i32_1 = arith.constant 0 : i32
    return %c0_i32, %c0_i32_0 : i32, i32
  }
  func.func @transform_15(%arg0: i32, %arg1: i32) -> (i32, i32) {
    %c0_i32 = arith.constant 0 : i32
    %c0_i32_0 = arith.constant 0 : i32
    %c0_i32_1 = arith.constant 0 : i32
    return %c0_i32, %c0_i32_0 : i32, i32
  }
  func.func @transform_16(%arg0: i32, %arg1: i32) -> (i32, i32) {
    %c0_i32 = arith.constant 0 : i32
    %c0_i32_0 = arith.constant 0 : i32
    %c0_i32_1 = arith.constant 0 : i32
    return %c0_i32, %c0_i32_0 : i32, i32
  }
  func.func @transform_17(%arg0: i32, %arg1: i32) -> (i32, i32) {
    %c0_i32 = arith.constant 0 : i32
    %c0_i32_0 = arith.constant 0 : i32
    return %arg0, %c0_i32 : i32, i32
  }
}

</mosaic_0001>

<llo_original>
// kernel: tpu_custom_call.1
$region0: #{tpu_custom_call.1}
  #allocation0 [shape = 'u32[]', space=smem, size = 0x4, offset = 0x4, fixed_abs, tag = 'smem constant byte address 0x4 - core index']
  #allocation1 [shape = 'u32[72,128]{1,0:T(1,128)}', space=vmem, size = 0x9000, scoped, tag = 'internal scratch']
  #allocation2 [shape = 'f32[16,512]{1,0:T(8,128)}', space=vmem, size = 0x8000, scoped, tag = 'scratch operand']
  #allocation3 [shape = 'f32[16,512]{1,0:T(8,128)}', space=vmem, size = 0x8000, scoped, tag = 'scratch operand']
  #allocation4 [shape = 'f32[16,512]{1,0:T(8,128)}', space=vmem, size = 0x8000, scoped, tag = 'scratch operand']
  %s0 = inlined_call_operand.hbm [shape: bf16[16,768], index: 0, kind: input, shape index: {}]
  %s1 = inlined_call_operand.hbm [shape: bf16[16,768], index: 1, kind: input, shape index: {}]
  %s2 = inlined_call_operand.hbm [shape: bf16[16,768], index: 2, kind: input, shape index: {}]
  %s3 = inlined_call_operand.hbm [shape: bf16[768,512], index: 3, kind: input, shape index: {}]
  %s4 = inlined_call_operand.hbm [shape: bf16[768,512], index: 4, kind: input, shape index: {}]
  %s5 = inlined_call_operand.hbm [shape: bf16[768,512], index: 5, kind: input, shape index: {}]
  %s6 = inlined_call_operand.vmem [shape: f32[1,512], index: 6, kind: input, shape index: {}]
  %s7 = inlined_call_operand.hbm [shape: f32[1,512], index: 7, kind: input, shape index: {}]
  %s8 = inlined_call_operand.hbm [shape: f32[1,512], index: 8, kind: input, shape index: {}]
  %s9 = inlined_call_operand.hbm [shape: bf16[512,512], index: 9, kind: input, shape index: {}]
  %s10 = inlined_call_operand.hbm [shape: bf16[512,512], index: 10, kind: input, shape index: {}]
  %s11 = inlined_call_operand.hbm [shape: bf16[512,512], index: 11, kind: input, shape index: {}]
  %s12 = inlined_call_operand.vmem [shape: f32[1,512], index: 12, kind: input, shape index: {}]
  %s13 = inlined_call_operand.hbm [shape: bf16[512,128], index: 13, kind: input, shape index: {}]
  %s14 = inlined_call_operand.vmem [shape: f32[1,128], index: 14, kind: input, shape index: {}]
  %s15 = inlined_call_operand.hbm [shape: bf16[128,128], index: 15, kind: input, shape index: {}]
  %s16 = inlined_call_operand.vmem [shape: f32[1,128], index: 16, kind: input, shape index: {}]
  %s17 = inlined_call_operand.hbm [shape: bf16[16,128], index: 17, kind: output, shape index: {}]
  %s18 = sld [smem:[#allocation0]]
  $region138: #{tpu_custom_call.1} parent=0
    _
  %s20 = ssub.s32 1, %s18
  %s21 = scalar_select 0, %s20, %s18
  $region1: #{tpu_custom_call.1} parent=0
    #allocation5 [shape = 'u8[24576]{0}', space=vmem, size = 0x6000, scoped, tag = 'input window, operand 0, single buffered']
    #allocation6 [shape = 's32[1]{0}', space=sflag, size = 0x4, scoped, tag = 'scoped memory for tpu_custom_call.1']
    #allocation7 [shape = 's32[1]{0}', space=sflag, size = 0x4, scoped, tag = 'scoped memory for tpu_custom_call.1']
    #allocation8 [shape = 'u8[24576]{0}', space=vmem, size = 0x6000, scoped, tag = 'input window, operand 1, single buffered']
    #allocation9 [shape = 's32[1]{0}', space=sflag, size = 0x4, scoped, tag = 'scoped memory for tpu_custom_call.1']
    #allocation10 [shape = 'u8[24576]{0}', space=vmem, size = 0x6000, scoped, tag = 'input window, operand 2, single buffered']
    #allocation11 [shape = 'u8[786432]{0}', space=vmem, size = 0xc0000, scoped, tag = 'input window, operand 3, single buffered']
    #allocation12 [shape = 's32[1]{0}', space=sflag, size = 0x4, scoped, tag = 'scoped memory for tpu_custom_call.1']
    #allocation13 [shape = 'u8[786432]{0}', space=vmem, size = 0xc0000, scoped, tag = 'input window, operand 4, single buffered']
    #allocation14 [shape = 'u8[786432]{0}', space=vmem, size = 0xc0000, scoped, tag = 'input window, operand 5, single buffered']
    #allocation15 [shape = 's32[1]{0}', space=sflag, size = 0x4, scoped, tag = 'scoped memory for tpu_custom_call.1']
    #allocation16 [shape = 'u8[2048]{0}', space=vmem, size = 0x800, scoped, tag = 'input window, operand 7, single buffered']
    #allocation17 [shape = 'u8[2048]{0}', space=vmem, size = 0x800, scoped, tag = 'input window, operand 8, single buffered']
    #allocation18 [shape = 's32[1]{0}', space=sflag, size = 0x4, scoped, tag = 'scoped memory for tpu_custom_call.1']
    #allocation19 [shape = 'u8[524288]{0}', space=vmem, size = 0x80000, scoped, tag = 'input window, operand 9, single buffered']
    #allocation20 [shape = 'u8[524288]{0}', space=vmem, size = 0x80000, scoped, tag = 'input window, operand 10, single buffered']
    #allocation21 [shape = 's32[1]{0}', space=sflag, size = 0x4, scoped, tag = 'scoped memory for tpu_custom_call.1']
    #allocation22 [shape = 'u8[524288]{0}', space=vmem, size = 0x80000, scoped, tag = 'input window, operand 11, single buffered']
    #allocation23 [shape = 'u8[131072]{0}', space=vmem, size = 0x20000, scoped, tag = 'input window, operand 13, single buffered']
    #allocation24 [shape = 's32[1]{0}', space=sflag, size = 0x4, scoped, tag = 'scoped memory for tpu_custom_call.1']
    #allocation25 [shape = 'u8[32768]{0}', space=vmem, size = 0x8000, scoped, tag = 'input window, operand 15, single buffered']
    #allocation26 [shape = 'u8[4096]{0}', space=vmem, size = 0x1000, scoped, tag = 'output window, operand 0, single buffered']
    %22 = vsyncpa [#allocation6], 0
    %23 = vsyncpa [#allocation9], 0
    %24 = vsyncpa [#allocation12], 0
    %25 = vsyncpa [#allocation15], 0
    %26 = vsyncpa [#allocation18], 0
    %27 = vsyncpa [#allocation21], 0
    %28 = vsyncpa [#allocation24], 0
    %29 = vsyncpa [#allocation7], 0
    // Predicated region
    $region2: #{tpu_custom_call.1} parent=1 // pred_check
      _
    $region3: #{tpu_custom_call.1} parent=1 // pred_check_branch
      %31 = sbr.rel (0) target = $region5
    $region4: #{tpu_custom_call.1} parent=1 // pred_region
      %33 = vsyncadd [#allocation6], 0
      %s34 = sshll.u32 %s0, 4
      %s35 = int_to_ptr.hbm [resolvable:$true] %s34
      %s36 = sshll.u32 [#allocation5], 4
      %s37 = int_to_ptr.vmem [resolvable:$true] %s36
      %42 = dma.hbm_to_vmem [thread:$0]  %s35, 768, %s37, [#allocation6], 384, 384, 24
    $region5: #{tpu_custom_call.1} parent=1 // pred_fallthru
      _
    // Predicated region
    $region6: #{tpu_custom_call.1} parent=1 // pred_check
      _
    $region7: #{tpu_custom_call.1} parent=1 // pred_check_branch
      %44 = sbr.rel (0) target = $region9
    $region8: #{tpu_custom_call.1} parent=1 // pred_region
      %46 = vsyncadd [#allocation9], 0
      %s47 = sshll.u32 %s1, 4
      %s48 = int_to_ptr.hbm [resolvable:$true] %s47
      %s49 = sshll.u32 [#allocation8], 4
      %s50 = int_to_ptr.vmem [resolvable:$true] %s49
      %55 = dma.hbm_to_vmem [thread:$0]  %s48, 768, %s50, [#allocation9], 384, 384, 24
    $region9: #{tpu_custom_call.1} parent=1 // pred_fallthru
      _
    // Predicated region
    $region10: #{tpu_custom_call.1} parent=1 // pred_check
      _
    $region11: #{tpu_custom_call.1} parent=1 // pred_check_branch
      %57 = sbr.rel (0) target = $region13
    $region12: #{tpu_custom_call.1} parent=1 // pred_region
      %59 = vsyncadd [#allocation9], 0
      %s60 = sshll.u32 %s2, 4
      %s61 = int_to_ptr.hbm [resolvable:$true] %s60
      %s62 = sshll.u32 [#allocation10], 4
      %s63 = int_to_ptr.vmem [resolvable:$true] %s62
      %68 = dma.hbm_to_vmem [thread:$0]  %s61, 768, %s63, [#allocation9], 384, 384, 24
    $region13: #{tpu_custom_call.1} parent=1 // pred_fallthru
      _
    // Predicated region
    $region14: #{tpu_custom_call.1} parent=1 // pred_check
      _
    $region15: #{tpu_custom_call.1} parent=1 // pred_check_branch
      %70 = sbr.rel (0) target = $region17
    $region16: #{tpu_custom_call.1} parent=1 // pred_region
      %72 = vsyncadd [#allocation12], 0
      %s73 = sshll.u32 %s3, 4
      %s74 = int_to_ptr.hbm [resolvable:$true] %s73
      %s75 = sshll.u32 [#allocation11], 4
      %s76 = int_to_ptr.vmem [resolvable:$true] %s75
      %81 = dma.hbm_to_vmem [thread:$0]  %s74, 24576, %s76, [#allocation12], 256, 256, 16
    $region17: #{tpu_custom_call.1} parent=1 // pred_fallthru
      _
    // Predicated region
    $region18: #{tpu_custom_call.1} parent=1 // pred_check
      _
    $region19: #{tpu_custom_call.1} parent=1 // pred_check_branch
      %83 = sbr.rel (0) target = $region21
    $region20: #{tpu_custom_call.1} parent=1 // pred_region
      %85 = vsyncadd [#allocation12], 0
      %s86 = sshll.u32 %s4, 4
      %s87 = int_to_ptr.hbm [resolvable:$true] %s86
      %s88 = sshll.u32 [#allocation13], 4
      %s89 = int_to_ptr.vmem [resolvable:$true] %s88
      %94 = dma.hbm_to_vmem [thread:$0]  %s87, 24576, %s89, [#allocation12], 256, 256, 16
    $region21: #{tpu_custom_call.1} parent=1 // pred_fallthru
      _
    // Predicated region
    $region22: #{tpu_custom_call.1} parent=1 // pred_check
      _
    $region23: #{tpu_custom_call.1} parent=1 // pred_check_branch
      %96 = sbr.rel (0) target = $region25
    $region24: #{tpu_custom_call.1} parent=1 // pred_region
      %98 = vsyncadd [#allocation15], 0
      %s99 = sshll.u32 %s5, 4
      %s100 = int_to_ptr.hbm [resolvable:$true] %s99
      %s101 = sshll.u32 [#allocation14], 4
      %s102 = int_to_ptr.vmem [resolvable:$true] %s101
      %107 = dma.hbm_to_vmem [thread:$0]  %s100, 24576, %s102, [#allocation15], 256, 256, 16
    $region25: #{tpu_custom_call.1} parent=1 // pred_fallthru
      _
    // Predicated region
    $region26: #{tpu_custom_call.1} parent=1 // pred_check
      _
    $region27: #{tpu_custom_call.1} parent=1 // pred_check_branch
      %109 = sbr.rel (0) target = $region29
    $region28: #{tpu_custom_call.1} parent=1 // pred_region
      _
    $region29: #{tpu_custom_call.1} parent=1 // pred_fallthru
      _
    // Predicated region
    $region30: #{tpu_custom_call.1} parent=1 // pred_check
      _
    $region31: #{tpu_custom_call.1} parent=1 // pred_check_branch
      %111 = sbr.rel (0) target = $region33
    $region32: #{tpu_custom_call.1} parent=1 // pred_region
      %113 = vsyncadd [#allocation15], 0
      %s115 = sshll.u32 %s7, 4
      %s116 = int_to_ptr.hbm [resolvable:$true] %s115
      %s117 = sshll.u32 [#allocation16], 4
      %s118 = int_to_ptr.vmem [resolvable:$true] %s117
      %120 = dma.hbm_to_vmem [thread:$0]  %s116, 64, %s118, [#allocation15]
    $region33: #{tpu_custom_call.1} parent=1 // pred_fallthru
      _
    // Predicated region
    $region34: #{tpu_custom_call.1} parent=1 // pred_check
      _
    $region35: #{tpu_custom_call.1} parent=1 // pred_check_branch
      %122 = sbr.rel (0) target = $region37
    $region36: #{tpu_custom_call.1} parent=1 // pred_region
      %124 = vsyncadd [#allocation18], 0
      %s126 = sshll.u32 %s8, 4
      %s127 = int_to_ptr.hbm [resolvable:$true] %s126
      %s128 = sshll.u32 [#allocation17], 4
      %s129 = int_to_ptr.vmem [resolvable:$true] %s128
      %131 = dma.hbm_to_vmem [thread:$0]  %s127, 64, %s129, [#allocation18]
    $region37: #{tpu_custom_call.1} parent=1 // pred_fallthru
      _
    // Predicated region
    $region38: #{tpu_custom_call.1} parent=1 // pred_check
      _
    $region39: #{tpu_custom_call.1} parent=1 // pred_check_branch
      %133 = sbr.rel (0) target = $region41
    $region40: #{tpu_custom_call.1} parent=1 // pred_region
      %135 = vsyncadd [#allocation18], 0
      %s136 = sshll.u32 %s9, 4
      %s137 = int_to_ptr.hbm [resolvable:$true] %s136
      %s138 = sshll.u32 [#allocation19], 4
      %s139 = int_to_ptr.vmem [resolvable:$true] %s138
      %144 = dma.hbm_to_vmem [thread:$0]  %s137, 16384, %s139, [#allocation18], 256, 256, 16
    $region41: #{tpu_custom_call.1} parent=1 // pred_fallthru
      _
    // Predicated region
    $region42: #{tpu_custom_call.1} parent=1 // pred_check
      _
    $region43: #{tpu_custom_call.1} parent=1 // pred_check_branch
      %146 = sbr.rel (0) target = $region45
    $region44: #{tpu_custom_call.1} parent=1 // pred_region
      %148 = vsyncadd [#allocation21], 0
      %s149 = sshll.u32 %s10, 4
      %s150 = int_to_ptr.hbm [resolvable:$true] %s149
      %s151 = sshll.u32 [#allocation20], 4
      %s152 = int_to_ptr.vmem [resolvable:$true] %s151
      %157 = dma.hbm_to_vmem [thread:$0]  %s150, 16384, %s152, [#allocation21], 256, 256, 16
    $region45: #{tpu_custom_call.1} parent=1 // pred_fallthru
      _
    // Predicated region
    $region46: #{tpu_custom_call.1} parent=1 // pred_check
      _
    $region47: #{tpu_custom_call.1} parent=1 // pred_check_branch
      %159 = sbr.rel (0) target = $region49
    $region48: #{tpu_custom_call.1} parent=1 // pred_region
      %161 = vsyncadd [#allocation21], 0
      %s162 = sshll.u32 %s11, 4
      %s163 = int_to_ptr.hbm [resolvable:$true] %s162
      %s164 = sshll.u32 [#allocation22], 4
      %s165 = int_to_ptr.vmem [resolvable:$true] %s164
      %170 = dma.hbm_to_vmem [thread:$0]  %s163, 16384, %s165, [#allocation21], 256, 256, 16
    $region49: #{tpu_custom_call.1} parent=1 // pred_fallthru
      _
    // Predicated region
    $region50: #{tpu_custom_call.1} parent=1 // pred_check
      _
    $region51: #{tpu_custom_call.1} parent=1 // pred_check_branch
      %172 = sbr.rel (0) target = $region53
    $region52: #{tpu_custom_call.1} parent=1 // pred_region
      _
    $region53: #{tpu_custom_call.1} parent=1 // pred_fallthru
      _
    // Predicated region
    $region54: #{tpu_custom_call.1} parent=1 // pred_check
      _
    $region55: #{tpu_custom_call.1} parent=1 // pred_check_branch
      %174 = sbr.rel (0) target = $region57
    $region56: #{tpu_custom_call.1} parent=1 // pred_region
      %176 = vsyncadd [#allocation24], 0
      %s177 = sshll.u32 %s13, 4
      %s178 = int_to_ptr.hbm [resolvable:$true] %s177
      %s179 = sshll.u32 [#allocation23], 4
      %s180 = int_to_ptr.vmem [resolvable:$true] %s179
      %185 = dma.hbm_to_vmem [thread:$0]  %s178, 4096, %s180, [#allocation24], 64, 64, 4
    $region57: #{tpu_custom_call.1} parent=1 // pred_fallthru
      _
    // Predicated region
    $region58: #{tpu_custom_call.1} parent=1 // pred_check
      _
    $region59: #{tpu_custom_call.1} parent=1 // pred_check_branch
      %187 = sbr.rel (0) target = $region61
    $region60: #{tpu_custom_call.1} parent=1 // pred_region
      _
    $region61: #{tpu_custom_call.1} parent=1 // pred_fallthru
      _
    // Predicated region
    $region62: #{tpu_custom_call.1} parent=1 // pred_check
      _
    $region63: #{tpu_custom_call.1} parent=1 // pred_check_branch
      %189 = sbr.rel (0) target = $region65
    $region64: #{tpu_custom_call.1} parent=1 // pred_region
      %191 = vsyncadd [#allocation24], 0
      %s192 = sshll.u32 %s15, 4
      %s193 = int_to_ptr.hbm [resolvable:$true] %s192
      %s194 = sshll.u32 [#allocation25], 4
      %s195 = int_to_ptr.vmem [resolvable:$true] %s194
      %200 = dma.hbm_to_vmem [thread:$0]  %s193, 1024, %s195, [#allocation24], 64, 64, 4
    $region65: #{tpu_custom_call.1} parent=1 // pred_fallthru
      _
    // Predicated region
    $region66: #{tpu_custom_call.1} parent=1 // pred_check
      _
    $region67: #{tpu_custom_call.1} parent=1 // pred_check_branch
      %202 = sbr.rel (0) target = $region69
    $region68: #{tpu_custom_call.1} parent=1 // pred_region
      _
    $region69: #{tpu_custom_call.1} parent=1 // pred_fallthru
      _
    // Predicated region
    $region70: #{tpu_custom_call.1} parent=1 // pred_check
      _
    $region71: #{tpu_custom_call.1} parent=1 // pred_check_branch
      %204 = sbr.rel (0) target = $region73
    $region72: #{tpu_custom_call.1} parent=1 // pred_region
      %206 = dma.done [#allocation6], 768
    $region73: #{tpu_custom_call.1} parent=1 // pred_fallthru
      _
    // Predicated region
    $region74: #{tpu_custom_call.1} parent=1 // pred_check
      _
    $region75: #{tpu_custom_call.1} parent=1 // pred_check_branch
      %208 = sbr.rel (0) target = $region77
    $region76: #{tpu_custom_call.1} parent=1 // pred_region
      %210 = dma.done [#allocation9], 768
    $region77: #{tpu_custom_call.1} parent=1 // pred_fallthru
      _
    // Predicated region
    $region78: #{tpu_custom_call.1} parent=1 // pred_check
      _
    $region79: #{tpu_custom_call.1} parent=1 // pred_check_branch
      %212 = sbr.rel (0) target = $region81
    $region80: #{tpu_custom_call.1} parent=1 // pred_region
      %214 = dma.done [#allocation9], 768
    $region81: #{tpu_custom_call.1} parent=1 // pred_fallthru
      _
    // Predicated region
    $region82: #{tpu_custom_call.1} parent=1 // pred_check
      _
    $region83: #{tpu_custom_call.1} parent=1 // pred_check_branch
      %216 = sbr.rel (0) target = $region85
    $region84: #{tpu_custom_call.1} parent=1 // pred_region
      %218 = dma.done [#allocation12], 24576
    $region85: #{tpu_custom_call.1} parent=1 // pred_fallthru
      _
    // Predicated region
    $region86: #{tpu_custom_call.1} parent=1 // pred_check
      _
    $region87: #{tpu_custom_call.1} parent=1 // pred_check_branch
      %220 = sbr.rel (0) target = $region89
    $region88: #{tpu_custom_call.1} parent=1 // pred_region
      %222 = dma.done [#allocation12], 24576
    $region89: #{tpu_custom_call.1} parent=1 // pred_fallthru
      _
    // Predicated region
    $region90: #{tpu_custom_call.1} parent=1 // pred_check
      _
    $region91: #{tpu_custom_call.1} parent=1 // pred_check_branch
      %224 = sbr.rel (0) target = $region93
    $region92: #{tpu_custom_call.1} parent=1 // pred_region
      %226 = dma.done [#allocation15], 24576
    $region93: #{tpu_custom_call.1} parent=1 // pred_fallthru
      _
    // Predicated region
    $region94: #{tpu_custom_call.1} parent=1 // pred_check
      _
    $region95: #{tpu_custom_call.1} parent=1 // pred_check_branch
      %228 = sbr.rel (0) target = $region97
    $region96: #{tpu_custom_call.1} parent=1 // pred_region
      %230 = dma.done [#allocation15], 64
    $region97: #{tpu_custom_call.1} parent=1 // pred_fallthru
      _
    // Predicated region
    $region98: #{tpu_custom_call.1} parent=1 // pred_check
      _
    $region99: #{tpu_custom_call.1} parent=1 // pred_check_branch
      %232 = sbr.rel (0) target = $region101
    $region100: #{tpu_custom_call.1} parent=1 // pred_region
      %234 = dma.done [#allocation18], 64
    $region101: #{tpu_custom_call.1} parent=1 // pred_fallthru
      _
    // Predicated region
    $region102: #{tpu_custom_call.1} parent=1 // pred_check
      _
    $region103: #{tpu_custom_call.1} parent=1 // pred_check_branch
      %236 = sbr.rel (0) target = $region105
    $region104: #{tpu_custom_call.1} parent=1 // pred_region
      %238 = dma.done [#allocation18], 16384
    $region105: #{tpu_custom_call.1} parent=1 // pred_fallthru
      _
    // Predicated region
    $region106: #{tpu_custom_call.1} parent=1 // pred_check
      _
    $region107: #{tpu_custom_call.1} parent=1 // pred_check_branch
      %240 = sbr.rel (0) target = $region109
    $region108: #{tpu_custom_call.1} parent=1 // pred_region
      %242 = dma.done [#allocation21], 16384
    $region109: #{tpu_custom_call.1} parent=1 // pred_fallthru
      _
    // Predicated region
    $region110: #{tpu_custom_call.1} parent=1 // pred_check
      _
    $region111: #{tpu_custom_call.1} parent=1 // pred_check_branch
      %244 = sbr.rel (0) target = $region113
    $region112: #{tpu_custom_call.1} parent=1 // pred_region
      %246 = dma.done [#allocation21], 16384
    $region113: #{tpu_custom_call.1} parent=1 // pred_fallthru
      _
    // Predicated region
    $region114: #{tpu_custom_call.1} parent=1 // pred_check
      _
    $region115: #{tpu_custom_call.1} parent=1 // pred_check_branch
      %248 = sbr.rel (0) target = $region117
    $region116: #{tpu_custom_call.1} parent=1 // pred_region
      %250 = dma.done [#allocation24], 4096
    $region117: #{tpu_custom_call.1} parent=1 // pred_fallthru
      _
    // Predicated region
    $region118: #{tpu_custom_call.1} parent=1 // pred_check
      _
    $region119: #{tpu_custom_call.1} parent=1 // pred_check_branch
      %252 = sbr.rel (0) target = $region121
    $region120: #{tpu_custom_call.1} parent=1 // pred_region
      %254 = dma.done [#allocation24], 1024
    $region121: #{tpu_custom_call.1} parent=1 // pred_fallthru
      _
    %p255 = scmp.eq.s32.totalorder 0, 0
    // Predicated region
    $region122: #{tpu_custom_call.1} parent=1 // pred_check
      %p256 = pneg %p255
    $region123: #{tpu_custom_call.1} parent=1 // pred_check_branch
      %258 = sbr.rel (%p256) target = $region125
    $region124: #{tpu_custom_call.1} parent=1 // pred_region
      %259 = vst [vmem:[#allocation2] sm:$0xff] 0.0
      %260 = vst [vmem:[#allocation2 + $0x8] sm:$0xff] 0.0
      %261 = vst [vmem:[#allocation2 + $0x10] sm:$0xff] 0.0
      %262 = vst [vmem:[#allocation2 + $0x18] sm:$0xff] 0.0
      %263 = vst [vmem:[#allocation2 + $0x20] sm:$0xff] 0.0
      %264 = vst [vmem:[#allocation2 + $0x28] sm:$0xff] 0.0
      %265 = vst [vmem:[#allocation2 + $0x30] sm:$0xff] 0.0
      %266 = vst [vmem:[#allocation2 + $0x38] sm:$0xff] 0.0
      %267 = vst [vmem:[#allocation3] sm:$0xff] 0.0
      %268 = vst [vmem:[#allocation3 + $0x8] sm:$0xff] 0.0
      %269 = vst [vmem:[#allocation3 + $0x10] sm:$0xff] 0.0
      %270 = vst [vmem:[#allocation3 + $0x18] sm:$0xff] 0.0
      %271 = vst [vmem:[#allocation3 + $0x20] sm:$0xff] 0.0
      %272 = vst [vmem:[#allocation3 + $0x28] sm:$0xff] 0.0
      %273 = vst [vmem:[#allocation3 + $0x30] sm:$0xff] 0.0
      %274 = vst [vmem:[#allocation3 + $0x38] sm:$0xff] 0.0
      %275 = vst [vmem:[#allocation4] sm:$0xff] 0.0
      %276 = vst [vmem:[#allocation4 + $0x8] sm:$0xff] 0.0
      %277 = vst [vmem:[#allocation4 + $0x10] sm:$0xff] 0.0
      %278 = vst [vmem:[#allocation4 + $0x18] sm:$0xff] 0.0
      %279 = vst [vmem:[#allocation4 + $0x20] sm:$0xff] 0.0
      %280 = vst [vmem:[#allocation4 + $0x28] sm:$0xff] 0.0
      %281 = vst [vmem:[#allocation4 + $0x30] sm:$0xff] 0.0
      %282 = vst [vmem:[#allocation4 + $0x38] sm:$0xff] 0.0
    $region125: #{tpu_custom_call.1} parent=1 // pred_fallthru
      _
    %v283 = vld [vmem:[#allocation2] sm:$0xff]
    %v284 = vld [vmem:[#allocation2 + $0x8] sm:$0xff]
    %v285 = vld [vmem:[#allocation2 + $0x10] sm:$0xff]
    %v286 = vld [vmem:[#allocation2 + $0x18] sm:$0xff]
    %v287 = vld [vmem:[#allocation2 + $0x20] sm:$0xff]
    %v288 = vld [vmem:[#allocation2 + $0x28] sm:$0xff]
    %v289 = vld [vmem:[#allocation2 + $0x30] sm:$0xff]
    %v290 = vld [vmem:[#allocation2 + $0x38] sm:$0xff]
    %v291 = vld [vmem:[#allocation5] sm:$0xff]
    %v292 = vld [vmem:[#allocation5 + $0x8] sm:$0xff]
    %v293 = vld [vmem:[#allocation5 + $0x10] sm:$0xff]
    %v294 = vld [vmem:[#allocation5 + $0x18] sm:$0xff]
    %v295 = vld [vmem:[#allocation5 + $0x20] sm:$0xff]
    %v296 = vld [vmem:[#allocation5 + $0x28] sm:$0xff]
    %v297 = vld [vmem:[#allocation11] sm:$0xff]
    %v298 = vld [vmem:[#allocation11 + $0x8] sm:$0xff]
    %v299 = vld [vmem:[#allocation11 + $0x10] sm:$0xff]
    %v300 = vld [vmem:[#allocation11 + $0x18] sm:$0xff]
    %v301 = vld [vmem:[#allocation11 + $0x20] sm:$0xff]
    %v302 = vld [vmem:[#allocation11 + $0x28] sm:$0xff]
    %v303 = vld [vmem:[#allocation11 + $0x30] sm:$0xff]
    %v304 = vld [vmem:[#allocation11 + $0x38] sm:$0xff]
    %v305 = vld [vmem:[#allocation11 + $0x40] sm:$0xff]
    %v306 = vld [vmem:[#allocation11 + $0x48] sm:$0xff]
    %v307 = vld [vmem:[#allocation11 + $0x50] sm:$0xff]
    %v308 = vld [vmem:[#allocation11 + $0x58] sm:$0xff]
    %v309 = vld [vmem:[#allocation11 + $0x60] sm:$0xff]
    %v310 = vld [vmem:[#allocation11 + $0x68] sm:$0xff]
    %v311 = vld [vmem:[#allocation11 + $0x70] sm:$0xff]
    %v312 = vld [vmem:[#allocation11 + $0x78] sm:$0xff]
    %v313 = vld [vmem:[#allocation11 + $0x80] sm:$0xff]
    %v314 = vld [vmem:[#allocation11 + $0x88] sm:$0xff]
    %v315 = vld [vmem:[#allocation11 + $0x90] sm:$0xff]
    %v316 = vld [vmem:[#allocation11 + $0x98] sm:$0xff]
    %v317 = vld [vmem:[#allocation11 + $0xa0] sm:$0xff]
    %v318 = vld [vmem:[#allocation11 + $0xa8] sm:$0xff]
    %v319 = vld [vmem:[#allocation11 + $0xb0] sm:$0xff]
    %v320 = vld [vmem:[#allocation11 + $0xb8] sm:$0xff]
    %v321 = vld [vmem:[#allocation11 + $0xc0] sm:$0xff]
    %v322 = vld [vmem:[#allocation11 + $0xc8] sm:$0xff]
    %v323 = vld [vmem:[#allocation11 + $0xd0] sm:$0xff]
    %v324 = vld [vmem:[#allocation11 + $0xd8] sm:$0xff]
    %v325 = vld [vmem:[#allocation11 + $0xe0] sm:$0xff]
    %v326 = vld [vmem:[#allocation11 + $0xe8] sm:$0xff]
    %v327 = vld [vmem:[#allocation11 + $0xf0] sm:$0xff]
    %v328 = vld [vmem:[#allocation11 + $0xf8] sm:$0xff]
    %v329 = vld [vmem:[#allocation11 + $0x100] sm:$0xff]
    %v330 = vld [vmem:[#allocation11 + $0x108] sm:$0xff]
    %v331 = vld [vmem:[#allocation11 + $0x110] sm:$0xff]
    %v332 = vld [vmem:[#allocation11 + $0x118] sm:$0xff]
    %v333 = vld [vmem:[#allocation11 + $0x120] sm:$0xff]
    %v334 = vld [vmem:[#allocation11 + $0x128] sm:$0xff]
    %v335 = vld [vmem:[#allocation11 + $0x130] sm:$0xff]
    %v336 = vld [vmem:[#allocation11 + $0x138] sm:$0xff]
    %v337 = vld [vmem:[#allocation11 + $0x140] sm:$0xff]
    %v338 = vld [vmem:[#allocation11 + $0x148] sm:$0xff]
    %v339 = vld [vmem:[#allocation11 + $0x150] sm:$0xff]
    %v340 = vld [vmem:[#allocation11 + $0x158] sm:$0xff]
    %v341 = vld [vmem:[#allocation11 + $0x160] sm:$0xff]
    %v342 = vld [vmem:[#allocation11 + $0x168] sm:$0xff]
    %v343 = vld [vmem:[#allocation11 + $0x170] sm:$0xff]
    %v344 = vld [vmem:[#allocation11 + $0x178] sm:$0xff]
    %v345 = vld [vmem:[#allocation11 + $0x180] sm:$0xff]
    %v346 = vld [vmem:[#allocation11 + $0x188] sm:$0xff]
    %v347 = vld [vmem:[#allocation11 + $0x190] sm:$0xff]
    %v348 = vld [vmem:[#allocation11 + $0x198] sm:$0xff]
    %v349 = vld [vmem:[#allocation11 + $0x1a0] sm:$0xff]
    %v350 = vld [vmem:[#allocation11 + $0x1a8] sm:$0xff]
    %v351 = vld [vmem:[#allocation11 + $0x1b0] sm:$0xff]
    %v352 = vld [vmem:[#allocation11 + $0x1b8] sm:$0xff]
    %v353 = vld [vmem:[#allocation11 + $0x1c0] sm:$0xff]
    %v354 = vld [vmem:[#allocation11 + $0x1c8] sm:$0xff]
    %v355 = vld [vmem:[#allocation11 + $0x1d0] sm:$0xff]
    %v356 = vld [vmem:[#allocation11 + $0x1d8] sm:$0xff]
    %v357 = vld [vmem:[#allocation11 + $0x1e0] sm:$0xff]
    %v358 = vld [vmem:[#allocation11 + $0x1e8] sm:$0xff]
    %v359 = vld [vmem:[#allocation11 + $0x1f0] sm:$0xff]
    %v360 = vld [vmem:[#allocation11 + $0x1f8] sm:$0xff]
    %v361 = vld [vmem:[#allocation11 + $0x200] sm:$0xff]
    %v362 = vld [vmem:[#allocation11 + $0x208] sm:$0xff]
    %v363 = vld [vmem:[#allocation11 + $0x210] sm:$0xff]
    %v364 = vld [vmem:[#allocation11 + $0x218] sm:$0xff]
    %v365 = vld [vmem:[#allocation11 + $0x220] sm:$0xff]
    %v366 = vld [vmem:[#allocation11 + $0x228] sm:$0xff]
    %v367 = vld [vmem:[#allocation11 + $0x230] sm:$0xff]
    %v368 = vld [vmem:[#allocation11 + $0x238] sm:$0xff]
    %v369 = vld [vmem:[#allocation11 + $0x240] sm:$0xff]
    %v370 = vld [vmem:[#allocation11 + $0x248] sm:$0xff]
    %v371 = vld [vmem:[#allocation11 + $0x250] sm:$0xff]
    %v372 = vld [vmem:[#allocation11 + $0x258] sm:$0xff]
    %v373 = vld [vmem:[#allocation11 + $0x260] sm:$0xff]
    %v374 = vld [vmem:[#allocation11 + $0x268] sm:$0xff]
    %v375 = vld [vmem:[#allocation11 + $0x270] sm:$0xff]
    %v376 = vld [vmem:[#allocation11 + $0x278] sm:$0xff]
    %v377 = vld [vmem:[#allocation11 + $0x280] sm:$0xff]
    %v378 = vld [vmem:[#allocation11 + $0x288] sm:$0xff]
    %v379 = vld [vmem:[#allocation11 + $0x290] sm:$0xff]
    %v380 = vld [vmem:[#allocation11 + $0x298] sm:$0xff]
    %v381 = vld [vmem:[#allocation11 + $0x2a0] sm:$0xff]
    %v382 = vld [vmem:[#allocation11 + $0x2a8] sm:$0xff]
    %v383 = vld [vmem:[#allocation11 + $0x2b0] sm:$0xff]
    %v384 = vld [vmem:[#allocation11 + $0x2b8] sm:$0xff]
    %v385 = vld [vmem:[#allocation11 + $0x2c0] sm:$0xff]
    %v386 = vld [vmem:[#allocation11 + $0x2c8] sm:$0xff]
    %v387 = vld [vmem:[#allocation11 + $0x2d0] sm:$0xff]
    %v388 = vld [vmem:[#allocation11 + $0x2d8] sm:$0xff]
    %v389 = vld [vmem:[#allocation11 + $0x2e0] sm:$0xff]
    %v390 = vld [vmem:[#allocation11 + $0x2e8] sm:$0xff]
    %v391 = vld [vmem:[#allocation11 + $0x2f0] sm:$0xff]
    %v392 = vld [vmem:[#allocation11 + $0x2f8] sm:$0xff]
    %v393 = vld [vmem:[#allocation11 + $0x300] sm:$0xff]
    %v394 = vld [vmem:[#allocation11 + $0x308] sm:$0xff]
    %v395 = vld [vmem:[#allocation11 + $0x310] sm:$0xff]
    %v396 = vld [vmem:[#allocation11 + $0x318] sm:$0xff]
    %v397 = vld [vmem:[#allocation11 + $0x320] sm:$0xff]
    %v398 = vld [vmem:[#allocation11 + $0x328] sm:$0xff]
    %v399 = vld [vmem:[#allocation11 + $0x330] sm:$0xff]
    %v400 = vld [vmem:[#allocation11 + $0x338] sm:$0xff]
    %v401 = vld [vmem:[#allocation11 + $0x340] sm:$0xff]
    %v402 = vld [vmem:[#allocation11 + $0x348] sm:$0xff]
    %v403 = vld [vmem:[#allocation11 + $0x350] sm:$0xff]
    %v404 = vld [vmem:[#allocation11 + $0x358] sm:$0xff]
    %v405 = vld [vmem:[#allocation11 + $0x360] sm:$0xff]
    %v406 = vld [vmem:[#allocation11 + $0x368] sm:$0xff]
    %v407 = vld [vmem:[#allocation11 + $0x370] sm:$0xff]
    %v408 = vld [vmem:[#allocation11 + $0x378] sm:$0xff]
    %v409 = vld [vmem:[#allocation11 + $0x380] sm:$0xff]
    %v410 = vld [vmem:[#allocation11 + $0x388] sm:$0xff]
    %v411 = vld [vmem:[#allocation11 + $0x390] sm:$0xff]
    %v412 = vld [vmem:[#allocation11 + $0x398] sm:$0xff]
    %v413 = vld [vmem:[#allocation11 + $0x3a0] sm:$0xff]
    %v414 = vld [vmem:[#allocation11 + $0x3a8] sm:$0xff]
    %v415 = vld [vmem:[#allocation11 + $0x3b0] sm:$0xff]
    %v416 = vld [vmem:[#allocation11 + $0x3b8] sm:$0xff]
    %v417 = vld [vmem:[#allocation11 + $0x3c0] sm:$0xff]
    %v418 = vld [vmem:[#allocation11 + $0x3c8] sm:$0xff]
    %v419 = vld [vmem:[#allocation11 + $0x3d0] sm:$0xff]
    %v420 = vld [vmem:[#allocation11 + $0x3d8] sm:$0xff]
    %v421 = vld [vmem:[#allocation11 + $0x3e0] sm:$0xff]
    %v422 = vld [vmem:[#allocation11 + $0x3e8] sm:$0xff]
    %v423 = vld [vmem:[#allocation11 + $0x3f0] sm:$0xff]
    %v424 = vld [vmem:[#allocation11 + $0x3f8] sm:$0xff]
    %v425 = vld [vmem:[#allocation11 + $0x400] sm:$0xff]
    %v426 = vld [vmem:[#allocation11 + $0x408] sm:$0xff]
    %v427 = vld [vmem:[#allocation11 + $0x410] sm:$0xff]
    %v428 = vld [vmem:[#allocation11 + $0x418] sm:$0xff]
    %v429 = vld [vmem:[#allocation11 + $0x420] sm:$0xff]
    %v430 = vld [vmem:[#allocation11 + $0x428] sm:$0xff]
    %v431 = vld [vmem:[#allocation11 + $0x430] sm:$0xff]
    %v432 = vld [vmem:[#allocation11 + $0x438] sm:$0xff]
    %v433 = vld [vmem:[#allocation11 + $0x440] sm:$0xff]
    %v434 = vld [vmem:[#allocation11 + $0x448] sm:$0xff]
    %v435 = vld [vmem:[#allocation11 + $0x450] sm:$0xff]
    %v436 = vld [vmem:[#allocation11 + $0x458] sm:$0xff]
    %v437 = vld [vmem:[#allocation11 + $0x460] sm:$0xff]
    %v438 = vld [vmem:[#allocation11 + $0x468] sm:$0xff]
    %v439 = vld [vmem:[#allocation11 + $0x470] sm:$0xff]
    %v440 = vld [vmem:[#allocation11 + $0x478] sm:$0xff]
    %v441 = vld [vmem:[#allocation11 + $0x480] sm:$0xff]
    %v442 = vld [vmem:[#allocation11 + $0x488] sm:$0xff]
    %v443 = vld [vmem:[#allocation11 + $0x490] sm:$0xff]
    %v444 = vld [vmem:[#allocation11 + $0x498] sm:$0xff]
    %v445 = vld [vmem:[#allocation11 + $0x4a0] sm:$0xff]
    %v446 = vld [vmem:[#allocation11 + $0x4a8] sm:$0xff]
    %v447 = vld [vmem:[#allocation11 + $0x4b0] sm:$0xff]
    %v448 = vld [vmem:[#allocation11 + $0x4b8] sm:$0xff]
    %v449 = vld [vmem:[#allocation11 + $0x4c0] sm:$0xff]
    %v450 = vld [vmem:[#allocation11 + $0x4c8] sm:$0xff]
    %v451 = vld [vmem:[#allocation11 + $0x4d0] sm:$0xff]
    %v452 = vld [vmem:[#allocation11 + $0x4d8] sm:$0xff]
    %v453 = vld [vmem:[#allocation11 + $0x4e0] sm:$0xff]
    %v454 = vld [vmem:[#allocation11 + $0x4e8] sm:$0xff]
    %v455 = vld [vmem:[#allocation11 + $0x4f0] sm:$0xff]
    %v456 = vld [vmem:[#allocation11 + $0x4f8] sm:$0xff]
    %v457 = vld [vmem:[#allocation11 + $0x500] sm:$0xff]
    %v458 = vld [vmem:[#allocation11 + $0x508] sm:$0xff]
    %v459 = vld [vmem:[#allocation11 + $0x510] sm:$0xff]
    %v460 = vld [vmem:[#allocation11 + $0x518] sm:$0xff]
    %v461 = vld [vmem:[#allocation11 + $0x520] sm:$0xff]
    %v462 = vld [vmem:[#allocation11 + $0x528] sm:$0xff]
    %v463 = vld [vmem:[#allocation11 + $0x530] sm:$0xff]
    %v464 = vld [vmem:[#allocation11 + $0x538] sm:$0xff]
    %v465 = vld [vmem:[#allocation11 + $0x540] sm:$0xff]
    %v466 = vld [vmem:[#allocation11 + $0x548] sm:$0xff]
    %v467 = vld [vmem:[#allocation11 + $0x550] sm:$0xff]
    %v468 = vld [vmem:[#allocation11 + $0x558] sm:$0xff]
    %v469 = vld [vmem:[#allocation11 + $0x560] sm:$0xff]
    %v470 = vld [vmem:[#allocation11 + $0x568] sm:$0xff]
    %v471 = vld [vmem:[#allocation11 + $0x570] sm:$0xff]
    %v472 = vld [vmem:[#allocation11 + $0x578] sm:$0xff]
    %v473 = vld [vmem:[#allocation11 + $0x580] sm:$0xff]
    %v474 = vld [vmem:[#allocation11 + $0x588] sm:$0xff]
    %v475 = vld [vmem:[#allocation11 + $0x590] sm:$0xff]
    %v476 = vld [vmem:[#allocation11 + $0x598] sm:$0xff]
    %v477 = vld [vmem:[#allocation11 + $0x5a0] sm:$0xff]
    %v478 = vld [vmem:[#allocation11 + $0x5a8] sm:$0xff]
    %v479 = vld [vmem:[#allocation11 + $0x5b0] sm:$0xff]
    %v480 = vld [vmem:[#allocation11 + $0x5b8] sm:$0xff]
    %v481 = vld [vmem:[#allocation11 + $0x5c0] sm:$0xff]
    %v482 = vld [vmem:[#allocation11 + $0x5c8] sm:$0xff]
    %v483 = vld [vmem:[#allocation11 + $0x5d0] sm:$0xff]
    %v484 = vld [vmem:[#allocation11 + $0x5d8] sm:$0xff]
    %v485 = vld [vmem:[#allocation11 + $0x5e0] sm:$0xff]
    %v486 = vld [vmem:[#allocation11 + $0x5e8] sm:$0xff]
    %v487 = vld [vmem:[#allocation11 + $0x5f0] sm:$0xff]
    %v488 = vld [vmem:[#allocation11 + $0x5f8] sm:$0xff]
    %v495 = vunpack.c.l.b16 %v291
    %v496 = vunpack.c.h.b16 %v291
    %v497 = vunpack.c.l.b16 %v292
    %v498 = vunpack.c.h.b16 %v292
    %v499 = vunpack.c.l.b16 %v293
    %v500 = vunpack.c.h.b16 %v293
    %v501 = vunpack.c.l.b16 %v294
    %v502 = vunpack.c.h.b16 %v294
    %v503 = vunpack.c.l.b16 %v295
    %v504 = vunpack.c.h.b16 %v295
    %v505 = vunpack.c.l.b16 %v296
    %v506 = vunpack.c.h.b16 %v296
    %v507 = vpack.c.b16 %v501, %v495
    %v508 = vpack.c.b16 %v502, %v496
    %v509 = vpack.c.b16 %v503, %v497
    %v510 = vpack.c.b16 %v504, %v498
    %v511 = vpack.c.b16 %v505, %v499
    %v512 = vpack.c.b16 %v506, %v500
    %v711 = vunpack.c.l.b16 %v297
    %v712 = vunpack.c.h.b16 %v297
    %v713 = vunpack.c.l.b16 %v298
    %v714 = vunpack.c.h.b16 %v298
    %v715 = vunpack.c.l.b16 %v299
    %v716 = vunpack.c.h.b16 %v299
    %v717 = vunpack.c.l.b16 %v300
    %v718 = vunpack.c.h.b16 %v300
    %v719 = vunpack.c.l.b16 %v301
    %v720 = vunpack.c.h.b16 %v301
    %v721 = vunpack.c.l.b16 %v302
    %v722 = vunpack.c.h.b16 %v302
    %v723 = vunpack.c.l.b16 %v303
    %v724 = vunpack.c.h.b16 %v303
    %v725 = vunpack.c.l.b16 %v304
    %v726 = vunpack.c.h.b16 %v304
    %v727 = vunpack.c.l.b16 %v305
    %v728 = vunpack.c.h.b16 %v305
    %v729 = vunpack.c.l.b16 %v306
    %v730 = vunpack.c.h.b16 %v306
    %v731 = vunpack.c.l.b16 %v307
    %v732 = vunpack.c.h.b16 %v307
    %v733 = vunpack.c.l.b16 %v308
    %v734 = vunpack.c.h.b16 %v308
    %v735 = vunpack.c.l.b16 %v309
    %v736 = vunpack.c.h.b16 %v309
    %v737 = vunpack.c.l.b16 %v310
    %v738 = vunpack.c.h.b16 %v310
    %v739 = vunpack.c.l.b16 %v311
    %v740 = vunpack.c.h.b16 %v311
    %v741 = vunpack.c.l.b16 %v312
    %v742 = vunpack.c.h.b16 %v312
    %v743 = vunpack.c.l.b16 %v313
    %v744 = vunpack.c.h.b16 %v313
    %v745 = vunpack.c.l.b16 %v314
    %v746 = vunpack.c.h.b16 %v314
    %v747 = vunpack.c.l.b16 %v315
    %v748 = vunpack.c.h.b16 %v315
    %v749 = vunpack.c.l.b16 %v316
    %v750 = vunpack.c.h.b16 %v316
    %v751 = vunpack.c.l.b16 %v317
    %v752 = vunpack.c.h.b16 %v317
    %v753 = vunpack.c.l.b16 %v318
    %v754 = vunpack.c.h.b16 %v318
    %v755 = vunpack.c.l.b16 %v319
    %v756 = vunpack.c.h.b16 %v319
    %v757 = vunpack.c.l.b16 %v320
    %v758 = vunpack.c.h.b16 %v320
    %v759 = vunpack.c.l.b16 %v321
    %v760 = vunpack.c.h.b16 %v321
    %v761 = vunpack.c.l.b16 %v322
    %v762 = vunpack.c.h.b16 %v322
    %v763 = vunpack.c.l.b16 %v323
    %v764 = vunpack.c.h.b16 %v323
    %v765 = vunpack.c.l.b16 %v324
    %v766 = vunpack.c.h.b16 %v324
    %v767 = vunpack.c.l.b16 %v325
    %v768 = vunpack.c.h.b16 %v325
    %v769 = vunpack.c.l.b16 %v326
    %v770 = vunpack.c.h.b16 %v326
    %v771 = vunpack.c.l.b16 %v327
    %v772 = vunpack.c.h.b16 %v327
    %v773 = vunpack.c.l.b16 %v328
    %v774 = vunpack.c.h.b16 %v328
    %v775 = vunpack.c.l.b16 %v329
    %v776 = vunpack.c.h.b16 %v329
    %v777 = vunpack.c.l.b16 %v330
    %v778 = vunpack.c.h.b16 %v330
    %v779 = vunpack.c.l.b16 %v331
    %v780 = vunpack.c.h.b16 %v331
    %v781 = vunpack.c.l.b16 %v332
    %v782 = vunpack.c.h.b16 %v332
    %v783 = vunpack.c.l.b16 %v333
    %v784 = vunpack.c.h.b16 %v333
    %v785 = vunpack.c.l.b16 %v334
    %v786 = vunpack.c.h.b16 %v334
    %v787 = vunpack.c.l.b16 %v335
    %v788 = vunpack.c.h.b16 %v335
    %v789 = vunpack.c.l.b16 %v336
    %v790 = vunpack.c.h.b16 %v336
    %v791 = vunpack.c.l.b16 %v337
    %v792 = vunpack.c.h.b16 %v337
    %v793 = vunpack.c.l.b16 %v338
    %v794 = vunpack.c.h.b16 %v338
    %v795 = vunpack.c.l.b16 %v339
    %v796 = vunpack.c.h.b16 %v339
    %v797 = vunpack.c.l.b16 %v340
    %v798 = vunpack.c.h.b16 %v340
    %v799 = vunpack.c.l.b16 %v341
    %v800 = vunpack.c.h.b16 %v341
    %v801 = vunpack.c.l.b16 %v342
    %v802 = vunpack.c.h.b16 %v342
    %v803 = vunpack.c.l.b16 %v343
    %v804 = vunpack.c.h.b16 %v343
    %v805 = vunpack.c.l.b16 %v344
    %v806 = vunpack.c.h.b16 %v344
    %v807 = vunpack.c.l.b16 %v345
    %v808 = vunpack.c.h.b16 %v345
    %v809 = vunpack.c.l.b16 %v346
    %v810 = vunpack.c.h.b16 %v346
    %v811 = vunpack.c.l.b16 %v347
    %v812 = vunpack.c.h.b16 %v347
    %v813 = vunpack.c.l.b16 %v348
    %v814 = vunpack.c.h.b16 %v348
    %v815 = vunpack.c.l.b16 %v349
    %v816 = vunpack.c.h.b16 %v349
    %v817 = vunpack.c.l.b16 %v350
    %v818 = vunpack.c.h.b16 %v350
    %v819 = vunpack.c.l.b16 %v351
    %v820 = vunpack.c.h.b16 %v351
    %v821 = vunpack.c.l.b16 %v352
    %v822 = vunpack.c.h.b16 %v352
    %v823 = vunpack.c.l.b16 %v353
    %v824 = vunpack.c.h.b16 %v353
    %v825 = vunpack.c.l.b16 %v354
    %v826 = vunpack.c.h.b16 %v354
    %v827 = vunpack.c.l.b16 %v355
    %v828 = vunpack.c.h.b16 %v355
    %v829 = vunpack.c.l.b16 %v356
    %v830 = vunpack.c.h.b16 %v356
    %v831 = vunpack.c.l.b16 %v357
    %v832 = vunpack.c.h.b16 %v357
    %v833 = vunpack.c.l.b16 %v358
    %v834 = vunpack.c.h.b16 %v358
    %v835 = vunpack.c.l.b16 %v359
    %v836 = vunpack.c.h.b16 %v359
    %v837 = vunpack.c.l.b16 %v360
    %v838 = vunpack.c.h.b16 %v360
    %v839 = vunpack.c.l.b16 %v361
    %v840 = vunpack.c.h.b16 %v361
    %v841 = vunpack.c.l.b16 %v362
    %v842 = vunpack.c.h.b16 %v362
    %v843 = vunpack.c.l.b16 %v363
    %v844 = vunpack.c.h.b16 %v363
    %v845 = vunpack.c.l.b16 %v364
    %v846 = vunpack.c.h.b16 %v364
    %v847 = vunpack.c.l.b16 %v365
    %v848 = vunpack.c.h.b16 %v365
    %v849 = vunpack.c.l.b16 %v366
    %v850 = vunpack.c.h.b16 %v366
    %v851 = vunpack.c.l.b16 %v367
    %v852 = vunpack.c.h.b16 %v367
    %v853 = vunpack.c.l.b16 %v368
    %v854 = vunpack.c.h.b16 %v368
    %v855 = vunpack.c.l.b16 %v369
    %v856 = vunpack.c.h.b16 %v369
    %v857 = vunpack.c.l.b16 %v370
    %v858 = vunpack.c.h.b16 %v370
    %v859 = vunpack.c.l.b16 %v371
    %v860 = vunpack.c.h.b16 %v371
    %v861 = vunpack.c.l.b16 %v372
    %v862 = vunpack.c.h.b16 %v372
    %v863 = vunpack.c.l.b16 %v373
    %v864 = vunpack.c.h.b16 %v373
    %v865 = vunpack.c.l.b16 %v374
    %v866 = vunpack.c.h.b16 %v374
    %v867 = vunpack.c.l.b16 %v375
    %v868 = vunpack.c.h.b16 %v375
    %v869 = vunpack.c.l.b16 %v376
    %v870 = vunpack.c.h.b16 %v376
    %v871 = vunpack.c.l.b16 %v377
    %v872 = vunpack.c.h.b16 %v377
    %v873 = vunpack.c.l.b16 %v378
    %v874 = vunpack.c.h.b16 %v378
    %v875 = vunpack.c.l.b16 %v379
    %v876 = vunpack.c.h.b16 %v379
    %v877 = vunpack.c.l.b16 %v380
    %v878 = vunpack.c.h.b16 %v380
    %v879 = vunpack.c.l.b16 %v381
    %v880 = vunpack.c.h.b16 %v381
    %v881 = vunpack.c.l.b16 %v382
    %v882 = vunpack.c.h.b16 %v382
    %v883 = vunpack.c.l.b16 %v383
    %v884 = vunpack.c.h.b16 %v383
    %v885 = vunpack.c.l.b16 %v384
    %v886 = vunpack.c.h.b16 %v384
    %v887 = vunpack.c.l.b16 %v385
    %v888 = vunpack.c.h.b16 %v385
    %v889 = vunpack.c.l.b16 %v386
    %v890 = vunpack.c.h.b16 %v386
    %v891 = vunpack.c.l.b16 %v387
    %v892 = vunpack.c.h.b16 %v387
    %v893 = vunpack.c.l.b16 %v388
    %v894 = vunpack.c.h.b16 %v388
    %v895 = vunpack.c.l.b16 %v389
    %v896 = vunpack.c.h.b16 %v389
    %v897 = vunpack.c.l.b16 %v390
    %v898 = vunpack.c.h.b16 %v390
    %v899 = vunpack.c.l.b16 %v391
    %v900 = vunpack.c.h.b16 %v391
    %v901 = vunpack.c.l.b16 %v392
    %v902 = vunpack.c.h.b16 %v392
    %v903 = vunpack.c.l.b16 %v393
    %v904 = vunpack.c.h.b16 %v393
    %v905 = vunpack.c.l.b16 %v394
    %v906 = vunpack.c.h.b16 %v394
    %v907 = vunpack.c.l.b16 %v395
    %v908 = vunpack.c.h.b16 %v395
    %v909 = vunpack.c.l.b16 %v396
    %v910 = vunpack.c.h.b16 %v396
    %v911 = vunpack.c.l.b16 %v397
    %v912 = vunpack.c.h.b16 %v397
    %v913 = vunpack.c.l.b16 %v398
    %v914 = vunpack.c.h.b16 %v398
    %v915 = vunpack.c.l.b16 %v399
    %v916 = vunpack.c.h.b16 %v399
    %v917 = vunpack.c.l.b16 %v400
    %v918 = vunpack.c.h.b16 %v400
    %v919 = vunpack.c.l.b16 %v401
    %v920 = vunpack.c.h.b16 %v401
    %v921 = vunpack.c.l.b16 %v402
    %v922 = vunpack.c.h.b16 %v402
    %v923 = vunpack.c.l.b16 %v403
    %v924 = vunpack.c.h.b16 %v403
    %v925 = vunpack.c.l.b16 %v404
    %v926 = vunpack.c.h.b16 %v404
    %v927 = vunpack.c.l.b16 %v405
    %v928 = vunpack.c.h.b16 %v405
    %v929 = vunpack.c.l.b16 %v406
    %v930 = vunpack.c.h.b16 %v406
    %v931 = vunpack.c.l.b16 %v407
    %v932 = vunpack.c.h.b16 %v407
    %v933 = vunpack.c.l.b16 %v408
    %v934 = vunpack.c.h.b16 %v408
    %v935 = vunpack.c.l.b16 %v409
    %v936 = vunpack.c.h.b16 %v409
    %v937 = vunpack.c.l.b16 %v410
    %v938 = vunpack.c.h.b16 %v410
    %v939 = vunpack.c.l.b16 %v411
    %v940 = vunpack.c.h.b16 %v411
    %v941 = vunpack.c.l.b16 %v412
    %v942 = vunpack.c.h.b16 %v412
    %v943 = vunpack.c.l.b16 %v413
    %v944 = vunpack.c.h.b16 %v413
    %v945 = vunpack.c.l.b16 %v414
    %v946 = vunpack.c.h.b16 %v414
    %v947 = vunpack.c.l.b16 %v415
    %v948 = vunpack.c.h.b16 %v415
    %v949 = vunpack.c.l.b16 %v416
    %v950 = vunpack.c.h.b16 %v416
    %v951 = vunpack.c.l.b16 %v417
    %v952 = vunpack.c.h.b16 %v417
    %v953 = vunpack.c.l.b16 %v418
    %v954 = vunpack.c.h.b16 %v418
    %v955 = vunpack.c.l.b16 %v419
    %v956 = vunpack.c.h.b16 %v419
    %v957 = vunpack.c.l.b16 %v420
    %v958 = vunpack.c.h.b16 %v420
    %v959 = vunpack.c.l.b16 %v421
    %v960 = vunpack.c.h.b16 %v421
    %v961 = vunpack.c.l.b16 %v422
    %v962 = vunpack.c.h.b16 %v422
    %v963 = vunpack.c.l.b16 %v423
    %v964 = vunpack.c.h.b16 %v423
    %v965 = vunpack.c.l.b16 %v424
    %v966 = vunpack.c.h.b16 %v424
    %v967 = vunpack.c.l.b16 %v425
    %v968 = vunpack.c.h.b16 %v425
    %v969 = vunpack.c.l.b16 %v426
    %v970 = vunpack.c.h.b16 %v426
    %v971 = vunpack.c.l.b16 %v427
    %v972 = vunpack.c.h.b16 %v427
    %v973 = vunpack.c.l.b16 %v428
    %v974 = vunpack.c.h.b16 %v428
    %v975 = vunpack.c.l.b16 %v429
    %v976 = vunpack.c.h.b16 %v429
    %v977 = vunpack.c.l.b16 %v430
    %v978 = vunpack.c.h.b16 %v430
    %v979 = vunpack.c.l.b16 %v431
    %v980 = vunpack.c.h.b16 %v431
    %v981 = vunpack.c.l.b16 %v432
    %v982 = vunpack.c.h.b16 %v432
    %v983 = vunpack.c.l.b16 %v433
    %v984 = vunpack.c.h.b16 %v433
    %v985 = vunpack.c.l.b16 %v434
    %v986 = vunpack.c.h.b16 %v434
    %v987 = vunpack.c.l.b16 %v435
    %v988 = vunpack.c.h.b16 %v435
    %v989 = vunpack.c.l.b16 %v436
    %v990 = vunpack.c.h.b16 %v436
    %v991 = vunpack.c.l.b16 %v437
    %v992 = vunpack.c.h.b16 %v437
    %v993 = vunpack.c.l.b16 %v438
    %v994 = vunpack.c.h.b16 %v438
    %v995 = vunpack.c.l.b16 %v439
    %v996 = vunpack.c.h.b16 %v439
    %v997 = vunpack.c.l.b16 %v440
    %v998 = vunpack.c.h.b16 %v440
    %v999 = vunpack.c.l.b16 %v441
    %v1000 = vunpack.c.h.b16 %v441
    %v1001 = vunpack.c.l.b16 %v442
    %v1002 = vunpack.c.h.b16 %v442
    %v1003 = vunpack.c.l.b16 %v443
    %v1004 = vunpack.c.h.b16 %v443
    %v1005 = vunpack.c.l.b16 %v444
    %v1006 = vunpack.c.h.b16 %v444
    %v1007 = vunpack.c.l.b16 %v445
    %v1008 = vunpack.c.h.b16 %v445
    %v1009 = vunpack.c.l.b16 %v446
    %v1010 = vunpack.c.h.b16 %v446
    %v1011 = vunpack.c.l.b16 %v447
    %v1012 = vunpack.c.h.b16 %v447
    %v1013 = vunpack.c.l.b16 %v448
    %v1014 = vunpack.c.h.b16 %v448
    %v1015 = vunpack.c.l.b16 %v449
    %v1016 = vunpack.c.h.b16 %v449
    %v1017 = vunpack.c.l.b16 %v450
    %v1018 = vunpack.c.h.b16 %v450
    %v1019 = vunpack.c.l.b16 %v451
    %v1020 = vunpack.c.h.b16 %v451
    %v1021 = vunpack.c.l.b16 %v452
    %v1022 = vunpack.c.h.b16 %v452
    %v1023 = vunpack.c.l.b16 %v453
    %v1024 = vunpack.c.h.b16 %v453
    %v1025 = vunpack.c.l.b16 %v454
    %v1026 = vunpack.c.h.b16 %v454
    %v1027 = vunpack.c.l.b16 %v455
    %v1028 = vunpack.c.h.b16 %v455
    %v1029 = vunpack.c.l.b16 %v456
    %v1030 = vunpack.c.h.b16 %v456
    %v1031 = vunpack.c.l.b16 %v457
    %v1032 = vunpack.c.h.b16 %v457
    %v1033 = vunpack.c.l.b16 %v458
    %v1034 = vunpack.c.h.b16 %v458
    %v1035 = vunpack.c.l.b16 %v459
    %v1036 = vunpack.c.h.b16 %v459
    %v1037 = vunpack.c.l.b16 %v460
    %v1038 = vunpack.c.h.b16 %v460
    %v1039 = vunpack.c.l.b16 %v461
    %v1040 = vunpack.c.h.b16 %v461
    %v1041 = vunpack.c.l.b16 %v462
    %v1042 = vunpack.c.h.b16 %v462
    %v1043 = vunpack.c.l.b16 %v463
    %v1044 = vunpack.c.h.b16 %v463
    %v1045 = vunpack.c.l.b16 %v464
    %v1046 = vunpack.c.h.b16 %v464
    %v1047 = vunpack.c.l.b16 %v465
    %v1048 = vunpack.c.h.b16 %v465
    %v1049 = vunpack.c.l.b16 %v466
    %v1050 = vunpack.c.h.b16 %v466
    %v1051 = vunpack.c.l.b16 %v467
    %v1052 = vunpack.c.h.b16 %v467
    %v1053 = vunpack.c.l.b16 %v468
    %v1054 = vunpack.c.h.b16 %v468
    %v1055 = vunpack.c.l.b16 %v469
    %v1056 = vunpack.c.h.b16 %v469
    %v1057 = vunpack.c.l.b16 %v470
    %v1058 = vunpack.c.h.b16 %v470
    %v1059 = vunpack.c.l.b16 %v471
    %v1060 = vunpack.c.h.b16 %v471
    %v1061 = vunpack.c.l.b16 %v472
    %v1062 = vunpack.c.h.b16 %v472
    %v1063 = vunpack.c.l.b16 %v473
    %v1064 = vunpack.c.h.b16 %v473
    %v1065 = vunpack.c.l.b16 %v474
    %v1066 = vunpack.c.h.b16 %v474
    %v1067 = vunpack.c.l.b16 %v475
    %v1068 = vunpack.c.h.b16 %v475
    %v1069 = vunpack.c.l.b16 %v476
    %v1070 = vunpack.c.h.b16 %v476
    %v1071 = vunpack.c.l.b16 %v477
    %v1072 = vunpack.c.h.b16 %v477
    %v1073 = vunpack.c.l.b16 %v478
    %v1074 = vunpack.c.h.b16 %v478
    %v1075 = vunpack.c.l.b16 %v479
    %v1076 = vunpack.c.h.b16 %v479
    %v1077 = vunpack.c.l.b16 %v480
    %v1078 = vunpack.c.h.b16 %v480
    %v1079 = vunpack.c.l.b16 %v481
    %v1080 = vunpack.c.h.b16 %v481
    %v1081 = vunpack.c.l.b16 %v482
    %v1082 = vunpack.c.h.b16 %v482
    %v1083 = vunpack.c.l.b16 %v483
    %v1084 = vunpack.c.h.b16 %v483
    %v1085 = vunpack.c.l.b16 %v484
    %v1086 = vunpack.c.h.b16 %v484
    %v1087 = vunpack.c.l.b16 %v485
    %v1088 = vunpack.c.h.b16 %v485
    %v1089 = vunpack.c.l.b16 %v486
    %v1090 = vunpack.c.h.b16 %v486
    %v1091 = vunpack.c.l.b16 %v487
    %v1092 = vunpack.c.h.b16 %v487
    %v1093 = vunpack.c.l.b16 %v488
    %v1094 = vunpack.c.h.b16 %v488
    %v1095 = vpack.c.b16 %v715, %v711
    %v1096 = vpack.c.b16 %v716, %v712
    %v1097 = vpack.c.b16 %v717, %v713
    %v1098 = vpack.c.b16 %v718, %v714
    %v1099 = vpack.c.b16 %v723, %v719
    %v1100 = vpack.c.b16 %v724, %v720
    %v1101 = vpack.c.b16 %v725, %v721
    %v1102 = vpack.c.b16 %v726, %v722
    %v1103 = vpack.c.b16 %v731, %v727
    %v1104 = vpack.c.b16 %v732, %v728
    %v1105 = vpack.c.b16 %v733, %v729
    %v1106 = vpack.c.b16 %v734, %v730
    %v1107 = vpack.c.b16 %v739, %v735
    %v1108 = vpack.c.b16 %v740, %v736
    %v1109 = vpack.c.b16 %v741, %v737
    %v1110 = vpack.c.b16 %v742, %v738
    %v1111 = vpack.c.b16 %v747, %v743
    %v1112 = vpack.c.b16 %v748, %v744
    %v1113 = vpack.c.b16 %v749, %v745
    %v1114 = vpack.c.b16 %v750, %v746
    %v1115 = vpack.c.b16 %v755, %v751
    %v1116 = vpack.c.b16 %v756, %v752
    %v1117 = vpack.c.b16 %v757, %v753
    %v1118 = vpack.c.b16 %v758, %v754
    %v1119 = vpack.c.b16 %v763, %v759
    %v1120 = vpack.c.b16 %v764, %v760
    %v1121 = vpack.c.b16 %v765, %v761
    %v1122 = vpack.c.b16 %v766, %v762
    %v1123 = vpack.c.b16 %v771, %v767
    %v1124 = vpack.c.b16 %v772, %v768
    %v1125 = vpack.c.b16 %v773, %v769
    %v1126 = vpack.c.b16 %v774, %v770
    %v1127 = vpack.c.b16 %v779, %v775
    %v1128 = vpack.c.b16 %v780, %v776
    %v1129 = vpack.c.b16 %v781, %v777
    %v1130 = vpack.c.b16 %v782, %v778
    %v1131 = vpack.c.b16 %v787, %v783
    %v1132 = vpack.c.b16 %v788, %v784
    %v1133 = vpack.c.b16 %v789, %v785
    %v1134 = vpack.c.b16 %v790, %v786
    %v1135 = vpack.c.b16 %v795, %v791
    %v1136 = vpack.c.b16 %v796, %v792
    %v1137 = vpack.c.b16 %v797, %v793
    %v1138 = vpack.c.b16 %v798, %v794
    %v1139 = vpack.c.b16 %v803, %v799
    %v1140 = vpack.c.b16 %v804, %v800
    %v1141 = vpack.c.b16 %v805, %v801
    %v1142 = vpack.c.b16 %v806, %v802
    %v1143 = vpack.c.b16 %v811, %v807
    %v1144 = vpack.c.b16 %v812, %v808
    %v1145 = vpack.c.b16 %v813, %v809
    %v1146 = vpack.c.b16 %v814, %v810
    %v1147 = vpack.c.b16 %v819, %v815
    %v1148 = vpack.c.b16 %v820, %v816
    %v1149 = vpack.c.b16 %v821, %v817
    %v1150 = vpack.c.b16 %v822, %v818
    %v1151 = vpack.c.b16 %v827, %v823
    %v1152 = vpack.c.b16 %v828, %v824
    %v1153 = vpack.c.b16 %v829, %v825
    %v1154 = vpack.c.b16 %v830, %v826
    %v1155 = vpack.c.b16 %v835, %v831
    %v1156 = vpack.c.b16 %v836, %v832
    %v1157 = vpack.c.b16 %v837, %v833
    %v1158 = vpack.c.b16 %v838, %v834
    %v1159 = vpack.c.b16 %v843, %v839
    %v1160 = vpack.c.b16 %v844, %v840
    %v1161 = vpack.c.b16 %v845, %v841
    %v1162 = vpack.c.b16 %v846, %v842
    %v1163 = vpack.c.b16 %v851, %v847
    %v1164 = vpack.c.b16 %v852, %v848
    %v1165 = vpack.c.b16 %v853, %v849
    %v1166 = vpack.c.b16 %v854, %v850
    %v1167 = vpack.c.b16 %v859, %v855
    %v1168 = vpack.c.b16 %v860, %v856
    %v1169 = vpack.c.b16 %v861, %v857
    %v1170 = vpack.c.b16 %v862, %v858
    %v1171 = vpack.c.b16 %v867, %v863
    %v1172 = vpack.c.b16 %v868, %v864
    %v1173 = vpack.c.b16 %v869, %v865
    %v1174 = vpack.c.b16 %v870, %v866
    %v1175 = vpack.c.b16 %v875, %v871
    %v1176 = vpack.c.b16 %v876, %v872
    %v1177 = vpack.c.b16 %v877, %v873
    %v1178 = vpack.c.b16 %v878, %v874
    %v1179 = vpack.c.b16 %v883, %v879
    %v1180 = vpack.c.b16 %v884, %v880
    %v1181 = vpack.c.b16 %v885, %v881
    %v1182 = vpack.c.b16 %v886, %v882
    %v1183 = vpack.c.b16 %v891, %v887
    %v1184 = vpack.c.b16 %v892, %v888
    %v1185 = vpack.c.b16 %v893, %v889
    %v1186 = vpack.c.b16 %v894, %v890
    %v1187 = vpack.c.b16 %v899, %v895
    %v1188 = vpack.c.b16 %v900, %v896
    %v1189 = vpack.c.b16 %v901, %v897
    %v1190 = vpack.c.b16 %v902, %v898
    %v1191 = vpack.c.b16 %v907, %v903
    %v1192 = vpack.c.b16 %v908, %v904
    %v1193 = vpack.c.b16 %v909, %v905
    %v1194 = vpack.c.b16 %v910, %v906
    %v1195 = vpack.c.b16 %v915, %v911
    %v1196 = vpack.c.b16 %v916, %v912
    %v1197 = vpack.c.b16 %v917, %v913
    %v1198 = vpack.c.b16 %v918, %v914
    %v1199 = vpack.c.b16 %v923, %v919
    %v1200 = vpack.c.b16 %v924, %v920
    %v1201 = vpack.c.b16 %v925, %v921
    %v1202 = vpack.c.b16 %v926, %v922
    %v1203 = vpack.c.b16 %v931, %v927
    %v1204 = vpack.c.b16 %v932, %v928
    %v1205 = vpack.c.b16 %v933, %v929
    %v1206 = vpack.c.b16 %v934, %v930
    %v1207 = vpack.c.b16 %v939, %v935
    %v1208 = vpack.c.b16 %v940, %v936
    %v1209 = vpack.c.b16 %v941, %v937
    %v1210 = vpack.c.b16 %v942, %v938
    %v1211 = vpack.c.b16 %v947, %v943
    %v1212 = vpack.c.b16 %v948, %v944
    %v1213 = vpack.c.b16 %v949, %v945
    %v1214 = vpack.c.b16 %v950, %v946
    %v1215 = vpack.c.b16 %v955, %v951
    %v1216 = vpack.c.b16 %v956, %v952
    %v1217 = vpack.c.b16 %v957, %v953
    %v1218 = vpack.c.b16 %v958, %v954
    %v1219 = vpack.c.b16 %v963, %v959
    %v1220 = vpack.c.b16 %v964, %v960
    %v1221 = vpack.c.b16 %v965, %v961
    %v1222 = vpack.c.b16 %v966, %v962
    %v1223 = vpack.c.b16 %v971, %v967
    %v1224 = vpack.c.b16 %v972, %v968
    %v1225 = vpack.c.b16 %v973, %v969
    %v1226 = vpack.c.b16 %v974, %v970
    %v1227 = vpack.c.b16 %v979, %v975
    %v1228 = vpack.c.b16 %v980, %v976
    %v1229 = vpack.c.b16 %v981, %v977
    %v1230 = vpack.c.b16 %v982, %v978
    %v1231 = vpack.c.b16 %v987, %v983
    %v1232 = vpack.c.b16 %v988, %v984
    %v1233 = vpack.c.b16 %v989, %v985
    %v1234 = vpack.c.b16 %v990, %v986
    %v1235 = vpack.c.b16 %v995, %v991
    %v1236 = vpack.c.b16 %v996, %v992
    %v1237 = vpack.c.b16 %v997, %v993
    %v1238 = vpack.c.b16 %v998, %v994
    %v1239 = vpack.c.b16 %v1003, %v999
    %v1240 = vpack.c.b16 %v1004, %v1000
    %v1241 = vpack.c.b16 %v1005, %v1001
    %v1242 = vpack.c.b16 %v1006, %v1002
    %v1243 = vpack.c.b16 %v1011, %v1007
    %v1244 = vpack.c.b16 %v1012, %v1008
    %v1245 = vpack.c.b16 %v1013, %v1009
    %v1246 = vpack.c.b16 %v1014, %v1010
    %v1247 = vpack.c.b16 %v1019, %v1015
    %v1248 = vpack.c.b16 %v1020, %v1016
    %v1249 = vpack.c.b16 %v1021, %v1017
    %v1250 = vpack.c.b16 %v1022, %v1018
    %v1251 = vpack.c.b16 %v1027, %v1023
    %v1252 = vpack.c.b16 %v1028, %v1024
    %v1253 = vpack.c.b16 %v1029, %v1025
    %v1254 = vpack.c.b16 %v1030, %v1026
    %v1255 = vpack.c.b16 %v1035, %v1031
    %v1256 = vpack.c.b16 %v1036, %v1032
    %v1257 = vpack.c.b16 %v1037, %v1033
    %v1258 = vpack.c.b16 %v1038, %v1034
    %v1259 = vpack.c.b16 %v1043, %v1039
    %v1260 = vpack.c.b16 %v1044, %v1040
    %v1261 = vpack.c.b16 %v1045, %v1041
    %v1262 = vpack.c.b16 %v1046, %v1042
    %v1263 = vpack.c.b16 %v1051, %v1047
    %v1264 = vpack.c.b16 %v1052, %v1048
    %v1265 = vpack.c.b16 %v1053, %v1049
    %v1266 = vpack.c.b16 %v1054, %v1050
    %v1267 = vpack.c.b16 %v1059, %v1055
    %v1268 = vpack.c.b16 %v1060, %v1056
    %v1269 = vpack.c.b16 %v1061, %v1057
    %v1270 = vpack.c.b16 %v1062, %v1058
    %v1271 = vpack.c.b16 %v1067, %v1063
    %v1272 = vpack.c.b16 %v1068, %v1064
    %v1273 = vpack.c.b16 %v1069, %v1065
    %v1274 = vpack.c.b16 %v1070, %v1066
    %v1275 = vpack.c.b16 %v1075, %v1071
    %v1276 = vpack.c.b16 %v1076, %v1072
    %v1277 = vpack.c.b16 %v1077, %v1073
    %v1278 = vpack.c.b16 %v1078, %v1074
    %v1279 = vpack.c.b16 %v1083, %v1079
    %v1280 = vpack.c.b16 %v1084, %v1080
    %v1281 = vpack.c.b16 %v1085, %v1081
    %v1282 = vpack.c.b16 %v1086, %v1082
    %v1283 = vpack.c.b16 %v1091, %v1087
    %v1284 = vpack.c.b16 %v1092, %v1088
    %v1285 = vpack.c.b16 %v1093, %v1089
    %v1286 = vpack.c.b16 %v1094, %v1090
    %1479 = vmatpush.bf16.msra.mxu0 %v1123
    %1480 = vmatpush.bf16.msra.mxu0 %v1119
    %1481 = vmatpush.bf16.msra.mxu0 %v1115
    %1482 = vmatpush.bf16.msra.mxu0 %v1111
    %1483 = vmatpush.bf16.msra.mxu0 %v1107
    %1484 = vmatpush.bf16.msra.mxu0 %v1103
    %1485 = vmatpush.bf16.msra.mxu0 %v1099
    %1486 = vmatpush.bf16.msra.mxu0 %v1095
    %1487 = vmatmul.bf16.gmra.mxu0 %v507
    %v1488 = vpop.f32.mrf.mxu0
    %v1489 = vadd.f32 0.0, %v1488
    %v1490 = vpop.f32.mrf.mxu0
    %v1491 = vadd.f32 0.0, %v1490
    %1492 = vdwg.mxu0
    %1493 = vmatpush.bf16.msra.mxu0 %v1155
    %1494 = vmatpush.bf16.msra.mxu0 %v1151
    %1495 = vmatpush.bf16.msra.mxu0 %v1147
    %1496 = vmatpush.bf16.msra.mxu0 %v1143
    %1497 = vmatpush.bf16.msra.mxu0 %v1139
    %1498 = vmatpush.bf16.msra.mxu0 %v1135
    %1499 = vmatpush.bf16.msra.mxu0 %v1131
    %1500 = vmatpush.bf16.msra.mxu0 %v1127
    %1501 = vmatmul.bf16.gmra.mxu0 %v508
    %v1502 = vpop.f32.mrf.mxu0
    %v1503 = vadd.f32 %v1489, %v1502
    %v1504 = vpop.f32.mrf.mxu0
    %v1505 = vadd.f32 %v1491, %v1504
    %1506 = vdwg.mxu0
    %1507 = vmatpush.bf16.msra.mxu0 %v1187
    %1508 = vmatpush.bf16.msra.mxu0 %v1183
    %1509 = vmatpush.bf16.msra.mxu0 %v1179
    %1510 = vmatpush.bf16.msra.mxu0 %v1175
    %1511 = vmatpush.bf16.msra.mxu0 %v1171
    %1512 = vmatpush.bf16.msra.mxu0 %v1167
    %1513 = vmatpush.bf16.msra.mxu0 %v1163
    %1514 = vmatpush.bf16.msra.mxu0 %v1159
    %1515 = vmatmul.bf16.gmra.mxu0 %v509
    %v1516 = vpop.f32.mrf.mxu0
    %v1517 = vadd.f32 %v1503, %v1516
    %v1518 = vpop.f32.mrf.mxu0
    %v1519 = vadd.f32 %v1505, %v1518
    %1520 = vdwg.mxu0
    %1521 = vmatpush.bf16.msra.mxu0 %v1219
    %1522 = vmatpush.bf16.msra.mxu0 %v1215
    %1523 = vmatpush.bf16.msra.mxu0 %v1211
    %1524 = vmatpush.bf16.msra.mxu0 %v1207
    %1525 = vmatpush.bf16.msra.mxu0 %v1203
    %1526 = vmatpush.bf16.msra.mxu0 %v1199
    %1527 = vmatpush.bf16.msra.mxu0 %v1195
    %1528 = vmatpush.bf16.msra.mxu0 %v1191
    %1529 = vmatmul.bf16.gmra.mxu0 %v510
    %v1530 = vpop.f32.mrf.mxu0
    %v1531 = vadd.f32 %v1517, %v1530
    %v1532 = vpop.f32.mrf.mxu0
    %v1533 = vadd.f32 %v1519, %v1532
    %1534 = vdwg.mxu0
    %1535 = vmatpush.bf16.msra.mxu0 %v1251
    %1536 = vmatpush.bf16.msra.mxu0 %v1247
    %1537 = vmatpush.bf16.msra.mxu0 %v1243
    %1538 = vmatpush.bf16.msra.mxu0 %v1239
    %1539 = vmatpush.bf16.msra.mxu0 %v1235
    %1540 = vmatpush.bf16.msra.mxu0 %v1231
    %1541 = vmatpush.bf16.msra.mxu0 %v1227
    %1542 = vmatpush.bf16.msra.mxu0 %v1223
    %1543 = vmatmul.bf16.gmra.mxu0 %v511
    %v1544 = vpop.f32.mrf.mxu0
    %v1545 = vadd.f32 %v1531, %v1544
    %v1546 = vpop.f32.mrf.mxu0
    %v1547 = vadd.f32 %v1533, %v1546
    %1548 = vdwg.mxu0
    %1549 = vmatpush.bf16.msra.mxu0 %v1283
    %1550 = vmatpush.bf16.msra.mxu0 %v1279
    %1551 = vmatpush.bf16.msra.mxu0 %v1275
    %1552 = vmatpush.bf16.msra.mxu0 %v1271
    %1553 = vmatpush.bf16.msra.mxu0 %v1267
    %1554 = vmatpush.bf16.msra.mxu0 %v1263
    %1555 = vmatpush.bf16.msra.mxu0 %v1259
    %1556 = vmatpush.bf16.msra.mxu0 %v1255
    %1557 = vmatmul.bf16.gmra.mxu0 %v512
    %v1558 = vpop.f32.mrf.mxu0
    %v1559 = vadd.f32 %v1545, %v1558
    %v1560 = vpop.f32.mrf.mxu0
    %v1561 = vadd.f32 %v1547, %v1560
    %1562 = vdwg.mxu0
    %1563 = vmatpush.bf16.msra.mxu0 %v1124
    %1564 = vmatpush.bf16.msra.mxu0 %v1120
    %1565 = vmatpush.bf16.msra.mxu0 %v1116
    %1566 = vmatpush.bf16.msra.mxu0 %v1112
    %1567 = vmatpush.bf16.msra.mxu0 %v1108
    %1568 = vmatpush.bf16.msra.mxu0 %v1104
    %1569 = vmatpush.bf16.msra.mxu0 %v1100
    %1570 = vmatpush.bf16.msra.mxu0 %v1096
    %1571 = vmatmul.bf16.gmra.mxu0 %v507
    %v1572 = vpop.f32.mrf.mxu0
    %v1573 = vadd.f32 0.0, %v1572
    %v1574 = vpop.f32.mrf.mxu0
    %v1575 = vadd.f32 0.0, %v1574
    %1576 = vdwg.mxu0
    %1577 = vmatpush.bf16.msra.mxu0 %v1156
    %1578 = vmatpush.bf16.msra.mxu0 %v1152
    %1579 = vmatpush.bf16.msra.mxu0 %v1148
    %1580 = vmatpush.bf16.msra.mxu0 %v1144
    %1581 = vmatpush.bf16.msra.mxu0 %v1140
    %1582 = vmatpush.bf16.msra.mxu0 %v1136
    %1583 = vmatpush.bf16.msra.mxu0 %v1132
    %1584 = vmatpush.bf16.msra.mxu0 %v1128
    %1585 = vmatmul.bf16.gmra.mxu0 %v508
    %v1586 = vpop.f32.mrf.mxu0
    %v1587 = vadd.f32 %v1573, %v1586
    %v1588 = vpop.f32.mrf.mxu0
    %v1589 = vadd.f32 %v1575, %v1588
    %1590 = vdwg.mxu0
    %1591 = vmatpush.bf16.msra.mxu0 %v1188
    %1592 = vmatpush.bf16.msra.mxu0 %v1184
    %1593 = vmatpush.bf16.msra.mxu0 %v1180
    %1594 = vmatpush.bf16.msra.mxu0 %v1176
    %1595 = vmatpush.bf16.msra.mxu0 %v1172
    %1596 = vmatpush.bf16.msra.mxu0 %v1168
    %1597 = vmatpush.bf16.msra.mxu0 %v1164
    %1598 = vmatpush.bf16.msra.mxu0 %v1160
    %1599 = vmatmul.bf16.gmra.mxu0 %v509
    %v1600 = vpop.f32.mrf.mxu0
    %v1601 = vadd.f32 %v1587, %v1600
    %v1602 = vpop.f32.mrf.mxu0
    %v1603 = vadd.f32 %v1589, %v1602
    %1604 = vdwg.mxu0
    %1605 = vmatpush.bf16.msra.mxu0 %v1220
    %1606 = vmatpush.bf16.msra.mxu0 %v1216
    %1607 = vmatpush.bf16.msra.mxu0 %v1212
    %1608 = vmatpush.bf16.msra.mxu0 %v1208
    %1609 = vmatpush.bf16.msra.mxu0 %v1204
    %1610 = vmatpush.bf16.msra.mxu0 %v1200
    %1611 = vmatpush.bf16.msra.mxu0 %v1196
    %1612 = vmatpush.bf16.msra.mxu0 %v1192
    %1613 = vmatmul.bf16.gmra.mxu0 %v510
    %v1614 = vpop.f32.mrf.mxu0
    %v1615 = vadd.f32 %v1601, %v1614
    %v1616 = vpop.f32.mrf.mxu0
    %v1617 = vadd.f32 %v1603, %v1616
    %1618 = vdwg.mxu0
    %1619 = vmatpush.bf16.msra.mxu0 %v1252
    %1620 = vmatpush.bf16.msra.mxu0 %v1248
    %1621 = vmatpush.bf16.msra.mxu0 %v1244
    %1622 = vmatpush.bf16.msra.mxu0 %v1240
    %1623 = vmatpush.bf16.msra.mxu0 %v1236
    %1624 = vmatpush.bf16.msra.mxu0 %v1232
    %1625 = vmatpush.bf16.msra.mxu0 %v1228
    %1626 = vmatpush.bf16.msra.mxu0 %v1224
    %1627 = vmatmul.bf16.gmra.mxu0 %v511
    %v1628 = vpop.f32.mrf.mxu0
    %v1629 = vadd.f32 %v1615, %v1628
    %v1630 = vpop.f32.mrf.mxu0
    %v1631 = vadd.f32 %v1617, %v1630
    %1632 = vdwg.mxu0
    %1633 = vmatpush.bf16.msra.mxu0 %v1284
    %1634 = vmatpush.bf16.msra.mxu0 %v1280
    %1635 = vmatpush.bf16.msra.mxu0 %v1276
    %1636 = vmatpush.bf16.msra.mxu0 %v1272
    %1637 = vmatpush.bf16.msra.mxu0 %v1268
    %1638 = vmatpush.bf16.msra.mxu0 %v1264
    %1639 = vmatpush.bf16.msra.mxu0 %v1260
    %1640 = vmatpush.bf16.msra.mxu0 %v1256
    %1641 = vmatmul.bf16.gmra.mxu0 %v512
    %v1642 = vpop.f32.mrf.mxu0
    %v1643 = vadd.f32 %v1629, %v1642
    %v1644 = vpop.f32.mrf.mxu0
    %v1645 = vadd.f32 %v1631, %v1644
    %1646 = vdwg.mxu0
    %1647 = vmatpush.bf16.msra.mxu0 %v1125
    %1648 = vmatpush.bf16.msra.mxu0 %v1121
    %1649 = vmatpush.bf16.msra.mxu0 %v1117
    %1650 = vmatpush.bf16.msra.mxu0 %v1113
    %1651 = vmatpush.bf16.msra.mxu0 %v1109
    %1652 = vmatpush.bf16.msra.mxu0 %v1105
    %1653 = vmatpush.bf16.msra.mxu0 %v1101
    %1654 = vmatpush.bf16.msra.mxu0 %v1097
    %1655 = vmatmul.bf16.gmra.mxu0 %v507
    %v1656 = vpop.f32.mrf.mxu0
    %v1657 = vadd.f32 0.0, %v1656
    %v1658 = vpop.f32.mrf.mxu0
    %v1659 = vadd.f32 0.0, %v1658
    %1660 = vdwg.mxu0
    %1661 = vmatpush.bf16.msra.mxu0 %v1157
    %1662 = vmatpush.bf16.msra.mxu0 %v1153
    %1663 = vmatpush.bf16.msra.mxu0 %v1149
    %1664 = vmatpush.bf16.msra.mxu0 %v1145
    %1665 = vmatpush.bf16.msra.mxu0 %v1141
    %1666 = vmatpush.bf16.msra.mxu0 %v1137
    %1667 = vmatpush.bf16.msra.mxu0 %v1133
    %1668 = vmatpush.bf16.msra.mxu0 %v1129
    %1669 = vmatmul.bf16.gmra.mxu0 %v508
    %v1670 = vpop.f32.mrf.mxu0
    %v1671 = vadd.f32 %v1657, %v1670
    %v1672 = vpop.f32.mrf.mxu0
    %v1673 = vadd.f32 %v1659, %v1672
    %1674 = vdwg.mxu0
    %1675 = vmatpush.bf16.msra.mxu0 %v1189
    %1676 = vmatpush.bf16.msra.mxu0 %v1185
    %1677 = vmatpush.bf16.msra.mxu0 %v1181
    %1678 = vmatpush.bf16.msra.mxu0 %v1177
    %1679 = vmatpush.bf16.msra.mxu0 %v1173
    %1680 = vmatpush.bf16.msra.mxu0 %v1169
    %1681 = vmatpush.bf16.msra.mxu0 %v1165
    %1682 = vmatpush.bf16.msra.mxu0 %v1161
    %1683 = vmatmul.bf16.gmra.mxu0 %v509
    %v1684 = vpop.f32.mrf.mxu0
    %v1685 = vadd.f32 %v1671, %v1684
    %v1686 = vpop.f32.mrf.mxu0
    %v1687 = vadd.f32 %v1673, %v1686
    %1688 = vdwg.mxu0
    %1689 = vmatpush.bf16.msra.mxu0 %v1221
    %1690 = vmatpush.bf16.msra.mxu0 %v1217
    %1691 = vmatpush.bf16.msra.mxu0 %v1213
    %1692 = vmatpush.bf16.msra.mxu0 %v1209
    %1693 = vmatpush.bf16.msra.mxu0 %v1205
    %1694 = vmatpush.bf16.msra.mxu0 %v1201
    %1695 = vmatpush.bf16.msra.mxu0 %v1197
    %1696 = vmatpush.bf16.msra.mxu0 %v1193
    %1697 = vmatmul.bf16.gmra.mxu0 %v510
    %v1698 = vpop.f32.mrf.mxu0
    %v1699 = vadd.f32 %v1685, %v1698
    %v1700 = vpop.f32.mrf.mxu0
    %v1701 = vadd.f32 %v1687, %v1700
    %1702 = vdwg.mxu0
    %1703 = vmatpush.bf16.msra.mxu0 %v1253
    %1704 = vmatpush.bf16.msra.mxu0 %v1249
    %1705 = vmatpush.bf16.msra.mxu0 %v1245
    %1706 = vmatpush.bf16.msra.mxu0 %v1241
    %1707 = vmatpush.bf16.msra.mxu0 %v1237
    %1708 = vmatpush.bf16.msra.mxu0 %v1233
    %1709 = vmatpush.bf16.msra.mxu0 %v1229
    %1710 = vmatpush.bf16.msra.mxu0 %v1225
    %1711 = vmatmul.bf16.gmra.mxu0 %v511
    %v1712 = vpop.f32.mrf.mxu0
    %v1713 = vadd.f32 %v1699, %v1712
    %v1714 = vpop.f32.mrf.mxu0
    %v1715 = vadd.f32 %v1701, %v1714
    %1716 = vdwg.mxu0
    %1717 = vmatpush.bf16.msra.mxu0 %v1285
    %1718 = vmatpush.bf16.msra.mxu0 %v1281
    %1719 = vmatpush.bf16.msra.mxu0 %v1277
    %1720 = vmatpush.bf16.msra.mxu0 %v1273
    %1721 = vmatpush.bf16.msra.mxu0 %v1269
    %1722 = vmatpush.bf16.msra.mxu0 %v1265
    %1723 = vmatpush.bf16.msra.mxu0 %v1261
    %1724 = vmatpush.bf16.msra.mxu0 %v1257
    %1725 = vmatmul.bf16.gmra.mxu0 %v512
    %v1726 = vpop.f32.mrf.mxu0
    %v1727 = vadd.f32 %v1713, %v1726
    %v1728 = vpop.f32.mrf.mxu0
    %v1729 = vadd.f32 %v1715, %v1728
    %1730 = vdwg.mxu0
    %1731 = vmatpush.bf16.msra.mxu0 %v1126
    %1732 = vmatpush.bf16.msra.mxu0 %v1122
    %1733 = vmatpush.bf16.msra.mxu0 %v1118
    %1734 = vmatpush.bf16.msra.mxu0 %v1114
    %1735 = vmatpush.bf16.msra.mxu0 %v1110
    %1736 = vmatpush.bf16.msra.mxu0 %v1106
    %1737 = vmatpush.bf16.msra.mxu0 %v1102
    %1738 = vmatpush.bf16.msra.mxu0 %v1098
    %1739 = vmatmul.bf16.gmra.mxu0 %v507
    %v1740 = vpop.f32.mrf.mxu0
    %v1741 = vadd.f32 0.0, %v1740
    %v1742 = vpop.f32.mrf.mxu0
    %v1743 = vadd.f32 0.0, %v1742
    %1744 = vdwg.mxu0
    %1745 = vmatpush.bf16.msra.mxu0 %v1158
    %1746 = vmatpush.bf16.msra.mxu0 %v1154
    %1747 = vmatpush.bf16.msra.mxu0 %v1150
    %1748 = vmatpush.bf16.msra.mxu0 %v1146
    %1749 = vmatpush.bf16.msra.mxu0 %v1142
    %1750 = vmatpush.bf16.msra.mxu0 %v1138
    %1751 = vmatpush.bf16.msra.mxu0 %v1134
    %1752 = vmatpush.bf16.msra.mxu0 %v1130
    %1753 = vmatmul.bf16.gmra.mxu0 %v508
    %v1754 = vpop.f32.mrf.mxu0
    %v1755 = vadd.f32 %v1741, %v1754
    %v1756 = vpop.f32.mrf.mxu0
    %v1757 = vadd.f32 %v1743, %v1756
    %1758 = vdwg.mxu0
    %1759 = vmatpush.bf16.msra.mxu0 %v1190
    %1760 = vmatpush.bf16.msra.mxu0 %v1186
    %1761 = vmatpush.bf16.msra.mxu0 %v1182
    %1762 = vmatpush.bf16.msra.mxu0 %v1178
    %1763 = vmatpush.bf16.msra.mxu0 %v1174
    %1764 = vmatpush.bf16.msra.mxu0 %v1170
    %1765 = vmatpush.bf16.msra.mxu0 %v1166
    %1766 = vmatpush.bf16.msra.mxu0 %v1162
    %1767 = vmatmul.bf16.gmra.mxu0 %v509
    %v1768 = vpop.f32.mrf.mxu0
    %v1769 = vadd.f32 %v1755, %v1768
    %v1770 = vpop.f32.mrf.mxu0
    %v1771 = vadd.f32 %v1757, %v1770
    %1772 = vdwg.mxu0
    %1773 = vmatpush.bf16.msra.mxu0 %v1222
    %1774 = vmatpush.bf16.msra.mxu0 %v1218
    %1775 = vmatpush.bf16.msra.mxu0 %v1214
    %1776 = vmatpush.bf16.msra.mxu0 %v1210
    %1777 = vmatpush.bf16.msra.mxu0 %v1206
    %1778 = vmatpush.bf16.msra.mxu0 %v1202
    %1779 = vmatpush.bf16.msra.mxu0 %v1198
    %1780 = vmatpush.bf16.msra.mxu0 %v1194
    %1781 = vmatmul.bf16.gmra.mxu0 %v510
    %v1782 = vpop.f32.mrf.mxu0
    %v1783 = vadd.f32 %v1769, %v1782
    %v1784 = vpop.f32.mrf.mxu0
    %v1785 = vadd.f32 %v1771, %v1784
    %1786 = vdwg.mxu0
    %1787 = vmatpush.bf16.msra.mxu0 %v1254
    %1788 = vmatpush.bf16.msra.mxu0 %v1250
    %1789 = vmatpush.bf16.msra.mxu0 %v1246
    %1790 = vmatpush.bf16.msra.mxu0 %v1242
    %1791 = vmatpush.bf16.msra.mxu0 %v1238
    %1792 = vmatpush.bf16.msra.mxu0 %v1234
    %1793 = vmatpush.bf16.msra.mxu0 %v1230
    %1794 = vmatpush.bf16.msra.mxu0 %v1226
    %1795 = vmatmul.bf16.gmra.mxu0 %v511
    %v1796 = vpop.f32.mrf.mxu0
    %v1797 = vadd.f32 %v1783, %v1796
    %v1798 = vpop.f32.mrf.mxu0
    %v1799 = vadd.f32 %v1785, %v1798
    %1800 = vdwg.mxu0
    %1801 = vmatpush.bf16.msra.mxu0 %v1286
    %1802 = vmatpush.bf16.msra.mxu0 %v1282
    %1803 = vmatpush.bf16.msra.mxu0 %v1278
    %1804 = vmatpush.bf16.msra.mxu0 %v1274
    %1805 = vmatpush.bf16.msra.mxu0 %v1270
    %1806 = vmatpush.bf16.msra.mxu0 %v1266
    %1807 = vmatpush.bf16.msra.mxu0 %v1262
    %1808 = vmatpush.bf16.msra.mxu0 %v1258
    %1809 = vmatmul.bf16.gmra.mxu0 %v512
    %v1810 = vpop.f32.mrf.mxu0
    %v1811 = vadd.f32 %v1797, %v1810
    %v1812 = vpop.f32.mrf.mxu0
    %v1813 = vadd.f32 %v1799, %v1812
    %1814 = vdwg.mxu0
    %v1815 = vadd.f32 %v283, %v1559
    %v1816 = vadd.f32 %v284, %v1643
    %v1817 = vadd.f32 %v285, %v1727
    %v1818 = vadd.f32 %v286, %v1811
    %v1819 = vadd.f32 %v287, %v1561
    %v1820 = vadd.f32 %v288, %v1645
    %v1821 = vadd.f32 %v289, %v1729
    %v1822 = vadd.f32 %v290, %v1813
    %1823 = vst [vmem:[#allocation2] sm:$0xff] %v1815
    %1824 = vst [vmem:[#allocation2 + $0x8] sm:$0xff] %v1816
    %1825 = vst [vmem:[#allocation2 + $0x10] sm:$0xff] %v1817
    %1826 = vst [vmem:[#allocation2 + $0x18] sm:$0xff] %v1818
    %1827 = vst [vmem:[#allocation2 + $0x20] sm:$0xff] %v1819
    %1828 = vst [vmem:[#allocation2 + $0x28] sm:$0xff] %v1820
    %1829 = vst [vmem:[#allocation2 + $0x30] sm:$0xff] %v1821
    %1830 = vst [vmem:[#allocation2 + $0x38] sm:$0xff] %v1822
    %v1831 = vld [vmem:[#allocation3] sm:$0xff]
    %v1832 = vld [vmem:[#allocation3 + $0x8] sm:$0xff]
    %v1833 = vld [vmem:[#allocation3 + $0x10] sm:$0xff]
    %v1834 = vld [vmem:[#allocation3 + $0x18] sm:$0xff]
    %v1835 = vld [vmem:[#allocation3 + $0x20] sm:$0xff]
    %v1836 = vld [vmem:[#allocation3 + $0x28] sm:$0xff]
    %v1837 = vld [vmem:[#allocation3 + $0x30] sm:$0xff]
    %v1838 = vld [vmem:[#allocation3 + $0x38] sm:$0xff]
    %v1839 = vld [vmem:[#allocation8] sm:$0xff]
    %v1840 = vld [vmem:[#allocation8 + $0x8] sm:$0xff]
    %v1841 = vld [vmem:[#allocation8 + $0x10] sm:$0xff]
    %v1842 = vld [vmem:[#allocation8 + $0x18] sm:$0xff]
    %v1843 = vld [vmem:[#allocation8 + $0x20] sm:$0xff]
    %v1844 = vld [vmem:[#allocation8 + $0x28] sm:$0xff]
    %v1845 = vld [vmem:[#allocation13] sm:$0xff]
    %v1846 = vld [vmem:[#allocation13 + $0x8] sm:$0xff]
    %v1847 = vld [vmem:[#allocation13 + $0x10] sm:$0xff]
    %v1848 = vld [vmem:[#allocation13 + $0x18] sm:$0xff]
    %v1849 = vld [vmem:[#allocation13 + $0x20] sm:$0xff]
    %v1850 = vld [vmem:[#allocation13 + $0x28] sm:$0xff]
    %v1851 = vld [vmem:[#allocation13 + $0x30] sm:$0xff]
    %v1852 = vld [vmem:[#allocation13 + $0x38] sm:$0xff]
    %v1853 = vld [vmem:[#allocation13 + $0x40] sm:$0xff]
    %v1854 = vld [vmem:[#allocation13 + $0x48] sm:$0xff]
    %v1855 = vld [vmem:[#allocation13 + $0x50] sm:$0xff]
    %v1856 = vld [vmem:[#allocation13 + $0x58] sm:$0xff]
    %v1857 = vld [vmem:[#allocation13 + $0x60] sm:$0xff]
    %v1858 = vld [vmem:[#allocation13 + $0x68] sm:$0xff]
    %v1859 = vld [vmem:[#allocation13 + $0x70] sm:$0xff]
    %v1860 = vld [vmem:[#allocation13 + $0x78] sm:$0xff]
    %v1861 = vld [vmem:[#allocation13 + $0x80] sm:$0xff]
    %v1862 = vld [vmem:[#allocation13 + $0x88] sm:$0xff]
    %v1863 = vld [vmem:[#allocation13 + $0x90] sm:$0xff]
    %v1864 = vld [vmem:[#allocation13 + $0x98] sm:$0xff]
    %v1865 = vld [vmem:[#allocation13 + $0xa0] sm:$0xff]
    %v1866 = vld [vmem:[#allocation13 + $0xa8] sm:$0xff]
    %v1867 = vld [vmem:[#allocation13 + $0xb0] sm:$0xff]
    %v1868 = vld [vmem:[#allocation13 + $0xb8] sm:$0xff]
    %v1869 = vld [vmem:[#allocation13 + $0xc0] sm:$0xff]
    %v1870 = vld [vmem:[#allocation13 + $0xc8] sm:$0xff]
    %v1871 = vld [vmem:[#allocation13 + $0xd0] sm:$0xff]
    %v1872 = vld [vmem:[#allocation13 + $0xd8] sm:$0xff]
    %v1873 = vld [vmem:[#allocation13 + $0xe0] sm:$0xff]
    %v1874 = vld [vmem:[#allocation13 + $0xe8] sm:$0xff]
    %v1875 = vld [vmem:[#allocation13 + $0xf0] sm:$0xff]
    %v1876 = vld [vmem:[#allocation13 + $0xf8] sm:$0xff]
    %v1877 = vld [vmem:[#allocation13 + $0x100] sm:$0xff]
    %v1878 = vld [vmem:[#allocation13 + $0x108] sm:$0xff]
    %v1879 = vld [vmem:[#allocation13 + $0x110] sm:$0xff]
    %v1880 = vld [vmem:[#allocation13 + $0x118] sm:$0xff]
    %v1881 = vld [vmem:[#allocation13 + $0x120] sm:$0xff]
    %v1882 = vld [vmem:[#allocation13 + $0x128] sm:$0xff]
    %v1883 = vld [vmem:[#allocation13 + $0x130] sm:$0xff]
    %v1884 = vld [vmem:[#allocation13 + $0x138] sm:$0xff]
    %v1885 = vld [vmem:[#allocation13 + $0x140] sm:$0xff]
    %v1886 = vld [vmem:[#allocation13 + $0x148] sm:$0xff]
    %v1887 = vld [vmem:[#allocation13 + $0x150] sm:$0xff]
    %v1888 = vld [vmem:[#allocation13 + $0x158] sm:$0xff]
    %v1889 = vld [vmem:[#allocation13 + $0x160] sm:$0xff]
    %v1890 = vld [vmem:[#allocation13 + $0x168] sm:$0xff]
    %v1891 = vld [vmem:[#allocation13 + $0x170] sm:$0xff]
    %v1892 = vld [vmem:[#allocation13 + $0x178] sm:$0xff]
    %v1893 = vld [vmem:[#allocation13 + $0x180] sm:$0xff]
    %v1894 = vld [vmem:[#allocation13 + $0x188] sm:$0xff]
    %v1895 = vld [vmem:[#allocation13 + $0x190] sm:$0xff]
    %v1896 = vld [vmem:[#allocation13 + $0x198] sm:$0xff]
    %v1897 = vld [vmem:[#allocation13 + $0x1a0] sm:$0xff]
    %v1898 = vld [vmem:[#allocation13 + $0x1a8] sm:$0xff]
    %v1899 = vld [vmem:[#allocation13 + $0x1b0] sm:$0xff]
    %v1900 = vld [vmem:[#allocation13 + $0x1b8] sm:$0xff]
    %v1901 = vld [vmem:[#allocation13 + $0x1c0] sm:$0xff]
    %v1902 = vld [vmem:[#allocation13 + $0x1c8] sm:$0xff]
    %v1903 = vld [vmem:[#allocation13 + $0x1d0] sm:$0xff]
    %v1904 = vld [vmem:[#allocation13 + $0x1d8] sm:$0xff]
    %v1905 = vld [vmem:[#allocation13 + $0x1e0] sm:$0xff]
    %v1906 = vld [vmem:[#allocation13 + $0x1e8] sm:$0xff]
    %v1907 = vld [vmem:[#allocation13 + $0x1f0] sm:$0xff]
    %v1908 = vld [vmem:[#allocation13 + $0x1f8] sm:$0xff]
    %v1909 = vld [vmem:[#allocation13 + $0x200] sm:$0xff]
    %v1910 = vld [vmem:[#allocation13 + $0x208] sm:$0xff]
    %v1911 = vld [vmem:[#allocation13 + $0x210] sm:$0xff]
    %v1912 = vld [vmem:[#allocation13 + $0x218] sm:$0xff]
    %v1913 = vld [vmem:[#allocation13 + $0x220] sm:$0xff]
    %v1914 = vld [vmem:[#allocation13 + $0x228] sm:$0xff]
    %v1915 = vld [vmem:[#allocation13 + $0x230] sm:$0xff]
    %v1916 = vld [vmem:[#allocation13 + $0x238] sm:$0xff]
    %v1917 = vld [vmem:[#allocation13 + $0x240] sm:$0xff]
    %v1918 = vld [vmem:[#allocation13 + $0x248] sm:$0xff]
    %v1919 = vld [vmem:[#allocation13 + $0x250] sm:$0xff]
    %v1920 = vld [vmem:[#allocation13 + $0x258] sm:$0xff]
    %v1921 = vld [vmem:[#allocation13 + $0x260] sm:$0xff]
    %v1922 = vld [vmem:[#allocation13 + $0x268] sm:$0xff]
    %v1923 = vld [vmem:[#allocation13 + $0x270] sm:$0xff]
    %v1924 = vld [vmem:[#allocation13 + $0x278] sm:$0xff]
    %v1925 = vld [vmem:[#allocation13 + $0x280] sm:$0xff]
    %v1926 = vld [vmem:[#allocation13 + $0x288] sm:$0xff]
    %v1927 = vld [vmem:[#allocation13 + $0x290] sm:$0xff]
    %v1928 = vld [vmem:[#allocation13 + $0x298] sm:$0xff]
    %v1929 = vld [vmem:[#allocation13 + $0x2a0] sm:$0xff]
    %v1930 = vld [vmem:[#allocation13 + $0x2a8] sm:$0xff]
    %v1931 = vld [vmem:[#allocation13 + $0x2b0] sm:$0xff]
    %v1932 = vld [vmem:[#allocation13 + $0x2b8] sm:$0xff]
    %v1933 = vld [vmem:[#allocation13 + $0x2c0] sm:$0xff]
    %v1934 = vld [vmem:[#allocation13 + $0x2c8] sm:$0xff]
    %v1935 = vld [vmem:[#allocation13 + $0x2d0] sm:$0xff]
    %v1936 = vld [vmem:[#allocation13 + $0x2d8] sm:$0xff]
    %v1937 = vld [vmem:[#allocation13 + $0x2e0] sm:$0xff]
    %v1938 = vld [vmem:[#allocation13 + $0x2e8] sm:$0xff]
    %v1939 = vld [vmem:[#allocation13 + $0x2f0] sm:$0xff]
    %v1940 = vld [vmem:[#allocation13 + $0x2f8] sm:$0xff]
    %v1941 = vld [vmem:[#allocation13 + $0x300] sm:$0xff]
    %v1942 = vld [vmem:[#allocation13 + $0x308] sm:$0xff]
    %v1943 = vld [vmem:[#allocation13 + $0x310] sm:$0xff]
    %v1944 = vld [vmem:[#allocation13 + $0x318] sm:$0xff]
    %v1945 = vld [vmem:[#allocation13 + $0x320] sm:$0xff]
    %v1946 = vld [vmem:[#allocation13 + $0x328] sm:$0xff]
    %v1947 = vld [vmem:[#allocation13 + $0x330] sm:$0xff]
    %v1948 = vld [vmem:[#allocation13 + $0x338] sm:$0xff]
    %v1949 = vld [vmem:[#allocation13 + $0x340] sm:$0xff]
    %v1950 = vld [vmem:[#allocation13 + $0x348] sm:$0xff]
    %v1951 = vld [vmem:[#allocation13 + $0x350] sm:$0xff]
    %v1952 = vld [vmem:[#allocation13 + $0x358] sm:$0xff]
    %v1953 = vld [vmem:[#allocation13 + $0x360] sm:$0xff]
    %v1954 = vld [vmem:[#allocation13 + $0x368] sm:$0xff]
    %v1955 = vld [vmem:[#allocation13 + $0x370] sm:$0xff]
    %v1956 = vld [vmem:[#allocation13 + $0x378] sm:$0xff]
    %v1957 = vld [vmem:[#allocation13 + $0x380] sm:$0xff]
    %v1958 = vld [vmem:[#allocation13 + $0x388] sm:$0xff]
    %v1959 = vld [vmem:[#allocation13 + $0x390] sm:$0xff]
    %v1960 = vld [vmem:[#allocation13 + $0x398] sm:$0xff]
    %v1961 = vld [vmem:[#allocation13 + $0x3a0] sm:$0xff]
    %v1962 = vld [vmem:[#allocation13 + $0x3a8] sm:$0xff]
    %v1963 = vld [vmem:[#allocation13 + $0x3b0] sm:$0xff]
    %v1964 = vld [vmem:[#allocation13 + $0x3b8] sm:$0xff]
    %v1965 = vld [vmem:[#allocation13 + $0x3c0] sm:$0xff]
    %v1966 = vld [vmem:[#allocation13 + $0x3c8] sm:$0xff]
    %v1967 = vld [vmem:[#allocation13 + $0x3d0] sm:$0xff]
    %v1968 = vld [vmem:[#allocation13 + $0x3d8] sm:$0xff]
    %v1969 = vld [vmem:[#allocation13 + $0x3e0] sm:$0xff]
    %v1970 = vld [vmem:[#allocation13 + $0x3e8] sm:$0xff]
    %v1971 = vld [vmem:[#allocation13 + $0x3f0] sm:$0xff]
    %v1972 = vld [vmem:[#allocation13 + $0x3f8] sm:$0xff]
    %v1973 = vld [vmem:[#allocation13 + $0x400] sm:$0xff]
    %v1974 = vld [vmem:[#allocation13 + $0x408] sm:$0xff]
    %v1975 = vld [vmem:[#allocation13 + $0x410] sm:$0xff]
    %v1976 = vld [vmem:[#allocation13 + $0x418] sm:$0xff]
    %v1977 = vld [vmem:[#allocation13 + $0x420] sm:$0xff]
    %v1978 = vld [vmem:[#allocation13 + $0x428] sm:$0xff]
    %v1979 = vld [vmem:[#allocation13 + $0x430] sm:$0xff]
    %v1980 = vld [vmem:[#allocation13 + $0x438] sm:$0xff]
    %v1981 = vld [vmem:[#allocation13 + $0x440] sm:$0xff]
    %v1982 = vld [vmem:[#allocation13 + $0x448] sm:$0xff]
    %v1983 = vld [vmem:[#allocation13 + $0x450] sm:$0xff]
    %v1984 = vld [vmem:[#allocation13 + $0x458] sm:$0xff]
    %v1985 = vld [vmem:[#allocation13 + $0x460] sm:$0xff]
    %v1986 = vld [vmem:[#allocation13 + $0x468] sm:$0xff]
    %v1987 = vld [vmem:[#allocation13 + $0x470] sm:$0xff]
    %v1988 = vld [vmem:[#allocation13 + $0x478] sm:$0xff]
    %v1989 = vld [vmem:[#allocation13 + $0x480] sm:$0xff]
    %v1990 = vld [vmem:[#allocation13 + $0x488] sm:$0xff]
    %v1991 = vld [vmem:[#allocation13 + $0x490] sm:$0xff]
    %v1992 = vld [vmem:[#allocation13 + $0x498] sm:$0xff]
    %v1993 = vld [vmem:[#allocation13 + $0x4a0] sm:$0xff]
    %v1994 = vld [vmem:[#allocation13 + $0x4a8] sm:$0xff]
    %v1995 = vld [vmem:[#allocation13 + $0x4b0] sm:$0xff]
    %v1996 = vld [vmem:[#allocation13 + $0x4b8] sm:$0xff]
    %v1997 = vld [vmem:[#allocation13 + $0x4c0] sm:$0xff]
    %v1998 = vld [vmem:[#allocation13 + $0x4c8] sm:$0xff]
    %v1999 = vld [vmem:[#allocation13 + $0x4d0] sm:$0xff]
    %v2000 = vld [vmem:[#allocation13 + $0x4d8] sm:$0xff]
    %v2001 = vld [vmem:[#allocation13 + $0x4e0] sm:$0xff]
    %v2002 = vld [vmem:[#allocation13 + $0x4e8] sm:$0xff]
    %v2003 = vld [vmem:[#allocation13 + $0x4f0] sm:$0xff]
    %v2004 = vld [vmem:[#allocation13 + $0x4f8] sm:$0xff]
    %v2005 = vld [vmem:[#allocation13 + $0x500] sm:$0xff]
    %v2006 = vld [vmem:[#allocation13 + $0x508] sm:$0xff]
    %v2007 = vld [vmem:[#allocation13 + $0x510] sm:$0xff]
    %v2008 = vld [vmem:[#allocation13 + $0x518] sm:$0xff]
    %v2009 = vld [vmem:[#allocation13 + $0x520] sm:$0xff]
    %v2010 = vld [vmem:[#allocation13 + $0x528] sm:$0xff]
    %v2011 = vld [vmem:[#allocation13 + $0x530] sm:$0xff]
    %v2012 = vld [vmem:[#allocation13 + $0x538] sm:$0xff]
    %v2013 = vld [vmem:[#allocation13 + $0x540] sm:$0xff]
    %v2014 = vld [vmem:[#allocation13 + $0x548] sm:$0xff]
    %v2015 = vld [vmem:[#allocation13 + $0x550] sm:$0xff]
    %v2016 = vld [vmem:[#allocation13 + $0x558] sm:$0xff]
    %v2017 = vld [vmem:[#allocation13 + $0x560] sm:$0xff]
    %v2018 = vld [vmem:[#allocation13 + $0x568] sm:$0xff]
    %v2019 = vld [vmem:[#allocation13 + $0x570] sm:$0xff]
    %v2020 = vld [vmem:[#allocation13 + $0x578] sm:$0xff]
    %v2021 = vld [vmem:[#allocation13 + $0x580] sm:$0xff]
    %v2022 = vld [vmem:[#allocation13 + $0x588] sm:$0xff]
    %v2023 = vld [vmem:[#allocation13 + $0x590] sm:$0xff]
    %v2024 = vld [vmem:[#allocation13 + $0x598] sm:$0xff]
    %v2025 = vld [vmem:[#allocation13 + $0x5a0] sm:$0xff]
    %v2026 = vld [vmem:[#allocation13 + $0x5a8] sm:$0xff]
    %v2027 = vld [vmem:[#allocation13 + $0x5b0] sm:$0xff]
    %v2028 = vld [vmem:[#allocation13 + $0x5b8] sm:$0xff]
    %v2029 = vld [vmem:[#allocation13 + $0x5c0] sm:$0xff]
    %v2030 = vld [vmem:[#allocation13 + $0x5c8] sm:$0xff]
    %v2031 = vld [vmem:[#allocation13 + $0x5d0] sm:$0xff]
    %v2032 = vld [vmem:[#allocation13 + $0x5d8] sm:$0xff]
    %v2033 = vld [vmem:[#allocation13 + $0x5e0] sm:$0xff]
    %v2034 = vld [vmem:[#allocation13 + $0x5e8] sm:$0xff]
    %v2035 = vld [vmem:[#allocation13 + $0x5f0] sm:$0xff]
    %v2036 = vld [vmem:[#allocation13 + $0x5f8] sm:$0xff]
    %v2043 = vunpack.c.l.b16 %v1839
    %v2044 = vunpack.c.h.b16 %v1839
    %v2045 = vunpack.c.l.b16 %v1840
    %v2046 = vunpack.c.h.b16 %v1840
    %v2047 = vunpack.c.l.b16 %v1841
    %v2048 = vunpack.c.h.b16 %v1841
    %v2049 = vunpack.c.l.b16 %v1842
    %v2050 = vunpack.c.h.b16 %v1842
    %v2051 = vunpack.c.l.b16 %v1843
    %v2052 = vunpack.c.h.b16 %v1843
    %v2053 = vunpack.c.l.b16 %v1844
    %v2054 = vunpack.c.h.b16 %v1844
    %v2055 = vpack.c.b16 %v2049, %v2043
    %v2056 = vpack.c.b16 %v2050, %v2044
    %v2057 = vpack.c.b16 %v2051, %v2045
    %v2058 = vpack.c.b16 %v2052, %v2046
    %v2059 = vpack.c.b16 %v2053, %v2047
    %v2060 = vpack.c.b16 %v2054, %v2048
    %v2259 = vunpack.c.l.b16 %v1845
    %v2260 = vunpack.c.h.b16 %v1845
    %v2261 = vunpack.c.l.b16 %v1846
    %v2262 = vunpack.c.h.b16 %v1846
    %v2263 = vunpack.c.l.b16 %v1847
    %v2264 = vunpack.c.h.b16 %v1847
    %v2265 = vunpack.c.l.b16 %v1848
    %v2266 = vunpack.c.h.b16 %v1848
    %v2267 = vunpack.c.l.b16 %v1849
    %v2268 = vunpack.c.h.b16 %v1849
    %v2269 = vunpack.c.l.b16 %v1850
    %v2270 = vunpack.c.h.b16 %v1850
    %v2271 = vunpack.c.l.b16 %v1851
    %v2272 = vunpack.c.h.b16 %v1851
    %v2273 = vunpack.c.l.b16 %v1852
    %v2274 = vunpack.c.h.b16 %v1852
    %v2275 = vunpack.c.l.b16 %v1853
    %v2276 = vunpack.c.h.b16 %v1853
    %v2277 = vunpack.c.l.b16 %v1854
    %v2278 = vunpack.c.h.b16 %v1854
    %v2279 = vunpack.c.l.b16 %v1855
    %v2280 = vunpack.c.h.b16 %v1855
    %v2281 = vunpack.c.l.b16 %v1856
    %v2282 = vunpack.c.h.b16 %v1856
    %v2283 = vunpack.c.l.b16 %v1857
    %v2284 = vunpack.c.h.b16 %v1857
    %v2285 = vunpack.c.l.b16 %v1858
    %v2286 = vunpack.c.h.b16 %v1858
    %v2287 = vunpack.c.l.b16 %v1859
    %v2288 = vunpack.c.h.b16 %v1859
    %v2289 = vunpack.c.l.b16 %v1860
    %v2290 = vunpack.c.h.b16 %v1860
    %v2291 = vunpack.c.l.b16 %v1861
    %v2292 = vunpack.c.h.b16 %v1861
    %v2293 = vunpack.c.l.b16 %v1862
    %v2294 = vunpack.c.h.b16 %v1862
    %v2295 = vunpack.c.l.b16 %v1863
    %v2296 = vunpack.c.h.b16 %v1863
    %v2297 = vunpack.c.l.b16 %v1864
    %v2298 = vunpack.c.h.b16 %v1864
    %v2299 = vunpack.c.l.b16 %v1865
    %v2300 = vunpack.c.h.b16 %v1865
    %v2301 = vunpack.c.l.b16 %v1866
    %v2302 = vunpack.c.h.b16 %v1866
    %v2303 = vunpack.c.l.b16 %v1867
    %v2304 = vunpack.c.h.b16 %v1867
    %v2305 = vunpack.c.l.b16 %v1868
    %v2306 = vunpack.c.h.b16 %v1868
    %v2307 = vunpack.c.l.b16 %v1869
    %v2308 = vunpack.c.h.b16 %v1869
    %v2309 = vunpack.c.l.b16 %v1870
    %v2310 = vunpack.c.h.b16 %v1870
    %v2311 = vunpack.c.l.b16 %v1871
    %v2312 = vunpack.c.h.b16 %v1871
    %v2313 = vunpack.c.l.b16 %v1872
    %v2314 = vunpack.c.h.b16 %v1872
    %v2315 = vunpack.c.l.b16 %v1873
    %v2316 = vunpack.c.h.b16 %v1873
    %v2317 = vunpack.c.l.b16 %v1874
    %v2318 = vunpack.c.h.b16 %v1874
    %v2319 = vunpack.c.l.b16 %v1875
    %v2320 = vunpack.c.h.b16 %v1875
    %v2321 = vunpack.c.l.b16 %v1876
    %v2322 = vunpack.c.h.b16 %v1876
    %v2323 = vunpack.c.l.b16 %v1877
    %v2324 = vunpack.c.h.b16 %v1877
    %v2325 = vunpack.c.l.b16 %v1878
    %v2326 = vunpack.c.h.b16 %v1878
    %v2327 = vunpack.c.l.b16 %v1879
    %v2328 = vunpack.c.h.b16 %v1879
    %v2329 = vunpack.c.l.b16 %v1880
    %v2330 = vunpack.c.h.b16 %v1880
    %v2331 = vunpack.c.l.b16 %v1881
    %v2332 = vunpack.c.h.b16 %v1881
    %v2333 = vunpack.c.l.b16 %v1882
    %v2334 = vunpack.c.h.b16 %v1882
    %v2335 = vunpack.c.l.b16 %v1883
    %v2336 = vunpack.c.h.b16 %v1883
    %v2337 = vunpack.c.l.b16 %v1884
    %v2338 = vunpack.c.h.b16 %v1884
    %v2339 = vunpack.c.l.b16 %v1885
    %v2340 = vunpack.c.h.b16 %v1885
    %v2341 = vunpack.c.l.b16 %v1886
    %v2342 = vunpack.c.h.b16 %v1886
    %v2343 = vunpack.c.l.b16 %v1887
    %v2344 = vunpack.c.h.b16 %v1887
    %v2345 = vunpack.c.l.b16 %v1888
    %v2346 = vunpack.c.h.b16 %v1888
    %v2347 = vunpack.c.l.b16 %v1889
    %v2348 = vunpack.c.h.b16 %v1889
    %v2349 = vunpack.c.l.b16 %v1890
    %v2350 = vunpack.c.h.b16 %v1890
    %v2351 = vunpack.c.l.b16 %v1891
    %v2352 = vunpack.c.h.b16 %v1891
    %v2353 = vunpack.c.l.b16 %v1892
    %v2354 = vunpack.c.h.b16 %v1892
    %v2355 = vunpack.c.l.b16 %v1893
    %v2356 = vunpack.c.h.b16 %v1893
    %v2357 = vunpack.c.l.b16 %v1894
    %v2358 = vunpack.c.h.b16 %v1894
    %v2359 = vunpack.c.l.b16 %v1895
    %v2360 = vunpack.c.h.b16 %v1895
    %v2361 = vunpack.c.l.b16 %v1896
    %v2362 = vunpack.c.h.b16 %v1896
    %v2363 = vunpack.c.l.b16 %v1897
    %v2364 = vunpack.c.h.b16 %v1897
    %v2365 = vunpack.c.l.b16 %v1898
    %v2366 = vunpack.c.h.b16 %v1898
    %v2367 = vunpack.c.l.b16 %v1899
    %v2368 = vunpack.c.h.b16 %v1899
    %v2369 = vunpack.c.l.b16 %v1900
    %v2370 = vunpack.c.h.b16 %v1900
    %v2371 = vunpack.c.l.b16 %v1901
    %v2372 = vunpack.c.h.b16 %v1901
    %v2373 = vunpack.c.l.b16 %v1902
    %v2374 = vunpack.c.h.b16 %v1902
    %v2375 = vunpack.c.l.b16 %v1903
    %v2376 = vunpack.c.h.b16 %v1903
    %v2377 = vunpack.c.l.b16 %v1904
    %v2378 = vunpack.c.h.b16 %v1904
    %v2379 = vunpack.c.l.b16 %v1905
    %v2380 = vunpack.c.h.b16 %v1905
    %v2381 = vunpack.c.l.b16 %v1906
    %v2382 = vunpack.c.h.b16 %v1906
    %v2383 = vunpack.c.l.b16 %v1907
    %v2384 = vunpack.c.h.b16 %v1907
    %v2385 = vunpack.c.l.b16 %v1908
    %v2386 = vunpack.c.h.b16 %v1908
    %v2387 = vunpack.c.l.b16 %v1909
    %v2388 = vunpack.c.h.b16 %v1909
    %v2389 = vunpack.c.l.b16 %v1910
    %v2390 = vunpack.c.h.b16 %v1910
    %v2391 = vunpack.c.l.b16 %v1911
    %v2392 = vunpack.c.h.b16 %v1911
    %v2393 = vunpack.c.l.b16 %v1912
    %v2394 = vunpack.c.h.b16 %v1912
    %v2395 = vunpack.c.l.b16 %v1913
    %v2396 = vunpack.c.h.b16 %v1913
    %v2397 = vunpack.c.l.b16 %v1914
    %v2398 = vunpack.c.h.b16 %v1914
    %v2399 = vunpack.c.l.b16 %v1915
    %v2400 = vunpack.c.h.b16 %v1915
    %v2401 = vunpack.c.l.b16 %v1916
    %v2402 = vunpack.c.h.b16 %v1916
    %v2403 = vunpack.c.l.b16 %v1917
    %v2404 = vunpack.c.h.b16 %v1917
    %v2405 = vunpack.c.l.b16 %v1918
    %v2406 = vunpack.c.h.b16 %v1918
    %v2407 = vunpack.c.l.b16 %v1919
    %v2408 = vunpack.c.h.b16 %v1919
    %v2409 = vunpack.c.l.b16 %v1920
    %v2410 = vunpack.c.h.b16 %v1920
    %v2411 = vunpack.c.l.b16 %v1921
    %v2412 = vunpack.c.h.b16 %v1921
    %v2413 = vunpack.c.l.b16 %v1922
    %v2414 = vunpack.c.h.b16 %v1922
    %v2415 = vunpack.c.l.b16 %v1923
    %v2416 = vunpack.c.h.b16 %v1923
    %v2417 = vunpack.c.l.b16 %v1924
    %v2418 = vunpack.c.h.b16 %v1924
    %v2419 = vunpack.c.l.b16 %v1925
    %v2420 = vunpack.c.h.b16 %v1925
    %v2421 = vunpack.c.l.b16 %v1926
    %v2422 = vunpack.c.h.b16 %v1926
    %v2423 = vunpack.c.l.b16 %v1927
    %v2424 = vunpack.c.h.b16 %v1927
    %v2425 = vunpack.c.l.b16 %v1928
    %v2426 = vunpack.c.h.b16 %v1928
    %v2427 = vunpack.c.l.b16 %v1929
    %v2428 = vunpack.c.h.b16 %v1929
    %v2429 = vunpack.c.l.b16 %v1930
    %v2430 = vunpack.c.h.b16 %v1930
    %v2431 = vunpack.c.l.b16 %v1931
    %v2432 = vunpack.c.h.b16 %v1931
    %v2433 = vunpack.c.l.b16 %v1932
    %v2434 = vunpack.c.h.b16 %v1932
    %v2435 = vunpack.c.l.b16 %v1933
    %v2436 = vunpack.c.h.b16 %v1933
    %v2437 = vunpack.c.l.b16 %v1934
    %v2438 = vunpack.c.h.b16 %v1934
    %v2439 = vunpack.c.l.b16 %v1935
    %v2440 = vunpack.c.h.b16 %v1935
    %v2441 = vunpack.c.l.b16 %v1936
    %v2442 = vunpack.c.h.b16 %v1936
    %v2443 = vunpack.c.l.b16 %v1937
    %v2444 = vunpack.c.h.b16 %v1937
    %v2445 = vunpack.c.l.b16 %v1938
    %v2446 = vunpack.c.h.b16 %v1938
    %v2447 = vunpack.c.l.b16 %v1939
    %v2448 = vunpack.c.h.b16 %v1939
    %v2449 = vunpack.c.l.b16 %v1940
    %v2450 = vunpack.c.h.b16 %v1940
    %v2451 = vunpack.c.l.b16 %v1941
    %v2452 = vunpack.c.h.b16 %v1941
    %v2453 = vunpack.c.l.b16 %v1942
    %v2454 = vunpack.c.h.b16 %v1942
    %v2455 = vunpack.c.l.b16 %v1943
    %v2456 = vunpack.c.h.b16 %v1943
    %v2457 = vunpack.c.l.b16 %v1944
    %v2458 = vunpack.c.h.b16 %v1944
    %v2459 = vunpack.c.l.b16 %v1945
    %v2460 = vunpack.c.h.b16 %v1945
    %v2461 = vunpack.c.l.b16 %v1946
    %v2462 = vunpack.c.h.b16 %v1946
    %v2463 = vunpack.c.l.b16 %v1947
    %v2464 = vunpack.c.h.b16 %v1947
    %v2465 = vunpack.c.l.b16 %v1948
    %v2466 = vunpack.c.h.b16 %v1948
    %v2467 = vunpack.c.l.b16 %v1949
    %v2468 = vunpack.c.h.b16 %v1949
    %v2469 = vunpack.c.l.b16 %v1950
    %v2470 = vunpack.c.h.b16 %v1950
    %v2471 = vunpack.c.l.b16 %v1951
    %v2472 = vunpack.c.h.b16 %v1951
    %v2473 = vunpack.c.l.b16 %v1952
    %v2474 = vunpack.c.h.b16 %v1952
    %v2475 = vunpack.c.l.b16 %v1953
    %v2476 = vunpack.c.h.b16 %v1953
    %v2477 = vunpack.c.l.b16 %v1954
    %v2478 = vunpack.c.h.b16 %v1954
    %v2479 = vunpack.c.l.b16 %v1955
    %v2480 = vunpack.c.h.b16 %v1955
    %v2481 = vunpack.c.l.b16 %v1956
    %v2482 = vunpack.c.h.b16 %v1956
    %v2483 = vunpack.c.l.b16 %v1957
    %v2484 = vunpack.c.h.b16 %v1957
    %v2485 = vunpack.c.l.b16 %v1958
    %v2486 = vunpack.c.h.b16 %v1958
    %v2487 = vunpack.c.l.b16 %v1959
    %v2488 = vunpack.c.h.b16 %v1959
    %v2489 = vunpack.c.l.b16 %v1960
    %v2490 = vunpack.c.h.b16 %v1960
    %v2491 = vunpack.c.l.b16 %v1961
    %v2492 = vunpack.c.h.b16 %v1961
    %v2493 = vunpack.c.l.b16 %v1962
    %v2494 = vunpack.c.h.b16 %v1962
    %v2495 = vunpack.c.l.b16 %v1963
    %v2496 = vunpack.c.h.b16 %v1963
    %v2497 = vunpack.c.l.b16 %v1964
    %v2498 = vunpack.c.h.b16 %v1964
    %v2499 = vunpack.c.l.b16 %v1965
    %v2500 = vunpack.c.h.b16 %v1965
    %v2501 = vunpack.c.l.b16 %v1966
    %v2502 = vunpack.c.h.b16 %v1966
    %v2503 = vunpack.c.l.b16 %v1967
    %v2504 = vunpack.c.h.b16 %v1967
    %v2505 = vunpack.c.l.b16 %v1968
    %v2506 = vunpack.c.h.b16 %v1968
    %v2507 = vunpack.c.l.b16 %v1969
    %v2508 = vunpack.c.h.b16 %v1969
    %v2509 = vunpack.c.l.b16 %v1970
    %v2510 = vunpack.c.h.b16 %v1970
    %v2511 = vunpack.c.l.b16 %v1971
    %v2512 = vunpack.c.h.b16 %v1971
    %v2513 = vunpack.c.l.b16 %v1972
    %v2514 = vunpack.c.h.b16 %v1972
    %v2515 = vunpack.c.l.b16 %v1973
    %v2516 = vunpack.c.h.b16 %v1973
    %v2517 = vunpack.c.l.b16 %v1974
    %v2518 = vunpack.c.h.b16 %v1974
    %v2519 = vunpack.c.l.b16 %v1975
    %v2520 = vunpack.c.h.b16 %v1975
    %v2521 = vunpack.c.l.b16 %v1976
    %v2522 = vunpack.c.h.b16 %v1976
    %v2523 = vunpack.c.l.b16 %v1977
    %v2524 = vunpack.c.h.b16 %v1977
    %v2525 = vunpack.c.l.b16 %v1978
    %v2526 = vunpack.c.h.b16 %v1978
    %v2527 = vunpack.c.l.b16 %v1979
    %v2528 = vunpack.c.h.b16 %v1979
    %v2529 = vunpack.c.l.b16 %v1980
    %v2530 = vunpack.c.h.b16 %v1980
    %v2531 = vunpack.c.l.b16 %v1981
    %v2532 = vunpack.c.h.b16 %v1981
    %v2533 = vunpack.c.l.b16 %v1982
    %v2534 = vunpack.c.h.b16 %v1982
    %v2535 = vunpack.c.l.b16 %v1983
    %v2536 = vunpack.c.h.b16 %v1983
    %v2537 = vunpack.c.l.b16 %v1984
    %v2538 = vunpack.c.h.b16 %v1984
    %v2539 = vunpack.c.l.b16 %v1985
    %v2540 = vunpack.c.h.b16 %v1985
    %v2541 = vunpack.c.l.b16 %v1986
    %v2542 = vunpack.c.h.b16 %v1986
    %v2543 = vunpack.c.l.b16 %v1987
    %v2544 = vunpack.c.h.b16 %v1987
    %v2545 = vunpack.c.l.b16 %v1988
    %v2546 = vunpack.c.h.b16 %v1988
    %v2547 = vunpack.c.l.b16 %v1989
    %v2548 = vunpack.c.h.b16 %v1989
    %v2549 = vunpack.c.l.b16 %v1990
    %v2550 = vunpack.c.h.b16 %v1990
    %v2551 = vunpack.c.l.b16 %v1991
    %v2552 = vunpack.c.h.b16 %v1991
    %v2553 = vunpack.c.l.b16 %v1992
    %v2554 = vunpack.c.h.b16 %v1992
    %v2555 = vunpack.c.l.b16 %v1993
    %v2556 = vunpack.c.h.b16 %v1993
    %v2557 = vunpack.c.l.b16 %v1994
    %v2558 = vunpack.c.h.b16 %v1994
    %v2559 = vunpack.c.l.b16 %v1995
    %v2560 = vunpack.c.h.b16 %v1995
    %v2561 = vunpack.c.l.b16 %v1996
    %v2562 = vunpack.c.h.b16 %v1996
    %v2563 = vunpack.c.l.b16 %v1997
    %v2564 = vunpack.c.h.b16 %v1997
    %v2565 = vunpack.c.l.b16 %v1998
    %v2566 = vunpack.c.h.b16 %v1998
    %v2567 = vunpack.c.l.b16 %v1999
    %v2568 = vunpack.c.h.b16 %v1999
    %v2569 = vunpack.c.l.b16 %v2000
    %v2570 = vunpack.c.h.b16 %v2000
    %v2571 = vunpack.c.l.b16 %v2001
    %v2572 = vunpack.c.h.b16 %v2001
    %v2573 = vunpack.c.l.b16 %v2002
    %v2574 = vunpack.c.h.b16 %v2002
    %v2575 = vunpack.c.l.b16 %v2003
    %v2576 = vunpack.c.h.b16 %v2003
    %v2577 = vunpack.c.l.b16 %v2004
    %v2578 = vunpack.c.h.b16 %v2004
    %v2579 = vunpack.c.l.b16 %v2005
    %v2580 = vunpack.c.h.b16 %v2005
    %v2581 = vunpack.c.l.b16 %v2006
    %v2582 = vunpack.c.h.b16 %v2006
    %v2583 = vunpack.c.l.b16 %v2007
    %v2584 = vunpack.c.h.b16 %v2007
    %v2585 = vunpack.c.l.b16 %v2008
    %v2586 = vunpack.c.h.b16 %v2008
    %v2587 = vunpack.c.l.b16 %v2009
    %v2588 = vunpack.c.h.b16 %v2009
    %v2589 = vunpack.c.l.b16 %v2010
    %v2590 = vunpack.c.h.b16 %v2010
    %v2591 = vunpack.c.l.b16 %v2011
    %v2592 = vunpack.c.h.b16 %v2011
    %v2593 = vunpack.c.l.b16 %v2012
    %v2594 = vunpack.c.h.b16 %v2012
    %v2595 = vunpack.c.l.b16 %v2013
    %v2596 = vunpack.c.h.b16 %v2013
    %v2597 = vunpack.c.l.b16 %v2014
    %v2598 = vunpack.c.h.b16 %v2014
    %v2599 = vunpack.c.l.b16 %v2015
    %v2600 = vunpack.c.h.b16 %v2015
    %v2601 = vunpack.c.l.b16 %v2016
    %v2602 = vunpack.c.h.b16 %v2016
    %v2603 = vunpack.c.l.b16 %v2017
    %v2604 = vunpack.c.h.b16 %v2017
    %v2605 = vunpack.c.l.b16 %v2018
    %v2606 = vunpack.c.h.b16 %v2018
    %v2607 = vunpack.c.l.b16 %v2019
    %v2608 = vunpack.c.h.b16 %v2019
    %v2609 = vunpack.c.l.b16 %v2020
    %v2610 = vunpack.c.h.b16 %v2020
    %v2611 = vunpack.c.l.b16 %v2021
    %v2612 = vunpack.c.h.b16 %v2021
    %v2613 = vunpack.c.l.b16 %v2022
    %v2614 = vunpack.c.h.b16 %v2022
    %v2615 = vunpack.c.l.b16 %v2023
    %v2616 = vunpack.c.h.b16 %v2023
    %v2617 = vunpack.c.l.b16 %v2024
    %v2618 = vunpack.c.h.b16 %v2024
    %v2619 = vunpack.c.l.b16 %v2025
    %v2620 = vunpack.c.h.b16 %v2025
    %v2621 = vunpack.c.l.b16 %v2026
    %v2622 = vunpack.c.h.b16 %v2026
    %v2623 = vunpack.c.l.b16 %v2027
    %v2624 = vunpack.c.h.b16 %v2027
    %v2625 = vunpack.c.l.b16 %v2028
    %v2626 = vunpack.c.h.b16 %v2028
    %v2627 = vunpack.c.l.b16 %v2029
    %v2628 = vunpack.c.h.b16 %v2029
    %v2629 = vunpack.c.l.b16 %v2030
    %v2630 = vunpack.c.h.b16 %v2030
    %v2631 = vunpack.c.l.b16 %v2031
    %v2632 = vunpack.c.h.b16 %v2031
    %v2633 = vunpack.c.l.b16 %v2032
    %v2634 = vunpack.c.h.b16 %v2032
    %v2635 = vunpack.c.l.b16 %v2033
    %v2636 = vunpack.c.h.b16 %v2033
    %v2637 = vunpack.c.l.b16 %v2034
    %v2638 = vunpack.c.h.b16 %v2034
    %v2639 = vunpack.c.l.b16 %v2035
    %v2640 = vunpack.c.h.b16 %v2035
    %v2641 = vunpack.c.l.b16 %v2036
    %v2642 = vunpack.c.h.b16 %v2036
    %v2643 = vpack.c.b16 %v2263, %v2259
    %v2644 = vpack.c.b16 %v2264, %v2260
    %v2645 = vpack.c.b16 %v2265, %v2261
    %v2646 = vpack.c.b16 %v2266, %v2262
    %v2647 = vpack.c.b16 %v2271, %v2267
    %v2648 = vpack.c.b16 %v2272, %v2268
    %v2649 = vpack.c.b16 %v2273, %v2269
    %v2650 = vpack.c.b16 %v2274, %v2270
    %v2651 = vpack.c.b16 %v2279, %v2275
    %v2652 = vpack.c.b16 %v2280, %v2276
    %v2653 = vpack.c.b16 %v2281, %v2277
    %v2654 = vpack.c.b16 %v2282, %v2278
    %v2655 = vpack.c.b16 %v2287, %v2283
    %v2656 = vpack.c.b16 %v2288, %v2284
    %v2657 = vpack.c.b16 %v2289, %v2285
    %v2658 = vpack.c.b16 %v2290, %v2286
    %v2659 = vpack.c.b16 %v2295, %v2291
    %v2660 = vpack.c.b16 %v2296, %v2292
    %v2661 = vpack.c.b16 %v2297, %v2293
    %v2662 = vpack.c.b16 %v2298, %v2294
    %v2663 = vpack.c.b16 %v2303, %v2299
    %v2664 = vpack.c.b16 %v2304, %v2300
    %v2665 = vpack.c.b16 %v2305, %v2301
    %v2666 = vpack.c.b16 %v2306, %v2302
    %v2667 = vpack.c.b16 %v2311, %v2307
    %v2668 = vpack.c.b16 %v2312, %v2308
    %v2669 = vpack.c.b16 %v2313, %v2309
    %v2670 = vpack.c.b16 %v2314, %v2310
    %v2671 = vpack.c.b16 %v2319, %v2315
    %v2672 = vpack.c.b16 %v2320, %v2316
    %v2673 = vpack.c.b16 %v2321, %v2317
    %v2674 = vpack.c.b16 %v2322, %v2318
    %v2675 = vpack.c.b16 %v2327, %v2323
    %v2676 = vpack.c.b16 %v2328, %v2324
    %v2677 = vpack.c.b16 %v2329, %v2325
    %v2678 = vpack.c.b16 %v2330, %v2326
    %v2679 = vpack.c.b16 %v2335, %v2331
    %v2680 = vpack.c.b16 %v2336, %v2332
    %v2681 = vpack.c.b16 %v2337, %v2333
    %v2682 = vpack.c.b16 %v2338, %v2334
    %v2683 = vpack.c.b16 %v2343, %v2339
    %v2684 = vpack.c.b16 %v2344, %v2340
    %v2685 = vpack.c.b16 %v2345, %v2341
    %v2686 = vpack.c.b16 %v2346, %v2342
    %v2687 = vpack.c.b16 %v2351, %v2347
    %v2688 = vpack.c.b16 %v2352, %v2348
    %v2689 = vpack.c.b16 %v2353, %v2349
    %v2690 = vpack.c.b16 %v2354, %v2350
    %v2691 = vpack.c.b16 %v2359, %v2355
    %v2692 = vpack.c.b16 %v2360, %v2356
    %v2693 = vpack.c.b16 %v2361, %v2357
    %v2694 = vpack.c.b16 %v2362, %v2358
    %v2695 = vpack.c.b16 %v2367, %v2363
    %v2696 = vpack.c.b16 %v2368, %v2364
    %v2697 = vpack.c.b16 %v2369, %v2365
    %v2698 = vpack.c.b16 %v2370, %v2366
    %v2699 = vpack.c.b16 %v2375, %v2371
    %v2700 = vpack.c.b16 %v2376, %v2372
    %v2701 = vpack.c.b16 %v2377, %v2373
    %v2702 = vpack.c.b16 %v2378, %v2374
    %v2703 = vpack.c.b16 %v2383, %v2379
    %v2704 = vpack.c.b16 %v2384, %v2380
    %v2705 = vpack.c.b16 %v2385, %v2381
    %v2706 = vpack.c.b16 %v2386, %v2382
    %v2707 = vpack.c.b16 %v2391, %v2387
    %v2708 = vpack.c.b16 %v2392, %v2388
    %v2709 = vpack.c.b16 %v2393, %v2389
    %v2710 = vpack.c.b16 %v2394, %v2390
    %v2711 = vpack.c.b16 %v2399, %v2395
    %v2712 = vpack.c.b16 %v2400, %v2396
    %v2713 = vpack.c.b16 %v2401, %v2397
    %v2714 = vpack.c.b16 %v2402, %v2398
    %v2715 = vpack.c.b16 %v2407, %v2403
    %v2716 = vpack.c.b16 %v2408, %v2404
    %v2717 = vpack.c.b16 %v2409, %v2405
    %v2718 = vpack.c.b16 %v2410, %v2406
    %v2719 = vpack.c.b16 %v2415, %v2411
    %v2720 = vpack.c.b16 %v2416, %v2412
    %v2721 = vpack.c.b16 %v2417, %v2413
    %v2722 = vpack.c.b16 %v2418, %v2414
    %v2723 = vpack.c.b16 %v2423, %v2419
    %v2724 = vpack.c.b16 %v2424, %v2420
    %v2725 = vpack.c.b16 %v2425, %v2421
    %v2726 = vpack.c.b16 %v2426, %v2422
    %v2727 = vpack.c.b16 %v2431, %v2427
    %v2728 = vpack.c.b16 %v2432, %v2428
    %v2729 = vpack.c.b16 %v2433, %v2429
    %v2730 = vpack.c.b16 %v2434, %v2430
    %v2731 = vpack.c.b16 %v2439, %v2435
    %v2732 = vpack.c.b16 %v2440, %v2436
    %v2733 = vpack.c.b16 %v2441, %v2437
    %v2734 = vpack.c.b16 %v2442, %v2438
    %v2735 = vpack.c.b16 %v2447, %v2443
    %v2736 = vpack.c.b16 %v2448, %v2444
    %v2737 = vpack.c.b16 %v2449, %v2445
    %v2738 = vpack.c.b16 %v2450, %v2446
    %v2739 = vpack.c.b16 %v2455, %v2451
    %v2740 = vpack.c.b16 %v2456, %v2452
    %v2741 = vpack.c.b16 %v2457, %v2453
    %v2742 = vpack.c.b16 %v2458, %v2454
    %v2743 = vpack.c.b16 %v2463, %v2459
    %v2744 = vpack.c.b16 %v2464, %v2460
    %v2745 = vpack.c.b16 %v2465, %v2461
    %v2746 = vpack.c.b16 %v2466, %v2462
    %v2747 = vpack.c.b16 %v2471, %v2467
    %v2748 = vpack.c.b16 %v2472, %v2468
    %v2749 = vpack.c.b16 %v2473, %v2469
    %v2750 = vpack.c.b16 %v2474, %v2470
    %v2751 = vpack.c.b16 %v2479, %v2475
    %v2752 = vpack.c.b16 %v2480, %v2476
    %v2753 = vpack.c.b16 %v2481, %v2477
    %v2754 = vpack.c.b16 %v2482, %v2478
    %v2755 = vpack.c.b16 %v2487, %v2483
    %v2756 = vpack.c.b16 %v2488, %v2484
    %v2757 = vpack.c.b16 %v2489, %v2485
    %v2758 = vpack.c.b16 %v2490, %v2486
    %v2759 = vpack.c.b16 %v2495, %v2491
    %v2760 = vpack.c.b16 %v2496, %v2492
    %v2761 = vpack.c.b16 %v2497, %v2493
    %v2762 = vpack.c.b16 %v2498, %v2494
    %v2763 = vpack.c.b16 %v2503, %v2499
    %v2764 = vpack.c.b16 %v2504, %v2500
    %v2765 = vpack.c.b16 %v2505, %v2501
    %v2766 = vpack.c.b16 %v2506, %v2502
    %v2767 = vpack.c.b16 %v2511, %v2507
    %v2768 = vpack.c.b16 %v2512, %v2508
    %v2769 = vpack.c.b16 %v2513, %v2509
    %v2770 = vpack.c.b16 %v2514, %v2510
    %v2771 = vpack.c.b16 %v2519, %v2515
    %v2772 = vpack.c.b16 %v2520, %v2516
    %v2773 = vpack.c.b16 %v2521, %v2517
    %v2774 = vpack.c.b16 %v2522, %v2518
    %v2775 = vpack.c.b16 %v2527, %v2523
    %v2776 = vpack.c.b16 %v2528, %v2524
    %v2777 = vpack.c.b16 %v2529, %v2525
    %v2778 = vpack.c.b16 %v2530, %v2526
    %v2779 = vpack.c.b16 %v2535, %v2531
    %v2780 = vpack.c.b16 %v2536, %v2532
    %v2781 = vpack.c.b16 %v2537, %v2533
    %v2782 = vpack.c.b16 %v2538, %v2534
    %v2783 = vpack.c.b16 %v2543, %v2539
    %v2784 = vpack.c.b16 %v2544, %v2540
    %v2785 = vpack.c.b16 %v2545, %v2541
    %v2786 = vpack.c.b16 %v2546, %v2542
    %v2787 = vpack.c.b16 %v2551, %v2547
    %v2788 = vpack.c.b16 %v2552, %v2548
    %v2789 = vpack.c.b16 %v2553, %v2549
    %v2790 = vpack.c.b16 %v2554, %v2550
    %v2791 = vpack.c.b16 %v2559, %v2555
    %v2792 = vpack.c.b16 %v2560, %v2556
    %v2793 = vpack.c.b16 %v2561, %v2557
    %v2794 = vpack.c.b16 %v2562, %v2558
    %v2795 = vpack.c.b16 %v2567, %v2563
    %v2796 = vpack.c.b16 %v2568, %v2564
    %v2797 = vpack.c.b16 %v2569, %v2565
    %v2798 = vpack.c.b16 %v2570, %v2566
    %v2799 = vpack.c.b16 %v2575, %v2571
    %v2800 = vpack.c.b16 %v2576, %v2572
    %v2801 = vpack.c.b16 %v2577, %v2573
    %v2802 = vpack.c.b16 %v2578, %v2574
    %v2803 = vpack.c.b16 %v2583, %v2579
    %v2804 = vpack.c.b16 %v2584, %v2580
    %v2805 = vpack.c.b16 %v2585, %v2581
    %v2806 = vpack.c.b16 %v2586, %v2582
    %v2807 = vpack.c.b16 %v2591, %v2587
    %v2808 = vpack.c.b16 %v2592, %v2588
    %v2809 = vpack.c.b16 %v2593, %v2589
    %v2810 = vpack.c.b16 %v2594, %v2590
    %v2811 = vpack.c.b16 %v2599, %v2595
    %v2812 = vpack.c.b16 %v2600, %v2596
    %v2813 = vpack.c.b16 %v2601, %v2597
    %v2814 = vpack.c.b16 %v2602, %v2598
    %v2815 = vpack.c.b16 %v2607, %v2603
    %v2816 = vpack.c.b16 %v2608, %v2604
    %v2817 = vpack.c.b16 %v2609, %v2605
    %v2818 = vpack.c.b16 %v2610, %v2606
    %v2819 = vpack.c.b16 %v2615, %v2611
    %v2820 = vpack.c.b16 %v2616, %v2612
    %v2821 = vpack.c.b16 %v2617, %v2613
    %v2822 = vpack.c.b16 %v2618, %v2614
    %v2823 = vpack.c.b16 %v2623, %v2619
    %v2824 = vpack.c.b16 %v2624, %v2620
    %v2825 = vpack.c.b16 %v2625, %v2621
    %v2826 = vpack.c.b16 %v2626, %v2622
    %v2827 = vpack.c.b16 %v2631, %v2627
    %v2828 = vpack.c.b16 %v2632, %v2628
    %v2829 = vpack.c.b16 %v2633, %v2629
    %v2830 = vpack.c.b16 %v2634, %v2630
    %v2831 = vpack.c.b16 %v2639, %v2635
    %v2832 = vpack.c.b16 %v2640, %v2636
    %v2833 = vpack.c.b16 %v2641, %v2637
    %v2834 = vpack.c.b16 %v2642, %v2638
    %3027 = vmatpush.bf16.msra.mxu0 %v2671
    %3028 = vmatpush.bf16.msra.mxu0 %v2667
    %3029 = vmatpush.bf16.msra.mxu0 %v2663
    %3030 = vmatpush.bf16.msra.mxu0 %v2659
    %3031 = vmatpush.bf16.msra.mxu0 %v2655
    %3032 = vmatpush.bf16.msra.mxu0 %v2651
    %3033 = vmatpush.bf16.msra.mxu0 %v2647
    %3034 = vmatpush.bf16.msra.mxu0 %v2643
    %3035 = vmatmul.bf16.gmra.mxu0 %v2055
    %v3036 = vpop.f32.mrf.mxu0
    %v3037 = vadd.f32 0.0, %v3036
    %v3038 = vpop.f32.mrf.mxu0
    %v3039 = vadd.f32 0.0, %v3038
    %3040 = vdwg.mxu0
    %3041 = vmatpush.bf16.msra.mxu0 %v2703
    %3042 = vmatpush.bf16.msra.mxu0 %v2699
    %3043 = vmatpush.bf16.msra.mxu0 %v2695
    %3044 = vmatpush.bf16.msra.mxu0 %v2691
    %3045 = vmatpush.bf16.msra.mxu0 %v2687
    %3046 = vmatpush.bf16.msra.mxu0 %v2683
    %3047 = vmatpush.bf16.msra.mxu0 %v2679
    %3048 = vmatpush.bf16.msra.mxu0 %v2675
    %3049 = vmatmul.bf16.gmra.mxu0 %v2056
    %v3050 = vpop.f32.mrf.mxu0
    %v3051 = vadd.f32 %v3037, %v3050
    %v3052 = vpop.f32.mrf.mxu0
    %v3053 = vadd.f32 %v3039, %v3052
    %3054 = vdwg.mxu0
    %3055 = vmatpush.bf16.msra.mxu0 %v2735
    %3056 = vmatpush.bf16.msra.mxu0 %v2731
    %3057 = vmatpush.bf16.msra.mxu0 %v2727
    %3058 = vmatpush.bf16.msra.mxu0 %v2723
    %3059 = vmatpush.bf16.msra.mxu0 %v2719
    %3060 = vmatpush.bf16.msra.mxu0 %v2715
    %3061 = vmatpush.bf16.msra.mxu0 %v2711
    %3062 = vmatpush.bf16.msra.mxu0 %v2707
    %3063 = vmatmul.bf16.gmra.mxu0 %v2057
    %v3064 = vpop.f32.mrf.mxu0
    %v3065 = vadd.f32 %v3051, %v3064
    %v3066 = vpop.f32.mrf.mxu0
    %v3067 = vadd.f32 %v3053, %v3066
    %3068 = vdwg.mxu0
    %3069 = vmatpush.bf16.msra.mxu0 %v2767
    %3070 = vmatpush.bf16.msra.mxu0 %v2763
    %3071 = vmatpush.bf16.msra.mxu0 %v2759
    %3072 = vmatpush.bf16.msra.mxu0 %v2755
    %3073 = vmatpush.bf16.msra.mxu0 %v2751
    %3074 = vmatpush.bf16.msra.mxu0 %v2747
    %3075 = vmatpush.bf16.msra.mxu0 %v2743
    %3076 = vmatpush.bf16.msra.mxu0 %v2739
    %3077 = vmatmul.bf16.gmra.mxu0 %v2058
    %v3078 = vpop.f32.mrf.mxu0
    %v3079 = vadd.f32 %v3065, %v3078
    %v3080 = vpop.f32.mrf.mxu0
    %v3081 = vadd.f32 %v3067, %v3080
    %3082 = vdwg.mxu0
    %3083 = vmatpush.bf16.msra.mxu0 %v2799
    %3084 = vmatpush.bf16.msra.mxu0 %v2795
    %3085 = vmatpush.bf16.msra.mxu0 %v2791
    %3086 = vmatpush.bf16.msra.mxu0 %v2787
    %3087 = vmatpush.bf16.msra.mxu0 %v2783
    %3088 = vmatpush.bf16.msra.mxu0 %v2779
    %3089 = vmatpush.bf16.msra.mxu0 %v2775
    %3090 = vmatpush.bf16.msra.mxu0 %v2771
    %3091 = vmatmul.bf16.gmra.mxu0 %v2059
    %v3092 = vpop.f32.mrf.mxu0
    %v3093 = vadd.f32 %v3079, %v3092
    %v3094 = vpop.f32.mrf.mxu0
    %v3095 = vadd.f32 %v3081, %v3094
    %3096 = vdwg.mxu0
    %3097 = vmatpush.bf16.msra.mxu0 %v2831
    %3098 = vmatpush.bf16.msra.mxu0 %v2827
    %3099 = vmatpush.bf16.msra.mxu0 %v2823
    %3100 = vmatpush.bf16.msra.mxu0 %v2819
    %3101 = vmatpush.bf16.msra.mxu0 %v2815
    %3102 = vmatpush.bf16.msra.mxu0 %v2811
    %3103 = vmatpush.bf16.msra.mxu0 %v2807
    %3104 = vmatpush.bf16.msra.mxu0 %v2803
    %3105 = vmatmul.bf16.gmra.mxu0 %v2060
    %v3106 = vpop.f32.mrf.mxu0
    %v3107 = vadd.f32 %v3093, %v3106
    %v3108 = vpop.f32.mrf.mxu0
    %v3109 = vadd.f32 %v3095, %v3108
    %3110 = vdwg.mxu0
    %3111 = vmatpush.bf16.msra.mxu0 %v2672
    %3112 = vmatpush.bf16.msra.mxu0 %v2668
    %3113 = vmatpush.bf16.msra.mxu0 %v2664
    %3114 = vmatpush.bf16.msra.mxu0 %v2660
    %3115 = vmatpush.bf16.msra.mxu0 %v2656
    %3116 = vmatpush.bf16.msra.mxu0 %v2652
    %3117 = vmatpush.bf16.msra.mxu0 %v2648
    %3118 = vmatpush.bf16.msra.mxu0 %v2644
    %3119 = vmatmul.bf16.gmra.mxu0 %v2055
    %v3120 = vpop.f32.mrf.mxu0
    %v3121 = vadd.f32 0.0, %v3120
    %v3122 = vpop.f32.mrf.mxu0
    %v3123 = vadd.f32 0.0, %v3122
    %3124 = vdwg.mxu0
    %3125 = vmatpush.bf16.msra.mxu0 %v2704
    %3126 = vmatpush.bf16.msra.mxu0 %v2700
    %3127 = vmatpush.bf16.msra.mxu0 %v2696
    %3128 = vmatpush.bf16.msra.mxu0 %v2692
    %3129 = vmatpush.bf16.msra.mxu0 %v2688
    %3130 = vmatpush.bf16.msra.mxu0 %v2684
    %3131 = vmatpush.bf16.msra.mxu0 %v2680
    %3132 = vmatpush.bf16.msra.mxu0 %v2676
    %3133 = vmatmul.bf16.gmra.mxu0 %v2056
    %v3134 = vpop.f32.mrf.mxu0
    %v3135 = vadd.f32 %v3121, %v3134
    %v3136 = vpop.f32.mrf.mxu0
    %v3137 = vadd.f32 %v3123, %v3136
    %3138 = vdwg.mxu0
    %3139 = vmatpush.bf16.msra.mxu0 %v2736
    %3140 = vmatpush.bf16.msra.mxu0 %v2732
    %3141 = vmatpush.bf16.msra.mxu0 %v2728
    %3142 = vmatpush.bf16.msra.mxu0 %v2724
    %3143 = vmatpush.bf16.msra.mxu0 %v2720
    %3144 = vmatpush.bf16.msra.mxu0 %v2716
    %3145 = vmatpush.bf16.msra.mxu0 %v2712
    %3146 = vmatpush.bf16.msra.mxu0 %v2708
    %3147 = vmatmul.bf16.gmra.mxu0 %v2057
    %v3148 = vpop.f32.mrf.mxu0
    %v3149 = vadd.f32 %v3135, %v3148
    %v3150 = vpop.f32.mrf.mxu0
    %v3151 = vadd.f32 %v3137, %v3150
    %3152 = vdwg.mxu0
    %3153 = vmatpush.bf16.msra.mxu0 %v2768
    %3154 = vmatpush.bf16.msra.mxu0 %v2764
    %3155 = vmatpush.bf16.msra.mxu0 %v2760
    %3156 = vmatpush.bf16.msra.mxu0 %v2756
    %3157 = vmatpush.bf16.msra.mxu0 %v2752
    %3158 = vmatpush.bf16.msra.mxu0 %v2748
    %3159 = vmatpush.bf16.msra.mxu0 %v2744
    %3160 = vmatpush.bf16.msra.mxu0 %v2740
    %3161 = vmatmul.bf16.gmra.mxu0 %v2058
    %v3162 = vpop.f32.mrf.mxu0
    %v3163 = vadd.f32 %v3149, %v3162
    %v3164 = vpop.f32.mrf.mxu0
    %v3165 = vadd.f32 %v3151, %v3164
    %3166 = vdwg.mxu0
    %3167 = vmatpush.bf16.msra.mxu0 %v2800
    %3168 = vmatpush.bf16.msra.mxu0 %v2796
    %3169 = vmatpush.bf16.msra.mxu0 %v2792
    %3170 = vmatpush.bf16.msra.mxu0 %v2788
    %3171 = vmatpush.bf16.msra.mxu0 %v2784
    %3172 = vmatpush.bf16.msra.mxu0 %v2780
    %3173 = vmatpush.bf16.msra.mxu0 %v2776
    %3174 = vmatpush.bf16.msra.mxu0 %v2772
    %3175 = vmatmul.bf16.gmra.mxu0 %v2059
    %v3176 = vpop.f32.mrf.mxu0
    %v3177 = vadd.f32 %v3163, %v3176
    %v3178 = vpop.f32.mrf.mxu0
    %v3179 = vadd.f32 %v3165, %v3178
    %3180 = vdwg.mxu0
    %3181 = vmatpush.bf16.msra.mxu0 %v2832
    %3182 = vmatpush.bf16.msra.mxu0 %v2828
    %3183 = vmatpush.bf16.msra.mxu0 %v2824
    %3184 = vmatpush.bf16.msra.mxu0 %v2820
    %3185 = vmatpush.bf16.msra.mxu0 %v2816
    %3186 = vmatpush.bf16.msra.mxu0 %v2812
    %3187 = vmatpush.bf16.msra.mxu0 %v2808
    %3188 = vmatpush.bf16.msra.mxu0 %v2804
    %3189 = vmatmul.bf16.gmra.mxu0 %v2060
    %v3190 = vpop.f32.mrf.mxu0
    %v3191 = vadd.f32 %v3177, %v3190
    %v3192 = vpop.f32.mrf.mxu0
    %v3193 = vadd.f32 %v3179, %v3192
    %3194 = vdwg.mxu0
    %3195 = vmatpush.bf16.msra.mxu0 %v2673
    %3196 = vmatpush.bf16.msra.mxu0 %v2669
    %3197 = vmatpush.bf16.msra.mxu0 %v2665
    %3198 = vmatpush.bf16.msra.mxu0 %v2661
    %3199 = vmatpush.bf16.msra.mxu0 %v2657
    %3200 = vmatpush.bf16.msra.mxu0 %v2653
    %3201 = vmatpush.bf16.msra.mxu0 %v2649
    %3202 = vmatpush.bf16.msra.mxu0 %v2645
    %3203 = vmatmul.bf16.gmra.mxu0 %v2055
    %v3204 = vpop.f32.mrf.mxu0
    %v3205 = vadd.f32 0.0, %v3204
    %v3206 = vpop.f32.mrf.mxu0
    %v3207 = vadd.f32 0.0, %v3206
    %3208 = vdwg.mxu0
    %3209 = vmatpush.bf16.msra.mxu0 %v2705
    %3210 = vmatpush.bf16.msra.mxu0 %v2701
    %3211 = vmatpush.bf16.msra.mxu0 %v2697
    %3212 = vmatpush.bf16.msra.mxu0 %v2693
    %3213 = vmatpush.bf16.msra.mxu0 %v2689
    %3214 = vmatpush.bf16.msra.mxu0 %v2685
    %3215 = vmatpush.bf16.msra.mxu0 %v2681
    %3216 = vmatpush.bf16.msra.mxu0 %v2677
    %3217 = vmatmul.bf16.gmra.mxu0 %v2056
    %v3218 = vpop.f32.mrf.mxu0
    %v3219 = vadd.f32 %v3205, %v3218
    %v3220 = vpop.f32.mrf.mxu0
    %v3221 = vadd.f32 %v3207, %v3220
    %3222 = vdwg.mxu0
    %3223 = vmatpush.bf16.msra.mxu0 %v2737
    %3224 = vmatpush.bf16.msra.mxu0 %v2733
    %3225 = vmatpush.bf16.msra.mxu0 %v2729
    %3226 = vmatpush.bf16.msra.mxu0 %v2725
    %3227 = vmatpush.bf16.msra.mxu0 %v2721
    %3228 = vmatpush.bf16.msra.mxu0 %v2717
    %3229 = vmatpush.bf16.msra.mxu0 %v2713
    %3230 = vmatpush.bf16.msra.mxu0 %v2709
    %3231 = vmatmul.bf16.gmra.mxu0 %v2057
    %v3232 = vpop.f32.mrf.mxu0
    %v3233 = vadd.f32 %v3219, %v3232
    %v3234 = vpop.f32.mrf.mxu0
    %v3235 = vadd.f32 %v3221, %v3234
    %3236 = vdwg.mxu0
    %3237 = vmatpush.bf16.msra.mxu0 %v2769
    %3238 = vmatpush.bf16.msra.mxu0 %v2765
    %3239 = vmatpush.bf16.msra.mxu0 %v2761
    %3240 = vmatpush.bf16.msra.mxu0 %v2757
    %3241 = vmatpush.bf16.msra.mxu0 %v2753
    %3242 = vmatpush.bf16.msra.mxu0 %v2749
    %3243 = vmatpush.bf16.msra.mxu0 %v2745
    %3244 = vmatpush.bf16.msra.mxu0 %v2741
    %3245 = vmatmul.bf16.gmra.mxu0 %v2058
    %v3246 = vpop.f32.mrf.mxu0
    %v3247 = vadd.f32 %v3233, %v3246
    %v3248 = vpop.f32.mrf.mxu0
    %v3249 = vadd.f32 %v3235, %v3248
    %3250 = vdwg.mxu0
    %3251 = vmatpush.bf16.msra.mxu0 %v2801
    %3252 = vmatpush.bf16.msra.mxu0 %v2797
    %3253 = vmatpush.bf16.msra.mxu0 %v2793
    %3254 = vmatpush.bf16.msra.mxu0 %v2789
    %3255 = vmatpush.bf16.msra.mxu0 %v2785
    %3256 = vmatpush.bf16.msra.mxu0 %v2781
    %3257 = vmatpush.bf16.msra.mxu0 %v2777
    %3258 = vmatpush.bf16.msra.mxu0 %v2773
    %3259 = vmatmul.bf16.gmra.mxu0 %v2059
    %v3260 = vpop.f32.mrf.mxu0
    %v3261 = vadd.f32 %v3247, %v3260
    %v3262 = vpop.f32.mrf.mxu0
    %v3263 = vadd.f32 %v3249, %v3262
    %3264 = vdwg.mxu0
    %3265 = vmatpush.bf16.msra.mxu0 %v2833
    %3266 = vmatpush.bf16.msra.mxu0 %v2829
    %3267 = vmatpush.bf16.msra.mxu0 %v2825
    %3268 = vmatpush.bf16.msra.mxu0 %v2821
    %3269 = vmatpush.bf16.msra.mxu0 %v2817
    %3270 = vmatpush.bf16.msra.mxu0 %v2813
    %3271 = vmatpush.bf16.msra.mxu0 %v2809
    %3272 = vmatpush.bf16.msra.mxu0 %v2805
    %3273 = vmatmul.bf16.gmra.mxu0 %v2060
    %v3274 = vpop.f32.mrf.mxu0
    %v3275 = vadd.f32 %v3261, %v3274
    %v3276 = vpop.f32.mrf.mxu0
    %v3277 = vadd.f32 %v3263, %v3276
    %3278 = vdwg.mxu0
    %3279 = vmatpush.bf16.msra.mxu0 %v2674
    %3280 = vmatpush.bf16.msra.mxu0 %v2670
    %3281 = vmatpush.bf16.msra.mxu0 %v2666
    %3282 = vmatpush.bf16.msra.mxu0 %v2662
    %3283 = vmatpush.bf16.msra.mxu0 %v2658
    %3284 = vmatpush.bf16.msra.mxu0 %v2654
    %3285 = vmatpush.bf16.msra.mxu0 %v2650
    %3286 = vmatpush.bf16.msra.mxu0 %v2646
    %3287 = vmatmul.bf16.gmra.mxu0 %v2055
    %v3288 = vpop.f32.mrf.mxu0
    %v3289 = vadd.f32 0.0, %v3288
    %v3290 = vpop.f32.mrf.mxu0
    %v3291 = vadd.f32 0.0, %v3290
    %3292 = vdwg.mxu0
    %3293 = vmatpush.bf16.msra.mxu0 %v2706
    %3294 = vmatpush.bf16.msra.mxu0 %v2702
    %3295 = vmatpush.bf16.msra.mxu0 %v2698
    %3296 = vmatpush.bf16.msra.mxu0 %v2694
    %3297 = vmatpush.bf16.msra.mxu0 %v2690
    %3298 = vmatpush.bf16.msra.mxu0 %v2686
    %3299 = vmatpush.bf16.msra.mxu0 %v2682
    %3300 = vmatpush.bf16.msra.mxu0 %v2678
    %3301 = vmatmul.bf16.gmra.mxu0 %v2056
    %v3302 = vpop.f32.mrf.mxu0
    %v3303 = vadd.f32 %v3289, %v3302
    %v3304 = vpop.f32.mrf.mxu0
    %v3305 = vadd.f32 %v3291, %v3304
    %3306 = vdwg.mxu0
    %3307 = vmatpush.bf16.msra.mxu0 %v2738
    %3308 = vmatpush.bf16.msra.mxu0 %v2734
    %3309 = vmatpush.bf16.msra.mxu0 %v2730
    %3310 = vmatpush.bf16.msra.mxu0 %v2726
    %3311 = vmatpush.bf16.msra.mxu0 %v2722
    %3312 = vmatpush.bf16.msra.mxu0 %v2718
    %3313 = vmatpush.bf16.msra.mxu0 %v2714
    %3314 = vmatpush.bf16.msra.mxu0 %v2710
    %3315 = vmatmul.bf16.gmra.mxu0 %v2057
    %v3316 = vpop.f32.mrf.mxu0
    %v3317 = vadd.f32 %v3303, %v3316
    %v3318 = vpop.f32.mrf.mxu0
    %v3319 = vadd.f32 %v3305, %v3318
    %3320 = vdwg.mxu0
    %3321 = vmatpush.bf16.msra.mxu0 %v2770
    %3322 = vmatpush.bf16.msra.mxu0 %v2766
    %3323 = vmatpush.bf16.msra.mxu0 %v2762
    %3324 = vmatpush.bf16.msra.mxu0 %v2758
    %3325 = vmatpush.bf16.msra.mxu0 %v2754
    %3326 = vmatpush.bf16.msra.mxu0 %v2750
    %3327 = vmatpush.bf16.msra.mxu0 %v2746
    %3328 = vmatpush.bf16.msra.mxu0 %v2742
    %3329 = vmatmul.bf16.gmra.mxu0 %v2058
    %v3330 = vpop.f32.mrf.mxu0
    %v3331 = vadd.f32 %v3317, %v3330
    %v3332 = vpop.f32.mrf.mxu0
    %v3333 = vadd.f32 %v3319, %v3332
    %3334 = vdwg.mxu0
    %3335 = vmatpush.bf16.msra.mxu0 %v2802
    %3336 = vmatpush.bf16.msra.mxu0 %v2798
    %3337 = vmatpush.bf16.msra.mxu0 %v2794
    %3338 = vmatpush.bf16.msra.mxu0 %v2790
    %3339 = vmatpush.bf16.msra.mxu0 %v2786
    %3340 = vmatpush.bf16.msra.mxu0 %v2782
    %3341 = vmatpush.bf16.msra.mxu0 %v2778
    %3342 = vmatpush.bf16.msra.mxu0 %v2774
    %3343 = vmatmul.bf16.gmra.mxu0 %v2059
    %v3344 = vpop.f32.mrf.mxu0
    %v3345 = vadd.f32 %v3331, %v3344
    %v3346 = vpop.f32.mrf.mxu0
    %v3347 = vadd.f32 %v3333, %v3346
    %3348 = vdwg.mxu0
    %3349 = vmatpush.bf16.msra.mxu0 %v2834
    %3350 = vmatpush.bf16.msra.mxu0 %v2830
    %3351 = vmatpush.bf16.msra.mxu0 %v2826
    %3352 = vmatpush.bf16.msra.mxu0 %v2822
    %3353 = vmatpush.bf16.msra.mxu0 %v2818
    %3354 = vmatpush.bf16.msra.mxu0 %v2814
    %3355 = vmatpush.bf16.msra.mxu0 %v2810
    %3356 = vmatpush.bf16.msra.mxu0 %v2806
    %3357 = vmatmul.bf16.gmra.mxu0 %v2060
    %v3358 = vpop.f32.mrf.mxu0
    %v3359 = vadd.f32 %v3345, %v3358
    %v3360 = vpop.f32.mrf.mxu0
    %v3361 = vadd.f32 %v3347, %v3360
    %3362 = vdwg.mxu0
    %v3363 = vadd.f32 %v1831, %v3107
    %v3364 = vadd.f32 %v1832, %v3191
    %v3365 = vadd.f32 %v1833, %v3275
    %v3366 = vadd.f32 %v1834, %v3359
    %v3367 = vadd.f32 %v1835, %v3109
    %v3368 = vadd.f32 %v1836, %v3193
    %v3369 = vadd.f32 %v1837, %v3277
    %v3370 = vadd.f32 %v1838, %v3361
    %3371 = vst [vmem:[#allocation3] sm:$0xff] %v3363
    %3372 = vst [vmem:[#allocation3 + $0x8] sm:$0xff] %v3364
    %3373 = vst [vmem:[#allocation3 + $0x10] sm:$0xff] %v3365
    %3374 = vst [vmem:[#allocation3 + $0x18] sm:$0xff] %v3366
    %3375 = vst [vmem:[#allocation3 + $0x20] sm:$0xff] %v3367
    %3376 = vst [vmem:[#allocation3 + $0x28] sm:$0xff] %v3368
    %3377 = vst [vmem:[#allocation3 + $0x30] sm:$0xff] %v3369
    %3378 = vst [vmem:[#allocation3 + $0x38] sm:$0xff] %v3370
    %v3379 = vld [vmem:[#allocation4] sm:$0xff]
    %v3380 = vld [vmem:[#allocation4 + $0x8] sm:$0xff]
    %v3381 = vld [vmem:[#allocation4 + $0x10] sm:$0xff]
    %v3382 = vld [vmem:[#allocation4 + $0x18] sm:$0xff]
    %v3383 = vld [vmem:[#allocation4 + $0x20] sm:$0xff]
    %v3384 = vld [vmem:[#allocation4 + $0x28] sm:$0xff]
    %v3385 = vld [vmem:[#allocation4 + $0x30] sm:$0xff]
    %v3386 = vld [vmem:[#allocation4 + $0x38] sm:$0xff]
    %v3387 = vld [vmem:[#allocation10] sm:$0xff]
    %v3388 = vld [vmem:[#allocation10 + $0x8] sm:$0xff]
    %v3389 = vld [vmem:[#allocation10 + $0x10] sm:$0xff]
    %v3390 = vld [vmem:[#allocation10 + $0x18] sm:$0xff]
    %v3391 = vld [vmem:[#allocation10 + $0x20] sm:$0xff]
    %v3392 = vld [vmem:[#allocation10 + $0x28] sm:$0xff]
    %v3393 = vld [vmem:[#allocation14] sm:$0xff]
    %v3394 = vld [vmem:[#allocation14 + $0x8] sm:$0xff]
    %v3395 = vld [vmem:[#allocation14 + $0x10] sm:$0xff]
    %v3396 = vld [vmem:[#allocation14 + $0x18] sm:$0xff]
    %v3397 = vld [vmem:[#allocation14 + $0x20] sm:$0xff]
    %v3398 = vld [vmem:[#allocation14 + $0x28] sm:$0xff]
    %v3399 = vld [vmem:[#allocation14 + $0x30] sm:$0xff]
    %v3400 = vld [vmem:[#allocation14 + $0x38] sm:$0xff]
    %v3401 = vld [vmem:[#allocation14 + $0x40] sm:$0xff]
    %v3402 = vld [vmem:[#allocation14 + $0x48] sm:$0xff]
    %v3403 = vld [vmem:[#allocation14 + $0x50] sm:$0xff]
    %v3404 = vld [vmem:[#allocation14 + $0x58] sm:$0xff]
    %v3405 = vld [vmem:[#allocation14 + $0x60] sm:$0xff]
    %v3406 = vld [vmem:[#allocation14 + $0x68] sm:$0xff]
    %v3407 = vld [vmem:[#allocation14 + $0x70] sm:$0xff]
    %v3408 = vld [vmem:[#allocation14 + $0x78] sm:$0xff]
    %v3409 = vld [vmem:[#allocation14 + $0x80] sm:$0xff]
    %v3410 = vld [vmem:[#allocation14 + $0x88] sm:$0xff]
    %v3411 = vld [vmem:[#allocation14 + $0x90] sm:$0xff]
    %v3412 = vld [vmem:[#allocation14 + $0x98] sm:$0xff]
    %v3413 = vld [vmem:[#allocation14 + $0xa0] sm:$0xff]
    %v3414 = vld [vmem:[#allocation14 + $0xa8] sm:$0xff]
    %v3415 = vld [vmem:[#allocation14 + $0xb0] sm:$0xff]
    %v3416 = vld [vmem:[#allocation14 + $0xb8] sm:$0xff]
    %v3417 = vld [vmem:[#allocation14 + $0xc0] sm:$0xff]
    %v3418 = vld [vmem:[#allocation14 + $0xc8] sm:$0xff]
    %v3419 = vld [vmem:[#allocation14 + $0xd0] sm:$0xff]
    %v3420 = vld [vmem:[#allocation14 + $0xd8] sm:$0xff]
    %v3421 = vld [vmem:[#allocation14 + $0xe0] sm:$0xff]
    %v3422 = vld [vmem:[#allocation14 + $0xe8] sm:$0xff]
    %v3423 = vld [vmem:[#allocation14 + $0xf0] sm:$0xff]
    %v3424 = vld [vmem:[#allocation14 + $0xf8] sm:$0xff]
    %v3425 = vld [vmem:[#allocation14 + $0x100] sm:$0xff]
    %v3426 = vld [vmem:[#allocation14 + $0x108] sm:$0xff]
    %v3427 = vld [vmem:[#allocation14 + $0x110] sm:$0xff]
    %v3428 = vld [vmem:[#allocation14 + $0x118] sm:$0xff]
    %v3429 = vld [vmem:[#allocation14 + $0x120] sm:$0xff]
    %v3430 = vld [vmem:[#allocation14 + $0x128] sm:$0xff]
    %v3431 = vld [vmem:[#allocation14 + $0x130] sm:$0xff]
    %v3432 = vld [vmem:[#allocation14 + $0x138] sm:$0xff]
    %v3433 = vld [vmem:[#allocation14 + $0x140] sm:$0xff]
    %v3434 = vld [vmem:[#allocation14 + $0x148] sm:$0xff]
    %v3435 = vld [vmem:[#allocation14 + $0x150] sm:$0xff]
    %v3436 = vld [vmem:[#allocation14 + $0x158] sm:$0xff]
    %v3437 = vld [vmem:[#allocation14 + $0x160] sm:$0xff]
    %v3438 = vld [vmem:[#allocation14 + $0x168] sm:$0xff]
    %v3439 = vld [vmem:[#allocation14 + $0x170] sm:$0xff]
    %v3440 = vld [vmem:[#allocation14 + $0x178] sm:$0xff]
    %v3441 = vld [vmem:[#allocation14 + $0x180] sm:$0xff]
    %v3442 = vld [vmem:[#allocation14 + $0x188] sm:$0xff]
    %v3443 = vld [vmem:[#allocation14 + $0x190] sm:$0xff]
    %v3444 = vld [vmem:[#allocation14 + $0x198] sm:$0xff]
    %v3445 = vld [vmem:[#allocation14 + $0x1a0] sm:$0xff]
    %v3446 = vld [vmem:[#allocation14 + $0x1a8] sm:$0xff]
    %v3447 = vld [vmem:[#allocation14 + $0x1b0] sm:$0xff]
    %v3448 = vld [vmem:[#allocation14 + $0x1b8] sm:$0xff]
    %v3449 = vld [vmem:[#allocation14 + $0x1c0] sm:$0xff]
    %v3450 = vld [vmem:[#allocation14 + $0x1c8] sm:$0xff]
    %v3451 = vld [vmem:[#allocation14 + $0x1d0] sm:$0xff]
    %v3452 = vld [vmem:[#allocation14 + $0x1d8] sm:$0xff]
    %v3453 = vld [vmem:[#allocation14 + $0x1e0] sm:$0xff]
    %v3454 = vld [vmem:[#allocation14 + $0x1e8] sm:$0xff]
    %v3455 = vld [vmem:[#allocation14 + $0x1f0] sm:$0xff]
    %v3456 = vld [vmem:[#allocation14 + $0x1f8] sm:$0xff]
    %v3457 = vld [vmem:[#allocation14 + $0x200] sm:$0xff]
    %v3458 = vld [vmem:[#allocation14 + $0x208] sm:$0xff]
    %v3459 = vld [vmem:[#allocation14 + $0x210] sm:$0xff]
    %v3460 = vld [vmem:[#allocation14 + $0x218] sm:$0xff]
    %v3461 = vld [vmem:[#allocation14 + $0x220] sm:$0xff]
    %v3462 = vld [vmem:[#allocation14 + $0x228] sm:$0xff]
    %v3463 = vld [vmem:[#allocation14 + $0x230] sm:$0xff]
    %v3464 = vld [vmem:[#allocation14 + $0x238] sm:$0xff]
    %v3465 = vld [vmem:[#allocation14 + $0x240] sm:$0xff]
    %v3466 = vld [vmem:[#allocation14 + $0x248] sm:$0xff]
    %v3467 = vld [vmem:[#allocation14 + $0x250] sm:$0xff]
    %v3468 = vld [vmem:[#allocation14 + $0x258] sm:$0xff]
    %v3469 = vld [vmem:[#allocation14 + $0x260] sm:$0xff]
    %v3470 = vld [vmem:[#allocation14 + $0x268] sm:$0xff]
    %v3471 = vld [vmem:[#allocation14 + $0x270] sm:$0xff]
    %v3472 = vld [vmem:[#allocation14 + $0x278] sm:$0xff]
    %v3473 = vld [vmem:[#allocation14 + $0x280] sm:$0xff]
    %v3474 = vld [vmem:[#allocation14 + $0x288] sm:$0xff]
    %v3475 = vld [vmem:[#allocation14 + $0x290] sm:$0xff]
    %v3476 = vld [vmem:[#allocation14 + $0x298] sm:$0xff]
    %v3477 = vld [vmem:[#allocation14 + $0x2a0] sm:$0xff]
    %v3478 = vld [vmem:[#allocation14 + $0x2a8] sm:$0xff]
    %v3479 = vld [vmem:[#allocation14 + $0x2b0] sm:$0xff]
    %v3480 = vld [vmem:[#allocation14 + $0x2b8] sm:$0xff]
    %v3481 = vld [vmem:[#allocation14 + $0x2c0] sm:$0xff]
    %v3482 = vld [vmem:[#allocation14 + $0x2c8] sm:$0xff]
    %v3483 = vld [vmem:[#allocation14 + $0x2d0] sm:$0xff]
    %v3484 = vld [vmem:[#allocation14 + $0x2d8] sm:$0xff]
    %v3485 = vld [vmem:[#allocation14 + $0x2e0] sm:$0xff]
    %v3486 = vld [vmem:[#allocation14 + $0x2e8] sm:$0xff]
    %v3487 = vld [vmem:[#allocation14 + $0x2f0] sm:$0xff]
    %v3488 = vld [vmem:[#allocation14 + $0x2f8] sm:$0xff]
    %v3489 = vld [vmem:[#allocation14 + $0x300] sm:$0xff]
    %v3490 = vld [vmem:[#allocation14 + $0x308] sm:$0xff]
    %v3491 = vld [vmem:[#allocation14 + $0x310] sm:$0xff]
    %v3492 = vld [vmem:[#allocation14 + $0x318] sm:$0xff]
    %v3493 = vld [vmem:[#allocation14 + $0x320] sm:$0xff]
    %v3494 = vld [vmem:[#allocation14 + $0x328] sm:$0xff]
    %v3495 = vld [vmem:[#allocation14 + $0x330] sm:$0xff]
    %v3496 = vld [vmem:[#allocation14 + $0x338] sm:$0xff]
    %v3497 = vld [vmem:[#allocation14 + $0x340] sm:$0xff]
    %v3498 = vld [vmem:[#allocation14 + $0x348] sm:$0xff]
    %v3499 = vld [vmem:[#allocation14 + $0x350] sm:$0xff]
    %v3500 = vld [vmem:[#allocation14 + $0x358] sm:$0xff]
    %v3501 = vld [vmem:[#allocation14 + $0x360] sm:$0xff]
    %v3502 = vld [vmem:[#allocation14 + $0x368] sm:$0xff]
    %v3503 = vld [vmem:[#allocation14 + $0x370] sm:$0xff]
    %v3504 = vld [vmem:[#allocation14 + $0x378] sm:$0xff]
    %v3505 = vld [vmem:[#allocation14 + $0x380] sm:$0xff]
    %v3506 = vld [vmem:[#allocation14 + $0x388] sm:$0xff]
    %v3507 = vld [vmem:[#allocation14 + $0x390] sm:$0xff]
    %v3508 = vld [vmem:[#allocation14 + $0x398] sm:$0xff]
    %v3509 = vld [vmem:[#allocation14 + $0x3a0] sm:$0xff]
    %v3510 = vld [vmem:[#allocation14 + $0x3a8] sm:$0xff]
    %v3511 = vld [vmem:[#allocation14 + $0x3b0] sm:$0xff]
    %v3512 = vld [vmem:[#allocation14 + $0x3b8] sm:$0xff]
    %v3513 = vld [vmem:[#allocation14 + $0x3c0] sm:$0xff]
    %v3514 = vld [vmem:[#allocation14 + $0x3c8] sm:$0xff]
    %v3515 = vld [vmem:[#allocation14 + $0x3d0] sm:$0xff]
    %v3516 = vld [vmem:[#allocation14 + $0x3d8] sm:$0xff]
    %v3517 = vld [vmem:[#allocation14 + $0x3e0] sm:$0xff]
    %v3518 = vld [vmem:[#allocation14 + $0x3e8] sm:$0xff]
    %v3519 = vld [vmem:[#allocation14 + $0x3f0] sm:$0xff]
    %v3520 = vld [vmem:[#allocation14 + $0x3f8] sm:$0xff]
    %v3521 = vld [vmem:[#allocation14 + $0x400] sm:$0xff]
    %v3522 = vld [vmem:[#allocation14 + $0x408] sm:$0xff]
    %v3523 = vld [vmem:[#allocation14 + $0x410] sm:$0xff]
    %v3524 = vld [vmem:[#allocation14 + $0x418] sm:$0xff]
    %v3525 = vld [vmem:[#allocation14 + $0x420] sm:$0xff]
    %v3526 = vld [vmem:[#allocation14 + $0x428] sm:$0xff]
    %v3527 = vld [vmem:[#allocation14 + $0x430] sm:$0xff]
    %v3528 = vld [vmem:[#allocation14 + $0x438] sm:$0xff]
    %v3529 = vld [vmem:[#allocation14 + $0x440] sm:$0xff]
    %v3530 = vld [vmem:[#allocation14 + $0x448] sm:$0xff]
    %v3531 = vld [vmem:[#allocation14 + $0x450] sm:$0xff]
    %v3532 = vld [vmem:[#allocation14 + $0x458] sm:$0xff]
    %v3533 = vld [vmem:[#allocation14 + $0x460] sm:$0xff]
    %v3534 = vld [vmem:[#allocation14 + $0x468] sm:$0xff]
    %v3535 = vld [vmem:[#allocation14 + $0x470] sm:$0xff]
    %v3536 = vld [vmem:[#allocation14 + $0x478] sm:$0xff]
    %v3537 = vld [vmem:[#allocation14 + $0x480] sm:$0xff]
    %v3538 = vld [vmem:[#allocation14 + $0x488] sm:$0xff]
    %v3539 = vld [vmem:[#allocation14 + $0x490] sm:$0xff]
    %v3540 = vld [vmem:[#allocation14 + $0x498] sm:$0xff]
    %v3541 = vld [vmem:[#allocation14 + $0x4a0] sm:$0xff]
    %v3542 = vld [vmem:[#allocation14 + $0x4a8] sm:$0xff]
    %v3543 = vld [vmem:[#allocation14 + $0x4b0] sm:$0xff]
    %v3544 = vld [vmem:[#allocation14 + $0x4b8] sm:$0xff]
    %v3545 = vld [vmem:[#allocation14 + $0x4c0] sm:$0xff]
    %v3546 = vld [vmem:[#allocation14 + $0x4c8] sm:$0xff]
    %v3547 = vld [vmem:[#allocation14 + $0x4d0] sm:$0xff]
    %v3548 = vld [vmem:[#allocation14 + $0x4d8] sm:$0xff]
    %v3549 = vld [vmem:[#allocation14 + $0x4e0] sm:$0xff]
    %v3550 = vld [vmem:[#allocation14 + $0x4e8] sm:$0xff]
    %v3551 = vld [vmem:[#allocation14 + $0x4f0] sm:$0xff]
    %v3552 = vld [vmem:[#allocation14 + $0x4f8] sm:$0xff]
    %v3553 = vld [vmem:[#allocation14 + $0x500] sm:$0xff]
    %v3554 = vld [vmem:[#allocation14 + $0x508] sm:$0xff]
    %v3555 = vld [vmem:[#allocation14 + $0x510] sm:$0xff]
    %v3556 = vld [vmem:[#allocation14 + $0x518] sm:$0xff]
    %v3557 = vld [vmem:[#allocation14 + $0x520] sm:$0xff]
    %v3558 = vld [vmem:[#allocation14 + $0x528] sm:$0xff]
    %v3559 = vld [vmem:[#allocation14 + $0x530] sm:$0xff]
    %v3560 = vld [vmem:[#allocation14 + $0x538] sm:$0xff]
    %v3561 = vld [vmem:[#allocation14 + $0x540] sm:$0xff]
    %v3562 = vld [vmem:[#allocation14 + $0x548] sm:$0xff]
    %v3563 = vld [vmem:[#allocation14 + $0x550] sm:$0xff]
    %v3564 = vld [vmem:[#allocation14 + $0x558] sm:$0xff]
    %v3565 = vld [vmem:[#allocation14 + $0x560] sm:$0xff]
    %v3566 = vld [vmem:[#allocation14 + $0x568] sm:$0xff]
    %v3567 = vld [vmem:[#allocation14 + $0x570] sm:$0xff]
    %v3568 = vld [vmem:[#allocation14 + $0x578] sm:$0xff]
    %v3569 = vld [vmem:[#allocation14 + $0x580] sm:$0xff]
    %v3570 = vld [vmem:[#allocation14 + $0x588] sm:$0xff]
    %v3571 = vld [vmem:[#allocation14 + $0x590] sm:$0xff]
    %v3572 = vld [vmem:[#allocation14 + $0x598] sm:$0xff]
    %v3573 = vld [vmem:[#allocation14 + $0x5a0] sm:$0xff]
    %v3574 = vld [vmem:[#allocation14 + $0x5a8] sm:$0xff]
    %v3575 = vld [vmem:[#allocation14 + $0x5b0] sm:$0xff]
    %v3576 = vld [vmem:[#allocation14 + $0x5b8] sm:$0xff]
    %v3577 = vld [vmem:[#allocation14 + $0x5c0] sm:$0xff]
    %v3578 = vld [vmem:[#allocation14 + $0x5c8] sm:$0xff]
    %v3579 = vld [vmem:[#allocation14 + $0x5d0] sm:$0xff]
    %v3580 = vld [vmem:[#allocation14 + $0x5d8] sm:$0xff]
    %v3581 = vld [vmem:[#allocation14 + $0x5e0] sm:$0xff]
    %v3582 = vld [vmem:[#allocation14 + $0x5e8] sm:$0xff]
    %v3583 = vld [vmem:[#allocation14 + $0x5f0] sm:$0xff]
    %v3584 = vld [vmem:[#allocation14 + $0x5f8] sm:$0xff]
    %v3591 = vunpack.c.l.b16 %v3387
    %v3592 = vunpack.c.h.b16 %v3387
    %v3593 = vunpack.c.l.b16 %v3388
    %v3594 = vunpack.c.h.b16 %v3388
    %v3595 = vunpack.c.l.b16 %v3389
    %v3596 = vunpack.c.h.b16 %v3389
    %v3597 = vunpack.c.l.b16 %v3390
    %v3598 = vunpack.c.h.b16 %v3390
    %v3599 = vunpack.c.l.b16 %v3391
    %v3600 = vunpack.c.h.b16 %v3391
    %v3601 = vunpack.c.l.b16 %v3392
    %v3602 = vunpack.c.h.b16 %v3392
    %v3603 = vpack.c.b16 %v3597, %v3591
    %v3604 = vpack.c.b16 %v3598, %v3592
    %v3605 = vpack.c.b16 %v3599, %v3593
    %v3606 = vpack.c.b16 %v3600, %v3594
    %v3607 = vpack.c.b16 %v3601, %v3595
    %v3608 = vpack.c.b16 %v3602, %v3596
    %v3807 = vunpack.c.l.b16 %v3393
    %v3808 = vunpack.c.h.b16 %v3393
    %v3809 = vunpack.c.l.b16 %v3394
    %v3810 = vunpack.c.h.b16 %v3394
    %v3811 = vunpack.c.l.b16 %v3395
    %v3812 = vunpack.c.h.b16 %v3395
    %v3813 = vunpack.c.l.b16 %v3396
    %v3814 = vunpack.c.h.b16 %v3396
    %v3815 = vunpack.c.l.b16 %v3397
    %v3816 = vunpack.c.h.b16 %v3397
    %v3817 = vunpack.c.l.b16 %v3398
    %v3818 = vunpack.c.h.b16 %v3398
    %v3819 = vunpack.c.l.b16 %v3399
    %v3820 = vunpack.c.h.b16 %v3399
    %v3821 = vunpack.c.l.b16 %v3400
    %v3822 = vunpack.c.h.b16 %v3400
    %v3823 = vunpack.c.l.b16 %v3401
    %v3824 = vunpack.c.h.b16 %v3401
    %v3825 = vunpack.c.l.b16 %v3402
    %v3826 = vunpack.c.h.b16 %v3402
    %v3827 = vunpack.c.l.b16 %v3403
    %v3828 = vunpack.c.h.b16 %v3403
    %v3829 = vunpack.c.l.b16 %v3404
    %v3830 = vunpack.c.h.b16 %v3404
    %v3831 = vunpack.c.l.b16 %v3405
    %v3832 = vunpack.c.h.b16 %v3405
    %v3833 = vunpack.c.l.b16 %v3406
    %v3834 = vunpack.c.h.b16 %v3406
    %v3835 = vunpack.c.l.b16 %v3407
    %v3836 = vunpack.c.h.b16 %v3407
    %v3837 = vunpack.c.l.b16 %v3408
    %v3838 = vunpack.c.h.b16 %v3408
    %v3839 = vunpack.c.l.b16 %v3409
    %v3840 = vunpack.c.h.b16 %v3409
    %v3841 = vunpack.c.l.b16 %v3410
    %v3842 = vunpack.c.h.b16 %v3410
    %v3843 = vunpack.c.l.b16 %v3411
    %v3844 = vunpack.c.h.b16 %v3411
    %v3845 = vunpack.c.l.b16 %v3412
    %v3846 = vunpack.c.h.b16 %v3412
    %v3847 = vunpack.c.l.b16 %v3413
    %v3848 = vunpack.c.h.b16 %v3413
    %v3849 = vunpack.c.l.b16 %v3414
    %v3850 = vunpack.c.h.b16 %v3414
    %v3851 = vunpack.c.l.b16 %v3415
    %v3852 = vunpack.c.h.b16 %v3415
    %v3853 = vunpack.c.l.b16 %v3416
    %v3854 = vunpack.c.h.b16 %v3416
    %v3855 = vunpack.c.l.b16 %v3417
    %v3856 = vunpack.c.h.b16 %v3417
    %v3857 = vunpack.c.l.b16 %v3418
    %v3858 = vunpack.c.h.b16 %v3418
    %v3859 = vunpack.c.l.b16 %v3419
    %v3860 = vunpack.c.h.b16 %v3419
    %v3861 = vunpack.c.l.b16 %v3420
    %v3862 = vunpack.c.h.b16 %v3420
    %v3863 = vunpack.c.l.b16 %v3421
    %v3864 = vunpack.c.h.b16 %v3421
    %v3865 = vunpack.c.l.b16 %v3422
    %v3866 = vunpack.c.h.b16 %v3422
    %v3867 = vunpack.c.l.b16 %v3423
    %v3868 = vunpack.c.h.b16 %v3423
    %v3869 = vunpack.c.l.b16 %v3424
    %v3870 = vunpack.c.h.b16 %v3424
    %v3871 = vunpack.c.l.b16 %v3425
    %v3872 = vunpack.c.h.b16 %v3425
    %v3873 = vunpack.c.l.b16 %v3426
    %v3874 = vunpack.c.h.b16 %v3426
    %v3875 = vunpack.c.l.b16 %v3427
    %v3876 = vunpack.c.h.b16 %v3427
    %v3877 = vunpack.c.l.b16 %v3428
    %v3878 = vunpack.c.h.b16 %v3428
    %v3879 = vunpack.c.l.b16 %v3429
    %v3880 = vunpack.c.h.b16 %v3429
    %v3881 = vunpack.c.l.b16 %v3430
    %v3882 = vunpack.c.h.b16 %v3430
    %v3883 = vunpack.c.l.b16 %v3431
    %v3884 = vunpack.c.h.b16 %v3431
    %v3885 = vunpack.c.l.b16 %v3432
    %v3886 = vunpack.c.h.b16 %v3432
    %v3887 = vunpack.c.l.b16 %v3433
    %v3888 = vunpack.c.h.b16 %v3433
    %v3889 = vunpack.c.l.b16 %v3434
    %v3890 = vunpack.c.h.b16 %v3434
    %v3891 = vunpack.c.l.b16 %v3435
    %v3892 = vunpack.c.h.b16 %v3435
    %v3893 = vunpack.c.l.b16 %v3436
    %v3894 = vunpack.c.h.b16 %v3436
    %v3895 = vunpack.c.l.b16 %v3437
    %v3896 = vunpack.c.h.b16 %v3437
    %v3897 = vunpack.c.l.b16 %v3438
    %v3898 = vunpack.c.h.b16 %v3438
    %v3899 = vunpack.c.l.b16 %v3439
    %v3900 = vunpack.c.h.b16 %v3439
    %v3901 = vunpack.c.l.b16 %v3440
    %v3902 = vunpack.c.h.b16 %v3440
    %v3903 = vunpack.c.l.b16 %v3441
    %v3904 = vunpack.c.h.b16 %v3441
    %v3905 = vunpack.c.l.b16 %v3442
    %v3906 = vunpack.c.h.b16 %v3442
    %v3907 = vunpack.c.l.b16 %v3443
    %v3908 = vunpack.c.h.b16 %v3443
    %v3909 = vunpack.c.l.b16 %v3444
    %v3910 = vunpack.c.h.b16 %v3444
    %v3911 = vunpack.c.l.b16 %v3445
    %v3912 = vunpack.c.h.b16 %v3445
    %v3913 = vunpack.c.l.b16 %v3446
    %v3914 = vunpack.c.h.b16 %v3446
    %v3915 = vunpack.c.l.b16 %v3447
    %v3916 = vunpack.c.h.b16 %v3447
    %v3917 = vunpack.c.l.b16 %v3448
    %v3918 = vunpack.c.h.b16 %v3448
    %v3919 = vunpack.c.l.b16 %v3449
    %v3920 = vunpack.c.h.b16 %v3449
    %v3921 = vunpack.c.l.b16 %v3450
    %v3922 = vunpack.c.h.b16 %v3450
    %v3923 = vunpack.c.l.b16 %v3451
    %v3924 = vunpack.c.h.b16 %v3451
    %v3925 = vunpack.c.l.b16 %v3452
    %v3926 = vunpack.c.h.b16 %v3452
    %v3927 = vunpack.c.l.b16 %v3453
    %v3928 = vunpack.c.h.b16 %v3453
    %v3929 = vunpack.c.l.b16 %v3454
    %v3930 = vunpack.c.h.b16 %v3454
    %v3931 = vunpack.c.l.b16 %v3455
    %v3932 = vunpack.c.h.b16 %v3455
    %v3933 = vunpack.c.l.b16 %v3456
    %v3934 = vunpack.c.h.b16 %v3456
    %v3935 = vunpack.c.l.b16 %v3457
    %v3936 = vunpack.c.h.b16 %v3457
    %v3937 = vunpack.c.l.b16 %v3458
    %v3938 = vunpack.c.h.b16 %v3458
    %v3939 = vunpack.c.l.b16 %v3459
    %v3940 = vunpack.c.h.b16 %v3459
    %v3941 = vunpack.c.l.b16 %v3460
    %v3942 = vunpack.c.h.b16 %v3460
    %v3943 = vunpack.c.l.b16 %v3461
    %v3944 = vunpack.c.h.b16 %v3461
    %v3945 = vunpack.c.l.b16 %v3462
    %v3946 = vunpack.c.h.b16 %v3462
    %v3947 = vunpack.c.l.b16 %v3463
    %v3948 = vunpack.c.h.b16 %v3463
    %v3949 = vunpack.c.l.b16 %v3464
    %v3950 = vunpack.c.h.b16 %v3464
    %v3951 = vunpack.c.l.b16 %v3465
    %v3952 = vunpack.c.h.b16 %v3465
    %v3953 = vunpack.c.l.b16 %v3466
    %v3954 = vunpack.c.h.b16 %v3466
    %v3955 = vunpack.c.l.b16 %v3467
    %v3956 = vunpack.c.h.b16 %v3467
    %v3957 = vunpack.c.l.b16 %v3468
    %v3958 = vunpack.c.h.b16 %v3468
    %v3959 = vunpack.c.l.b16 %v3469
    %v3960 = vunpack.c.h.b16 %v3469
    %v3961 = vunpack.c.l.b16 %v3470
    %v3962 = vunpack.c.h.b16 %v3470
    %v3963 = vunpack.c.l.b16 %v3471
    %v3964 = vunpack.c.h.b16 %v3471
    %v3965 = vunpack.c.l.b16 %v3472
    %v3966 = vunpack.c.h.b16 %v3472
    %v3967 = vunpack.c.l.b16 %v3473
    %v3968 = vunpack.c.h.b16 %v3473
    %v3969 = vunpack.c.l.b16 %v3474
    %v3970 = vunpack.c.h.b16 %v3474
    %v3971 = vunpack.c.l.b16 %v3475
    %v3972 = vunpack.c.h.b16 %v3475
    %v3973 = vunpack.c.l.b16 %v3476
    %v3974 = vunpack.c.h.b16 %v3476
    %v3975 = vunpack.c.l.b16 %v3477
    %v3976 = vunpack.c.h.b16 %v3477
    %v3977 = vunpack.c.l.b16 %v3478
    %v3978 = vunpack.c.h.b16 %v3478
    %v3979 = vunpack.c.l.b16 %v3479
    %v3980 = vunpack.c.h.b16 %v3479
    %v3981 = vunpack.c.l.b16 %v3480
    %v3982 = vunpack.c.h.b16 %v3480
    %v3983 = vunpack.c.l.b16 %v3481
    %v3984 = vunpack.c.h.b16 %v3481
    %v3985 = vunpack.c.l.b16 %v3482
    %v3986 = vunpack.c.h.b16 %v3482
    %v3987 = vunpack.c.l.b16 %v3483
    %v3988 = vunpack.c.h.b16 %v3483
    %v3989 = vunpack.c.l.b16 %v3484
    %v3990 = vunpack.c.h.b16 %v3484
    %v3991 = vunpack.c.l.b16 %v3485
    %v3992 = vunpack.c.h.b16 %v3485
    %v3993 = vunpack.c.l.b16 %v3486
    %v3994 = vunpack.c.h.b16 %v3486
    %v3995 = vunpack.c.l.b16 %v3487
    %v3996 = vunpack.c.h.b16 %v3487
    %v3997 = vunpack.c.l.b16 %v3488
    %v3998 = vunpack.c.h.b16 %v3488
    %v3999 = vunpack.c.l.b16 %v3489
    %v4000 = vunpack.c.h.b16 %v3489
    %v4001 = vunpack.c.l.b16 %v3490
    %v4002 = vunpack.c.h.b16 %v3490
    %v4003 = vunpack.c.l.b16 %v3491
    %v4004 = vunpack.c.h.b16 %v3491
    %v4005 = vunpack.c.l.b16 %v3492
    %v4006 = vunpack.c.h.b16 %v3492
    %v4007 = vunpack.c.l.b16 %v3493
    %v4008 = vunpack.c.h.b16 %v3493
    %v4009 = vunpack.c.l.b16 %v3494
    %v4010 = vunpack.c.h.b16 %v3494
    %v4011 = vunpack.c.l.b16 %v3495
    %v4012 = vunpack.c.h.b16 %v3495
    %v4013 = vunpack.c.l.b16 %v3496
    %v4014 = vunpack.c.h.b16 %v3496
    %v4015 = vunpack.c.l.b16 %v3497
    %v4016 = vunpack.c.h.b16 %v3497
    %v4017 = vunpack.c.l.b16 %v3498
    %v4018 = vunpack.c.h.b16 %v3498
    %v4019 = vunpack.c.l.b16 %v3499
    %v4020 = vunpack.c.h.b16 %v3499
    %v4021 = vunpack.c.l.b16 %v3500
    %v4022 = vunpack.c.h.b16 %v3500
    %v4023 = vunpack.c.l.b16 %v3501
    %v4024 = vunpack.c.h.b16 %v3501
    %v4025 = vunpack.c.l.b16 %v3502
    %v4026 = vunpack.c.h.b16 %v3502
    %v4027 = vunpack.c.l.b16 %v3503
    %v4028 = vunpack.c.h.b16 %v3503
    %v4029 = vunpack.c.l.b16 %v3504
    %v4030 = vunpack.c.h.b16 %v3504
    %v4031 = vunpack.c.l.b16 %v3505
    %v4032 = vunpack.c.h.b16 %v3505
    %v4033 = vunpack.c.l.b16 %v3506
    %v4034 = vunpack.c.h.b16 %v3506
    %v4035 = vunpack.c.l.b16 %v3507
    %v4036 = vunpack.c.h.b16 %v3507
    %v4037 = vunpack.c.l.b16 %v3508
    %v4038 = vunpack.c.h.b16 %v3508
    %v4039 = vunpack.c.l.b16 %v3509
    %v4040 = vunpack.c.h.b16 %v3509
    %v4041 = vunpack.c.l.b16 %v3510
    %v4042 = vunpack.c.h.b16 %v3510
    %v4043 = vunpack.c.l.b16 %v3511
    %v4044 = vunpack.c.h.b16 %v3511
    %v4045 = vunpack.c.l.b16 %v3512
    %v4046 = vunpack.c.h.b16 %v3512
    %v4047 = vunpack.c.l.b16 %v3513
    %v4048 = vunpack.c.h.b16 %v3513
    %v4049 = vunpack.c.l.b16 %v3514
    %v4050 = vunpack.c.h.b16 %v3514
    %v4051 = vunpack.c.l.b16 %v3515
    %v4052 = vunpack.c.h.b16 %v3515
    %v4053 = vunpack.c.l.b16 %v3516
    %v4054 = vunpack.c.h.b16 %v3516
    %v4055 = vunpack.c.l.b16 %v3517
    %v4056 = vunpack.c.h.b16 %v3517
    %v4057 = vunpack.c.l.b16 %v3518
    %v4058 = vunpack.c.h.b16 %v3518
    %v4059 = vunpack.c.l.b16 %v3519
    %v4060 = vunpack.c.h.b16 %v3519
    %v4061 = vunpack.c.l.b16 %v3520
    %v4062 = vunpack.c.h.b16 %v3520
    %v4063 = vunpack.c.l.b16 %v3521
    %v4064 = vunpack.c.h.b16 %v3521
    %v4065 = vunpack.c.l.b16 %v3522
    %v4066 = vunpack.c.h.b16 %v3522
    %v4067 = vunpack.c.l.b16 %v3523
    %v4068 = vunpack.c.h.b16 %v3523
    %v4069 = vunpack.c.l.b16 %v3524
    %v4070 = vunpack.c.h.b16 %v3524
    %v4071 = vunpack.c.l.b16 %v3525
    %v4072 = vunpack.c.h.b16 %v3525
    %v4073 = vunpack.c.l.b16 %v3526
    %v4074 = vunpack.c.h.b16 %v3526
    %v4075 = vunpack.c.l.b16 %v3527
    %v4076 = vunpack.c.h.b16 %v3527
    %v4077 = vunpack.c.l.b16 %v3528
    %v4078 = vunpack.c.h.b16 %v3528
    %v4079 = vunpack.c.l.b16 %v3529
    %v4080 = vunpack.c.h.b16 %v3529
    %v4081 = vunpack.c.l.b16 %v3530
    %v4082 = vunpack.c.h.b16 %v3530
    %v4083 = vunpack.c.l.b16 %v3531
    %v4084 = vunpack.c.h.b16 %v3531
    %v4085 = vunpack.c.l.b16 %v3532
    %v4086 = vunpack.c.h.b16 %v3532
    %v4087 = vunpack.c.l.b16 %v3533
    %v4088 = vunpack.c.h.b16 %v3533
    %v4089 = vunpack.c.l.b16 %v3534
    %v4090 = vunpack.c.h.b16 %v3534
    %v4091 = vunpack.c.l.b16 %v3535
    %v4092 = vunpack.c.h.b16 %v3535
    %v4093 = vunpack.c.l.b16 %v3536
    %v4094 = vunpack.c.h.b16 %v3536
    %v4095 = vunpack.c.l.b16 %v3537
    %v4096 = vunpack.c.h.b16 %v3537
    %v4097 = vunpack.c.l.b16 %v3538
    %v4098 = vunpack.c.h.b16 %v3538
    %v4099 = vunpack.c.l.b16 %v3539
    %v4100 = vunpack.c.h.b16 %v3539
    %v4101 = vunpack.c.l.b16 %v3540
    %v4102 = vunpack.c.h.b16 %v3540
    %v4103 = vunpack.c.l.b16 %v3541
    %v4104 = vunpack.c.h.b16 %v3541
    %v4105 = vunpack.c.l.b16 %v3542
    %v4106 = vunpack.c.h.b16 %v3542
    %v4107 = vunpack.c.l.b16 %v3543
    %v4108 = vunpack.c.h.b16 %v3543
    %v4109 = vunpack.c.l.b16 %v3544
    %v4110 = vunpack.c.h.b16 %v3544
    %v4111 = vunpack.c.l.b16 %v3545
    %v4112 = vunpack.c.h.b16 %v3545
    %v4113 = vunpack.c.l.b16 %v3546
    %v4114 = vunpack.c.h.b16 %v3546
    %v4115 = vunpack.c.l.b16 %v3547
    %v4116 = vunpack.c.h.b16 %v3547
    %v4117 = vunpack.c.l.b16 %v3548
    %v4118 = vunpack.c.h.b16 %v3548
    %v4119 = vunpack.c.l.b16 %v3549
    %v4120 = vunpack.c.h.b16 %v3549
    %v4121 = vunpack.c.l.b16 %v3550
    %v4122 = vunpack.c.h.b16 %v3550
    %v4123 = vunpack.c.l.b16 %v3551
    %v4124 = vunpack.c.h.b16 %v3551
    %v4125 = vunpack.c.l.b16 %v3552
    %v4126 = vunpack.c.h.b16 %v3552
    %v4127 = vunpack.c.l.b16 %v3553
    %v4128 = vunpack.c.h.b16 %v3553
    %v4129 = vunpack.c.l.b16 %v3554
    %v4130 = vunpack.c.h.b16 %v3554
    %v4131 = vunpack.c.l.b16 %v3555
    %v4132 = vunpack.c.h.b16 %v3555
    %v4133 = vunpack.c.l.b16 %v3556
    %v4134 = vunpack.c.h.b16 %v3556
    %v4135 = vunpack.c.l.b16 %v3557
    %v4136 = vunpack.c.h.b16 %v3557
    %v4137 = vunpack.c.l.b16 %v3558
    %v4138 = vunpack.c.h.b16 %v3558
    %v4139 = vunpack.c.l.b16 %v3559
    %v4140 = vunpack.c.h.b16 %v3559
    %v4141 = vunpack.c.l.b16 %v3560
    %v4142 = vunpack.c.h.b16 %v3560
    %v4143 = vunpack.c.l.b16 %v3561
    %v4144 = vunpack.c.h.b16 %v3561
    %v4145 = vunpack.c.l.b16 %v3562
    %v4146 = vunpack.c.h.b16 %v3562
    %v4147 = vunpack.c.l.b16 %v3563
    %v4148 = vunpack.c.h.b16 %v3563
    %v4149 = vunpack.c.l.b16 %v3564
    %v4150 = vunpack.c.h.b16 %v3564
    %v4151 = vunpack.c.l.b16 %v3565
    %v4152 = vunpack.c.h.b16 %v3565
    %v4153 = vunpack.c.l.b16 %v3566
    %v4154 = vunpack.c.h.b16 %v3566
    %v4155 = vunpack.c.l.b16 %v3567
    %v4156 = vunpack.c.h.b16 %v3567
    %v4157 = vunpack.c.l.b16 %v3568
    %v4158 = vunpack.c.h.b16 %v3568
    %v4159 = vunpack.c.l.b16 %v3569
    %v4160 = vunpack.c.h.b16 %v3569
    %v4161 = vunpack.c.l.b16 %v3570
    %v4162 = vunpack.c.h.b16 %v3570
    %v4163 = vunpack.c.l.b16 %v3571
    %v4164 = vunpack.c.h.b16 %v3571
    %v4165 = vunpack.c.l.b16 %v3572
    %v4166 = vunpack.c.h.b16 %v3572
    %v4167 = vunpack.c.l.b16 %v3573
    %v4168 = vunpack.c.h.b16 %v3573
    %v4169 = vunpack.c.l.b16 %v3574
    %v4170 = vunpack.c.h.b16 %v3574
    %v4171 = vunpack.c.l.b16 %v3575
    %v4172 = vunpack.c.h.b16 %v3575
    %v4173 = vunpack.c.l.b16 %v3576
    %v4174 = vunpack.c.h.b16 %v3576
    %v4175 = vunpack.c.l.b16 %v3577
    %v4176 = vunpack.c.h.b16 %v3577
    %v4177 = vunpack.c.l.b16 %v3578
    %v4178 = vunpack.c.h.b16 %v3578
    %v4179 = vunpack.c.l.b16 %v3579
    %v4180 = vunpack.c.h.b16 %v3579
    %v4181 = vunpack.c.l.b16 %v3580
    %v4182 = vunpack.c.h.b16 %v3580
    %v4183 = vunpack.c.l.b16 %v3581
    %v4184 = vunpack.c.h.b16 %v3581
    %v4185 = vunpack.c.l.b16 %v3582
    %v4186 = vunpack.c.h.b16 %v3582
    %v4187 = vunpack.c.l.b16 %v3583
    %v4188 = vunpack.c.h.b16 %v3583
    %v4189 = vunpack.c.l.b16 %v3584
    %v4190 = vunpack.c.h.b16 %v3584
    %v4191 = vpack.c.b16 %v3811, %v3807
    %v4192 = vpack.c.b16 %v3812, %v3808
    %v4193 = vpack.c.b16 %v3813, %v3809
    %v4194 = vpack.c.b16 %v3814, %v3810
    %v4195 = vpack.c.b16 %v3819, %v3815
    %v4196 = vpack.c.b16 %v3820, %v3816
    %v4197 = vpack.c.b16 %v3821, %v3817
    %v4198 = vpack.c.b16 %v3822, %v3818
    %v4199 = vpack.c.b16 %v3827, %v3823
    %v4200 = vpack.c.b16 %v3828, %v3824
    %v4201 = vpack.c.b16 %v3829, %v3825
    %v4202 = vpack.c.b16 %v3830, %v3826
    %v4203 = vpack.c.b16 %v3835, %v3831
    %v4204 = vpack.c.b16 %v3836, %v3832
    %v4205 = vpack.c.b16 %v3837, %v3833
    %v4206 = vpack.c.b16 %v3838, %v3834
    %v4207 = vpack.c.b16 %v3843, %v3839
    %v4208 = vpack.c.b16 %v3844, %v3840
    %v4209 = vpack.c.b16 %v3845, %v3841
    %v4210 = vpack.c.b16 %v3846, %v3842
    %v4211 = vpack.c.b16 %v3851, %v3847
    %v4212 = vpack.c.b16 %v3852, %v3848
    %v4213 = vpack.c.b16 %v3853, %v3849
    %v4214 = vpack.c.b16 %v3854, %v3850
    %v4215 = vpack.c.b16 %v3859, %v3855
    %v4216 = vpack.c.b16 %v3860, %v3856
    %v4217 = vpack.c.b16 %v3861, %v3857
    %v4218 = vpack.c.b16 %v3862, %v3858
    %v4219 = vpack.c.b16 %v3867, %v3863
    %v4220 = vpack.c.b16 %v3868, %v3864
    %v4221 = vpack.c.b16 %v3869, %v3865
    %v4222 = vpack.c.b16 %v3870, %v3866
    %v4223 = vpack.c.b16 %v3875, %v3871
    %v4224 = vpack.c.b16 %v3876, %v3872
    %v4225 = vpack.c.b16 %v3877, %v3873
    %v4226 = vpack.c.b16 %v3878, %v3874
    %v4227 = vpack.c.b16 %v3883, %v3879
    %v4228 = vpack.c.b16 %v3884, %v3880
    %v4229 = vpack.c.b16 %v3885, %v3881
    %v4230 = vpack.c.b16 %v3886, %v3882
    %v4231 = vpack.c.b16 %v3891, %v3887
    %v4232 = vpack.c.b16 %v3892, %v3888
    %v4233 = vpack.c.b16 %v3893, %v3889
    %v4234 = vpack.c.b16 %v3894, %v3890
    %v4235 = vpack.c.b16 %v3899, %v3895
    %v4236 = vpack.c.b16 %v3900, %v3896
    %v4237 = vpack.c.b16 %v3901, %v3897
    %v4238 = vpack.c.b16 %v3902, %v3898
    %v4239 = vpack.c.b16 %v3907, %v3903
    %v4240 = vpack.c.b16 %v3908, %v3904
    %v4241 = vpack.c.b16 %v3909, %v3905
    %v4242 = vpack.c.b16 %v3910, %v3906
    %v4243 = vpack.c.b16 %v3915, %v3911
    %v4244 = vpack.c.b16 %v3916, %v3912
    %v4245 = vpack.c.b16 %v3917, %v3913
    %v4246 = vpack.c.b16 %v3918, %v3914
    %v4247 = vpack.c.b16 %v3923, %v3919
    %v4248 = vpack.c.b16 %v3924, %v3920
    %v4249 = vpack.c.b16 %v3925, %v3921
    %v4250 = vpack.c.b16 %v3926, %v3922
    %v4251 = vpack.c.b16 %v3931, %v3927
    %v4252 = vpack.c.b16 %v3932, %v3928
    %v4253 = vpack.c.b16 %v3933, %v3929
    %v4254 = vpack.c.b16 %v3934, %v3930
    %v4255 = vpack.c.b16 %v3939, %v3935
    %v4256 = vpack.c.b16 %v3940, %v3936
    %v4257 = vpack.c.b16 %v3941, %v3937
    %v4258 = vpack.c.b16 %v3942, %v3938
    %v4259 = vpack.c.b16 %v3947, %v3943
    %v4260 = vpack.c.b16 %v3948, %v3944
    %v4261 = vpack.c.b16 %v3949, %v3945
    %v4262 = vpack.c.b16 %v3950, %v3946
    %v4263 = vpack.c.b16 %v3955, %v3951
    %v4264 = vpack.c.b16 %v3956, %v3952
    %v4265 = vpack.c.b16 %v3957, %v3953
    %v4266 = vpack.c.b16 %v3958, %v3954
    %v4267 = vpack.c.b16 %v3963, %v3959
    %v4268 = vpack.c.b16 %v3964, %v3960
    %v4269 = vpack.c.b16 %v3965, %v3961
    %v4270 = vpack.c.b16 %v3966, %v3962
    %v4271 = vpack.c.b16 %v3971, %v3967
    %v4272 = vpack.c.b16 %v3972, %v3968
    %v4273 = vpack.c.b16 %v3973, %v3969
    %v4274 = vpack.c.b16 %v3974, %v3970
    %v4275 = vpack.c.b16 %v3979, %v3975
    %v4276 = vpack.c.b16 %v3980, %v3976
    %v4277 = vpack.c.b16 %v3981, %v3977
    %v4278 = vpack.c.b16 %v3982, %v3978
    %v4279 = vpack.c.b16 %v3987, %v3983
    %v4280 = vpack.c.b16 %v3988, %v3984
    %v4281 = vpack.c.b16 %v3989, %v3985
    %v4282 = vpack.c.b16 %v3990, %v3986
    %v4283 = vpack.c.b16 %v3995, %v3991
    %v4284 = vpack.c.b16 %v3996, %v3992
    %v4285 = vpack.c.b16 %v3997, %v3993
    %v4286 = vpack.c.b16 %v3998, %v3994
    %v4287 = vpack.c.b16 %v4003, %v3999
    %v4288 = vpack.c.b16 %v4004, %v4000
    %v4289 = vpack.c.b16 %v4005, %v4001
    %v4290 = vpack.c.b16 %v4006, %v4002
    %v4291 = vpack.c.b16 %v4011, %v4007
    %v4292 = vpack.c.b16 %v4012, %v4008
    %v4293 = vpack.c.b16 %v4013, %v4009
    %v4294 = vpack.c.b16 %v4014, %v4010
    %v4295 = vpack.c.b16 %v4019, %v4015
    %v4296 = vpack.c.b16 %v4020, %v4016
    %v4297 = vpack.c.b16 %v4021, %v4017
    %v4298 = vpack.c.b16 %v4022, %v4018
    %v4299 = vpack.c.b16 %v4027, %v4023
    %v4300 = vpack.c.b16 %v4028, %v4024
    %v4301 = vpack.c.b16 %v4029, %v4025
    %v4302 = vpack.c.b16 %v4030, %v4026
    %v4303 = vpack.c.b16 %v4035, %v4031
    %v4304 = vpack.c.b16 %v4036, %v4032
    %v4305 = vpack.c.b16 %v4037, %v4033
    %v4306 = vpack.c.b16 %v4038, %v4034
    %v4307 = vpack.c.b16 %v4043, %v4039
    %v4308 = vpack.c.b16 %v4044, %v4040
    %v4309 = vpack.c.b16 %v4045, %v4041
    %v4310 = vpack.c.b16 %v4046, %v4042
    %v4311 = vpack.c.b16 %v4051, %v4047
    %v4312 = vpack.c.b16 %v4052, %v4048
    %v4313 = vpack.c.b16 %v4053, %v4049
    %v4314 = vpack.c.b16 %v4054, %v4050
    %v4315 = vpack.c.b16 %v4059, %v4055
    %v4316 = vpack.c.b16 %v4060, %v4056
    %v4317 = vpack.c.b16 %v4061, %v4057
    %v4318 = vpack.c.b16 %v4062, %v4058
    %v4319 = vpack.c.b16 %v4067, %v4063
    %v4320 = vpack.c.b16 %v4068, %v4064
    %v4321 = vpack.c.b16 %v4069, %v4065
    %v4322 = vpack.c.b16 %v4070, %v4066
    %v4323 = vpack.c.b16 %v4075, %v4071
    %v4324 = vpack.c.b16 %v4076, %v4072
    %v4325 = vpack.c.b16 %v4077, %v4073
    %v4326 = vpack.c.b16 %v4078, %v4074
    %v4327 = vpack.c.b16 %v4083, %v4079
    %v4328 = vpack.c.b16 %v4084, %v4080
    %v4329 = vpack.c.b16 %v4085, %v4081
    %v4330 = vpack.c.b16 %v4086, %v4082
    %v4331 = vpack.c.b16 %v4091, %v4087
    %v4332 = vpack.c.b16 %v4092, %v4088
    %v4333 = vpack.c.b16 %v4093, %v4089
    %v4334 = vpack.c.b16 %v4094, %v4090
    %v4335 = vpack.c.b16 %v4099, %v4095
    %v4336 = vpack.c.b16 %v4100, %v4096
    %v4337 = vpack.c.b16 %v4101, %v4097
    %v4338 = vpack.c.b16 %v4102, %v4098
    %v4339 = vpack.c.b16 %v4107, %v4103
    %v4340 = vpack.c.b16 %v4108, %v4104
    %v4341 = vpack.c.b16 %v4109, %v4105
    %v4342 = vpack.c.b16 %v4110, %v4106
    %v4343 = vpack.c.b16 %v4115, %v4111
    %v4344 = vpack.c.b16 %v4116, %v4112
    %v4345 = vpack.c.b16 %v4117, %v4113
    %v4346 = vpack.c.b16 %v4118, %v4114
    %v4347 = vpack.c.b16 %v4123, %v4119
    %v4348 = vpack.c.b16 %v4124, %v4120
    %v4349 = vpack.c.b16 %v4125, %v4121
    %v4350 = vpack.c.b16 %v4126, %v4122
    %v4351 = vpack.c.b16 %v4131, %v4127
    %v4352 = vpack.c.b16 %v4132, %v4128
    %v4353 = vpack.c.b16 %v4133, %v4129
    %v4354 = vpack.c.b16 %v4134, %v4130
    %v4355 = vpack.c.b16 %v4139, %v4135
    %v4356 = vpack.c.b16 %v4140, %v4136
    %v4357 = vpack.c.b16 %v4141, %v4137
    %v4358 = vpack.c.b16 %v4142, %v4138
    %v4359 = vpack.c.b16 %v4147, %v4143
    %v4360 = vpack.c.b16 %v4148, %v4144
    %v4361 = vpack.c.b16 %v4149, %v4145
    %v4362 = vpack.c.b16 %v4150, %v4146
    %v4363 = vpack.c.b16 %v4155, %v4151
    %v4364 = vpack.c.b16 %v4156, %v4152
    %v4365 = vpack.c.b16 %v4157, %v4153
    %v4366 = vpack.c.b16 %v4158, %v4154
    %v4367 = vpack.c.b16 %v4163, %v4159
    %v4368 = vpack.c.b16 %v4164, %v4160
    %v4369 = vpack.c.b16 %v4165, %v4161
    %v4370 = vpack.c.b16 %v4166, %v4162
    %v4371 = vpack.c.b16 %v4171, %v4167
    %v4372 = vpack.c.b16 %v4172, %v4168
    %v4373 = vpack.c.b16 %v4173, %v4169
    %v4374 = vpack.c.b16 %v4174, %v4170
    %v4375 = vpack.c.b16 %v4179, %v4175
    %v4376 = vpack.c.b16 %v4180, %v4176
    %v4377 = vpack.c.b16 %v4181, %v4177
    %v4378 = vpack.c.b16 %v4182, %v4178
    %v4379 = vpack.c.b16 %v4187, %v4183
    %v4380 = vpack.c.b16 %v4188, %v4184
    %v4381 = vpack.c.b16 %v4189, %v4185
    %v4382 = vpack.c.b16 %v4190, %v4186
    %4575 = vmatpush.bf16.msra.mxu0 %v4219
    %4576 = vmatpush.bf16.msra.mxu0 %v4215
    %4577 = vmatpush.bf16.msra.mxu0 %v4211
    %4578 = vmatpush.bf16.msra.mxu0 %v4207
    %4579 = vmatpush.bf16.msra.mxu0 %v4203
    %4580 = vmatpush.bf16.msra.mxu0 %v4199
    %4581 = vmatpush.bf16.msra.mxu0 %v4195
    %4582 = vmatpush.bf16.msra.mxu0 %v4191
    %4583 = vmatmul.bf16.gmra.mxu0 %v3603
    %v4584 = vpop.f32.mrf.mxu0
    %v4585 = vadd.f32 0.0, %v4584
    %v4586 = vpop.f32.mrf.mxu0
    %v4587 = vadd.f32 0.0, %v4586
    %4588 = vdwg.mxu0
    %4589 = vmatpush.bf16.msra.mxu0 %v4251
    %4590 = vmatpush.bf16.msra.mxu0 %v4247
    %4591 = vmatpush.bf16.msra.mxu0 %v4243
    %4592 = vmatpush.bf16.msra.mxu0 %v4239
    %4593 = vmatpush.bf16.msra.mxu0 %v4235
    %4594 = vmatpush.bf16.msra.mxu0 %v4231
    %4595 = vmatpush.bf16.msra.mxu0 %v4227
    %4596 = vmatpush.bf16.msra.mxu0 %v4223
    %4597 = vmatmul.bf16.gmra.mxu0 %v3604
    %v4598 = vpop.f32.mrf.mxu0
    %v4599 = vadd.f32 %v4585, %v4598
    %v4600 = vpop.f32.mrf.mxu0
    %v4601 = vadd.f32 %v4587, %v4600
    %4602 = vdwg.mxu0
    %4603 = vmatpush.bf16.msra.mxu0 %v4283
    %4604 = vmatpush.bf16.msra.mxu0 %v4279
    %4605 = vmatpush.bf16.msra.mxu0 %v4275
    %4606 = vmatpush.bf16.msra.mxu0 %v4271
    %4607 = vmatpush.bf16.msra.mxu0 %v4267
    %4608 = vmatpush.bf16.msra.mxu0 %v4263
    %4609 = vmatpush.bf16.msra.mxu0 %v4259
    %4610 = vmatpush.bf16.msra.mxu0 %v4255
    %4611 = vmatmul.bf16.gmra.mxu0 %v3605
    %v4612 = vpop.f32.mrf.mxu0
    %v4613 = vadd.f32 %v4599, %v4612
    %v4614 = vpop.f32.mrf.mxu0
    %v4615 = vadd.f32 %v4601, %v4614
    %4616 = vdwg.mxu0
    %4617 = vmatpush.bf16.msra.mxu0 %v4315
    %4618 = vmatpush.bf16.msra.mxu0 %v4311
    %4619 = vmatpush.bf16.msra.mxu0 %v4307
    %4620 = vmatpush.bf16.msra.mxu0 %v4303
    %4621 = vmatpush.bf16.msra.mxu0 %v4299
    %4622 = vmatpush.bf16.msra.mxu0 %v4295
    %4623 = vmatpush.bf16.msra.mxu0 %v4291
    %4624 = vmatpush.bf16.msra.mxu0 %v4287
    %4625 = vmatmul.bf16.gmra.mxu0 %v3606
    %v4626 = vpop.f32.mrf.mxu0
    %v4627 = vadd.f32 %v4613, %v4626
    %v4628 = vpop.f32.mrf.mxu0
    %v4629 = vadd.f32 %v4615, %v4628
    %4630 = vdwg.mxu0
    %4631 = vmatpush.bf16.msra.mxu0 %v4347
    %4632 = vmatpush.bf16.msra.mxu0 %v4343
    %4633 = vmatpush.bf16.msra.mxu0 %v4339
    %4634 = vmatpush.bf16.msra.mxu0 %v4335
    %4635 = vmatpush.bf16.msra.mxu0 %v4331
    %4636 = vmatpush.bf16.msra.mxu0 %v4327
    %4637 = vmatpush.bf16.msra.mxu0 %v4323
    %4638 = vmatpush.bf16.msra.mxu0 %v4319
    %4639 = vmatmul.bf16.gmra.mxu0 %v3607
    %v4640 = vpop.f32.mrf.mxu0
    %v4641 = vadd.f32 %v4627, %v4640
    %v4642 = vpop.f32.mrf.mxu0
    %v4643 = vadd.f32 %v4629, %v4642
    %4644 = vdwg.mxu0
    %4645 = vmatpush.bf16.msra.mxu0 %v4379
    %4646 = vmatpush.bf16.msra.mxu0 %v4375
    %4647 = vmatpush.bf16.msra.mxu0 %v4371
    %4648 = vmatpush.bf16.msra.mxu0 %v4367
    %4649 = vmatpush.bf16.msra.mxu0 %v4363
    %4650 = vmatpush.bf16.msra.mxu0 %v4359
    %4651 = vmatpush.bf16.msra.mxu0 %v4355
    %4652 = vmatpush.bf16.msra.mxu0 %v4351
    %4653 = vmatmul.bf16.gmra.mxu0 %v3608
    %v4654 = vpop.f32.mrf.mxu0
    %v4655 = vadd.f32 %v4641, %v4654
    %v4656 = vpop.f32.mrf.mxu0
    %v4657 = vadd.f32 %v4643, %v4656
    %4658 = vdwg.mxu0
    %4659 = vmatpush.bf16.msra.mxu0 %v4220
    %4660 = vmatpush.bf16.msra.mxu0 %v4216
    %4661 = vmatpush.bf16.msra.mxu0 %v4212
    %4662 = vmatpush.bf16.msra.mxu0 %v4208
    %4663 = vmatpush.bf16.msra.mxu0 %v4204
    %4664 = vmatpush.bf16.msra.mxu0 %v4200
    %4665 = vmatpush.bf16.msra.mxu0 %v4196
    %4666 = vmatpush.bf16.msra.mxu0 %v4192
    %4667 = vmatmul.bf16.gmra.mxu0 %v3603
    %v4668 = vpop.f32.mrf.mxu0
    %v4669 = vadd.f32 0.0, %v4668
    %v4670 = vpop.f32.mrf.mxu0
    %v4671 = vadd.f32 0.0, %v4670
    %4672 = vdwg.mxu0
    %4673 = vmatpush.bf16.msra.mxu0 %v4252
    %4674 = vmatpush.bf16.msra.mxu0 %v4248
    %4675 = vmatpush.bf16.msra.mxu0 %v4244
    %4676 = vmatpush.bf16.msra.mxu0 %v4240
    %4677 = vmatpush.bf16.msra.mxu0 %v4236
    %4678 = vmatpush.bf16.msra.mxu0 %v4232
    %4679 = vmatpush.bf16.msra.mxu0 %v4228
    %4680 = vmatpush.bf16.msra.mxu0 %v4224
    %4681 = vmatmul.bf16.gmra.mxu0 %v3604
    %v4682 = vpop.f32.mrf.mxu0
    %v4683 = vadd.f32 %v4669, %v4682
    %v4684 = vpop.f32.mrf.mxu0
    %v4685 = vadd.f32 %v4671, %v4684
    %4686 = vdwg.mxu0
    %4687 = vmatpush.bf16.msra.mxu0 %v4284
    %4688 = vmatpush.bf16.msra.mxu0 %v4280
    %4689 = vmatpush.bf16.msra.mxu0 %v4276
    %4690 = vmatpush.bf16.msra.mxu0 %v4272
    %4691 = vmatpush.bf16.msra.mxu0 %v4268
    %4692 = vmatpush.bf16.msra.mxu0 %v4264
    %4693 = vmatpush.bf16.msra.mxu0 %v4260
    %4694 = vmatpush.bf16.msra.mxu0 %v4256
    %4695 = vmatmul.bf16.gmra.mxu0 %v3605
    %v4696 = vpop.f32.mrf.mxu0
    %v4697 = vadd.f32 %v4683, %v4696
    %v4698 = vpop.f32.mrf.mxu0
    %v4699 = vadd.f32 %v4685, %v4698
    %4700 = vdwg.mxu0
    %4701 = vmatpush.bf16.msra.mxu0 %v4316
    %4702 = vmatpush.bf16.msra.mxu0 %v4312
    %4703 = vmatpush.bf16.msra.mxu0 %v4308
    %4704 = vmatpush.bf16.msra.mxu0 %v4304
    %4705 = vmatpush.bf16.msra.mxu0 %v4300
    %4706 = vmatpush.bf16.msra.mxu0 %v4296
    %4707 = vmatpush.bf16.msra.mxu0 %v4292
    %4708 = vmatpush.bf16.msra.mxu0 %v4288
    %4709 = vmatmul.bf16.gmra.mxu0 %v3606
    %v4710 = vpop.f32.mrf.mxu0
    %v4711 = vadd.f32 %v4697, %v4710
    %v4712 = vpop.f32.mrf.mxu0
    %v4713 = vadd.f32 %v4699, %v4712
    %4714 = vdwg.mxu0
    %4715 = vmatpush.bf16.msra.mxu0 %v4348
    %4716 = vmatpush.bf16.msra.mxu0 %v4344
    %4717 = vmatpush.bf16.msra.mxu0 %v4340
    %4718 = vmatpush.bf16.msra.mxu0 %v4336
    %4719 = vmatpush.bf16.msra.mxu0 %v4332
    %4720 = vmatpush.bf16.msra.mxu0 %v4328
    %4721 = vmatpush.bf16.msra.mxu0 %v4324
    %4722 = vmatpush.bf16.msra.mxu0 %v4320
    %4723 = vmatmul.bf16.gmra.mxu0 %v3607
    %v4724 = vpop.f32.mrf.mxu0
    %v4725 = vadd.f32 %v4711, %v4724
    %v4726 = vpop.f32.mrf.mxu0
    %v4727 = vadd.f32 %v4713, %v4726
    %4728 = vdwg.mxu0
    %4729 = vmatpush.bf16.msra.mxu0 %v4380
    %4730 = vmatpush.bf16.msra.mxu0 %v4376
    %4731 = vmatpush.bf16.msra.mxu0 %v4372
    %4732 = vmatpush.bf16.msra.mxu0 %v4368
    %4733 = vmatpush.bf16.msra.mxu0 %v4364
    %4734 = vmatpush.bf16.msra.mxu0 %v4360
    %4735 = vmatpush.bf16.msra.mxu0 %v4356
    %4736 = vmatpush.bf16.msra.mxu0 %v4352
    %4737 = vmatmul.bf16.gmra.mxu0 %v3608
    %v4738 = vpop.f32.mrf.mxu0
    %v4739 = vadd.f32 %v4725, %v4738
    %v4740 = vpop.f32.mrf.mxu0
    %v4741 = vadd.f32 %v4727, %v4740
    %4742 = vdwg.mxu0
    %4743 = vmatpush.bf16.msra.mxu0 %v4221
    %4744 = vmatpush.bf16.msra.mxu0 %v4217
    %4745 = vmatpush.bf16.msra.mxu0 %v4213
    %4746 = vmatpush.bf16.msra.mxu0 %v4209
    %4747 = vmatpush.bf16.msra.mxu0 %v4205
    %4748 = vmatpush.bf16.msra.mxu0 %v4201
    %4749 = vmatpush.bf16.msra.mxu0 %v4197
    %4750 = vmatpush.bf16.msra.mxu0 %v4193
    %4751 = vmatmul.bf16.gmra.mxu0 %v3603
    %v4752 = vpop.f32.mrf.mxu0
    %v4753 = vadd.f32 0.0, %v4752
    %v4754 = vpop.f32.mrf.mxu0
    %v4755 = vadd.f32 0.0, %v4754
    %4756 = vdwg.mxu0
    %4757 = vmatpush.bf16.msra.mxu0 %v4253
    %4758 = vmatpush.bf16.msra.mxu0 %v4249
    %4759 = vmatpush.bf16.msra.mxu0 %v4245
    %4760 = vmatpush.bf16.msra.mxu0 %v4241
    %4761 = vmatpush.bf16.msra.mxu0 %v4237
    %4762 = vmatpush.bf16.msra.mxu0 %v4233
    %4763 = vmatpush.bf16.msra.mxu0 %v4229
    %4764 = vmatpush.bf16.msra.mxu0 %v4225
    %4765 = vmatmul.bf16.gmra.mxu0 %v3604
    %v4766 = vpop.f32.mrf.mxu0
    %v4767 = vadd.f32 %v4753, %v4766
    %v4768 = vpop.f32.mrf.mxu0
    %v4769 = vadd.f32 %v4755, %v4768
    %4770 = vdwg.mxu0
    %4771 = vmatpush.bf16.msra.mxu0 %v4285
    %4772 = vmatpush.bf16.msra.mxu0 %v4281
    %4773 = vmatpush.bf16.msra.mxu0 %v4277
    %4774 = vmatpush.bf16.msra.mxu0 %v4273
    %4775 = vmatpush.bf16.msra.mxu0 %v4269
    %4776 = vmatpush.bf16.msra.mxu0 %v4265
    %4777 = vmatpush.bf16.msra.mxu0 %v4261
    %4778 = vmatpush.bf16.msra.mxu0 %v4257
    %4779 = vmatmul.bf16.gmra.mxu0 %v3605
    %v4780 = vpop.f32.mrf.mxu0
    %v4781 = vadd.f32 %v4767, %v4780
    %v4782 = vpop.f32.mrf.mxu0
    %v4783 = vadd.f32 %v4769, %v4782
    %4784 = vdwg.mxu0
    %4785 = vmatpush.bf16.msra.mxu0 %v4317
    %4786 = vmatpush.bf16.msra.mxu0 %v4313
    %4787 = vmatpush.bf16.msra.mxu0 %v4309
    %4788 = vmatpush.bf16.msra.mxu0 %v4305
    %4789 = vmatpush.bf16.msra.mxu0 %v4301
    %4790 = vmatpush.bf16.msra.mxu0 %v4297
    %4791 = vmatpush.bf16.msra.mxu0 %v4293
    %4792 = vmatpush.bf16.msra.mxu0 %v4289
    %4793 = vmatmul.bf16.gmra.mxu0 %v3606
    %v4794 = vpop.f32.mrf.mxu0
    %v4795 = vadd.f32 %v4781, %v4794
    %v4796 = vpop.f32.mrf.mxu0
    %v4797 = vadd.f32 %v4783, %v4796
    %4798 = vdwg.mxu0
    %4799 = vmatpush.bf16.msra.mxu0 %v4349
    %4800 = vmatpush.bf16.msra.mxu0 %v4345
    %4801 = vmatpush.bf16.msra.mxu0 %v4341
    %4802 = vmatpush.bf16.msra.mxu0 %v4337
    %4803 = vmatpush.bf16.msra.mxu0 %v4333
    %4804 = vmatpush.bf16.msra.mxu0 %v4329
    %4805 = vmatpush.bf16.msra.mxu0 %v4325
    %4806 = vmatpush.bf16.msra.mxu0 %v4321
    %4807 = vmatmul.bf16.gmra.mxu0 %v3607
    %v4808 = vpop.f32.mrf.mxu0
    %v4809 = vadd.f32 %v4795, %v4808
    %v4810 = vpop.f32.mrf.mxu0
    %v4811 = vadd.f32 %v4797, %v4810
    %4812 = vdwg.mxu0
    %4813 = vmatpush.bf16.msra.mxu0 %v4381
    %4814 = vmatpush.bf16.msra.mxu0 %v4377
    %4815 = vmatpush.bf16.msra.mxu0 %v4373
    %4816 = vmatpush.bf16.msra.mxu0 %v4369
    %4817 = vmatpush.bf16.msra.mxu0 %v4365
    %4818 = vmatpush.bf16.msra.mxu0 %v4361
    %4819 = vmatpush.bf16.msra.mxu0 %v4357
    %4820 = vmatpush.bf16.msra.mxu0 %v4353
    %4821 = vmatmul.bf16.gmra.mxu0 %v3608
    %v4822 = vpop.f32.mrf.mxu0
    %v4823 = vadd.f32 %v4809, %v4822
    %v4824 = vpop.f32.mrf.mxu0
    %v4825 = vadd.f32 %v4811, %v4824
    %4826 = vdwg.mxu0
    %4827 = vmatpush.bf16.msra.mxu0 %v4222
    %4828 = vmatpush.bf16.msra.mxu0 %v4218
    %4829 = vmatpush.bf16.msra.mxu0 %v4214
    %4830 = vmatpush.bf16.msra.mxu0 %v4210
    %4831 = vmatpush.bf16.msra.mxu0 %v4206
    %4832 = vmatpush.bf16.msra.mxu0 %v4202
    %4833 = vmatpush.bf16.msra.mxu0 %v4198
    %4834 = vmatpush.bf16.msra.mxu0 %v4194
    %4835 = vmatmul.bf16.gmra.mxu0 %v3603
    %v4836 = vpop.f32.mrf.mxu0
    %v4837 = vadd.f32 0.0, %v4836
    %v4838 = vpop.f32.mrf.mxu0
    %v4839 = vadd.f32 0.0, %v4838
    %4840 = vdwg.mxu0
    %4841 = vmatpush.bf16.msra.mxu0 %v4254
    %4842 = vmatpush.bf16.msra.mxu0 %v4250
    %4843 = vmatpush.bf16.msra.mxu0 %v4246
    %4844 = vmatpush.bf16.msra.mxu0 %v4242
    %4845 = vmatpush.bf16.msra.mxu0 %v4238
    %4846 = vmatpush.bf16.msra.mxu0 %v4234
    %4847 = vmatpush.bf16.msra.mxu0 %v4230
    %4848 = vmatpush.bf16.msra.mxu0 %v4226
    %4849 = vmatmul.bf16.gmra.mxu0 %v3604
    %v4850 = vpop.f32.mrf.mxu0
    %v4851 = vadd.f32 %v4837, %v4850
    %v4852 = vpop.f32.mrf.mxu0
    %v4853 = vadd.f32 %v4839, %v4852
    %4854 = vdwg.mxu0
    %4855 = vmatpush.bf16.msra.mxu0 %v4286
    %4856 = vmatpush.bf16.msra.mxu0 %v4282
    %4857 = vmatpush.bf16.msra.mxu0 %v4278
    %4858 = vmatpush.bf16.msra.mxu0 %v4274
    %4859 = vmatpush.bf16.msra.mxu0 %v4270
    %4860 = vmatpush.bf16.msra.mxu0 %v4266
    %4861 = vmatpush.bf16.msra.mxu0 %v4262
    %4862 = vmatpush.bf16.msra.mxu0 %v4258
    %4863 = vmatmul.bf16.gmra.mxu0 %v3605
    %v4864 = vpop.f32.mrf.mxu0
    %v4865 = vadd.f32 %v4851, %v4864
    %v4866 = vpop.f32.mrf.mxu0
    %v4867 = vadd.f32 %v4853, %v4866
    %4868 = vdwg.mxu0
    %4869 = vmatpush.bf16.msra.mxu0 %v4318
    %4870 = vmatpush.bf16.msra.mxu0 %v4314
    %4871 = vmatpush.bf16.msra.mxu0 %v4310
    %4872 = vmatpush.bf16.msra.mxu0 %v4306
    %4873 = vmatpush.bf16.msra.mxu0 %v4302
    %4874 = vmatpush.bf16.msra.mxu0 %v4298
    %4875 = vmatpush.bf16.msra.mxu0 %v4294
    %4876 = vmatpush.bf16.msra.mxu0 %v4290
    %4877 = vmatmul.bf16.gmra.mxu0 %v3606
    %v4878 = vpop.f32.mrf.mxu0
    %v4879 = vadd.f32 %v4865, %v4878
    %v4880 = vpop.f32.mrf.mxu0
    %v4881 = vadd.f32 %v4867, %v4880
    %4882 = vdwg.mxu0
    %4883 = vmatpush.bf16.msra.mxu0 %v4350
    %4884 = vmatpush.bf16.msra.mxu0 %v4346
    %4885 = vmatpush.bf16.msra.mxu0 %v4342
    %4886 = vmatpush.bf16.msra.mxu0 %v4338
    %4887 = vmatpush.bf16.msra.mxu0 %v4334
    %4888 = vmatpush.bf16.msra.mxu0 %v4330
    %4889 = vmatpush.bf16.msra.mxu0 %v4326
    %4890 = vmatpush.bf16.msra.mxu0 %v4322
    %4891 = vmatmul.bf16.gmra.mxu0 %v3607
    %v4892 = vpop.f32.mrf.mxu0
    %v4893 = vadd.f32 %v4879, %v4892
    %v4894 = vpop.f32.mrf.mxu0
    %v4895 = vadd.f32 %v4881, %v4894
    %4896 = vdwg.mxu0
    %4897 = vmatpush.bf16.msra.mxu0 %v4382
    %4898 = vmatpush.bf16.msra.mxu0 %v4378
    %4899 = vmatpush.bf16.msra.mxu0 %v4374
    %4900 = vmatpush.bf16.msra.mxu0 %v4370
    %4901 = vmatpush.bf16.msra.mxu0 %v4366
    %4902 = vmatpush.bf16.msra.mxu0 %v4362
    %4903 = vmatpush.bf16.msra.mxu0 %v4358
    %4904 = vmatpush.bf16.msra.mxu0 %v4354
    %4905 = vmatmul.bf16.gmra.mxu0 %v3608
    %v4906 = vpop.f32.mrf.mxu0
    %v4907 = vadd.f32 %v4893, %v4906
    %v4908 = vpop.f32.mrf.mxu0
    %v4909 = vadd.f32 %v4895, %v4908
    %4910 = vdwg.mxu0
    %v4911 = vadd.f32 %v3379, %v4655
    %v4912 = vadd.f32 %v3380, %v4739
    %v4913 = vadd.f32 %v3381, %v4823
    %v4914 = vadd.f32 %v3382, %v4907
    %v4915 = vadd.f32 %v3383, %v4657
    %v4916 = vadd.f32 %v3384, %v4741
    %v4917 = vadd.f32 %v3385, %v4825
    %v4918 = vadd.f32 %v3386, %v4909
    %4919 = vst [vmem:[#allocation4] sm:$0xff] %v4911
    %4920 = vst [vmem:[#allocation4 + $0x8] sm:$0xff] %v4912
    %4921 = vst [vmem:[#allocation4 + $0x10] sm:$0xff] %v4913
    %4922 = vst [vmem:[#allocation4 + $0x18] sm:$0xff] %v4914
    %4923 = vst [vmem:[#allocation4 + $0x20] sm:$0xff] %v4915
    %4924 = vst [vmem:[#allocation4 + $0x28] sm:$0xff] %v4916
    %4925 = vst [vmem:[#allocation4 + $0x30] sm:$0xff] %v4917
    %4926 = vst [vmem:[#allocation4 + $0x38] sm:$0xff] %v4918
    // Predicated region
    $region126: #{tpu_custom_call.1} parent=1 // pred_check
      %p4927 = pneg %p255
    $region127: #{tpu_custom_call.1} parent=1 // pred_check_branch
      %4929 = sbr.rel (%p4927) target = $region129
    $region128: #{tpu_custom_call.1} parent=1 // pred_region
      %v4930 = vld [vmem:[#allocation2] sm:$0xff]
      %v4931 = vld [vmem:[#allocation2 + $0x8] sm:$0xff]
      %v4932 = vld [vmem:[#allocation2 + $0x10] sm:$0xff]
      %v4933 = vld [vmem:[#allocation2 + $0x18] sm:$0xff]
      %v4934 = vld [vmem:[#allocation2 + $0x20] sm:$0xff]
      %v4935 = vld [vmem:[#allocation2 + $0x28] sm:$0xff]
      %v4936 = vld [vmem:[#allocation2 + $0x30] sm:$0xff]
      %v4937 = vld [vmem:[#allocation2 + $0x38] sm:$0xff]
      %v4938 = vld [vmem:[%s6] sm:$0xf]
      %v4940 = vperm.slane %v4938, 0
      %v4941 = vperm.slane %v4938, 1
      %v4942 = vperm.slane %v4938, 2
      %v4943 = vperm.slane %v4938, 3
      %v4948 = vadd.f32 %v4930, %v4940
      %v4949 = vadd.f32 %v4931, %v4941
      %v4950 = vadd.f32 %v4932, %v4942
      %v4951 = vadd.f32 %v4933, %v4943
      %v4952 = vadd.f32 %v4934, %v4940
      %v4953 = vadd.f32 %v4935, %v4941
      %v4954 = vadd.f32 %v4936, %v4942
      %v4955 = vadd.f32 %v4937, %v4943
      %v4956 = vmax.f32 %v4948, 0.0
      %v4957 = vmax.f32 %v4949, 0.0
      %v4958 = vmax.f32 %v4950, 0.0
      %v4959 = vmax.f32 %v4951, 0.0
      %v4960 = vmax.f32 %v4952, 0.0
      %v4961 = vmax.f32 %v4953, 0.0
      %v4962 = vmax.f32 %v4954, 0.0
      %v4963 = vmax.f32 %v4955, 0.0
      %v4964 = vld [vmem:[#allocation3] sm:$0xff]
      %v4965 = vld [vmem:[#allocation3 + $0x8] sm:$0xff]
      %v4966 = vld [vmem:[#allocation3 + $0x10] sm:$0xff]
      %v4967 = vld [vmem:[#allocation3 + $0x18] sm:$0xff]
      %v4968 = vld [vmem:[#allocation3 + $0x20] sm:$0xff]
      %v4969 = vld [vmem:[#allocation3 + $0x28] sm:$0xff]
      %v4970 = vld [vmem:[#allocation3 + $0x30] sm:$0xff]
      %v4971 = vld [vmem:[#allocation3 + $0x38] sm:$0xff]
      %v4972 = vld [vmem:[#allocation16] sm:$0xf]
      %v4974 = vperm.slane %v4972, 0
      %v4975 = vperm.slane %v4972, 1
      %v4976 = vperm.slane %v4972, 2
      %v4977 = vperm.slane %v4972, 3
      %v4982 = vadd.f32 %v4964, %v4974
      %v4983 = vadd.f32 %v4965, %v4975
      %v4984 = vadd.f32 %v4966, %v4976
      %v4985 = vadd.f32 %v4967, %v4977
      %v4986 = vadd.f32 %v4968, %v4974
      %v4987 = vadd.f32 %v4969, %v4975
      %v4988 = vadd.f32 %v4970, %v4976
      %v4989 = vadd.f32 %v4971, %v4977
      %v4990 = vmax.f32 %v4982, 0.0
      %v4991 = vmax.f32 %v4983, 0.0
      %v4992 = vmax.f32 %v4984, 0.0
      %v4993 = vmax.f32 %v4985, 0.0
      %v4994 = vmax.f32 %v4986, 0.0
      %v4995 = vmax.f32 %v4987, 0.0
      %v4996 = vmax.f32 %v4988, 0.0
      %v4997 = vmax.f32 %v4989, 0.0
      %v4998 = vld [vmem:[#allocation4] sm:$0xff]
      %v4999 = vld [vmem:[#allocation4 + $0x8] sm:$0xff]
      %v5000 = vld [vmem:[#allocation4 + $0x10] sm:$0xff]
      %v5001 = vld [vmem:[#allocation4 + $0x18] sm:$0xff]
      %v5002 = vld [vmem:[#allocation4 + $0x20] sm:$0xff]
      %v5003 = vld [vmem:[#allocation4 + $0x28] sm:$0xff]
      %v5004 = vld [vmem:[#allocation4 + $0x30] sm:$0xff]
      %v5005 = vld [vmem:[#allocation4 + $0x38] sm:$0xff]
      %v5006 = vld [vmem:[#allocation17] sm:$0xf]
      %v5008 = vperm.slane %v5006, 0
      %v5009 = vperm.slane %v5006, 1
      %v5010 = vperm.slane %v5006, 2
      %v5011 = vperm.slane %v5006, 3
      %v5016 = vadd.f32 %v4998, %v5008
      %v5017 = vadd.f32 %v4999, %v5009
      %v5018 = vadd.f32 %v5000, %v5010
      %v5019 = vadd.f32 %v5001, %v5011
      %v5020 = vadd.f32 %v5002, %v5008
      %v5021 = vadd.f32 %v5003, %v5009
      %v5022 = vadd.f32 %v5004, %v5010
      %v5023 = vadd.f32 %v5005, %v5011
      %v5024 = vmax.f32 %v5016, 0.0
      %v5025 = vmax.f32 %v5017, 0.0
      %v5026 = vmax.f32 %v5018, 0.0
      %v5027 = vmax.f32 %v5019, 0.0
      %v5028 = vmax.f32 %v5020, 0.0
      %v5029 = vmax.f32 %v5021, 0.0
      %v5030 = vmax.f32 %v5022, 0.0
      %v5031 = vmax.f32 %v5023, 0.0
      %v5032 = vsub.f32 %v4956, %v4990
      %v5033 = vsub.f32 %v4957, %v4991
      %v5034 = vsub.f32 %v4958, %v4992
      %v5035 = vsub.f32 %v4959, %v4993
      %v5036 = vsub.f32 %v4960, %v4994
      %v5037 = vsub.f32 %v4961, %v4995
      %v5038 = vsub.f32 %v4962, %v4996
      %v5039 = vsub.f32 %v4963, %v4997
      %v5040 = vand.u32 2147483647, %v5032
      %v5041 = vand.u32 2147483647, %v5033
      %v5042 = vand.u32 2147483647, %v5034
      %v5043 = vand.u32 2147483647, %v5035
      %v5044 = vand.u32 2147483647, %v5036
      %v5045 = vand.u32 2147483647, %v5037
      %v5046 = vand.u32 2147483647, %v5038
      %v5047 = vand.u32 2147483647, %v5039
      %v5048 = vpack.c.bf16 %v5044, %v5040
      %v5049 = vpack.c.bf16 %v5045, %v5041
      %v5050 = vpack.c.bf16 %v5046, %v5042
      %v5051 = vpack.c.bf16 %v5047, %v5043
      %v5052 = vsub.f32 %v4990, %v5024
      %v5053 = vsub.f32 %v4991, %v5025
      %v5054 = vsub.f32 %v4992, %v5026
      %v5055 = vsub.f32 %v4993, %v5027
      %v5056 = vsub.f32 %v4994, %v5028
      %v5057 = vsub.f32 %v4995, %v5029
      %v5058 = vsub.f32 %v4996, %v5030
      %v5059 = vsub.f32 %v4997, %v5031
      %v5060 = vand.u32 2147483647, %v5052
      %v5061 = vand.u32 2147483647, %v5053
      %v5062 = vand.u32 2147483647, %v5054
      %v5063 = vand.u32 2147483647, %v5055
      %v5064 = vand.u32 2147483647, %v5056
      %v5065 = vand.u32 2147483647, %v5057
      %v5066 = vand.u32 2147483647, %v5058
      %v5067 = vand.u32 2147483647, %v5059
      %v5068 = vpack.c.bf16 %v5064, %v5060
      %v5069 = vpack.c.bf16 %v5065, %v5061
      %v5070 = vpack.c.bf16 %v5066, %v5062
      %v5071 = vpack.c.bf16 %v5067, %v5063
      %v5072 = vsub.f32 %v5024, %v4956
      %v5073 = vsub.f32 %v5025, %v4957
      %v5074 = vsub.f32 %v5026, %v4958
      %v5075 = vsub.f32 %v5027, %v4959
      %v5076 = vsub.f32 %v5028, %v4960
      %v5077 = vsub.f32 %v5029, %v4961
      %v5078 = vsub.f32 %v5030, %v4962
      %v5079 = vsub.f32 %v5031, %v4963
      %v5080 = vand.u32 2147483647, %v5072
      %v5081 = vand.u32 2147483647, %v5073
      %v5082 = vand.u32 2147483647, %v5074
      %v5083 = vand.u32 2147483647, %v5075
      %v5084 = vand.u32 2147483647, %v5076
      %v5085 = vand.u32 2147483647, %v5077
      %v5086 = vand.u32 2147483647, %v5078
      %v5087 = vand.u32 2147483647, %v5079
      %v5088 = vpack.c.bf16 %v5084, %v5080
      %v5089 = vpack.c.bf16 %v5085, %v5081
      %v5090 = vpack.c.bf16 %v5086, %v5082
      %v5091 = vpack.c.bf16 %v5087, %v5083
      %v5092 = vld [vmem:[#allocation19] sm:$0xff]
      %v5093 = vld [vmem:[#allocation19 + $0x8] sm:$0xff]
      %v5094 = vld [vmem:[#allocation19 + $0x10] sm:$0xff]
      %v5095 = vld [vmem:[#allocation19 + $0x18] sm:$0xff]
      %v5096 = vld [vmem:[#allocation19 + $0x20] sm:$0xff]
      %v5097 = vld [vmem:[#allocation19 + $0x28] sm:$0xff]
      %v5098 = vld [vmem:[#allocation19 + $0x30] sm:$0xff]
      %v5099 = vld [vmem:[#allocation19 + $0x38] sm:$0xff]
      %v5100 = vld [vmem:[#allocation19 + $0x40] sm:$0xff]
      %v5101 = vld [vmem:[#allocation19 + $0x48] sm:$0xff]
      %v5102 = vld [vmem:[#allocation19 + $0x50] sm:$0xff]
      %v5103 = vld [vmem:[#allocation19 + $0x58] sm:$0xff]
      %v5104 = vld [vmem:[#allocation19 + $0x60] sm:$0xff]
      %v5105 = vld [vmem:[#allocation19 + $0x68] sm:$0xff]
      %v5106 = vld [vmem:[#allocation19 + $0x70] sm:$0xff]
      %v5107 = vld [vmem:[#allocation19 + $0x78] sm:$0xff]
      %v5108 = vld [vmem:[#allocation19 + $0x80] sm:$0xff]
      %v5109 = vld [vmem:[#allocation19 + $0x88] sm:$0xff]
      %v5110 = vld [vmem:[#allocation19 + $0x90] sm:$0xff]
      %v5111 = vld [vmem:[#allocation19 + $0x98] sm:$0xff]
      %v5112 = vld [vmem:[#allocation19 + $0xa0] sm:$0xff]
      %v5113 = vld [vmem:[#allocation19 + $0xa8] sm:$0xff]
      %v5114 = vld [vmem:[#allocation19 + $0xb0] sm:$0xff]
      %v5115 = vld [vmem:[#allocation19 + $0xb8] sm:$0xff]
      %v5116 = vld [vmem:[#allocation19 + $0xc0] sm:$0xff]
      %v5117 = vld [vmem:[#allocation19 + $0xc8] sm:$0xff]
      %v5118 = vld [vmem:[#allocation19 + $0xd0] sm:$0xff]
      %v5119 = vld [vmem:[#allocation19 + $0xd8] sm:$0xff]
      %v5120 = vld [vmem:[#allocation19 + $0xe0] sm:$0xff]
      %v5121 = vld [vmem:[#allocation19 + $0xe8] sm:$0xff]
      %v5122 = vld [vmem:[#allocation19 + $0xf0] sm:$0xff]
      %v5123 = vld [vmem:[#allocation19 + $0xf8] sm:$0xff]
      %v5124 = vld [vmem:[#allocation19 + $0x100] sm:$0xff]
      %v5125 = vld [vmem:[#allocation19 + $0x108] sm:$0xff]
      %v5126 = vld [vmem:[#allocation19 + $0x110] sm:$0xff]
      %v5127 = vld [vmem:[#allocation19 + $0x118] sm:$0xff]
      %v5128 = vld [vmem:[#allocation19 + $0x120] sm:$0xff]
      %v5129 = vld [vmem:[#allocation19 + $0x128] sm:$0xff]
      %v5130 = vld [vmem:[#allocation19 + $0x130] sm:$0xff]
      %v5131 = vld [vmem:[#allocation19 + $0x138] sm:$0xff]
      %v5132 = vld [vmem:[#allocation19 + $0x140] sm:$0xff]
      %v5133 = vld [vmem:[#allocation19 + $0x148] sm:$0xff]
      %v5134 = vld [vmem:[#allocation19 + $0x150] sm:$0xff]
      %v5135 = vld [vmem:[#allocation19 + $0x158] sm:$0xff]
      %v5136 = vld [vmem:[#allocation19 + $0x160] sm:$0xff]
      %v5137 = vld [vmem:[#allocation19 + $0x168] sm:$0xff]
      %v5138 = vld [vmem:[#allocation19 + $0x170] sm:$0xff]
      %v5139 = vld [vmem:[#allocation19 + $0x178] sm:$0xff]
      %v5140 = vld [vmem:[#allocation19 + $0x180] sm:$0xff]
      %v5141 = vld [vmem:[#allocation19 + $0x188] sm:$0xff]
      %v5142 = vld [vmem:[#allocation19 + $0x190] sm:$0xff]
      %v5143 = vld [vmem:[#allocation19 + $0x198] sm:$0xff]
      %v5144 = vld [vmem:[#allocation19 + $0x1a0] sm:$0xff]
      %v5145 = vld [vmem:[#allocation19 + $0x1a8] sm:$0xff]
      %v5146 = vld [vmem:[#allocation19 + $0x1b0] sm:$0xff]
      %v5147 = vld [vmem:[#allocation19 + $0x1b8] sm:$0xff]
      %v5148 = vld [vmem:[#allocation19 + $0x1c0] sm:$0xff]
      %v5149 = vld [vmem:[#allocation19 + $0x1c8] sm:$0xff]
      %v5150 = vld [vmem:[#allocation19 + $0x1d0] sm:$0xff]
      %v5151 = vld [vmem:[#allocation19 + $0x1d8] sm:$0xff]
      %v5152 = vld [vmem:[#allocation19 + $0x1e0] sm:$0xff]
      %v5153 = vld [vmem:[#allocation19 + $0x1e8] sm:$0xff]
      %v5154 = vld [vmem:[#allocation19 + $0x1f0] sm:$0xff]
      %v5155 = vld [vmem:[#allocation19 + $0x1f8] sm:$0xff]
      %v5156 = vld [vmem:[#allocation19 + $0x200] sm:$0xff]
      %v5157 = vld [vmem:[#allocation19 + $0x208] sm:$0xff]
      %v5158 = vld [vmem:[#allocation19 + $0x210] sm:$0xff]
      %v5159 = vld [vmem:[#allocation19 + $0x218] sm:$0xff]
      %v5160 = vld [vmem:[#allocation19 + $0x220] sm:$0xff]
      %v5161 = vld [vmem:[#allocation19 + $0x228] sm:$0xff]
      %v5162 = vld [vmem:[#allocation19 + $0x230] sm:$0xff]
      %v5163 = vld [vmem:[#allocation19 + $0x238] sm:$0xff]
      %v5164 = vld [vmem:[#allocation19 + $0x240] sm:$0xff]
      %v5165 = vld [vmem:[#allocation19 + $0x248] sm:$0xff]
      %v5166 = vld [vmem:[#allocation19 + $0x250] sm:$0xff]
      %v5167 = vld [vmem:[#allocation19 + $0x258] sm:$0xff]
      %v5168 = vld [vmem:[#allocation19 + $0x260] sm:$0xff]
      %v5169 = vld [vmem:[#allocation19 + $0x268] sm:$0xff]
      %v5170 = vld [vmem:[#allocation19 + $0x270] sm:$0xff]
      %v5171 = vld [vmem:[#allocation19 + $0x278] sm:$0xff]
      %v5172 = vld [vmem:[#allocation19 + $0x280] sm:$0xff]
      %v5173 = vld [vmem:[#allocation19 + $0x288] sm:$0xff]
      %v5174 = vld [vmem:[#allocation19 + $0x290] sm:$0xff]
      %v5175 = vld [vmem:[#allocation19 + $0x298] sm:$0xff]
      %v5176 = vld [vmem:[#allocation19 + $0x2a0] sm:$0xff]
      %v5177 = vld [vmem:[#allocation19 + $0x2a8] sm:$0xff]
      %v5178 = vld [vmem:[#allocation19 + $0x2b0] sm:$0xff]
      %v5179 = vld [vmem:[#allocation19 + $0x2b8] sm:$0xff]
      %v5180 = vld [vmem:[#allocation19 + $0x2c0] sm:$0xff]
      %v5181 = vld [vmem:[#allocation19 + $0x2c8] sm:$0xff]
      %v5182 = vld [vmem:[#allocation19 + $0x2d0] sm:$0xff]
      %v5183 = vld [vmem:[#allocation19 + $0x2d8] sm:$0xff]
      %v5184 = vld [vmem:[#allocation19 + $0x2e0] sm:$0xff]
      %v5185 = vld [vmem:[#allocation19 + $0x2e8] sm:$0xff]
      %v5186 = vld [vmem:[#allocation19 + $0x2f0] sm:$0xff]
      %v5187 = vld [vmem:[#allocation19 + $0x2f8] sm:$0xff]
      %v5188 = vld [vmem:[#allocation19 + $0x300] sm:$0xff]
      %v5189 = vld [vmem:[#allocation19 + $0x308] sm:$0xff]
      %v5190 = vld [vmem:[#allocation19 + $0x310] sm:$0xff]
      %v5191 = vld [vmem:[#allocation19 + $0x318] sm:$0xff]
      %v5192 = vld [vmem:[#allocation19 + $0x320] sm:$0xff]
      %v5193 = vld [vmem:[#allocation19 + $0x328] sm:$0xff]
      %v5194 = vld [vmem:[#allocation19 + $0x330] sm:$0xff]
      %v5195 = vld [vmem:[#allocation19 + $0x338] sm:$0xff]
      %v5196 = vld [vmem:[#allocation19 + $0x340] sm:$0xff]
      %v5197 = vld [vmem:[#allocation19 + $0x348] sm:$0xff]
      %v5198 = vld [vmem:[#allocation19 + $0x350] sm:$0xff]
      %v5199 = vld [vmem:[#allocation19 + $0x358] sm:$0xff]
      %v5200 = vld [vmem:[#allocation19 + $0x360] sm:$0xff]
      %v5201 = vld [vmem:[#allocation19 + $0x368] sm:$0xff]
      %v5202 = vld [vmem:[#allocation19 + $0x370] sm:$0xff]
      %v5203 = vld [vmem:[#allocation19 + $0x378] sm:$0xff]
      %v5204 = vld [vmem:[#allocation19 + $0x380] sm:$0xff]
      %v5205 = vld [vmem:[#allocation19 + $0x388] sm:$0xff]
      %v5206 = vld [vmem:[#allocation19 + $0x390] sm:$0xff]
      %v5207 = vld [vmem:[#allocation19 + $0x398] sm:$0xff]
      %v5208 = vld [vmem:[#allocation19 + $0x3a0] sm:$0xff]
      %v5209 = vld [vmem:[#allocation19 + $0x3a8] sm:$0xff]
      %v5210 = vld [vmem:[#allocation19 + $0x3b0] sm:$0xff]
      %v5211 = vld [vmem:[#allocation19 + $0x3b8] sm:$0xff]
      %v5212 = vld [vmem:[#allocation19 + $0x3c0] sm:$0xff]
      %v5213 = vld [vmem:[#allocation19 + $0x3c8] sm:$0xff]
      %v5214 = vld [vmem:[#allocation19 + $0x3d0] sm:$0xff]
      %v5215 = vld [vmem:[#allocation19 + $0x3d8] sm:$0xff]
      %v5216 = vld [vmem:[#allocation19 + $0x3e0] sm:$0xff]
      %v5217 = vld [vmem:[#allocation19 + $0x3e8] sm:$0xff]
      %v5218 = vld [vmem:[#allocation19 + $0x3f0] sm:$0xff]
      %v5219 = vld [vmem:[#allocation19 + $0x3f8] sm:$0xff]
      %v5220 = vld [vmem:[#allocation20] sm:$0xff]
      %v5221 = vld [vmem:[#allocation20 + $0x8] sm:$0xff]
      %v5222 = vld [vmem:[#allocation20 + $0x10] sm:$0xff]
      %v5223 = vld [vmem:[#allocation20 + $0x18] sm:$0xff]
      %v5224 = vld [vmem:[#allocation20 + $0x20] sm:$0xff]
      %v5225 = vld [vmem:[#allocation20 + $0x28] sm:$0xff]
      %v5226 = vld [vmem:[#allocation20 + $0x30] sm:$0xff]
      %v5227 = vld [vmem:[#allocation20 + $0x38] sm:$0xff]
      %v5228 = vld [vmem:[#allocation20 + $0x40] sm:$0xff]
      %v5229 = vld [vmem:[#allocation20 + $0x48] sm:$0xff]
      %v5230 = vld [vmem:[#allocation20 + $0x50] sm:$0xff]
      %v5231 = vld [vmem:[#allocation20 + $0x58] sm:$0xff]
      %v5232 = vld [vmem:[#allocation20 + $0x60] sm:$0xff]
      %v5233 = vld [vmem:[#allocation20 + $0x68] sm:$0xff]
      %v5234 = vld [vmem:[#allocation20 + $0x70] sm:$0xff]
      %v5235 = vld [vmem:[#allocation20 + $0x78] sm:$0xff]
      %v5236 = vld [vmem:[#allocation20 + $0x80] sm:$0xff]
      %v5237 = vld [vmem:[#allocation20 + $0x88] sm:$0xff]
      %v5238 = vld [vmem:[#allocation20 + $0x90] sm:$0xff]
      %v5239 = vld [vmem:[#allocation20 + $0x98] sm:$0xff]
      %v5240 = vld [vmem:[#allocation20 + $0xa0] sm:$0xff]
      %v5241 = vld [vmem:[#allocation20 + $0xa8] sm:$0xff]
      %v5242 = vld [vmem:[#allocation20 + $0xb0] sm:$0xff]
      %v5243 = vld [vmem:[#allocation20 + $0xb8] sm:$0xff]
      %v5244 = vld [vmem:[#allocation20 + $0xc0] sm:$0xff]
      %v5245 = vld [vmem:[#allocation20 + $0xc8] sm:$0xff]
      %v5246 = vld [vmem:[#allocation20 + $0xd0] sm:$0xff]
      %v5247 = vld [vmem:[#allocation20 + $0xd8] sm:$0xff]
      %v5248 = vld [vmem:[#allocation20 + $0xe0] sm:$0xff]
      %v5249 = vld [vmem:[#allocation20 + $0xe8] sm:$0xff]
      %v5250 = vld [vmem:[#allocation20 + $0xf0] sm:$0xff]
      %v5251 = vld [vmem:[#allocation20 + $0xf8] sm:$0xff]
      %v5252 = vld [vmem:[#allocation20 + $0x100] sm:$0xff]
      %v5253 = vld [vmem:[#allocation20 + $0x108] sm:$0xff]
      %v5254 = vld [vmem:[#allocation20 + $0x110] sm:$0xff]
      %v5255 = vld [vmem:[#allocation20 + $0x118] sm:$0xff]
      %v5256 = vld [vmem:[#allocation20 + $0x120] sm:$0xff]
      %v5257 = vld [vmem:[#allocation20 + $0x128] sm:$0xff]
      %v5258 = vld [vmem:[#allocation20 + $0x130] sm:$0xff]
      %v5259 = vld [vmem:[#allocation20 + $0x138] sm:$0xff]
      %v5260 = vld [vmem:[#allocation20 + $0x140] sm:$0xff]
      %v5261 = vld [vmem:[#allocation20 + $0x148] sm:$0xff]
      %v5262 = vld [vmem:[#allocation20 + $0x150] sm:$0xff]
      %v5263 = vld [vmem:[#allocation20 + $0x158] sm:$0xff]
      %v5264 = vld [vmem:[#allocation20 + $0x160] sm:$0xff]
      %v5265 = vld [vmem:[#allocation20 + $0x168] sm:$0xff]
      %v5266 = vld [vmem:[#allocation20 + $0x170] sm:$0xff]
      %v5267 = vld [vmem:[#allocation20 + $0x178] sm:$0xff]
      %v5268 = vld [vmem:[#allocation20 + $0x180] sm:$0xff]
      %v5269 = vld [vmem:[#allocation20 + $0x188] sm:$0xff]
      %v5270 = vld [vmem:[#allocation20 + $0x190] sm:$0xff]
      %v5271 = vld [vmem:[#allocation20 + $0x198] sm:$0xff]
      %v5272 = vld [vmem:[#allocation20 + $0x1a0] sm:$0xff]
      %v5273 = vld [vmem:[#allocation20 + $0x1a8] sm:$0xff]
      %v5274 = vld [vmem:[#allocation20 + $0x1b0] sm:$0xff]
      %v5275 = vld [vmem:[#allocation20 + $0x1b8] sm:$0xff]
      %v5276 = vld [vmem:[#allocation20 + $0x1c0] sm:$0xff]
      %v5277 = vld [vmem:[#allocation20 + $0x1c8] sm:$0xff]
      %v5278 = vld [vmem:[#allocation20 + $0x1d0] sm:$0xff]
      %v5279 = vld [vmem:[#allocation20 + $0x1d8] sm:$0xff]
      %v5280 = vld [vmem:[#allocation20 + $0x1e0] sm:$0xff]
      %v5281 = vld [vmem:[#allocation20 + $0x1e8] sm:$0xff]
      %v5282 = vld [vmem:[#allocation20 + $0x1f0] sm:$0xff]
      %v5283 = vld [vmem:[#allocation20 + $0x1f8] sm:$0xff]
      %v5284 = vld [vmem:[#allocation20 + $0x200] sm:$0xff]
      %v5285 = vld [vmem:[#allocation20 + $0x208] sm:$0xff]
      %v5286 = vld [vmem:[#allocation20 + $0x210] sm:$0xff]
      %v5287 = vld [vmem:[#allocation20 + $0x218] sm:$0xff]
      %v5288 = vld [vmem:[#allocation20 + $0x220] sm:$0xff]
      %v5289 = vld [vmem:[#allocation20 + $0x228] sm:$0xff]
      %v5290 = vld [vmem:[#allocation20 + $0x230] sm:$0xff]
      %v5291 = vld [vmem:[#allocation20 + $0x238] sm:$0xff]
      %v5292 = vld [vmem:[#allocation20 + $0x240] sm:$0xff]
      %v5293 = vld [vmem:[#allocation20 + $0x248] sm:$0xff]
      %v5294 = vld [vmem:[#allocation20 + $0x250] sm:$0xff]
      %v5295 = vld [vmem:[#allocation20 + $0x258] sm:$0xff]
      %v5296 = vld [vmem:[#allocation20 + $0x260] sm:$0xff]
      %v5297 = vld [vmem:[#allocation20 + $0x268] sm:$0xff]
      %v5298 = vld [vmem:[#allocation20 + $0x270] sm:$0xff]
      %v5299 = vld [vmem:[#allocation20 + $0x278] sm:$0xff]
      %v5300 = vld [vmem:[#allocation20 + $0x280] sm:$0xff]
      %v5301 = vld [vmem:[#allocation20 + $0x288] sm:$0xff]
      %v5302 = vld [vmem:[#allocation20 + $0x290] sm:$0xff]
      %v5303 = vld [vmem:[#allocation20 + $0x298] sm:$0xff]
      %v5304 = vld [vmem:[#allocation20 + $0x2a0] sm:$0xff]
      %v5305 = vld [vmem:[#allocation20 + $0x2a8] sm:$0xff]
      %v5306 = vld [vmem:[#allocation20 + $0x2b0] sm:$0xff]
      %v5307 = vld [vmem:[#allocation20 + $0x2b8] sm:$0xff]
      %v5308 = vld [vmem:[#allocation20 + $0x2c0] sm:$0xff]
      %v5309 = vld [vmem:[#allocation20 + $0x2c8] sm:$0xff]
      %v5310 = vld [vmem:[#allocation20 + $0x2d0] sm:$0xff]
      %v5311 = vld [vmem:[#allocation20 + $0x2d8] sm:$0xff]
      %v5312 = vld [vmem:[#allocation20 + $0x2e0] sm:$0xff]
      %v5313 = vld [vmem:[#allocation20 + $0x2e8] sm:$0xff]
      %v5314 = vld [vmem:[#allocation20 + $0x2f0] sm:$0xff]
      %v5315 = vld [vmem:[#allocation20 + $0x2f8] sm:$0xff]
      %v5316 = vld [vmem:[#allocation20 + $0x300] sm:$0xff]
      %v5317 = vld [vmem:[#allocation20 + $0x308] sm:$0xff]
      %v5318 = vld [vmem:[#allocation20 + $0x310] sm:$0xff]
      %v5319 = vld [vmem:[#allocation20 + $0x318] sm:$0xff]
      %v5320 = vld [vmem:[#allocation20 + $0x320] sm:$0xff]
      %v5321 = vld [vmem:[#allocation20 + $0x328] sm:$0xff]
      %v5322 = vld [vmem:[#allocation20 + $0x330] sm:$0xff]
      %v5323 = vld [vmem:[#allocation20 + $0x338] sm:$0xff]
      %v5324 = vld [vmem:[#allocation20 + $0x340] sm:$0xff]
      %v5325 = vld [vmem:[#allocation20 + $0x348] sm:$0xff]
      %v5326 = vld [vmem:[#allocation20 + $0x350] sm:$0xff]
      %v5327 = vld [vmem:[#allocation20 + $0x358] sm:$0xff]
      %v5328 = vld [vmem:[#allocation20 + $0x360] sm:$0xff]
      %v5329 = vld [vmem:[#allocation20 + $0x368] sm:$0xff]
      %v5330 = vld [vmem:[#allocation20 + $0x370] sm:$0xff]
      %v5331 = vld [vmem:[#allocation20 + $0x378] sm:$0xff]
      %v5332 = vld [vmem:[#allocation20 + $0x380] sm:$0xff]
      %v5333 = vld [vmem:[#allocation20 + $0x388] sm:$0xff]
      %v5334 = vld [vmem:[#allocation20 + $0x390] sm:$0xff]
      %v5335 = vld [vmem:[#allocation20 + $0x398] sm:$0xff]
      %v5336 = vld [vmem:[#allocation20 + $0x3a0] sm:$0xff]
      %v5337 = vld [vmem:[#allocation20 + $0x3a8] sm:$0xff]
      %v5338 = vld [vmem:[#allocation20 + $0x3b0] sm:$0xff]
      %v5339 = vld [vmem:[#allocation20 + $0x3b8] sm:$0xff]
      %v5340 = vld [vmem:[#allocation20 + $0x3c0] sm:$0xff]
      %v5341 = vld [vmem:[#allocation20 + $0x3c8] sm:$0xff]
      %v5342 = vld [vmem:[#allocation20 + $0x3d0] sm:$0xff]
      %v5343 = vld [vmem:[#allocation20 + $0x3d8] sm:$0xff]
      %v5344 = vld [vmem:[#allocation20 + $0x3e0] sm:$0xff]
      %v5345 = vld [vmem:[#allocation20 + $0x3e8] sm:$0xff]
      %v5346 = vld [vmem:[#allocation20 + $0x3f0] sm:$0xff]
      %v5347 = vld [vmem:[#allocation20 + $0x3f8] sm:$0xff]
      %v5476 = vunpack.c.l.b16 %v5220
      %v5477 = vunpack.c.h.b16 %v5220
      %v5478 = vunpack.c.l.b16 %v5221
      %v5479 = vunpack.c.h.b16 %v5221
      %v5480 = vunpack.c.l.b16 %v5222
      %v5481 = vunpack.c.h.b16 %v5222
      %v5482 = vunpack.c.l.b16 %v5223
      %v5483 = vunpack.c.h.b16 %v5223
      %v5484 = vunpack.c.l.b16 %v5224
      %v5485 = vunpack.c.h.b16 %v5224
      %v5486 = vunpack.c.l.b16 %v5225
      %v5487 = vunpack.c.h.b16 %v5225
      %v5488 = vunpack.c.l.b16 %v5226
      %v5489 = vunpack.c.h.b16 %v5226
      %v5490 = vunpack.c.l.b16 %v5227
      %v5491 = vunpack.c.h.b16 %v5227
      %v5492 = vunpack.c.l.b16 %v5228
      %v5493 = vunpack.c.h.b16 %v5228
      %v5494 = vunpack.c.l.b16 %v5229
      %v5495 = vunpack.c.h.b16 %v5229
      %v5496 = vunpack.c.l.b16 %v5230
      %v5497 = vunpack.c.h.b16 %v5230
      %v5498 = vunpack.c.l.b16 %v5231
      %v5499 = vunpack.c.h.b16 %v5231
      %v5500 = vunpack.c.l.b16 %v5232
      %v5501 = vunpack.c.h.b16 %v5232
      %v5502 = vunpack.c.l.b16 %v5233
      %v5503 = vunpack.c.h.b16 %v5233
      %v5504 = vunpack.c.l.b16 %v5234
      %v5505 = vunpack.c.h.b16 %v5234
      %v5506 = vunpack.c.l.b16 %v5235
      %v5507 = vunpack.c.h.b16 %v5235
      %v5508 = vunpack.c.l.b16 %v5236
      %v5509 = vunpack.c.h.b16 %v5236
      %v5510 = vunpack.c.l.b16 %v5237
      %v5511 = vunpack.c.h.b16 %v5237
      %v5512 = vunpack.c.l.b16 %v5238
      %v5513 = vunpack.c.h.b16 %v5238
      %v5514 = vunpack.c.l.b16 %v5239
      %v5515 = vunpack.c.h.b16 %v5239
      %v5516 = vunpack.c.l.b16 %v5240
      %v5517 = vunpack.c.h.b16 %v5240
      %v5518 = vunpack.c.l.b16 %v5241
      %v5519 = vunpack.c.h.b16 %v5241
      %v5520 = vunpack.c.l.b16 %v5242
      %v5521 = vunpack.c.h.b16 %v5242
      %v5522 = vunpack.c.l.b16 %v5243
      %v5523 = vunpack.c.h.b16 %v5243
      %v5524 = vunpack.c.l.b16 %v5244
      %v5525 = vunpack.c.h.b16 %v5244
      %v5526 = vunpack.c.l.b16 %v5245
      %v5527 = vunpack.c.h.b16 %v5245
      %v5528 = vunpack.c.l.b16 %v5246
      %v5529 = vunpack.c.h.b16 %v5246
      %v5530 = vunpack.c.l.b16 %v5247
      %v5531 = vunpack.c.h.b16 %v5247
      %v5532 = vunpack.c.l.b16 %v5248
      %v5533 = vunpack.c.h.b16 %v5248
      %v5534 = vunpack.c.l.b16 %v5249
      %v5535 = vunpack.c.h.b16 %v5249
      %v5536 = vunpack.c.l.b16 %v5250
      %v5537 = vunpack.c.h.b16 %v5250
      %v5538 = vunpack.c.l.b16 %v5251
      %v5539 = vunpack.c.h.b16 %v5251
      %v5540 = vunpack.c.l.b16 %v5252
      %v5541 = vunpack.c.h.b16 %v5252
      %v5542 = vunpack.c.l.b16 %v5253
      %v5543 = vunpack.c.h.b16 %v5253
      %v5544 = vunpack.c.l.b16 %v5254
      %v5545 = vunpack.c.h.b16 %v5254
      %v5546 = vunpack.c.l.b16 %v5255
      %v5547 = vunpack.c.h.b16 %v5255
      %v5548 = vunpack.c.l.b16 %v5256
      %v5549 = vunpack.c.h.b16 %v5256
      %v5550 = vunpack.c.l.b16 %v5257
      %v5551 = vunpack.c.h.b16 %v5257
      %v5552 = vunpack.c.l.b16 %v5258
      %v5553 = vunpack.c.h.b16 %v5258
      %v5554 = vunpack.c.l.b16 %v5259
      %v5555 = vunpack.c.h.b16 %v5259
      %v5556 = vunpack.c.l.b16 %v5260
      %v5557 = vunpack.c.h.b16 %v5260
      %v5558 = vunpack.c.l.b16 %v5261
      %v5559 = vunpack.c.h.b16 %v5261
      %v5560 = vunpack.c.l.b16 %v5262
      %v5561 = vunpack.c.h.b16 %v5262
      %v5562 = vunpack.c.l.b16 %v5263
      %v5563 = vunpack.c.h.b16 %v5263
      %v5564 = vunpack.c.l.b16 %v5264
      %v5565 = vunpack.c.h.b16 %v5264
      %v5566 = vunpack.c.l.b16 %v5265
      %v5567 = vunpack.c.h.b16 %v5265
      %v5568 = vunpack.c.l.b16 %v5266
      %v5569 = vunpack.c.h.b16 %v5266
      %v5570 = vunpack.c.l.b16 %v5267
      %v5571 = vunpack.c.h.b16 %v5267
      %v5572 = vunpack.c.l.b16 %v5268
      %v5573 = vunpack.c.h.b16 %v5268
      %v5574 = vunpack.c.l.b16 %v5269
      %v5575 = vunpack.c.h.b16 %v5269
      %v5576 = vunpack.c.l.b16 %v5270
      %v5577 = vunpack.c.h.b16 %v5270
      %v5578 = vunpack.c.l.b16 %v5271
      %v5579 = vunpack.c.h.b16 %v5271
      %v5580 = vunpack.c.l.b16 %v5272
      %v5581 = vunpack.c.h.b16 %v5272
      %v5582 = vunpack.c.l.b16 %v5273
      %v5583 = vunpack.c.h.b16 %v5273
      %v5584 = vunpack.c.l.b16 %v5274
      %v5585 = vunpack.c.h.b16 %v5274
      %v5586 = vunpack.c.l.b16 %v5275
      %v5587 = vunpack.c.h.b16 %v5275
      %v5588 = vunpack.c.l.b16 %v5276
      %v5589 = vunpack.c.h.b16 %v5276
      %v5590 = vunpack.c.l.b16 %v5277
      %v5591 = vunpack.c.h.b16 %v5277
      %v5592 = vunpack.c.l.b16 %v5278
      %v5593 = vunpack.c.h.b16 %v5278
      %v5594 = vunpack.c.l.b16 %v5279
      %v5595 = vunpack.c.h.b16 %v5279
      %v5596 = vunpack.c.l.b16 %v5280
      %v5597 = vunpack.c.h.b16 %v5280
      %v5598 = vunpack.c.l.b16 %v5281
      %v5599 = vunpack.c.h.b16 %v5281
      %v5600 = vunpack.c.l.b16 %v5282
      %v5601 = vunpack.c.h.b16 %v5282
      %v5602 = vunpack.c.l.b16 %v5283
      %v5603 = vunpack.c.h.b16 %v5283
      %v5604 = vunpack.c.l.b16 %v5284
      %v5605 = vunpack.c.h.b16 %v5284
      %v5606 = vunpack.c.l.b16 %v5285
      %v5607 = vunpack.c.h.b16 %v5285
      %v5608 = vunpack.c.l.b16 %v5286
      %v5609 = vunpack.c.h.b16 %v5286
      %v5610 = vunpack.c.l.b16 %v5287
      %v5611 = vunpack.c.h.b16 %v5287
      %v5612 = vunpack.c.l.b16 %v5288
      %v5613 = vunpack.c.h.b16 %v5288
      %v5614 = vunpack.c.l.b16 %v5289
      %v5615 = vunpack.c.h.b16 %v5289
      %v5616 = vunpack.c.l.b16 %v5290
      %v5617 = vunpack.c.h.b16 %v5290
      %v5618 = vunpack.c.l.b16 %v5291
      %v5619 = vunpack.c.h.b16 %v5291
      %v5620 = vunpack.c.l.b16 %v5292
      %v5621 = vunpack.c.h.b16 %v5292
      %v5622 = vunpack.c.l.b16 %v5293
      %v5623 = vunpack.c.h.b16 %v5293
      %v5624 = vunpack.c.l.b16 %v5294
      %v5625 = vunpack.c.h.b16 %v5294
      %v5626 = vunpack.c.l.b16 %v5295
      %v5627 = vunpack.c.h.b16 %v5295
      %v5628 = vunpack.c.l.b16 %v5296
      %v5629 = vunpack.c.h.b16 %v5296
      %v5630 = vunpack.c.l.b16 %v5297
      %v5631 = vunpack.c.h.b16 %v5297
      %v5632 = vunpack.c.l.b16 %v5298
      %v5633 = vunpack.c.h.b16 %v5298
      %v5634 = vunpack.c.l.b16 %v5299
      %v5635 = vunpack.c.h.b16 %v5299
      %v5636 = vunpack.c.l.b16 %v5300
      %v5637 = vunpack.c.h.b16 %v5300
      %v5638 = vunpack.c.l.b16 %v5301
      %v5639 = vunpack.c.h.b16 %v5301
      %v5640 = vunpack.c.l.b16 %v5302
      %v5641 = vunpack.c.h.b16 %v5302
      %v5642 = vunpack.c.l.b16 %v5303
      %v5643 = vunpack.c.h.b16 %v5303
      %v5644 = vunpack.c.l.b16 %v5304
      %v5645 = vunpack.c.h.b16 %v5304
      %v5646 = vunpack.c.l.b16 %v5305
      %v5647 = vunpack.c.h.b16 %v5305
      %v5648 = vunpack.c.l.b16 %v5306
      %v5649 = vunpack.c.h.b16 %v5306
      %v5650 = vunpack.c.l.b16 %v5307
      %v5651 = vunpack.c.h.b16 %v5307
      %v5652 = vunpack.c.l.b16 %v5308
      %v5653 = vunpack.c.h.b16 %v5308
      %v5654 = vunpack.c.l.b16 %v5309
      %v5655 = vunpack.c.h.b16 %v5309
      %v5656 = vunpack.c.l.b16 %v5310
      %v5657 = vunpack.c.h.b16 %v5310
      %v5658 = vunpack.c.l.b16 %v5311
      %v5659 = vunpack.c.h.b16 %v5311
      %v5660 = vunpack.c.l.b16 %v5312
      %v5661 = vunpack.c.h.b16 %v5312
      %v5662 = vunpack.c.l.b16 %v5313
      %v5663 = vunpack.c.h.b16 %v5313
      %v5664 = vunpack.c.l.b16 %v5314
      %v5665 = vunpack.c.h.b16 %v5314
      %v5666 = vunpack.c.l.b16 %v5315
      %v5667 = vunpack.c.h.b16 %v5315
      %v5668 = vunpack.c.l.b16 %v5316
      %v5669 = vunpack.c.h.b16 %v5316
      %v5670 = vunpack.c.l.b16 %v5317
      %v5671 = vunpack.c.h.b16 %v5317
      %v5672 = vunpack.c.l.b16 %v5318
      %v5673 = vunpack.c.h.b16 %v5318
      %v5674 = vunpack.c.l.b16 %v5319
      %v5675 = vunpack.c.h.b16 %v5319
      %v5676 = vunpack.c.l.b16 %v5320
      %v5677 = vunpack.c.h.b16 %v5320
      %v5678 = vunpack.c.l.b16 %v5321
      %v5679 = vunpack.c.h.b16 %v5321
      %v5680 = vunpack.c.l.b16 %v5322
      %v5681 = vunpack.c.h.b16 %v5322
      %v5682 = vunpack.c.l.b16 %v5323
      %v5683 = vunpack.c.h.b16 %v5323
      %v5684 = vunpack.c.l.b16 %v5324
      %v5685 = vunpack.c.h.b16 %v5324
      %v5686 = vunpack.c.l.b16 %v5325
      %v5687 = vunpack.c.h.b16 %v5325
      %v5688 = vunpack.c.l.b16 %v5326
      %v5689 = vunpack.c.h.b16 %v5326
      %v5690 = vunpack.c.l.b16 %v5327
      %v5691 = vunpack.c.h.b16 %v5327
      %v5692 = vunpack.c.l.b16 %v5328
      %v5693 = vunpack.c.h.b16 %v5328
      %v5694 = vunpack.c.l.b16 %v5329
      %v5695 = vunpack.c.h.b16 %v5329
      %v5696 = vunpack.c.l.b16 %v5330
      %v5697 = vunpack.c.h.b16 %v5330
      %v5698 = vunpack.c.l.b16 %v5331
      %v5699 = vunpack.c.h.b16 %v5331
      %v5700 = vunpack.c.l.b16 %v5332
      %v5701 = vunpack.c.h.b16 %v5332
      %v5702 = vunpack.c.l.b16 %v5333
      %v5703 = vunpack.c.h.b16 %v5333
      %v5704 = vunpack.c.l.b16 %v5334
      %v5705 = vunpack.c.h.b16 %v5334
      %v5706 = vunpack.c.l.b16 %v5335
      %v5707 = vunpack.c.h.b16 %v5335
      %v5708 = vunpack.c.l.b16 %v5336
      %v5709 = vunpack.c.h.b16 %v5336
      %v5710 = vunpack.c.l.b16 %v5337
      %v5711 = vunpack.c.h.b16 %v5337
      %v5712 = vunpack.c.l.b16 %v5338
      %v5713 = vunpack.c.h.b16 %v5338
      %v5714 = vunpack.c.l.b16 %v5339
      %v5715 = vunpack.c.h.b16 %v5339
      %v5716 = vunpack.c.l.b16 %v5340
      %v5717 = vunpack.c.h.b16 %v5340
      %v5718 = vunpack.c.l.b16 %v5341
      %v5719 = vunpack.c.h.b16 %v5341
      %v5720 = vunpack.c.l.b16 %v5342
      %v5721 = vunpack.c.h.b16 %v5342
      %v5722 = vunpack.c.l.b16 %v5343
      %v5723 = vunpack.c.h.b16 %v5343
      %v5724 = vunpack.c.l.b16 %v5344
      %v5725 = vunpack.c.h.b16 %v5344
      %v5726 = vunpack.c.l.b16 %v5345
      %v5727 = vunpack.c.h.b16 %v5345
      %v5728 = vunpack.c.l.b16 %v5346
      %v5729 = vunpack.c.h.b16 %v5346
      %v5730 = vunpack.c.l.b16 %v5347
      %v5731 = vunpack.c.h.b16 %v5347
      %v5732 = vpack.c.b16 %v5480, %v5476
      %v5733 = vpack.c.b16 %v5481, %v5477
      %v5734 = vpack.c.b16 %v5482, %v5478
      %v5735 = vpack.c.b16 %v5483, %v5479
      %v5736 = vpack.c.b16 %v5488, %v5484
      %v5737 = vpack.c.b16 %v5489, %v5485
      %v5738 = vpack.c.b16 %v5490, %v5486
      %v5739 = vpack.c.b16 %v5491, %v5487
      %v5740 = vpack.c.b16 %v5496, %v5492
      %v5741 = vpack.c.b16 %v5497, %v5493
      %v5742 = vpack.c.b16 %v5498, %v5494
      %v5743 = vpack.c.b16 %v5499, %v5495
      %v5744 = vpack.c.b16 %v5504, %v5500
      %v5745 = vpack.c.b16 %v5505, %v5501
      %v5746 = vpack.c.b16 %v5506, %v5502
      %v5747 = vpack.c.b16 %v5507, %v5503
      %v5748 = vpack.c.b16 %v5512, %v5508
      %v5749 = vpack.c.b16 %v5513, %v5509
      %v5750 = vpack.c.b16 %v5514, %v5510
      %v5751 = vpack.c.b16 %v5515, %v5511
      %v5752 = vpack.c.b16 %v5520, %v5516
      %v5753 = vpack.c.b16 %v5521, %v5517
      %v5754 = vpack.c.b16 %v5522, %v5518
      %v5755 = vpack.c.b16 %v5523, %v5519
      %v5756 = vpack.c.b16 %v5528, %v5524
      %v5757 = vpack.c.b16 %v5529, %v5525
      %v5758 = vpack.c.b16 %v5530, %v5526
      %v5759 = vpack.c.b16 %v5531, %v5527
      %v5760 = vpack.c.b16 %v5536, %v5532
      %v5761 = vpack.c.b16 %v5537, %v5533
      %v5762 = vpack.c.b16 %v5538, %v5534
      %v5763 = vpack.c.b16 %v5539, %v5535
      %v5764 = vpack.c.b16 %v5544, %v5540
      %v5765 = vpack.c.b16 %v5545, %v5541
      %v5766 = vpack.c.b16 %v5546, %v5542
      %v5767 = vpack.c.b16 %v5547, %v5543
      %v5768 = vpack.c.b16 %v5552, %v5548
      %v5769 = vpack.c.b16 %v5553, %v5549
      %v5770 = vpack.c.b16 %v5554, %v5550
      %v5771 = vpack.c.b16 %v5555, %v5551
      %v5772 = vpack.c.b16 %v5560, %v5556
      %v5773 = vpack.c.b16 %v5561, %v5557
      %v5774 = vpack.c.b16 %v5562, %v5558
      %v5775 = vpack.c.b16 %v5563, %v5559
      %v5776 = vpack.c.b16 %v5568, %v5564
      %v5777 = vpack.c.b16 %v5569, %v5565
      %v5778 = vpack.c.b16 %v5570, %v5566
      %v5779 = vpack.c.b16 %v5571, %v5567
      %v5780 = vpack.c.b16 %v5576, %v5572
      %v5781 = vpack.c.b16 %v5577, %v5573
      %v5782 = vpack.c.b16 %v5578, %v5574
      %v5783 = vpack.c.b16 %v5579, %v5575
      %v5784 = vpack.c.b16 %v5584, %v5580
      %v5785 = vpack.c.b16 %v5585, %v5581
      %v5786 = vpack.c.b16 %v5586, %v5582
      %v5787 = vpack.c.b16 %v5587, %v5583
      %v5788 = vpack.c.b16 %v5592, %v5588
      %v5789 = vpack.c.b16 %v5593, %v5589
      %v5790 = vpack.c.b16 %v5594, %v5590
      %v5791 = vpack.c.b16 %v5595, %v5591
      %v5792 = vpack.c.b16 %v5600, %v5596
      %v5793 = vpack.c.b16 %v5601, %v5597
      %v5794 = vpack.c.b16 %v5602, %v5598
      %v5795 = vpack.c.b16 %v5603, %v5599
      %v5796 = vpack.c.b16 %v5608, %v5604
      %v5797 = vpack.c.b16 %v5609, %v5605
      %v5798 = vpack.c.b16 %v5610, %v5606
      %v5799 = vpack.c.b16 %v5611, %v5607
      %v5800 = vpack.c.b16 %v5616, %v5612
      %v5801 = vpack.c.b16 %v5617, %v5613
      %v5802 = vpack.c.b16 %v5618, %v5614
      %v5803 = vpack.c.b16 %v5619, %v5615
      %v5804 = vpack.c.b16 %v5624, %v5620
      %v5805 = vpack.c.b16 %v5625, %v5621
      %v5806 = vpack.c.b16 %v5626, %v5622
      %v5807 = vpack.c.b16 %v5627, %v5623
      %v5808 = vpack.c.b16 %v5632, %v5628
      %v5809 = vpack.c.b16 %v5633, %v5629
      %v5810 = vpack.c.b16 %v5634, %v5630
      %v5811 = vpack.c.b16 %v5635, %v5631
      %v5812 = vpack.c.b16 %v5640, %v5636
      %v5813 = vpack.c.b16 %v5641, %v5637
      %v5814 = vpack.c.b16 %v5642, %v5638
      %v5815 = vpack.c.b16 %v5643, %v5639
      %v5816 = vpack.c.b16 %v5648, %v5644
      %v5817 = vpack.c.b16 %v5649, %v5645
      %v5818 = vpack.c.b16 %v5650, %v5646
      %v5819 = vpack.c.b16 %v5651, %v5647
      %v5820 = vpack.c.b16 %v5656, %v5652
      %v5821 = vpack.c.b16 %v5657, %v5653
      %v5822 = vpack.c.b16 %v5658, %v5654
      %v5823 = vpack.c.b16 %v5659, %v5655
      %v5824 = vpack.c.b16 %v5664, %v5660
      %v5825 = vpack.c.b16 %v5665, %v5661
      %v5826 = vpack.c.b16 %v5666, %v5662
      %v5827 = vpack.c.b16 %v5667, %v5663
      %v5828 = vpack.c.b16 %v5672, %v5668
      %v5829 = vpack.c.b16 %v5673, %v5669
      %v5830 = vpack.c.b16 %v5674, %v5670
      %v5831 = vpack.c.b16 %v5675, %v5671
      %v5832 = vpack.c.b16 %v5680, %v5676
      %v5833 = vpack.c.b16 %v5681, %v5677
      %v5834 = vpack.c.b16 %v5682, %v5678
      %v5835 = vpack.c.b16 %v5683, %v5679
      %v5836 = vpack.c.b16 %v5688, %v5684
      %v5837 = vpack.c.b16 %v5689, %v5685
      %v5838 = vpack.c.b16 %v5690, %v5686
      %v5839 = vpack.c.b16 %v5691, %v5687
      %v5840 = vpack.c.b16 %v5696, %v5692
      %v5841 = vpack.c.b16 %v5697, %v5693
      %v5842 = vpack.c.b16 %v5698, %v5694
      %v5843 = vpack.c.b16 %v5699, %v5695
      %v5844 = vpack.c.b16 %v5704, %v5700
      %v5845 = vpack.c.b16 %v5705, %v5701
      %v5846 = vpack.c.b16 %v5706, %v5702
      %v5847 = vpack.c.b16 %v5707, %v5703
      %v5848 = vpack.c.b16 %v5712, %v5708
      %v5849 = vpack.c.b16 %v5713, %v5709
      %v5850 = vpack.c.b16 %v5714, %v5710
      %v5851 = vpack.c.b16 %v5715, %v5711
      %v5852 = vpack.c.b16 %v5720, %v5716
      %v5853 = vpack.c.b16 %v5721, %v5717
      %v5854 = vpack.c.b16 %v5722, %v5718
      %v5855 = vpack.c.b16 %v5723, %v5719
      %v5856 = vpack.c.b16 %v5728, %v5724
      %v5857 = vpack.c.b16 %v5729, %v5725
      %v5858 = vpack.c.b16 %v5730, %v5726
      %v5859 = vpack.c.b16 %v5731, %v5727
      %5988 = vmatpush.bf16.msra.mxu0 %v5760
      %5989 = vmatpush.bf16.msra.mxu0 %v5756
      %5990 = vmatpush.bf16.msra.mxu0 %v5752
      %5991 = vmatpush.bf16.msra.mxu0 %v5748
      %5992 = vmatpush.bf16.msra.mxu0 %v5744
      %5993 = vmatpush.bf16.msra.mxu0 %v5740
      %5994 = vmatpush.bf16.msra.mxu0 %v5736
      %5995 = vmatpush.bf16.msra.mxu0 %v5732
      %5996 = vmatmul.bf16.gmra.mxu0 %v5068
      %v5997 = vpop.f32.mrf.mxu0
      %v5998 = vadd.f32 0.0, %v5997
      %v5999 = vpop.f32.mrf.mxu0
      %v6000 = vadd.f32 0.0, %v5999
      %6001 = vdwg.mxu0
      %6002 = vmatpush.bf16.msra.mxu0 %v5792
      %6003 = vmatpush.bf16.msra.mxu0 %v5788
      %6004 = vmatpush.bf16.msra.mxu0 %v5784
      %6005 = vmatpush.bf16.msra.mxu0 %v5780
      %6006 = vmatpush.bf16.msra.mxu0 %v5776
      %6007 = vmatpush.bf16.msra.mxu0 %v5772
      %6008 = vmatpush.bf16.msra.mxu0 %v5768
      %6009 = vmatpush.bf16.msra.mxu0 %v5764
      %6010 = vmatmul.bf16.gmra.mxu0 %v5069
      %v6011 = vpop.f32.mrf.mxu0
      %v6012 = vadd.f32 %v5998, %v6011
      %v6013 = vpop.f32.mrf.mxu0
      %v6014 = vadd.f32 %v6000, %v6013
      %6015 = vdwg.mxu0
      %6016 = vmatpush.bf16.msra.mxu0 %v5824
      %6017 = vmatpush.bf16.msra.mxu0 %v5820
      %6018 = vmatpush.bf16.msra.mxu0 %v5816
      %6019 = vmatpush.bf16.msra.mxu0 %v5812
      %6020 = vmatpush.bf16.msra.mxu0 %v5808
      %6021 = vmatpush.bf16.msra.mxu0 %v5804
      %6022 = vmatpush.bf16.msra.mxu0 %v5800
      %6023 = vmatpush.bf16.msra.mxu0 %v5796
      %6024 = vmatmul.bf16.gmra.mxu0 %v5070
      %v6025 = vpop.f32.mrf.mxu0
      %v6026 = vadd.f32 %v6012, %v6025
      %v6027 = vpop.f32.mrf.mxu0
      %v6028 = vadd.f32 %v6014, %v6027
      %6029 = vdwg.mxu0
      %6030 = vmatpush.bf16.msra.mxu0 %v5856
      %6031 = vmatpush.bf16.msra.mxu0 %v5852
      %6032 = vmatpush.bf16.msra.mxu0 %v5848
      %6033 = vmatpush.bf16.msra.mxu0 %v5844
      %6034 = vmatpush.bf16.msra.mxu0 %v5840
      %6035 = vmatpush.bf16.msra.mxu0 %v5836
      %6036 = vmatpush.bf16.msra.mxu0 %v5832
      %6037 = vmatpush.bf16.msra.mxu0 %v5828
      %6038 = vmatmul.bf16.gmra.mxu0 %v5071
      %v6039 = vpop.f32.mrf.mxu0
      %v6040 = vadd.f32 %v6026, %v6039
      %v6041 = vpop.f32.mrf.mxu0
      %v6042 = vadd.f32 %v6028, %v6041
      %6043 = vdwg.mxu0
      %6044 = vmatpush.bf16.msra.mxu0 %v5761
      %6045 = vmatpush.bf16.msra.mxu0 %v5757
      %6046 = vmatpush.bf16.msra.mxu0 %v5753
      %6047 = vmatpush.bf16.msra.mxu0 %v5749
      %6048 = vmatpush.bf16.msra.mxu0 %v5745
      %6049 = vmatpush.bf16.msra.mxu0 %v5741
      %6050 = vmatpush.bf16.msra.mxu0 %v5737
      %6051 = vmatpush.bf16.msra.mxu0 %v5733
      %6052 = vmatmul.bf16.gmra.mxu0 %v5068
      %v6053 = vpop.f32.mrf.mxu0
      %v6054 = vadd.f32 0.0, %v6053
      %v6055 = vpop.f32.mrf.mxu0
      %v6056 = vadd.f32 0.0, %v6055
      %6057 = vdwg.mxu0
      %6058 = vmatpush.bf16.msra.mxu0 %v5793
      %6059 = vmatpush.bf16.msra.mxu0 %v5789
      %6060 = vmatpush.bf16.msra.mxu0 %v5785
      %6061 = vmatpush.bf16.msra.mxu0 %v5781
      %6062 = vmatpush.bf16.msra.mxu0 %v5777
      %6063 = vmatpush.bf16.msra.mxu0 %v5773
      %6064 = vmatpush.bf16.msra.mxu0 %v5769
      %6065 = vmatpush.bf16.msra.mxu0 %v5765
      %6066 = vmatmul.bf16.gmra.mxu0 %v5069
      %v6067 = vpop.f32.mrf.mxu0
      %v6068 = vadd.f32 %v6054, %v6067
      %v6069 = vpop.f32.mrf.mxu0
      %v6070 = vadd.f32 %v6056, %v6069
      %6071 = vdwg.mxu0
      %6072 = vmatpush.bf16.msra.mxu0 %v5825
      %6073 = vmatpush.bf16.msra.mxu0 %v5821
      %6074 = vmatpush.bf16.msra.mxu0 %v5817
      %6075 = vmatpush.bf16.msra.mxu0 %v5813
      %6076 = vmatpush.bf16.msra.mxu0 %v5809
      %6077 = vmatpush.bf16.msra.mxu0 %v5805
      %6078 = vmatpush.bf16.msra.mxu0 %v5801
      %6079 = vmatpush.bf16.msra.mxu0 %v5797
      %6080 = vmatmul.bf16.gmra.mxu0 %v5070
      %v6081 = vpop.f32.mrf.mxu0
      %v6082 = vadd.f32 %v6068, %v6081
      %v6083 = vpop.f32.mrf.mxu0
      %v6084 = vadd.f32 %v6070, %v6083
      %6085 = vdwg.mxu0
      %6086 = vmatpush.bf16.msra.mxu0 %v5857
      %6087 = vmatpush.bf16.msra.mxu0 %v5853
      %6088 = vmatpush.bf16.msra.mxu0 %v5849
      %6089 = vmatpush.bf16.msra.mxu0 %v5845
      %6090 = vmatpush.bf16.msra.mxu0 %v5841
      %6091 = vmatpush.bf16.msra.mxu0 %v5837
      %6092 = vmatpush.bf16.msra.mxu0 %v5833
      %6093 = vmatpush.bf16.msra.mxu0 %v5829
      %6094 = vmatmul.bf16.gmra.mxu0 %v5071
      %v6095 = vpop.f32.mrf.mxu0
      %v6096 = vadd.f32 %v6082, %v6095
      %v6097 = vpop.f32.mrf.mxu0
      %v6098 = vadd.f32 %v6084, %v6097
      %6099 = vdwg.mxu0
      %6100 = vmatpush.bf16.msra.mxu0 %v5762
      %6101 = vmatpush.bf16.msra.mxu0 %v5758
      %6102 = vmatpush.bf16.msra.mxu0 %v5754
      %6103 = vmatpush.bf16.msra.mxu0 %v5750
      %6104 = vmatpush.bf16.msra.mxu0 %v5746
      %6105 = vmatpush.bf16.msra.mxu0 %v5742
      %6106 = vmatpush.bf16.msra.mxu0 %v5738
      %6107 = vmatpush.bf16.msra.mxu0 %v5734
      %6108 = vmatmul.bf16.gmra.mxu0 %v5068
      %v6109 = vpop.f32.mrf.mxu0
      %v6110 = vadd.f32 0.0, %v6109
      %v6111 = vpop.f32.mrf.mxu0
      %v6112 = vadd.f32 0.0, %v6111
      %6113 = vdwg.mxu0
      %6114 = vmatpush.bf16.msra.mxu0 %v5794
      %6115 = vmatpush.bf16.msra.mxu0 %v5790
      %6116 = vmatpush.bf16.msra.mxu0 %v5786
      %6117 = vmatpush.bf16.msra.mxu0 %v5782
      %6118 = vmatpush.bf16.msra.mxu0 %v5778
      %6119 = vmatpush.bf16.msra.mxu0 %v5774
      %6120 = vmatpush.bf16.msra.mxu0 %v5770
      %6121 = vmatpush.bf16.msra.mxu0 %v5766
      %6122 = vmatmul.bf16.gmra.mxu0 %v5069
      %v6123 = vpop.f32.mrf.mxu0
      %v6124 = vadd.f32 %v6110, %v6123
      %v6125 = vpop.f32.mrf.mxu0
      %v6126 = vadd.f32 %v6112, %v6125
      %6127 = vdwg.mxu0
      %6128 = vmatpush.bf16.msra.mxu0 %v5826
      %6129 = vmatpush.bf16.msra.mxu0 %v5822
      %6130 = vmatpush.bf16.msra.mxu0 %v5818
      %6131 = vmatpush.bf16.msra.mxu0 %v5814
      %6132 = vmatpush.bf16.msra.mxu0 %v5810
      %6133 = vmatpush.bf16.msra.mxu0 %v5806
      %6134 = vmatpush.bf16.msra.mxu0 %v5802
      %6135 = vmatpush.bf16.msra.mxu0 %v5798
      %6136 = vmatmul.bf16.gmra.mxu0 %v5070
      %v6137 = vpop.f32.mrf.mxu0
      %v6138 = vadd.f32 %v6124, %v6137
      %v6139 = vpop.f32.mrf.mxu0
      %v6140 = vadd.f32 %v6126, %v6139
      %6141 = vdwg.mxu0
      %6142 = vmatpush.bf16.msra.mxu0 %v5858
      %6143 = vmatpush.bf16.msra.mxu0 %v5854
      %6144 = vmatpush.bf16.msra.mxu0 %v5850
      %6145 = vmatpush.bf16.msra.mxu0 %v5846
      %6146 = vmatpush.bf16.msra.mxu0 %v5842
      %6147 = vmatpush.bf16.msra.mxu0 %v5838
      %6148 = vmatpush.bf16.msra.mxu0 %v5834
      %6149 = vmatpush.bf16.msra.mxu0 %v5830
      %6150 = vmatmul.bf16.gmra.mxu0 %v5071
      %v6151 = vpop.f32.mrf.mxu0
      %v6152 = vadd.f32 %v6138, %v6151
      %v6153 = vpop.f32.mrf.mxu0
      %v6154 = vadd.f32 %v6140, %v6153
      %6155 = vdwg.mxu0
      %6156 = vmatpush.bf16.msra.mxu0 %v5763
      %6157 = vmatpush.bf16.msra.mxu0 %v5759
      %6158 = vmatpush.bf16.msra.mxu0 %v5755
      %6159 = vmatpush.bf16.msra.mxu0 %v5751
      %6160 = vmatpush.bf16.msra.mxu0 %v5747
      %6161 = vmatpush.bf16.msra.mxu0 %v5743
      %6162 = vmatpush.bf16.msra.mxu0 %v5739
      %6163 = vmatpush.bf16.msra.mxu0 %v5735
      %6164 = vmatmul.bf16.gmra.mxu0 %v5068
      %v6165 = vpop.f32.mrf.mxu0
      %v6166 = vadd.f32 0.0, %v6165
      %v6167 = vpop.f32.mrf.mxu0
      %v6168 = vadd.f32 0.0, %v6167
      %6169 = vdwg.mxu0
      %6170 = vmatpush.bf16.msra.mxu0 %v5795
      %6171 = vmatpush.bf16.msra.mxu0 %v5791
      %6172 = vmatpush.bf16.msra.mxu0 %v5787
      %6173 = vmatpush.bf16.msra.mxu0 %v5783
      %6174 = vmatpush.bf16.msra.mxu0 %v5779
      %6175 = vmatpush.bf16.msra.mxu0 %v5775
      %6176 = vmatpush.bf16.msra.mxu0 %v5771
      %6177 = vmatpush.bf16.msra.mxu0 %v5767
      %6178 = vmatmul.bf16.gmra.mxu0 %v5069
      %v6179 = vpop.f32.mrf.mxu0
      %v6180 = vadd.f32 %v6166, %v6179
      %v6181 = vpop.f32.mrf.mxu0
      %v6182 = vadd.f32 %v6168, %v6181
      %6183 = vdwg.mxu0
      %6184 = vmatpush.bf16.msra.mxu0 %v5827
      %6185 = vmatpush.bf16.msra.mxu0 %v5823
      %6186 = vmatpush.bf16.msra.mxu0 %v5819
      %6187 = vmatpush.bf16.msra.mxu0 %v5815
      %6188 = vmatpush.bf16.msra.mxu0 %v5811
      %6189 = vmatpush.bf16.msra.mxu0 %v5807
      %6190 = vmatpush.bf16.msra.mxu0 %v5803
      %6191 = vmatpush.bf16.msra.mxu0 %v5799
      %6192 = vmatmul.bf16.gmra.mxu0 %v5070
      %v6193 = vpop.f32.mrf.mxu0
      %v6194 = vadd.f32 %v6180, %v6193
      %v6195 = vpop.f32.mrf.mxu0
      %v6196 = vadd.f32 %v6182, %v6195
      %6197 = vdwg.mxu0
      %6198 = vmatpush.bf16.msra.mxu0 %v5859
      %6199 = vmatpush.bf16.msra.mxu0 %v5855
      %6200 = vmatpush.bf16.msra.mxu0 %v5851
      %6201 = vmatpush.bf16.msra.mxu0 %v5847
      %6202 = vmatpush.bf16.msra.mxu0 %v5843
      %6203 = vmatpush.bf16.msra.mxu0 %v5839
      %6204 = vmatpush.bf16.msra.mxu0 %v5835
      %6205 = vmatpush.bf16.msra.mxu0 %v5831
      %6206 = vmatmul.bf16.gmra.mxu0 %v5071
      %v6207 = vpop.f32.mrf.mxu0
      %v6208 = vadd.f32 %v6194, %v6207
      %v6209 = vpop.f32.mrf.mxu0
      %v6210 = vadd.f32 %v6196, %v6209
      %6211 = vdwg.mxu0
      %v6340 = vunpack.c.l.b16 %v5092
      %v6341 = vunpack.c.h.b16 %v5092
      %v6342 = vunpack.c.l.b16 %v5093
      %v6343 = vunpack.c.h.b16 %v5093
      %v6344 = vunpack.c.l.b16 %v5094
      %v6345 = vunpack.c.h.b16 %v5094
      %v6346 = vunpack.c.l.b16 %v5095
      %v6347 = vunpack.c.h.b16 %v5095
      %v6348 = vunpack.c.l.b16 %v5096
      %v6349 = vunpack.c.h.b16 %v5096
      %v6350 = vunpack.c.l.b16 %v5097
      %v6351 = vunpack.c.h.b16 %v5097
      %v6352 = vunpack.c.l.b16 %v5098
      %v6353 = vunpack.c.h.b16 %v5098
      %v6354 = vunpack.c.l.b16 %v5099
      %v6355 = vunpack.c.h.b16 %v5099
      %v6356 = vunpack.c.l.b16 %v5100
      %v6357 = vunpack.c.h.b16 %v5100
      %v6358 = vunpack.c.l.b16 %v5101
      %v6359 = vunpack.c.h.b16 %v5101
      %v6360 = vunpack.c.l.b16 %v5102
      %v6361 = vunpack.c.h.b16 %v5102
      %v6362 = vunpack.c.l.b16 %v5103
      %v6363 = vunpack.c.h.b16 %v5103
      %v6364 = vunpack.c.l.b16 %v5104
      %v6365 = vunpack.c.h.b16 %v5104
      %v6366 = vunpack.c.l.b16 %v5105
      %v6367 = vunpack.c.h.b16 %v5105
      %v6368 = vunpack.c.l.b16 %v5106
      %v6369 = vunpack.c.h.b16 %v5106
      %v6370 = vunpack.c.l.b16 %v5107
      %v6371 = vunpack.c.h.b16 %v5107
      %v6372 = vunpack.c.l.b16 %v5108
      %v6373 = vunpack.c.h.b16 %v5108
      %v6374 = vunpack.c.l.b16 %v5109
      %v6375 = vunpack.c.h.b16 %v5109
      %v6376 = vunpack.c.l.b16 %v5110
      %v6377 = vunpack.c.h.b16 %v5110
      %v6378 = vunpack.c.l.b16 %v5111
      %v6379 = vunpack.c.h.b16 %v5111
      %v6380 = vunpack.c.l.b16 %v5112
      %v6381 = vunpack.c.h.b16 %v5112
      %v6382 = vunpack.c.l.b16 %v5113
      %v6383 = vunpack.c.h.b16 %v5113
      %v6384 = vunpack.c.l.b16 %v5114
      %v6385 = vunpack.c.h.b16 %v5114
      %v6386 = vunpack.c.l.b16 %v5115
      %v6387 = vunpack.c.h.b16 %v5115
      %v6388 = vunpack.c.l.b16 %v5116
      %v6389 = vunpack.c.h.b16 %v5116
      %v6390 = vunpack.c.l.b16 %v5117
      %v6391 = vunpack.c.h.b16 %v5117
      %v6392 = vunpack.c.l.b16 %v5118
      %v6393 = vunpack.c.h.b16 %v5118
      %v6394 = vunpack.c.l.b16 %v5119
      %v6395 = vunpack.c.h.b16 %v5119
      %v6396 = vunpack.c.l.b16 %v5120
      %v6397 = vunpack.c.h.b16 %v5120
      %v6398 = vunpack.c.l.b16 %v5121
      %v6399 = vunpack.c.h.b16 %v5121
      %v6400 = vunpack.c.l.b16 %v5122
      %v6401 = vunpack.c.h.b16 %v5122
      %v6402 = vunpack.c.l.b16 %v5123
      %v6403 = vunpack.c.h.b16 %v5123
      %v6404 = vunpack.c.l.b16 %v5124
      %v6405 = vunpack.c.h.b16 %v5124
      %v6406 = vunpack.c.l.b16 %v5125
      %v6407 = vunpack.c.h.b16 %v5125
      %v6408 = vunpack.c.l.b16 %v5126
      %v6409 = vunpack.c.h.b16 %v5126
      %v6410 = vunpack.c.l.b16 %v5127
      %v6411 = vunpack.c.h.b16 %v5127
      %v6412 = vunpack.c.l.b16 %v5128
      %v6413 = vunpack.c.h.b16 %v5128
      %v6414 = vunpack.c.l.b16 %v5129
      %v6415 = vunpack.c.h.b16 %v5129
      %v6416 = vunpack.c.l.b16 %v5130
      %v6417 = vunpack.c.h.b16 %v5130
      %v6418 = vunpack.c.l.b16 %v5131
      %v6419 = vunpack.c.h.b16 %v5131
      %v6420 = vunpack.c.l.b16 %v5132
      %v6421 = vunpack.c.h.b16 %v5132
      %v6422 = vunpack.c.l.b16 %v5133
      %v6423 = vunpack.c.h.b16 %v5133
      %v6424 = vunpack.c.l.b16 %v5134
      %v6425 = vunpack.c.h.b16 %v5134
      %v6426 = vunpack.c.l.b16 %v5135
      %v6427 = vunpack.c.h.b16 %v5135
      %v6428 = vunpack.c.l.b16 %v5136
      %v6429 = vunpack.c.h.b16 %v5136
      %v6430 = vunpack.c.l.b16 %v5137
      %v6431 = vunpack.c.h.b16 %v5137
      %v6432 = vunpack.c.l.b16 %v5138
      %v6433 = vunpack.c.h.b16 %v5138
      %v6434 = vunpack.c.l.b16 %v5139
      %v6435 = vunpack.c.h.b16 %v5139
      %v6436 = vunpack.c.l.b16 %v5140
      %v6437 = vunpack.c.h.b16 %v5140
      %v6438 = vunpack.c.l.b16 %v5141
      %v6439 = vunpack.c.h.b16 %v5141
      %v6440 = vunpack.c.l.b16 %v5142
      %v6441 = vunpack.c.h.b16 %v5142
      %v6442 = vunpack.c.l.b16 %v5143
      %v6443 = vunpack.c.h.b16 %v5143
      %v6444 = vunpack.c.l.b16 %v5144
      %v6445 = vunpack.c.h.b16 %v5144
      %v6446 = vunpack.c.l.b16 %v5145
      %v6447 = vunpack.c.h.b16 %v5145
      %v6448 = vunpack.c.l.b16 %v5146
      %v6449 = vunpack.c.h.b16 %v5146
      %v6450 = vunpack.c.l.b16 %v5147
      %v6451 = vunpack.c.h.b16 %v5147
      %v6452 = vunpack.c.l.b16 %v5148
      %v6453 = vunpack.c.h.b16 %v5148
      %v6454 = vunpack.c.l.b16 %v5149
      %v6455 = vunpack.c.h.b16 %v5149
      %v6456 = vunpack.c.l.b16 %v5150
      %v6457 = vunpack.c.h.b16 %v5150
      %v6458 = vunpack.c.l.b16 %v5151
      %v6459 = vunpack.c.h.b16 %v5151
      %v6460 = vunpack.c.l.b16 %v5152
      %v6461 = vunpack.c.h.b16 %v5152
      %v6462 = vunpack.c.l.b16 %v5153
      %v6463 = vunpack.c.h.b16 %v5153
      %v6464 = vunpack.c.l.b16 %v5154
      %v6465 = vunpack.c.h.b16 %v5154
      %v6466 = vunpack.c.l.b16 %v5155
      %v6467 = vunpack.c.h.b16 %v5155
      %v6468 = vunpack.c.l.b16 %v5156
      %v6469 = vunpack.c.h.b16 %v5156
      %v6470 = vunpack.c.l.b16 %v5157
      %v6471 = vunpack.c.h.b16 %v5157
      %v6472 = vunpack.c.l.b16 %v5158
      %v6473 = vunpack.c.h.b16 %v5158
      %v6474 = vunpack.c.l.b16 %v5159
      %v6475 = vunpack.c.h.b16 %v5159
      %v6476 = vunpack.c.l.b16 %v5160
      %v6477 = vunpack.c.h.b16 %v5160
      %v6478 = vunpack.c.l.b16 %v5161
      %v6479 = vunpack.c.h.b16 %v5161
      %v6480 = vunpack.c.l.b16 %v5162
      %v6481 = vunpack.c.h.b16 %v5162
      %v6482 = vunpack.c.l.b16 %v5163
      %v6483 = vunpack.c.h.b16 %v5163
      %v6484 = vunpack.c.l.b16 %v5164
      %v6485 = vunpack.c.h.b16 %v5164
      %v6486 = vunpack.c.l.b16 %v5165
      %v6487 = vunpack.c.h.b16 %v5165
      %v6488 = vunpack.c.l.b16 %v5166
      %v6489 = vunpack.c.h.b16 %v5166
      %v6490 = vunpack.c.l.b16 %v5167
      %v6491 = vunpack.c.h.b16 %v5167
      %v6492 = vunpack.c.l.b16 %v5168
      %v6493 = vunpack.c.h.b16 %v5168
      %v6494 = vunpack.c.l.b16 %v5169
      %v6495 = vunpack.c.h.b16 %v5169
      %v6496 = vunpack.c.l.b16 %v5170
      %v6497 = vunpack.c.h.b16 %v5170
      %v6498 = vunpack.c.l.b16 %v5171
      %v6499 = vunpack.c.h.b16 %v5171
      %v6500 = vunpack.c.l.b16 %v5172
      %v6501 = vunpack.c.h.b16 %v5172
      %v6502 = vunpack.c.l.b16 %v5173
      %v6503 = vunpack.c.h.b16 %v5173
      %v6504 = vunpack.c.l.b16 %v5174
      %v6505 = vunpack.c.h.b16 %v5174
      %v6506 = vunpack.c.l.b16 %v5175
      %v6507 = vunpack.c.h.b16 %v5175
      %v6508 = vunpack.c.l.b16 %v5176
      %v6509 = vunpack.c.h.b16 %v5176
      %v6510 = vunpack.c.l.b16 %v5177
      %v6511 = vunpack.c.h.b16 %v5177
      %v6512 = vunpack.c.l.b16 %v5178
      %v6513 = vunpack.c.h.b16 %v5178
      %v6514 = vunpack.c.l.b16 %v5179
      %v6515 = vunpack.c.h.b16 %v5179
      %v6516 = vunpack.c.l.b16 %v5180
      %v6517 = vunpack.c.h.b16 %v5180
      %v6518 = vunpack.c.l.b16 %v5181
      %v6519 = vunpack.c.h.b16 %v5181
      %v6520 = vunpack.c.l.b16 %v5182
      %v6521 = vunpack.c.h.b16 %v5182
      %v6522 = vunpack.c.l.b16 %v5183
      %v6523 = vunpack.c.h.b16 %v5183
      %v6524 = vunpack.c.l.b16 %v5184
      %v6525 = vunpack.c.h.b16 %v5184
      %v6526 = vunpack.c.l.b16 %v5185
      %v6527 = vunpack.c.h.b16 %v5185
      %v6528 = vunpack.c.l.b16 %v5186
      %v6529 = vunpack.c.h.b16 %v5186
      %v6530 = vunpack.c.l.b16 %v5187
      %v6531 = vunpack.c.h.b16 %v5187
      %v6532 = vunpack.c.l.b16 %v5188
      %v6533 = vunpack.c.h.b16 %v5188
      %v6534 = vunpack.c.l.b16 %v5189
      %v6535 = vunpack.c.h.b16 %v5189
      %v6536 = vunpack.c.l.b16 %v5190
      %v6537 = vunpack.c.h.b16 %v5190
      %v6538 = vunpack.c.l.b16 %v5191
      %v6539 = vunpack.c.h.b16 %v5191
      %v6540 = vunpack.c.l.b16 %v5192
      %v6541 = vunpack.c.h.b16 %v5192
      %v6542 = vunpack.c.l.b16 %v5193
      %v6543 = vunpack.c.h.b16 %v5193
      %v6544 = vunpack.c.l.b16 %v5194
      %v6545 = vunpack.c.h.b16 %v5194
      %v6546 = vunpack.c.l.b16 %v5195
      %v6547 = vunpack.c.h.b16 %v5195
      %v6548 = vunpack.c.l.b16 %v5196
      %v6549 = vunpack.c.h.b16 %v5196
      %v6550 = vunpack.c.l.b16 %v5197
      %v6551 = vunpack.c.h.b16 %v5197
      %v6552 = vunpack.c.l.b16 %v5198
      %v6553 = vunpack.c.h.b16 %v5198
      %v6554 = vunpack.c.l.b16 %v5199
      %v6555 = vunpack.c.h.b16 %v5199
      %v6556 = vunpack.c.l.b16 %v5200
      %v6557 = vunpack.c.h.b16 %v5200
      %v6558 = vunpack.c.l.b16 %v5201
      %v6559 = vunpack.c.h.b16 %v5201
      %v6560 = vunpack.c.l.b16 %v5202
      %v6561 = vunpack.c.h.b16 %v5202
      %v6562 = vunpack.c.l.b16 %v5203
      %v6563 = vunpack.c.h.b16 %v5203
      %v6564 = vunpack.c.l.b16 %v5204
      %v6565 = vunpack.c.h.b16 %v5204
      %v6566 = vunpack.c.l.b16 %v5205
      %v6567 = vunpack.c.h.b16 %v5205
      %v6568 = vunpack.c.l.b16 %v5206
      %v6569 = vunpack.c.h.b16 %v5206
      %v6570 = vunpack.c.l.b16 %v5207
      %v6571 = vunpack.c.h.b16 %v5207
      %v6572 = vunpack.c.l.b16 %v5208
      %v6573 = vunpack.c.h.b16 %v5208
      %v6574 = vunpack.c.l.b16 %v5209
      %v6575 = vunpack.c.h.b16 %v5209
      %v6576 = vunpack.c.l.b16 %v5210
      %v6577 = vunpack.c.h.b16 %v5210
      %v6578 = vunpack.c.l.b16 %v5211
      %v6579 = vunpack.c.h.b16 %v5211
      %v6580 = vunpack.c.l.b16 %v5212
      %v6581 = vunpack.c.h.b16 %v5212
      %v6582 = vunpack.c.l.b16 %v5213
      %v6583 = vunpack.c.h.b16 %v5213
      %v6584 = vunpack.c.l.b16 %v5214
      %v6585 = vunpack.c.h.b16 %v5214
      %v6586 = vunpack.c.l.b16 %v5215
      %v6587 = vunpack.c.h.b16 %v5215
      %v6588 = vunpack.c.l.b16 %v5216
      %v6589 = vunpack.c.h.b16 %v5216
      %v6590 = vunpack.c.l.b16 %v5217
      %v6591 = vunpack.c.h.b16 %v5217
      %v6592 = vunpack.c.l.b16 %v5218
      %v6593 = vunpack.c.h.b16 %v5218
      %v6594 = vunpack.c.l.b16 %v5219
      %v6595 = vunpack.c.h.b16 %v5219
      %v6596 = vpack.c.b16 %v6344, %v6340
      %v6597 = vpack.c.b16 %v6345, %v6341
      %v6598 = vpack.c.b16 %v6346, %v6342
      %v6599 = vpack.c.b16 %v6347, %v6343
      %v6600 = vpack.c.b16 %v6352, %v6348
      %v6601 = vpack.c.b16 %v6353, %v6349
      %v6602 = vpack.c.b16 %v6354, %v6350
      %v6603 = vpack.c.b16 %v6355, %v6351
      %v6604 = vpack.c.b16 %v6360, %v6356
      %v6605 = vpack.c.b16 %v6361, %v6357
      %v6606 = vpack.c.b16 %v6362, %v6358
      %v6607 = vpack.c.b16 %v6363, %v6359
      %v6608 = vpack.c.b16 %v6368, %v6364
      %v6609 = vpack.c.b16 %v6369, %v6365
      %v6610 = vpack.c.b16 %v6370, %v6366
      %v6611 = vpack.c.b16 %v6371, %v6367
      %v6612 = vpack.c.b16 %v6376, %v6372
      %v6613 = vpack.c.b16 %v6377, %v6373
      %v6614 = vpack.c.b16 %v6378, %v6374
      %v6615 = vpack.c.b16 %v6379, %v6375
      %v6616 = vpack.c.b16 %v6384, %v6380
      %v6617 = vpack.c.b16 %v6385, %v6381
      %v6618 = vpack.c.b16 %v6386, %v6382
      %v6619 = vpack.c.b16 %v6387, %v6383
      %v6620 = vpack.c.b16 %v6392, %v6388
      %v6621 = vpack.c.b16 %v6393, %v6389
      %v6622 = vpack.c.b16 %v6394, %v6390
      %v6623 = vpack.c.b16 %v6395, %v6391
      %v6624 = vpack.c.b16 %v6400, %v6396
      %v6625 = vpack.c.b16 %v6401, %v6397
      %v6626 = vpack.c.b16 %v6402, %v6398
      %v6627 = vpack.c.b16 %v6403, %v6399
      %v6628 = vpack.c.b16 %v6408, %v6404
      %v6629 = vpack.c.b16 %v6409, %v6405
      %v6630 = vpack.c.b16 %v6410, %v6406
      %v6631 = vpack.c.b16 %v6411, %v6407
      %v6632 = vpack.c.b16 %v6416, %v6412
      %v6633 = vpack.c.b16 %v6417, %v6413
      %v6634 = vpack.c.b16 %v6418, %v6414
      %v6635 = vpack.c.b16 %v6419, %v6415
      %v6636 = vpack.c.b16 %v6424, %v6420
      %v6637 = vpack.c.b16 %v6425, %v6421
      %v6638 = vpack.c.b16 %v6426, %v6422
      %v6639 = vpack.c.b16 %v6427, %v6423
      %v6640 = vpack.c.b16 %v6432, %v6428
      %v6641 = vpack.c.b16 %v6433, %v6429
      %v6642 = vpack.c.b16 %v6434, %v6430
      %v6643 = vpack.c.b16 %v6435, %v6431
      %v6644 = vpack.c.b16 %v6440, %v6436
      %v6645 = vpack.c.b16 %v6441, %v6437
      %v6646 = vpack.c.b16 %v6442, %v6438
      %v6647 = vpack.c.b16 %v6443, %v6439
      %v6648 = vpack.c.b16 %v6448, %v6444
      %v6649 = vpack.c.b16 %v6449, %v6445
      %v6650 = vpack.c.b16 %v6450, %v6446
      %v6651 = vpack.c.b16 %v6451, %v6447
      %v6652 = vpack.c.b16 %v6456, %v6452
      %v6653 = vpack.c.b16 %v6457, %v6453
      %v6654 = vpack.c.b16 %v6458, %v6454
      %v6655 = vpack.c.b16 %v6459, %v6455
      %v6656 = vpack.c.b16 %v6464, %v6460
      %v6657 = vpack.c.b16 %v6465, %v6461
      %v6658 = vpack.c.b16 %v6466, %v6462
      %v6659 = vpack.c.b16 %v6467, %v6463
      %v6660 = vpack.c.b16 %v6472, %v6468
      %v6661 = vpack.c.b16 %v6473, %v6469
      %v6662 = vpack.c.b16 %v6474, %v6470
      %v6663 = vpack.c.b16 %v6475, %v6471
      %v6664 = vpack.c.b16 %v6480, %v6476
      %v6665 = vpack.c.b16 %v6481, %v6477
      %v6666 = vpack.c.b16 %v6482, %v6478
      %v6667 = vpack.c.b16 %v6483, %v6479
      %v6668 = vpack.c.b16 %v6488, %v6484
      %v6669 = vpack.c.b16 %v6489, %v6485
      %v6670 = vpack.c.b16 %v6490, %v6486
      %v6671 = vpack.c.b16 %v6491, %v6487
      %v6672 = vpack.c.b16 %v6496, %v6492
      %v6673 = vpack.c.b16 %v6497, %v6493
      %v6674 = vpack.c.b16 %v6498, %v6494
      %v6675 = vpack.c.b16 %v6499, %v6495
      %v6676 = vpack.c.b16 %v6504, %v6500
      %v6677 = vpack.c.b16 %v6505, %v6501
      %v6678 = vpack.c.b16 %v6506, %v6502
      %v6679 = vpack.c.b16 %v6507, %v6503
      %v6680 = vpack.c.b16 %v6512, %v6508
      %v6681 = vpack.c.b16 %v6513, %v6509
      %v6682 = vpack.c.b16 %v6514, %v6510
      %v6683 = vpack.c.b16 %v6515, %v6511
      %v6684 = vpack.c.b16 %v6520, %v6516
      %v6685 = vpack.c.b16 %v6521, %v6517
      %v6686 = vpack.c.b16 %v6522, %v6518
      %v6687 = vpack.c.b16 %v6523, %v6519
      %v6688 = vpack.c.b16 %v6528, %v6524
      %v6689 = vpack.c.b16 %v6529, %v6525
      %v6690 = vpack.c.b16 %v6530, %v6526
      %v6691 = vpack.c.b16 %v6531, %v6527
      %v6692 = vpack.c.b16 %v6536, %v6532
      %v6693 = vpack.c.b16 %v6537, %v6533
      %v6694 = vpack.c.b16 %v6538, %v6534
      %v6695 = vpack.c.b16 %v6539, %v6535
      %v6696 = vpack.c.b16 %v6544, %v6540
      %v6697 = vpack.c.b16 %v6545, %v6541
      %v6698 = vpack.c.b16 %v6546, %v6542
      %v6699 = vpack.c.b16 %v6547, %v6543
      %v6700 = vpack.c.b16 %v6552, %v6548
      %v6701 = vpack.c.b16 %v6553, %v6549
      %v6702 = vpack.c.b16 %v6554, %v6550
      %v6703 = vpack.c.b16 %v6555, %v6551
      %v6704 = vpack.c.b16 %v6560, %v6556
      %v6705 = vpack.c.b16 %v6561, %v6557
      %v6706 = vpack.c.b16 %v6562, %v6558
      %v6707 = vpack.c.b16 %v6563, %v6559
      %v6708 = vpack.c.b16 %v6568, %v6564
      %v6709 = vpack.c.b16 %v6569, %v6565
      %v6710 = vpack.c.b16 %v6570, %v6566
      %v6711 = vpack.c.b16 %v6571, %v6567
      %v6712 = vpack.c.b16 %v6576, %v6572
      %v6713 = vpack.c.b16 %v6577, %v6573
      %v6714 = vpack.c.b16 %v6578, %v6574
      %v6715 = vpack.c.b16 %v6579, %v6575
      %v6716 = vpack.c.b16 %v6584, %v6580
      %v6717 = vpack.c.b16 %v6585, %v6581
      %v6718 = vpack.c.b16 %v6586, %v6582
      %v6719 = vpack.c.b16 %v6587, %v6583
      %v6720 = vpack.c.b16 %v6592, %v6588
      %v6721 = vpack.c.b16 %v6593, %v6589
      %v6722 = vpack.c.b16 %v6594, %v6590
      %v6723 = vpack.c.b16 %v6595, %v6591
      %6852 = vmatpush.bf16.msra.mxu0 %v6624
      %6853 = vmatpush.bf16.msra.mxu0 %v6620
      %6854 = vmatpush.bf16.msra.mxu0 %v6616
      %6855 = vmatpush.bf16.msra.mxu0 %v6612
      %6856 = vmatpush.bf16.msra.mxu0 %v6608
      %6857 = vmatpush.bf16.msra.mxu0 %v6604
      %6858 = vmatpush.bf16.msra.mxu0 %v6600
      %6859 = vmatpush.bf16.msra.mxu0 %v6596
      %6860 = vmatmul.bf16.gmra.mxu0 %v5048
      %v6861 = vpop.f32.mrf.mxu0
      %v6862 = vadd.f32 %v6040, %v6861
      %v6863 = vpop.f32.mrf.mxu0
      %v6864 = vadd.f32 %v6042, %v6863
      %6865 = vdwg.mxu0
      %6866 = vmatpush.bf16.msra.mxu0 %v6656
      %6867 = vmatpush.bf16.msra.mxu0 %v6652
      %6868 = vmatpush.bf16.msra.mxu0 %v6648
      %6869 = vmatpush.bf16.msra.mxu0 %v6644
      %6870 = vmatpush.bf16.msra.mxu0 %v6640
      %6871 = vmatpush.bf16.msra.mxu0 %v6636
      %6872 = vmatpush.bf16.msra.mxu0 %v6632
      %6873 = vmatpush.bf16.msra.mxu0 %v6628
      %6874 = vmatmul.bf16.gmra.mxu0 %v5049
      %v6875 = vpop.f32.mrf.mxu0
      %v6876 = vadd.f32 %v6862, %v6875
      %v6877 = vpop.f32.mrf.mxu0
      %v6878 = vadd.f32 %v6864, %v6877
      %6879 = vdwg.mxu0
      %6880 = vmatpush.bf16.msra.mxu0 %v6688
      %6881 = vmatpush.bf16.msra.mxu0 %v6684
      %6882 = vmatpush.bf16.msra.mxu0 %v6680
      %6883 = vmatpush.bf16.msra.mxu0 %v6676
      %6884 = vmatpush.bf16.msra.mxu0 %v6672
      %6885 = vmatpush.bf16.msra.mxu0 %v6668
      %6886 = vmatpush.bf16.msra.mxu0 %v6664
      %6887 = vmatpush.bf16.msra.mxu0 %v6660
      %6888 = vmatmul.bf16.gmra.mxu0 %v5050
      %v6889 = vpop.f32.mrf.mxu0
      %v6890 = vadd.f32 %v6876, %v6889
      %v6891 = vpop.f32.mrf.mxu0
      %v6892 = vadd.f32 %v6878, %v6891
      %6893 = vdwg.mxu0
      %6894 = vmatpush.bf16.msra.mxu0 %v6720
      %6895 = vmatpush.bf16.msra.mxu0 %v6716
      %6896 = vmatpush.bf16.msra.mxu0 %v6712
      %6897 = vmatpush.bf16.msra.mxu0 %v6708
      %6898 = vmatpush.bf16.msra.mxu0 %v6704
      %6899 = vmatpush.bf16.msra.mxu0 %v6700
      %6900 = vmatpush.bf16.msra.mxu0 %v6696
      %6901 = vmatpush.bf16.msra.mxu0 %v6692
      %6902 = vmatmul.bf16.gmra.mxu0 %v5051
      %v6903 = vpop.f32.mrf.mxu0
      %v6904 = vadd.f32 %v6890, %v6903
      %v6905 = vpop.f32.mrf.mxu0
      %v6906 = vadd.f32 %v6892, %v6905
      %6907 = vdwg.mxu0
      %6908 = vmatpush.bf16.msra.mxu0 %v6625
      %6909 = vmatpush.bf16.msra.mxu0 %v6621
      %6910 = vmatpush.bf16.msra.mxu0 %v6617
      %6911 = vmatpush.bf16.msra.mxu0 %v6613
      %6912 = vmatpush.bf16.msra.mxu0 %v6609
      %6913 = vmatpush.bf16.msra.mxu0 %v6605
      %6914 = vmatpush.bf16.msra.mxu0 %v6601
      %6915 = vmatpush.bf16.msra.mxu0 %v6597
      %6916 = vmatmul.bf16.gmra.mxu0 %v5048
      %v6917 = vpop.f32.mrf.mxu0
      %v6918 = vadd.f32 %v6096, %v6917
      %v6919 = vpop.f32.mrf.mxu0
      %v6920 = vadd.f32 %v6098, %v6919
      %6921 = vdwg.mxu0
      %6922 = vmatpush.bf16.msra.mxu0 %v6657
      %6923 = vmatpush.bf16.msra.mxu0 %v6653
      %6924 = vmatpush.bf16.msra.mxu0 %v6649
      %6925 = vmatpush.bf16.msra.mxu0 %v6645
      %6926 = vmatpush.bf16.msra.mxu0 %v6641
      %6927 = vmatpush.bf16.msra.mxu0 %v6637
      %6928 = vmatpush.bf16.msra.mxu0 %v6633
      %6929 = vmatpush.bf16.msra.mxu0 %v6629
      %6930 = vmatmul.bf16.gmra.mxu0 %v5049
      %v6931 = vpop.f32.mrf.mxu0
      %v6932 = vadd.f32 %v6918, %v6931
      %v6933 = vpop.f32.mrf.mxu0
      %v6934 = vadd.f32 %v6920, %v6933
      %6935 = vdwg.mxu0
      %6936 = vmatpush.bf16.msra.mxu0 %v6689
      %6937 = vmatpush.bf16.msra.mxu0 %v6685
      %6938 = vmatpush.bf16.msra.mxu0 %v6681
      %6939 = vmatpush.bf16.msra.mxu0 %v6677
      %6940 = vmatpush.bf16.msra.mxu0 %v6673
      %6941 = vmatpush.bf16.msra.mxu0 %v6669
      %6942 = vmatpush.bf16.msra.mxu0 %v6665
      %6943 = vmatpush.bf16.msra.mxu0 %v6661
      %6944 = vmatmul.bf16.gmra.mxu0 %v5050
      %v6945 = vpop.f32.mrf.mxu0
      %v6946 = vadd.f32 %v6932, %v6945
      %v6947 = vpop.f32.mrf.mxu0
      %v6948 = vadd.f32 %v6934, %v6947
      %6949 = vdwg.mxu0
      %6950 = vmatpush.bf16.msra.mxu0 %v6721
      %6951 = vmatpush.bf16.msra.mxu0 %v6717
      %6952 = vmatpush.bf16.msra.mxu0 %v6713
      %6953 = vmatpush.bf16.msra.mxu0 %v6709
      %6954 = vmatpush.bf16.msra.mxu0 %v6705
      %6955 = vmatpush.bf16.msra.mxu0 %v6701
      %6956 = vmatpush.bf16.msra.mxu0 %v6697
      %6957 = vmatpush.bf16.msra.mxu0 %v6693
      %6958 = vmatmul.bf16.gmra.mxu0 %v5051
      %v6959 = vpop.f32.mrf.mxu0
      %v6960 = vadd.f32 %v6946, %v6959
      %v6961 = vpop.f32.mrf.mxu0
      %v6962 = vadd.f32 %v6948, %v6961
      %6963 = vdwg.mxu0
      %6964 = vmatpush.bf16.msra.mxu0 %v6626
      %6965 = vmatpush.bf16.msra.mxu0 %v6622
      %6966 = vmatpush.bf16.msra.mxu0 %v6618
      %6967 = vmatpush.bf16.msra.mxu0 %v6614
      %6968 = vmatpush.bf16.msra.mxu0 %v6610
      %6969 = vmatpush.bf16.msra.mxu0 %v6606
      %6970 = vmatpush.bf16.msra.mxu0 %v6602
      %6971 = vmatpush.bf16.msra.mxu0 %v6598
      %6972 = vmatmul.bf16.gmra.mxu0 %v5048
      %v6973 = vpop.f32.mrf.mxu0
      %v6974 = vadd.f32 %v6152, %v6973
      %v6975 = vpop.f32.mrf.mxu0
      %v6976 = vadd.f32 %v6154, %v6975
      %6977 = vdwg.mxu0
      %6978 = vmatpush.bf16.msra.mxu0 %v6658
      %6979 = vmatpush.bf16.msra.mxu0 %v6654
      %6980 = vmatpush.bf16.msra.mxu0 %v6650
      %6981 = vmatpush.bf16.msra.mxu0 %v6646
      %6982 = vmatpush.bf16.msra.mxu0 %v6642
      %6983 = vmatpush.bf16.msra.mxu0 %v6638
      %6984 = vmatpush.bf16.msra.mxu0 %v6634
      %6985 = vmatpush.bf16.msra.mxu0 %v6630
      %6986 = vmatmul.bf16.gmra.mxu0 %v5049
      %v6987 = vpop.f32.mrf.mxu0
      %v6988 = vadd.f32 %v6974, %v6987
      %v6989 = vpop.f32.mrf.mxu0
      %v6990 = vadd.f32 %v6976, %v6989
      %6991 = vdwg.mxu0
      %6992 = vmatpush.bf16.msra.mxu0 %v6690
      %6993 = vmatpush.bf16.msra.mxu0 %v6686
      %6994 = vmatpush.bf16.msra.mxu0 %v6682
      %6995 = vmatpush.bf16.msra.mxu0 %v6678
      %6996 = vmatpush.bf16.msra.mxu0 %v6674
      %6997 = vmatpush.bf16.msra.mxu0 %v6670
      %6998 = vmatpush.bf16.msra.mxu0 %v6666
      %6999 = vmatpush.bf16.msra.mxu0 %v6662
      %7000 = vmatmul.bf16.gmra.mxu0 %v5050
      %v7001 = vpop.f32.mrf.mxu0
      %v7002 = vadd.f32 %v6988, %v7001
      %v7003 = vpop.f32.mrf.mxu0
      %v7004 = vadd.f32 %v6990, %v7003
      %7005 = vdwg.mxu0
      %7006 = vmatpush.bf16.msra.mxu0 %v6722
      %7007 = vmatpush.bf16.msra.mxu0 %v6718
      %7008 = vmatpush.bf16.msra.mxu0 %v6714
      %7009 = vmatpush.bf16.msra.mxu0 %v6710
      %7010 = vmatpush.bf16.msra.mxu0 %v6706
      %7011 = vmatpush.bf16.msra.mxu0 %v6702
      %7012 = vmatpush.bf16.msra.mxu0 %v6698
      %7013 = vmatpush.bf16.msra.mxu0 %v6694
      %7014 = vmatmul.bf16.gmra.mxu0 %v5051
      %v7015 = vpop.f32.mrf.mxu0
      %v7016 = vadd.f32 %v7002, %v7015
      %v7017 = vpop.f32.mrf.mxu0
      %v7018 = vadd.f32 %v7004, %v7017
      %7019 = vdwg.mxu0
      %7020 = vmatpush.bf16.msra.mxu0 %v6627
      %7021 = vmatpush.bf16.msra.mxu0 %v6623
      %7022 = vmatpush.bf16.msra.mxu0 %v6619
      %7023 = vmatpush.bf16.msra.mxu0 %v6615
      %7024 = vmatpush.bf16.msra.mxu0 %v6611
      %7025 = vmatpush.bf16.msra.mxu0 %v6607
      %7026 = vmatpush.bf16.msra.mxu0 %v6603
      %7027 = vmatpush.bf16.msra.mxu0 %v6599
      %7028 = vmatmul.bf16.gmra.mxu0 %v5048
      %v7029 = vpop.f32.mrf.mxu0
      %v7030 = vadd.f32 %v6208, %v7029
      %v7031 = vpop.f32.mrf.mxu0
      %v7032 = vadd.f32 %v6210, %v7031
      %7033 = vdwg.mxu0
      %7034 = vmatpush.bf16.msra.mxu0 %v6659
      %7035 = vmatpush.bf16.msra.mxu0 %v6655
      %7036 = vmatpush.bf16.msra.mxu0 %v6651
      %7037 = vmatpush.bf16.msra.mxu0 %v6647
      %7038 = vmatpush.bf16.msra.mxu0 %v6643
      %7039 = vmatpush.bf16.msra.mxu0 %v6639
      %7040 = vmatpush.bf16.msra.mxu0 %v6635
      %7041 = vmatpush.bf16.msra.mxu0 %v6631
      %7042 = vmatmul.bf16.gmra.mxu0 %v5049
      %v7043 = vpop.f32.mrf.mxu0
      %v7044 = vadd.f32 %v7030, %v7043
      %v7045 = vpop.f32.mrf.mxu0
      %v7046 = vadd.f32 %v7032, %v7045
      %7047 = vdwg.mxu0
      %7048 = vmatpush.bf16.msra.mxu0 %v6691
      %7049 = vmatpush.bf16.msra.mxu0 %v6687
      %7050 = vmatpush.bf16.msra.mxu0 %v6683
      %7051 = vmatpush.bf16.msra.mxu0 %v6679
      %7052 = vmatpush.bf16.msra.mxu0 %v6675
      %7053 = vmatpush.bf16.msra.mxu0 %v6671
      %7054 = vmatpush.bf16.msra.mxu0 %v6667
      %7055 = vmatpush.bf16.msra.mxu0 %v6663
      %7056 = vmatmul.bf16.gmra.mxu0 %v5050
      %v7057 = vpop.f32.mrf.mxu0
      %v7058 = vadd.f32 %v7044, %v7057
      %v7059 = vpop.f32.mrf.mxu0
      %v7060 = vadd.f32 %v7046, %v7059
      %7061 = vdwg.mxu0
      %7062 = vmatpush.bf16.msra.mxu0 %v6723
      %7063 = vmatpush.bf16.msra.mxu0 %v6719
      %7064 = vmatpush.bf16.msra.mxu0 %v6715
      %7065 = vmatpush.bf16.msra.mxu0 %v6711
      %7066 = vmatpush.bf16.msra.mxu0 %v6707
      %7067 = vmatpush.bf16.msra.mxu0 %v6703
      %7068 = vmatpush.bf16.msra.mxu0 %v6699
      %7069 = vmatpush.bf16.msra.mxu0 %v6695
      %7070 = vmatmul.bf16.gmra.mxu0 %v5051
      %v7071 = vpop.f32.mrf.mxu0
      %v7072 = vadd.f32 %v7058, %v7071
      %v7073 = vpop.f32.mrf.mxu0
      %v7074 = vadd.f32 %v7060, %v7073
      %7075 = vdwg.mxu0
      %v7076 = vld [vmem:[#allocation22] sm:$0xff]
      %v7077 = vld [vmem:[#allocation22 + $0x8] sm:$0xff]
      %v7078 = vld [vmem:[#allocation22 + $0x10] sm:$0xff]
      %v7079 = vld [vmem:[#allocation22 + $0x18] sm:$0xff]
      %v7080 = vld [vmem:[#allocation22 + $0x20] sm:$0xff]
      %v7081 = vld [vmem:[#allocation22 + $0x28] sm:$0xff]
      %v7082 = vld [vmem:[#allocation22 + $0x30] sm:$0xff]
      %v7083 = vld [vmem:[#allocation22 + $0x38] sm:$0xff]
      %v7084 = vld [vmem:[#allocation22 + $0x40] sm:$0xff]
      %v7085 = vld [vmem:[#allocation22 + $0x48] sm:$0xff]
      %v7086 = vld [vmem:[#allocation22 + $0x50] sm:$0xff]
      %v7087 = vld [vmem:[#allocation22 + $0x58] sm:$0xff]
      %v7088 = vld [vmem:[#allocation22 + $0x60] sm:$0xff]
      %v7089 = vld [vmem:[#allocation22 + $0x68] sm:$0xff]
      %v7090 = vld [vmem:[#allocation22 + $0x70] sm:$0xff]
      %v7091 = vld [vmem:[#allocation22 + $0x78] sm:$0xff]
      %v7092 = vld [vmem:[#allocation22 + $0x80] sm:$0xff]
      %v7093 = vld [vmem:[#allocation22 + $0x88] sm:$0xff]
      %v7094 = vld [vmem:[#allocation22 + $0x90] sm:$0xff]
      %v7095 = vld [vmem:[#allocation22 + $0x98] sm:$0xff]
      %v7096 = vld [vmem:[#allocation22 + $0xa0] sm:$0xff]
      %v7097 = vld [vmem:[#allocation22 + $0xa8] sm:$0xff]
      %v7098 = vld [vmem:[#allocation22 + $0xb0] sm:$0xff]
      %v7099 = vld [vmem:[#allocation22 + $0xb8] sm:$0xff]
      %v7100 = vld [vmem:[#allocation22 + $0xc0] sm:$0xff]
      %v7101 = vld [vmem:[#allocation22 + $0xc8] sm:$0xff]
      %v7102 = vld [vmem:[#allocation22 + $0xd0] sm:$0xff]
      %v7103 = vld [vmem:[#allocation22 + $0xd8] sm:$0xff]
      %v7104 = vld [vmem:[#allocation22 + $0xe0] sm:$0xff]
      %v7105 = vld [vmem:[#allocation22 + $0xe8] sm:$0xff]
      %v7106 = vld [vmem:[#allocation22 + $0xf0] sm:$0xff]
      %v7107 = vld [vmem:[#allocation22 + $0xf8] sm:$0xff]
      %v7108 = vld [vmem:[#allocation22 + $0x100] sm:$0xff]
      %v7109 = vld [vmem:[#allocation22 + $0x108] sm:$0xff]
      %v7110 = vld [vmem:[#allocation22 + $0x110] sm:$0xff]
      %v7111 = vld [vmem:[#allocation22 + $0x118] sm:$0xff]
      %v7112 = vld [vmem:[#allocation22 + $0x120] sm:$0xff]
      %v7113 = vld [vmem:[#allocation22 + $0x128] sm:$0xff]
      %v7114 = vld [vmem:[#allocation22 + $0x130] sm:$0xff]
      %v7115 = vld [vmem:[#allocation22 + $0x138] sm:$0xff]
      %v7116 = vld [vmem:[#allocation22 + $0x140] sm:$0xff]
      %v7117 = vld [vmem:[#allocation22 + $0x148] sm:$0xff]
      %v7118 = vld [vmem:[#allocation22 + $0x150] sm:$0xff]
      %v7119 = vld [vmem:[#allocation22 + $0x158] sm:$0xff]
      %v7120 = vld [vmem:[#allocation22 + $0x160] sm:$0xff]
      %v7121 = vld [vmem:[#allocation22 + $0x168] sm:$0xff]
      %v7122 = vld [vmem:[#allocation22 + $0x170] sm:$0xff]
      %v7123 = vld [vmem:[#allocation22 + $0x178] sm:$0xff]
      %v7124 = vld [vmem:[#allocation22 + $0x180] sm:$0xff]
      %v7125 = vld [vmem:[#allocation22 + $0x188] sm:$0xff]
      %v7126 = vld [vmem:[#allocation22 + $0x190] sm:$0xff]
      %v7127 = vld [vmem:[#allocation22 + $0x198] sm:$0xff]
      %v7128 = vld [vmem:[#allocation22 + $0x1a0] sm:$0xff]
      %v7129 = vld [vmem:[#allocation22 + $0x1a8] sm:$0xff]
      %v7130 = vld [vmem:[#allocation22 + $0x1b0] sm:$0xff]
      %v7131 = vld [vmem:[#allocation22 + $0x1b8] sm:$0xff]
      %v7132 = vld [vmem:[#allocation22 + $0x1c0] sm:$0xff]
      %v7133 = vld [vmem:[#allocation22 + $0x1c8] sm:$0xff]
      %v7134 = vld [vmem:[#allocation22 + $0x1d0] sm:$0xff]
      %v7135 = vld [vmem:[#allocation22 + $0x1d8] sm:$0xff]
      %v7136 = vld [vmem:[#allocation22 + $0x1e0] sm:$0xff]
      %v7137 = vld [vmem:[#allocation22 + $0x1e8] sm:$0xff]
      %v7138 = vld [vmem:[#allocation22 + $0x1f0] sm:$0xff]
      %v7139 = vld [vmem:[#allocation22 + $0x1f8] sm:$0xff]
      %v7140 = vld [vmem:[#allocation22 + $0x200] sm:$0xff]
      %v7141 = vld [vmem:[#allocation22 + $0x208] sm:$0xff]
      %v7142 = vld [vmem:[#allocation22 + $0x210] sm:$0xff]
      %v7143 = vld [vmem:[#allocation22 + $0x218] sm:$0xff]
      %v7144 = vld [vmem:[#allocation22 + $0x220] sm:$0xff]
      %v7145 = vld [vmem:[#allocation22 + $0x228] sm:$0xff]
      %v7146 = vld [vmem:[#allocation22 + $0x230] sm:$0xff]
      %v7147 = vld [vmem:[#allocation22 + $0x238] sm:$0xff]
      %v7148 = vld [vmem:[#allocation22 + $0x240] sm:$0xff]
      %v7149 = vld [vmem:[#allocation22 + $0x248] sm:$0xff]
      %v7150 = vld [vmem:[#allocation22 + $0x250] sm:$0xff]
      %v7151 = vld [vmem:[#allocation22 + $0x258] sm:$0xff]
      %v7152 = vld [vmem:[#allocation22 + $0x260] sm:$0xff]
      %v7153 = vld [vmem:[#allocation22 + $0x268] sm:$0xff]
      %v7154 = vld [vmem:[#allocation22 + $0x270] sm:$0xff]
      %v7155 = vld [vmem:[#allocation22 + $0x278] sm:$0xff]
      %v7156 = vld [vmem:[#allocation22 + $0x280] sm:$0xff]
      %v7157 = vld [vmem:[#allocation22 + $0x288] sm:$0xff]
      %v7158 = vld [vmem:[#allocation22 + $0x290] sm:$0xff]
      %v7159 = vld [vmem:[#allocation22 + $0x298] sm:$0xff]
      %v7160 = vld [vmem:[#allocation22 + $0x2a0] sm:$0xff]
      %v7161 = vld [vmem:[#allocation22 + $0x2a8] sm:$0xff]
      %v7162 = vld [vmem:[#allocation22 + $0x2b0] sm:$0xff]
      %v7163 = vld [vmem:[#allocation22 + $0x2b8] sm:$0xff]
      %v7164 = vld [vmem:[#allocation22 + $0x2c0] sm:$0xff]
      %v7165 = vld [vmem:[#allocation22 + $0x2c8] sm:$0xff]
      %v7166 = vld [vmem:[#allocation22 + $0x2d0] sm:$0xff]
      %v7167 = vld [vmem:[#allocation22 + $0x2d8] sm:$0xff]
      %v7168 = vld [vmem:[#allocation22 + $0x2e0] sm:$0xff]
      %v7169 = vld [vmem:[#allocation22 + $0x2e8] sm:$0xff]
      %v7170 = vld [vmem:[#allocation22 + $0x2f0] sm:$0xff]
      %v7171 = vld [vmem:[#allocation22 + $0x2f8] sm:$0xff]
      %v7172 = vld [vmem:[#allocation22 + $0x300] sm:$0xff]
      %v7173 = vld [vmem:[#allocation22 + $0x308] sm:$0xff]
      %v7174 = vld [vmem:[#allocation22 + $0x310] sm:$0xff]
      %v7175 = vld [vmem:[#allocation22 + $0x318] sm:$0xff]
      %v7176 = vld [vmem:[#allocation22 + $0x320] sm:$0xff]
      %v7177 = vld [vmem:[#allocation22 + $0x328] sm:$0xff]
      %v7178 = vld [vmem:[#allocation22 + $0x330] sm:$0xff]
      %v7179 = vld [vmem:[#allocation22 + $0x338] sm:$0xff]
      %v7180 = vld [vmem:[#allocation22 + $0x340] sm:$0xff]
      %v7181 = vld [vmem:[#allocation22 + $0x348] sm:$0xff]
      %v7182 = vld [vmem:[#allocation22 + $0x350] sm:$0xff]
      %v7183 = vld [vmem:[#allocation22 + $0x358] sm:$0xff]
      %v7184 = vld [vmem:[#allocation22 + $0x360] sm:$0xff]
      %v7185 = vld [vmem:[#allocation22 + $0x368] sm:$0xff]
      %v7186 = vld [vmem:[#allocation22 + $0x370] sm:$0xff]
      %v7187 = vld [vmem:[#allocation22 + $0x378] sm:$0xff]
      %v7188 = vld [vmem:[#allocation22 + $0x380] sm:$0xff]
      %v7189 = vld [vmem:[#allocation22 + $0x388] sm:$0xff]
      %v7190 = vld [vmem:[#allocation22 + $0x390] sm:$0xff]
      %v7191 = vld [vmem:[#allocation22 + $0x398] sm:$0xff]
      %v7192 = vld [vmem:[#allocation22 + $0x3a0] sm:$0xff]
      %v7193 = vld [vmem:[#allocation22 + $0x3a8] sm:$0xff]
      %v7194 = vld [vmem:[#allocation22 + $0x3b0] sm:$0xff]
      %v7195 = vld [vmem:[#allocation22 + $0x3b8] sm:$0xff]
      %v7196 = vld [vmem:[#allocation22 + $0x3c0] sm:$0xff]
      %v7197 = vld [vmem:[#allocation22 + $0x3c8] sm:$0xff]
      %v7198 = vld [vmem:[#allocation22 + $0x3d0] sm:$0xff]
      %v7199 = vld [vmem:[#allocation22 + $0x3d8] sm:$0xff]
      %v7200 = vld [vmem:[#allocation22 + $0x3e0] sm:$0xff]
      %v7201 = vld [vmem:[#allocation22 + $0x3e8] sm:$0xff]
      %v7202 = vld [vmem:[#allocation22 + $0x3f0] sm:$0xff]
      %v7203 = vld [vmem:[#allocation22 + $0x3f8] sm:$0xff]
      %v7332 = vunpack.c.l.b16 %v7076
      %v7333 = vunpack.c.h.b16 %v7076
      %v7334 = vunpack.c.l.b16 %v7077
      %v7335 = vunpack.c.h.b16 %v7077
      %v7336 = vunpack.c.l.b16 %v7078
      %v7337 = vunpack.c.h.b16 %v7078
      %v7338 = vunpack.c.l.b16 %v7079
      %v7339 = vunpack.c.h.b16 %v7079
      %v7340 = vunpack.c.l.b16 %v7080
      %v7341 = vunpack.c.h.b16 %v7080
      %v7342 = vunpack.c.l.b16 %v7081
      %v7343 = vunpack.c.h.b16 %v7081
      %v7344 = vunpack.c.l.b16 %v7082
      %v7345 = vunpack.c.h.b16 %v7082
      %v7346 = vunpack.c.l.b16 %v7083
      %v7347 = vunpack.c.h.b16 %v7083
      %v7348 = vunpack.c.l.b16 %v7084
      %v7349 = vunpack.c.h.b16 %v7084
      %v7350 = vunpack.c.l.b16 %v7085
      %v7351 = vunpack.c.h.b16 %v7085
      %v7352 = vunpack.c.l.b16 %v7086
      %v7353 = vunpack.c.h.b16 %v7086
      %v7354 = vunpack.c.l.b16 %v7087
      %v7355 = vunpack.c.h.b16 %v7087
      %v7356 = vunpack.c.l.b16 %v7088
      %v7357 = vunpack.c.h.b16 %v7088
      %v7358 = vunpack.c.l.b16 %v7089
      %v7359 = vunpack.c.h.b16 %v7089
      %v7360 = vunpack.c.l.b16 %v7090
      %v7361 = vunpack.c.h.b16 %v7090
      %v7362 = vunpack.c.l.b16 %v7091
      %v7363 = vunpack.c.h.b16 %v7091
      %v7364 = vunpack.c.l.b16 %v7092
      %v7365 = vunpack.c.h.b16 %v7092
      %v7366 = vunpack.c.l.b16 %v7093
      %v7367 = vunpack.c.h.b16 %v7093
      %v7368 = vunpack.c.l.b16 %v7094
      %v7369 = vunpack.c.h.b16 %v7094
      %v7370 = vunpack.c.l.b16 %v7095
      %v7371 = vunpack.c.h.b16 %v7095
      %v7372 = vunpack.c.l.b16 %v7096
      %v7373 = vunpack.c.h.b16 %v7096
      %v7374 = vunpack.c.l.b16 %v7097
      %v7375 = vunpack.c.h.b16 %v7097
      %v7376 = vunpack.c.l.b16 %v7098
      %v7377 = vunpack.c.h.b16 %v7098
      %v7378 = vunpack.c.l.b16 %v7099
      %v7379 = vunpack.c.h.b16 %v7099
      %v7380 = vunpack.c.l.b16 %v7100
      %v7381 = vunpack.c.h.b16 %v7100
      %v7382 = vunpack.c.l.b16 %v7101
      %v7383 = vunpack.c.h.b16 %v7101
      %v7384 = vunpack.c.l.b16 %v7102
      %v7385 = vunpack.c.h.b16 %v7102
      %v7386 = vunpack.c.l.b16 %v7103
      %v7387 = vunpack.c.h.b16 %v7103
      %v7388 = vunpack.c.l.b16 %v7104
      %v7389 = vunpack.c.h.b16 %v7104
      %v7390 = vunpack.c.l.b16 %v7105
      %v7391 = vunpack.c.h.b16 %v7105
      %v7392 = vunpack.c.l.b16 %v7106
      %v7393 = vunpack.c.h.b16 %v7106
      %v7394 = vunpack.c.l.b16 %v7107
      %v7395 = vunpack.c.h.b16 %v7107
      %v7396 = vunpack.c.l.b16 %v7108
      %v7397 = vunpack.c.h.b16 %v7108
      %v7398 = vunpack.c.l.b16 %v7109
      %v7399 = vunpack.c.h.b16 %v7109
      %v7400 = vunpack.c.l.b16 %v7110
      %v7401 = vunpack.c.h.b16 %v7110
      %v7402 = vunpack.c.l.b16 %v7111
      %v7403 = vunpack.c.h.b16 %v7111
      %v7404 = vunpack.c.l.b16 %v7112
      %v7405 = vunpack.c.h.b16 %v7112
      %v7406 = vunpack.c.l.b16 %v7113
      %v7407 = vunpack.c.h.b16 %v7113
      %v7408 = vunpack.c.l.b16 %v7114
      %v7409 = vunpack.c.h.b16 %v7114
      %v7410 = vunpack.c.l.b16 %v7115
      %v7411 = vunpack.c.h.b16 %v7115
      %v7412 = vunpack.c.l.b16 %v7116
      %v7413 = vunpack.c.h.b16 %v7116
      %v7414 = vunpack.c.l.b16 %v7117
      %v7415 = vunpack.c.h.b16 %v7117
      %v7416 = vunpack.c.l.b16 %v7118
      %v7417 = vunpack.c.h.b16 %v7118
      %v7418 = vunpack.c.l.b16 %v7119
      %v7419 = vunpack.c.h.b16 %v7119
      %v7420 = vunpack.c.l.b16 %v7120
      %v7421 = vunpack.c.h.b16 %v7120
      %v7422 = vunpack.c.l.b16 %v7121
      %v7423 = vunpack.c.h.b16 %v7121
      %v7424 = vunpack.c.l.b16 %v7122
      %v7425 = vunpack.c.h.b16 %v7122
      %v7426 = vunpack.c.l.b16 %v7123
      %v7427 = vunpack.c.h.b16 %v7123
      %v7428 = vunpack.c.l.b16 %v7124
      %v7429 = vunpack.c.h.b16 %v7124
      %v7430 = vunpack.c.l.b16 %v7125
      %v7431 = vunpack.c.h.b16 %v7125
      %v7432 = vunpack.c.l.b16 %v7126
      %v7433 = vunpack.c.h.b16 %v7126
      %v7434 = vunpack.c.l.b16 %v7127
      %v7435 = vunpack.c.h.b16 %v7127
      %v7436 = vunpack.c.l.b16 %v7128
      %v7437 = vunpack.c.h.b16 %v7128
      %v7438 = vunpack.c.l.b16 %v7129
      %v7439 = vunpack.c.h.b16 %v7129
      %v7440 = vunpack.c.l.b16 %v7130
      %v7441 = vunpack.c.h.b16 %v7130
      %v7442 = vunpack.c.l.b16 %v7131
      %v7443 = vunpack.c.h.b16 %v7131
      %v7444 = vunpack.c.l.b16 %v7132
      %v7445 = vunpack.c.h.b16 %v7132
      %v7446 = vunpack.c.l.b16 %v7133
      %v7447 = vunpack.c.h.b16 %v7133
      %v7448 = vunpack.c.l.b16 %v7134
      %v7449 = vunpack.c.h.b16 %v7134
      %v7450 = vunpack.c.l.b16 %v7135
      %v7451 = vunpack.c.h.b16 %v7135
      %v7452 = vunpack.c.l.b16 %v7136
      %v7453 = vunpack.c.h.b16 %v7136
      %v7454 = vunpack.c.l.b16 %v7137
      %v7455 = vunpack.c.h.b16 %v7137
      %v7456 = vunpack.c.l.b16 %v7138
      %v7457 = vunpack.c.h.b16 %v7138
      %v7458 = vunpack.c.l.b16 %v7139
      %v7459 = vunpack.c.h.b16 %v7139
      %v7460 = vunpack.c.l.b16 %v7140
      %v7461 = vunpack.c.h.b16 %v7140
      %v7462 = vunpack.c.l.b16 %v7141
      %v7463 = vunpack.c.h.b16 %v7141
      %v7464 = vunpack.c.l.b16 %v7142
      %v7465 = vunpack.c.h.b16 %v7142
      %v7466 = vunpack.c.l.b16 %v7143
      %v7467 = vunpack.c.h.b16 %v7143
      %v7468 = vunpack.c.l.b16 %v7144
      %v7469 = vunpack.c.h.b16 %v7144
      %v7470 = vunpack.c.l.b16 %v7145
      %v7471 = vunpack.c.h.b16 %v7145
      %v7472 = vunpack.c.l.b16 %v7146
      %v7473 = vunpack.c.h.b16 %v7146
      %v7474 = vunpack.c.l.b16 %v7147
      %v7475 = vunpack.c.h.b16 %v7147
      %v7476 = vunpack.c.l.b16 %v7148
      %v7477 = vunpack.c.h.b16 %v7148
      %v7478 = vunpack.c.l.b16 %v7149
      %v7479 = vunpack.c.h.b16 %v7149
      %v7480 = vunpack.c.l.b16 %v7150
      %v7481 = vunpack.c.h.b16 %v7150
      %v7482 = vunpack.c.l.b16 %v7151
      %v7483 = vunpack.c.h.b16 %v7151
      %v7484 = vunpack.c.l.b16 %v7152
      %v7485 = vunpack.c.h.b16 %v7152
      %v7486 = vunpack.c.l.b16 %v7153
      %v7487 = vunpack.c.h.b16 %v7153
      %v7488 = vunpack.c.l.b16 %v7154
      %v7489 = vunpack.c.h.b16 %v7154
      %v7490 = vunpack.c.l.b16 %v7155
      %v7491 = vunpack.c.h.b16 %v7155
      %v7492 = vunpack.c.l.b16 %v7156
      %v7493 = vunpack.c.h.b16 %v7156
      %v7494 = vunpack.c.l.b16 %v7157
      %v7495 = vunpack.c.h.b16 %v7157
      %v7496 = vunpack.c.l.b16 %v7158
      %v7497 = vunpack.c.h.b16 %v7158
      %v7498 = vunpack.c.l.b16 %v7159
      %v7499 = vunpack.c.h.b16 %v7159
      %v7500 = vunpack.c.l.b16 %v7160
      %v7501 = vunpack.c.h.b16 %v7160
      %v7502 = vunpack.c.l.b16 %v7161
      %v7503 = vunpack.c.h.b16 %v7161
      %v7504 = vunpack.c.l.b16 %v7162
      %v7505 = vunpack.c.h.b16 %v7162
      %v7506 = vunpack.c.l.b16 %v7163
      %v7507 = vunpack.c.h.b16 %v7163
      %v7508 = vunpack.c.l.b16 %v7164
      %v7509 = vunpack.c.h.b16 %v7164
      %v7510 = vunpack.c.l.b16 %v7165
      %v7511 = vunpack.c.h.b16 %v7165
      %v7512 = vunpack.c.l.b16 %v7166
      %v7513 = vunpack.c.h.b16 %v7166
      %v7514 = vunpack.c.l.b16 %v7167
      %v7515 = vunpack.c.h.b16 %v7167
      %v7516 = vunpack.c.l.b16 %v7168
      %v7517 = vunpack.c.h.b16 %v7168
      %v7518 = vunpack.c.l.b16 %v7169
      %v7519 = vunpack.c.h.b16 %v7169
      %v7520 = vunpack.c.l.b16 %v7170
      %v7521 = vunpack.c.h.b16 %v7170
      %v7522 = vunpack.c.l.b16 %v7171
      %v7523 = vunpack.c.h.b16 %v7171
      %v7524 = vunpack.c.l.b16 %v7172
      %v7525 = vunpack.c.h.b16 %v7172
      %v7526 = vunpack.c.l.b16 %v7173
      %v7527 = vunpack.c.h.b16 %v7173
      %v7528 = vunpack.c.l.b16 %v7174
      %v7529 = vunpack.c.h.b16 %v7174
      %v7530 = vunpack.c.l.b16 %v7175
      %v7531 = vunpack.c.h.b16 %v7175
      %v7532 = vunpack.c.l.b16 %v7176
      %v7533 = vunpack.c.h.b16 %v7176
      %v7534 = vunpack.c.l.b16 %v7177
      %v7535 = vunpack.c.h.b16 %v7177
      %v7536 = vunpack.c.l.b16 %v7178
      %v7537 = vunpack.c.h.b16 %v7178
      %v7538 = vunpack.c.l.b16 %v7179
      %v7539 = vunpack.c.h.b16 %v7179
      %v7540 = vunpack.c.l.b16 %v7180
      %v7541 = vunpack.c.h.b16 %v7180
      %v7542 = vunpack.c.l.b16 %v7181
      %v7543 = vunpack.c.h.b16 %v7181
      %v7544 = vunpack.c.l.b16 %v7182
      %v7545 = vunpack.c.h.b16 %v7182
      %v7546 = vunpack.c.l.b16 %v7183
      %v7547 = vunpack.c.h.b16 %v7183
      %v7548 = vunpack.c.l.b16 %v7184
      %v7549 = vunpack.c.h.b16 %v7184
      %v7550 = vunpack.c.l.b16 %v7185
      %v7551 = vunpack.c.h.b16 %v7185
      %v7552 = vunpack.c.l.b16 %v7186
      %v7553 = vunpack.c.h.b16 %v7186
      %v7554 = vunpack.c.l.b16 %v7187
      %v7555 = vunpack.c.h.b16 %v7187
      %v7556 = vunpack.c.l.b16 %v7188
      %v7557 = vunpack.c.h.b16 %v7188
      %v7558 = vunpack.c.l.b16 %v7189
      %v7559 = vunpack.c.h.b16 %v7189
      %v7560 = vunpack.c.l.b16 %v7190
      %v7561 = vunpack.c.h.b16 %v7190
      %v7562 = vunpack.c.l.b16 %v7191
      %v7563 = vunpack.c.h.b16 %v7191
      %v7564 = vunpack.c.l.b16 %v7192
      %v7565 = vunpack.c.h.b16 %v7192
      %v7566 = vunpack.c.l.b16 %v7193
      %v7567 = vunpack.c.h.b16 %v7193
      %v7568 = vunpack.c.l.b16 %v7194
      %v7569 = vunpack.c.h.b16 %v7194
      %v7570 = vunpack.c.l.b16 %v7195
      %v7571 = vunpack.c.h.b16 %v7195
      %v7572 = vunpack.c.l.b16 %v7196
      %v7573 = vunpack.c.h.b16 %v7196
      %v7574 = vunpack.c.l.b16 %v7197
      %v7575 = vunpack.c.h.b16 %v7197
      %v7576 = vunpack.c.l.b16 %v7198
      %v7577 = vunpack.c.h.b16 %v7198
      %v7578 = vunpack.c.l.b16 %v7199
      %v7579 = vunpack.c.h.b16 %v7199
      %v7580 = vunpack.c.l.b16 %v7200
      %v7581 = vunpack.c.h.b16 %v7200
      %v7582 = vunpack.c.l.b16 %v7201
      %v7583 = vunpack.c.h.b16 %v7201
      %v7584 = vunpack.c.l.b16 %v7202
      %v7585 = vunpack.c.h.b16 %v7202
      %v7586 = vunpack.c.l.b16 %v7203
      %v7587 = vunpack.c.h.b16 %v7203
      %v7588 = vpack.c.b16 %v7336, %v7332
      %v7589 = vpack.c.b16 %v7337, %v7333
      %v7590 = vpack.c.b16 %v7338, %v7334
      %v7591 = vpack.c.b16 %v7339, %v7335
      %v7592 = vpack.c.b16 %v7344, %v7340
      %v7593 = vpack.c.b16 %v7345, %v7341
      %v7594 = vpack.c.b16 %v7346, %v7342
      %v7595 = vpack.c.b16 %v7347, %v7343
      %v7596 = vpack.c.b16 %v7352, %v7348
      %v7597 = vpack.c.b16 %v7353, %v7349
      %v7598 = vpack.c.b16 %v7354, %v7350
      %v7599 = vpack.c.b16 %v7355, %v7351
      %v7600 = vpack.c.b16 %v7360, %v7356
      %v7601 = vpack.c.b16 %v7361, %v7357
      %v7602 = vpack.c.b16 %v7362, %v7358
      %v7603 = vpack.c.b16 %v7363, %v7359
      %v7604 = vpack.c.b16 %v7368, %v7364
      %v7605 = vpack.c.b16 %v7369, %v7365
      %v7606 = vpack.c.b16 %v7370, %v7366
      %v7607 = vpack.c.b16 %v7371, %v7367
      %v7608 = vpack.c.b16 %v7376, %v7372
      %v7609 = vpack.c.b16 %v7377, %v7373
      %v7610 = vpack.c.b16 %v7378, %v7374
      %v7611 = vpack.c.b16 %v7379, %v7375
      %v7612 = vpack.c.b16 %v7384, %v7380
      %v7613 = vpack.c.b16 %v7385, %v7381
      %v7614 = vpack.c.b16 %v7386, %v7382
      %v7615 = vpack.c.b16 %v7387, %v7383
      %v7616 = vpack.c.b16 %v7392, %v7388
      %v7617 = vpack.c.b16 %v7393, %v7389
      %v7618 = vpack.c.b16 %v7394, %v7390
      %v7619 = vpack.c.b16 %v7395, %v7391
      %v7620 = vpack.c.b16 %v7400, %v7396
      %v7621 = vpack.c.b16 %v7401, %v7397
      %v7622 = vpack.c.b16 %v7402, %v7398
      %v7623 = vpack.c.b16 %v7403, %v7399
      %v7624 = vpack.c.b16 %v7408, %v7404
      %v7625 = vpack.c.b16 %v7409, %v7405
      %v7626 = vpack.c.b16 %v7410, %v7406
      %v7627 = vpack.c.b16 %v7411, %v7407
      %v7628 = vpack.c.b16 %v7416, %v7412
      %v7629 = vpack.c.b16 %v7417, %v7413
      %v7630 = vpack.c.b16 %v7418, %v7414
      %v7631 = vpack.c.b16 %v7419, %v7415
      %v7632 = vpack.c.b16 %v7424, %v7420
      %v7633 = vpack.c.b16 %v7425, %v7421
      %v7634 = vpack.c.b16 %v7426, %v7422
      %v7635 = vpack.c.b16 %v7427, %v7423
      %v7636 = vpack.c.b16 %v7432, %v7428
      %v7637 = vpack.c.b16 %v7433, %v7429
      %v7638 = vpack.c.b16 %v7434, %v7430
      %v7639 = vpack.c.b16 %v7435, %v7431
      %v7640 = vpack.c.b16 %v7440, %v7436
      %v7641 = vpack.c.b16 %v7441, %v7437
      %v7642 = vpack.c.b16 %v7442, %v7438
      %v7643 = vpack.c.b16 %v7443, %v7439
      %v7644 = vpack.c.b16 %v7448, %v7444
      %v7645 = vpack.c.b16 %v7449, %v7445
      %v7646 = vpack.c.b16 %v7450, %v7446
      %v7647 = vpack.c.b16 %v7451, %v7447
      %v7648 = vpack.c.b16 %v7456, %v7452
      %v7649 = vpack.c.b16 %v7457, %v7453
      %v7650 = vpack.c.b16 %v7458, %v7454
      %v7651 = vpack.c.b16 %v7459, %v7455
      %v7652 = vpack.c.b16 %v7464, %v7460
      %v7653 = vpack.c.b16 %v7465, %v7461
      %v7654 = vpack.c.b16 %v7466, %v7462
      %v7655 = vpack.c.b16 %v7467, %v7463
      %v7656 = vpack.c.b16 %v7472, %v7468
      %v7657 = vpack.c.b16 %v7473, %v7469
      %v7658 = vpack.c.b16 %v7474, %v7470
      %v7659 = vpack.c.b16 %v7475, %v7471
      %v7660 = vpack.c.b16 %v7480, %v7476
      %v7661 = vpack.c.b16 %v7481, %v7477
      %v7662 = vpack.c.b16 %v7482, %v7478
      %v7663 = vpack.c.b16 %v7483, %v7479
      %v7664 = vpack.c.b16 %v7488, %v7484
      %v7665 = vpack.c.b16 %v7489, %v7485
      %v7666 = vpack.c.b16 %v7490, %v7486
      %v7667 = vpack.c.b16 %v7491, %v7487
      %v7668 = vpack.c.b16 %v7496, %v7492
      %v7669 = vpack.c.b16 %v7497, %v7493
      %v7670 = vpack.c.b16 %v7498, %v7494
      %v7671 = vpack.c.b16 %v7499, %v7495
      %v7672 = vpack.c.b16 %v7504, %v7500
      %v7673 = vpack.c.b16 %v7505, %v7501
      %v7674 = vpack.c.b16 %v7506, %v7502
      %v7675 = vpack.c.b16 %v7507, %v7503
      %v7676 = vpack.c.b16 %v7512, %v7508
      %v7677 = vpack.c.b16 %v7513, %v7509
      %v7678 = vpack.c.b16 %v7514, %v7510
      %v7679 = vpack.c.b16 %v7515, %v7511
      %v7680 = vpack.c.b16 %v7520, %v7516
      %v7681 = vpack.c.b16 %v7521, %v7517
      %v7682 = vpack.c.b16 %v7522, %v7518
      %v7683 = vpack.c.b16 %v7523, %v7519
      %v7684 = vpack.c.b16 %v7528, %v7524
      %v7685 = vpack.c.b16 %v7529, %v7525
      %v7686 = vpack.c.b16 %v7530, %v7526
      %v7687 = vpack.c.b16 %v7531, %v7527
      %v7688 = vpack.c.b16 %v7536, %v7532
      %v7689 = vpack.c.b16 %v7537, %v7533
      %v7690 = vpack.c.b16 %v7538, %v7534
      %v7691 = vpack.c.b16 %v7539, %v7535
      %v7692 = vpack.c.b16 %v7544, %v7540
      %v7693 = vpack.c.b16 %v7545, %v7541
      %v7694 = vpack.c.b16 %v7546, %v7542
      %v7695 = vpack.c.b16 %v7547, %v7543
      %v7696 = vpack.c.b16 %v7552, %v7548
      %v7697 = vpack.c.b16 %v7553, %v7549
      %v7698 = vpack.c.b16 %v7554, %v7550
      %v7699 = vpack.c.b16 %v7555, %v7551
      %v7700 = vpack.c.b16 %v7560, %v7556
      %v7701 = vpack.c.b16 %v7561, %v7557
      %v7702 = vpack.c.b16 %v7562, %v7558
      %v7703 = vpack.c.b16 %v7563, %v7559
      %v7704 = vpack.c.b16 %v7568, %v7564
      %v7705 = vpack.c.b16 %v7569, %v7565
      %v7706 = vpack.c.b16 %v7570, %v7566
      %v7707 = vpack.c.b16 %v7571, %v7567
      %v7708 = vpack.c.b16 %v7576, %v7572
      %v7709 = vpack.c.b16 %v7577, %v7573
      %v7710 = vpack.c.b16 %v7578, %v7574
      %v7711 = vpack.c.b16 %v7579, %v7575
      %v7712 = vpack.c.b16 %v7584, %v7580
      %v7713 = vpack.c.b16 %v7585, %v7581
      %v7714 = vpack.c.b16 %v7586, %v7582
      %v7715 = vpack.c.b16 %v7587, %v7583
      %7844 = vmatpush.bf16.msra.mxu0 %v7616
      %7845 = vmatpush.bf16.msra.mxu0 %v7612
      %7846 = vmatpush.bf16.msra.mxu0 %v7608
      %7847 = vmatpush.bf16.msra.mxu0 %v7604
      %7848 = vmatpush.bf16.msra.mxu0 %v7600
      %7849 = vmatpush.bf16.msra.mxu0 %v7596
      %7850 = vmatpush.bf16.msra.mxu0 %v7592
      %7851 = vmatpush.bf16.msra.mxu0 %v7588
      %7852 = vmatmul.bf16.gmra.mxu0 %v5088
      %v7853 = vpop.f32.mrf.mxu0
      %v7854 = vadd.f32 0.0, %v7853
      %v7855 = vpop.f32.mrf.mxu0
      %v7856 = vadd.f32 0.0, %v7855
      %7857 = vdwg.mxu0
      %7858 = vmatpush.bf16.msra.mxu0 %v7648
      %7859 = vmatpush.bf16.msra.mxu0 %v7644
      %7860 = vmatpush.bf16.msra.mxu0 %v7640
      %7861 = vmatpush.bf16.msra.mxu0 %v7636
      %7862 = vmatpush.bf16.msra.mxu0 %v7632
      %7863 = vmatpush.bf16.msra.mxu0 %v7628
      %7864 = vmatpush.bf16.msra.mxu0 %v7624
      %7865 = vmatpush.bf16.msra.mxu0 %v7620
      %7866 = vmatmul.bf16.gmra.mxu0 %v5089
      %v7867 = vpop.f32.mrf.mxu0
      %v7868 = vadd.f32 %v7854, %v7867
      %v7869 = vpop.f32.mrf.mxu0
      %v7870 = vadd.f32 %v7856, %v7869
      %7871 = vdwg.mxu0
      %7872 = vmatpush.bf16.msra.mxu0 %v7680
      %7873 = vmatpush.bf16.msra.mxu0 %v7676
      %7874 = vmatpush.bf16.msra.mxu0 %v7672
      %7875 = vmatpush.bf16.msra.mxu0 %v7668
      %7876 = vmatpush.bf16.msra.mxu0 %v7664
      %7877 = vmatpush.bf16.msra.mxu0 %v7660
      %7878 = vmatpush.bf16.msra.mxu0 %v7656
      %7879 = vmatpush.bf16.msra.mxu0 %v7652
      %7880 = vmatmul.bf16.gmra.mxu0 %v5090
      %v7881 = vpop.f32.mrf.mxu0
      %v7882 = vadd.f32 %v7868, %v7881
      %v7883 = vpop.f32.mrf.mxu0
      %v7884 = vadd.f32 %v7870, %v7883
      %7885 = vdwg.mxu0
      %7886 = vmatpush.bf16.msra.mxu0 %v7712
      %7887 = vmatpush.bf16.msra.mxu0 %v7708
      %7888 = vmatpush.bf16.msra.mxu0 %v7704
      %7889 = vmatpush.bf16.msra.mxu0 %v7700
      %7890 = vmatpush.bf16.msra.mxu0 %v7696
      %7891 = vmatpush.bf16.msra.mxu0 %v7692
      %7892 = vmatpush.bf16.msra.mxu0 %v7688
      %7893 = vmatpush.bf16.msra.mxu0 %v7684
      %7894 = vmatmul.bf16.gmra.mxu0 %v5091
      %v7895 = vpop.f32.mrf.mxu0
      %v7896 = vadd.f32 %v7882, %v7895
      %v7897 = vpop.f32.mrf.mxu0
      %v7898 = vadd.f32 %v7884, %v7897
      %7899 = vdwg.mxu0
      %7900 = vmatpush.bf16.msra.mxu0 %v7617
      %7901 = vmatpush.bf16.msra.mxu0 %v7613
      %7902 = vmatpush.bf16.msra.mxu0 %v7609
      %7903 = vmatpush.bf16.msra.mxu0 %v7605
      %7904 = vmatpush.bf16.msra.mxu0 %v7601
      %7905 = vmatpush.bf16.msra.mxu0 %v7597
      %7906 = vmatpush.bf16.msra.mxu0 %v7593
      %7907 = vmatpush.bf16.msra.mxu0 %v7589
      %7908 = vmatmul.bf16.gmra.mxu0 %v5088
      %v7909 = vpop.f32.mrf.mxu0
      %v7910 = vadd.f32 0.0, %v7909
      %v7911 = vpop.f32.mrf.mxu0
      %v7912 = vadd.f32 0.0, %v7911
      %7913 = vdwg.mxu0
      %7914 = vmatpush.bf16.msra.mxu0 %v7649
      %7915 = vmatpush.bf16.msra.mxu0 %v7645
      %7916 = vmatpush.bf16.msra.mxu0 %v7641
      %7917 = vmatpush.bf16.msra.mxu0 %v7637
      %7918 = vmatpush.bf16.msra.mxu0 %v7633
      %7919 = vmatpush.bf16.msra.mxu0 %v7629
      %7920 = vmatpush.bf16.msra.mxu0 %v7625
      %7921 = vmatpush.bf16.msra.mxu0 %v7621
      %7922 = vmatmul.bf16.gmra.mxu0 %v5089
      %v7923 = vpop.f32.mrf.mxu0
      %v7924 = vadd.f32 %v7910, %v7923
      %v7925 = vpop.f32.mrf.mxu0
      %v7926 = vadd.f32 %v7912, %v7925
      %7927 = vdwg.mxu0
      %7928 = vmatpush.bf16.msra.mxu0 %v7681
      %7929 = vmatpush.bf16.msra.mxu0 %v7677
      %7930 = vmatpush.bf16.msra.mxu0 %v7673
      %7931 = vmatpush.bf16.msra.mxu0 %v7669
      %7932 = vmatpush.bf16.msra.mxu0 %v7665
      %7933 = vmatpush.bf16.msra.mxu0 %v7661
      %7934 = vmatpush.bf16.msra.mxu0 %v7657
      %7935 = vmatpush.bf16.msra.mxu0 %v7653
      %7936 = vmatmul.bf16.gmra.mxu0 %v5090
      %v7937 = vpop.f32.mrf.mxu0
      %v7938 = vadd.f32 %v7924, %v7937
      %v7939 = vpop.f32.mrf.mxu0
      %v7940 = vadd.f32 %v7926, %v7939
      %7941 = vdwg.mxu0
      %7942 = vmatpush.bf16.msra.mxu0 %v7713
      %7943 = vmatpush.bf16.msra.mxu0 %v7709
      %7944 = vmatpush.bf16.msra.mxu0 %v7705
      %7945 = vmatpush.bf16.msra.mxu0 %v7701
      %7946 = vmatpush.bf16.msra.mxu0 %v7697
      %7947 = vmatpush.bf16.msra.mxu0 %v7693
      %7948 = vmatpush.bf16.msra.mxu0 %v7689
      %7949 = vmatpush.bf16.msra.mxu0 %v7685
      %7950 = vmatmul.bf16.gmra.mxu0 %v5091
      %v7951 = vpop.f32.mrf.mxu0
      %v7952 = vadd.f32 %v7938, %v7951
      %v7953 = vpop.f32.mrf.mxu0
      %v7954 = vadd.f32 %v7940, %v7953
      %7955 = vdwg.mxu0
      %7956 = vmatpush.bf16.msra.mxu0 %v7618
      %7957 = vmatpush.bf16.msra.mxu0 %v7614
      %7958 = vmatpush.bf16.msra.mxu0 %v7610
      %7959 = vmatpush.bf16.msra.mxu0 %v7606
      %7960 = vmatpush.bf16.msra.mxu0 %v7602
      %7961 = vmatpush.bf16.msra.mxu0 %v7598
      %7962 = vmatpush.bf16.msra.mxu0 %v7594
      %7963 = vmatpush.bf16.msra.mxu0 %v7590
      %7964 = vmatmul.bf16.gmra.mxu0 %v5088
      %v7965 = vpop.f32.mrf.mxu0
      %v7966 = vadd.f32 0.0, %v7965
      %v7967 = vpop.f32.mrf.mxu0
      %v7968 = vadd.f32 0.0, %v7967
      %7969 = vdwg.mxu0
      %7970 = vmatpush.bf16.msra.mxu0 %v7650
      %7971 = vmatpush.bf16.msra.mxu0 %v7646
      %7972 = vmatpush.bf16.msra.mxu0 %v7642
      %7973 = vmatpush.bf16.msra.mxu0 %v7638
      %7974 = vmatpush.bf16.msra.mxu0 %v7634
      %7975 = vmatpush.bf16.msra.mxu0 %v7630
      %7976 = vmatpush.bf16.msra.mxu0 %v7626
      %7977 = vmatpush.bf16.msra.mxu0 %v7622
      %7978 = vmatmul.bf16.gmra.mxu0 %v5089
      %v7979 = vpop.f32.mrf.mxu0
      %v7980 = vadd.f32 %v7966, %v7979
      %v7981 = vpop.f32.mrf.mxu0
      %v7982 = vadd.f32 %v7968, %v7981
      %7983 = vdwg.mxu0
      %7984 = vmatpush.bf16.msra.mxu0 %v7682
      %7985 = vmatpush.bf16.msra.mxu0 %v7678
      %7986 = vmatpush.bf16.msra.mxu0 %v7674
      %7987 = vmatpush.bf16.msra.mxu0 %v7670
      %7988 = vmatpush.bf16.msra.mxu0 %v7666
      %7989 = vmatpush.bf16.msra.mxu0 %v7662
      %7990 = vmatpush.bf16.msra.mxu0 %v7658
      %7991 = vmatpush.bf16.msra.mxu0 %v7654
      %7992 = vmatmul.bf16.gmra.mxu0 %v5090
      %v7993 = vpop.f32.mrf.mxu0
      %v7994 = vadd.f32 %v7980, %v7993
      %v7995 = vpop.f32.mrf.mxu0
      %v7996 = vadd.f32 %v7982, %v7995
      %7997 = vdwg.mxu0
      %7998 = vmatpush.bf16.msra.mxu0 %v7714
      %7999 = vmatpush.bf16.msra.mxu0 %v7710
      %8000 = vmatpush.bf16.msra.mxu0 %v7706
      %8001 = vmatpush.bf16.msra.mxu0 %v7702
      %8002 = vmatpush.bf16.msra.mxu0 %v7698
      %8003 = vmatpush.bf16.msra.mxu0 %v7694
      %8004 = vmatpush.bf16.msra.mxu0 %v7690
      %8005 = vmatpush.bf16.msra.mxu0 %v7686
      %8006 = vmatmul.bf16.gmra.mxu0 %v5091
      %v8007 = vpop.f32.mrf.mxu0
      %v8008 = vadd.f32 %v7994, %v8007
      %v8009 = vpop.f32.mrf.mxu0
      %v8010 = vadd.f32 %v7996, %v8009
      %8011 = vdwg.mxu0
      %8012 = vmatpush.bf16.msra.mxu0 %v7619
      %8013 = vmatpush.bf16.msra.mxu0 %v7615
      %8014 = vmatpush.bf16.msra.mxu0 %v7611
      %8015 = vmatpush.bf16.msra.mxu0 %v7607
      %8016 = vmatpush.bf16.msra.mxu0 %v7603
      %8017 = vmatpush.bf16.msra.mxu0 %v7599
      %8018 = vmatpush.bf16.msra.mxu0 %v7595
      %8019 = vmatpush.bf16.msra.mxu0 %v7591
      %8020 = vmatmul.bf16.gmra.mxu0 %v5088
      %v8021 = vpop.f32.mrf.mxu0
      %v8022 = vadd.f32 0.0, %v8021
      %v8023 = vpop.f32.mrf.mxu0
      %v8024 = vadd.f32 0.0, %v8023
      %8025 = vdwg.mxu0
      %8026 = vmatpush.bf16.msra.mxu0 %v7651
      %8027 = vmatpush.bf16.msra.mxu0 %v7647
      %8028 = vmatpush.bf16.msra.mxu0 %v7643
      %8029 = vmatpush.bf16.msra.mxu0 %v7639
      %8030 = vmatpush.bf16.msra.mxu0 %v7635
      %8031 = vmatpush.bf16.msra.mxu0 %v7631
      %8032 = vmatpush.bf16.msra.mxu0 %v7627
      %8033 = vmatpush.bf16.msra.mxu0 %v7623
      %8034 = vmatmul.bf16.gmra.mxu0 %v5089
      %v8035 = vpop.f32.mrf.mxu0
      %v8036 = vadd.f32 %v8022, %v8035
      %v8037 = vpop.f32.mrf.mxu0
      %v8038 = vadd.f32 %v8024, %v8037
      %8039 = vdwg.mxu0
      %8040 = vmatpush.bf16.msra.mxu0 %v7683
      %8041 = vmatpush.bf16.msra.mxu0 %v7679
      %8042 = vmatpush.bf16.msra.mxu0 %v7675
      %8043 = vmatpush.bf16.msra.mxu0 %v7671
      %8044 = vmatpush.bf16.msra.mxu0 %v7667
      %8045 = vmatpush.bf16.msra.mxu0 %v7663
      %8046 = vmatpush.bf16.msra.mxu0 %v7659
      %8047 = vmatpush.bf16.msra.mxu0 %v7655
      %8048 = vmatmul.bf16.gmra.mxu0 %v5090
      %v8049 = vpop.f32.mrf.mxu0
      %v8050 = vadd.f32 %v8036, %v8049
      %v8051 = vpop.f32.mrf.mxu0
      %v8052 = vadd.f32 %v8038, %v8051
      %8053 = vdwg.mxu0
      %8054 = vmatpush.bf16.msra.mxu0 %v7715
      %8055 = vmatpush.bf16.msra.mxu0 %v7711
      %8056 = vmatpush.bf16.msra.mxu0 %v7707
      %8057 = vmatpush.bf16.msra.mxu0 %v7703
      %8058 = vmatpush.bf16.msra.mxu0 %v7699
      %8059 = vmatpush.bf16.msra.mxu0 %v7695
      %8060 = vmatpush.bf16.msra.mxu0 %v7691
      %8061 = vmatpush.bf16.msra.mxu0 %v7687
      %8062 = vmatmul.bf16.gmra.mxu0 %v5091
      %v8063 = vpop.f32.mrf.mxu0
      %v8064 = vadd.f32 %v8050, %v8063
      %v8065 = vpop.f32.mrf.mxu0
      %v8066 = vadd.f32 %v8052, %v8065
      %8067 = vdwg.mxu0
      %v8068 = vadd.f32 %v6904, %v7896
      %v8069 = vadd.f32 %v6960, %v7952
      %v8070 = vadd.f32 %v7016, %v8008
      %v8071 = vadd.f32 %v7072, %v8064
      %v8072 = vadd.f32 %v6906, %v7898
      %v8073 = vadd.f32 %v6962, %v7954
      %v8074 = vadd.f32 %v7018, %v8010
      %v8075 = vadd.f32 %v7074, %v8066
      %v8076 = vld [vmem:[%s12] sm:$0xf]
      %v8078 = vperm.slane %v8076, 0
      %v8079 = vperm.slane %v8076, 1
      %v8080 = vperm.slane %v8076, 2
      %v8081 = vperm.slane %v8076, 3
      %v8086 = vadd.f32 %v8068, %v8078
      %v8087 = vadd.f32 %v8069, %v8079
      %v8088 = vadd.f32 %v8070, %v8080
      %v8089 = vadd.f32 %v8071, %v8081
      %v8090 = vadd.f32 %v8072, %v8078
      %v8091 = vadd.f32 %v8073, %v8079
      %v8092 = vadd.f32 %v8074, %v8080
      %v8093 = vadd.f32 %v8075, %v8081
      %v8094 = vmax.f32 %v8086, 0.0
      %v8095 = vmax.f32 %v8087, 0.0
      %v8096 = vmax.f32 %v8088, 0.0
      %v8097 = vmax.f32 %v8089, 0.0
      %v8098 = vmax.f32 %v8090, 0.0
      %v8099 = vmax.f32 %v8091, 0.0
      %v8100 = vmax.f32 %v8092, 0.0
      %v8101 = vmax.f32 %v8093, 0.0
      %v8102 = vpack.c.bf16 %v8098, %v8094
      %v8103 = vpack.c.bf16 %v8099, %v8095
      %v8104 = vpack.c.bf16 %v8100, %v8096
      %v8105 = vpack.c.bf16 %v8101, %v8097
      %v8106 = vld [vmem:[#allocation23] sm:$0xf]
      %v8107 = vld [vmem:[#allocation23 + $0x4] sm:$0xf]
      %v8108 = vld [vmem:[#allocation23 + $0x8] sm:$0xf]
      %v8109 = vld [vmem:[#allocation23 + $0xc] sm:$0xf]
      %v8110 = vld [vmem:[#allocation23 + $0x10] sm:$0xf]
      %v8111 = vld [vmem:[#allocation23 + $0x14] sm:$0xf]
      %v8112 = vld [vmem:[#allocation23 + $0x18] sm:$0xf]
      %v8113 = vld [vmem:[#allocation23 + $0x1c] sm:$0xf]
      %v8114 = vld [vmem:[#allocation23 + $0x20] sm:$0xf]
      %v8115 = vld [vmem:[#allocation23 + $0x24] sm:$0xf]
      %v8116 = vld [vmem:[#allocation23 + $0x28] sm:$0xf]
      %v8117 = vld [vmem:[#allocation23 + $0x2c] sm:$0xf]
      %v8118 = vld [vmem:[#allocation23 + $0x30] sm:$0xf]
      %v8119 = vld [vmem:[#allocation23 + $0x34] sm:$0xf]
      %v8120 = vld [vmem:[#allocation23 + $0x38] sm:$0xf]
      %v8121 = vld [vmem:[#allocation23 + $0x3c] sm:$0xf]
      %v8122 = vld [vmem:[#allocation23 + $0x40] sm:$0xf]
      %v8123 = vld [vmem:[#allocation23 + $0x44] sm:$0xf]
      %v8124 = vld [vmem:[#allocation23 + $0x48] sm:$0xf]
      %v8125 = vld [vmem:[#allocation23 + $0x4c] sm:$0xf]
      %v8126 = vld [vmem:[#allocation23 + $0x50] sm:$0xf]
      %v8127 = vld [vmem:[#allocation23 + $0x54] sm:$0xf]
      %v8128 = vld [vmem:[#allocation23 + $0x58] sm:$0xf]
      %v8129 = vld [vmem:[#allocation23 + $0x5c] sm:$0xf]
      %v8130 = vld [vmem:[#allocation23 + $0x60] sm:$0xf]
      %v8131 = vld [vmem:[#allocation23 + $0x64] sm:$0xf]
      %v8132 = vld [vmem:[#allocation23 + $0x68] sm:$0xf]
      %v8133 = vld [vmem:[#allocation23 + $0x6c] sm:$0xf]
      %v8134 = vld [vmem:[#allocation23 + $0x70] sm:$0xf]
      %v8135 = vld [vmem:[#allocation23 + $0x74] sm:$0xf]
      %v8136 = vld [vmem:[#allocation23 + $0x78] sm:$0xf]
      %v8137 = vld [vmem:[#allocation23 + $0x7c] sm:$0xf]
      %v8138 = vld [vmem:[#allocation23 + $0x80] sm:$0xf]
      %v8139 = vld [vmem:[#allocation23 + $0x84] sm:$0xf]
      %v8140 = vld [vmem:[#allocation23 + $0x88] sm:$0xf]
      %v8141 = vld [vmem:[#allocation23 + $0x8c] sm:$0xf]
      %v8142 = vld [vmem:[#allocation23 + $0x90] sm:$0xf]
      %v8143 = vld [vmem:[#allocation23 + $0x94] sm:$0xf]
      %v8144 = vld [vmem:[#allocation23 + $0x98] sm:$0xf]
      %v8145 = vld [vmem:[#allocation23 + $0x9c] sm:$0xf]
      %v8146 = vld [vmem:[#allocation23 + $0xa0] sm:$0xf]
      %v8147 = vld [vmem:[#allocation23 + $0xa4] sm:$0xf]
      %v8148 = vld [vmem:[#allocation23 + $0xa8] sm:$0xf]
      %v8149 = vld [vmem:[#allocation23 + $0xac] sm:$0xf]
      %v8150 = vld [vmem:[#allocation23 + $0xb0] sm:$0xf]
      %v8151 = vld [vmem:[#allocation23 + $0xb4] sm:$0xf]
      %v8152 = vld [vmem:[#allocation23 + $0xb8] sm:$0xf]
      %v8153 = vld [vmem:[#allocation23 + $0xbc] sm:$0xf]
      %v8154 = vld [vmem:[#allocation23 + $0xc0] sm:$0xf]
      %v8155 = vld [vmem:[#allocation23 + $0xc4] sm:$0xf]
      %v8156 = vld [vmem:[#allocation23 + $0xc8] sm:$0xf]
      %v8157 = vld [vmem:[#allocation23 + $0xcc] sm:$0xf]
      %v8158 = vld [vmem:[#allocation23 + $0xd0] sm:$0xf]
      %v8159 = vld [vmem:[#allocation23 + $0xd4] sm:$0xf]
      %v8160 = vld [vmem:[#allocation23 + $0xd8] sm:$0xf]
      %v8161 = vld [vmem:[#allocation23 + $0xdc] sm:$0xf]
      %v8162 = vld [vmem:[#allocation23 + $0xe0] sm:$0xf]
      %v8163 = vld [vmem:[#allocation23 + $0xe4] sm:$0xf]
      %v8164 = vld [vmem:[#allocation23 + $0xe8] sm:$0xf]
      %v8165 = vld [vmem:[#allocation23 + $0xec] sm:$0xf]
      %v8166 = vld [vmem:[#allocation23 + $0xf0] sm:$0xf]
      %v8167 = vld [vmem:[#allocation23 + $0xf4] sm:$0xf]
      %v8168 = vld [vmem:[#allocation23 + $0xf8] sm:$0xf]
      %v8169 = vld [vmem:[#allocation23 + $0xfc] sm:$0xf]
      %v8170 = vld [vmem:[%s14] sm:$0x1]
      %v8172 = vperm.slane %v8170, 0
      %v8238 = vunpack.c.l.b16 %v8106
      %v8239 = vunpack.c.l.b16 %v8107
      %v8240 = vunpack.c.l.b16 %v8108
      %v8241 = vunpack.c.l.b16 %v8109
      %v8242 = vunpack.c.l.b16 %v8110
      %v8243 = vunpack.c.l.b16 %v8111
      %v8244 = vunpack.c.l.b16 %v8112
      %v8245 = vunpack.c.l.b16 %v8113
      %v8246 = vunpack.c.l.b16 %v8114
      %v8247 = vunpack.c.l.b16 %v8115
      %v8248 = vunpack.c.l.b16 %v8116
      %v8249 = vunpack.c.l.b16 %v8117
      %v8250 = vunpack.c.l.b16 %v8118
      %v8251 = vunpack.c.l.b16 %v8119
      %v8252 = vunpack.c.l.b16 %v8120
      %v8253 = vunpack.c.l.b16 %v8121
      %v8254 = vunpack.c.l.b16 %v8122
      %v8255 = vunpack.c.l.b16 %v8123
      %v8256 = vunpack.c.l.b16 %v8124
      %v8257 = vunpack.c.l.b16 %v8125
      %v8258 = vunpack.c.l.b16 %v8126
      %v8259 = vunpack.c.l.b16 %v8127
      %v8260 = vunpack.c.l.b16 %v8128
      %v8261 = vunpack.c.l.b16 %v8129
      %v8262 = vunpack.c.l.b16 %v8130
      %v8263 = vunpack.c.l.b16 %v8131
      %v8264 = vunpack.c.l.b16 %v8132
      %v8265 = vunpack.c.l.b16 %v8133
      %v8266 = vunpack.c.l.b16 %v8134
      %v8267 = vunpack.c.l.b16 %v8135
      %v8268 = vunpack.c.l.b16 %v8136
      %v8269 = vunpack.c.l.b16 %v8137
      %v8270 = vunpack.c.l.b16 %v8138
      %v8271 = vunpack.c.l.b16 %v8139
      %v8272 = vunpack.c.l.b16 %v8140
      %v8273 = vunpack.c.l.b16 %v8141
      %v8274 = vunpack.c.l.b16 %v8142
      %v8275 = vunpack.c.l.b16 %v8143
      %v8276 = vunpack.c.l.b16 %v8144
      %v8277 = vunpack.c.l.b16 %v8145
      %v8278 = vunpack.c.l.b16 %v8146
      %v8279 = vunpack.c.l.b16 %v8147
      %v8280 = vunpack.c.l.b16 %v8148
      %v8281 = vunpack.c.l.b16 %v8149
      %v8282 = vunpack.c.l.b16 %v8150
      %v8283 = vunpack.c.l.b16 %v8151
      %v8284 = vunpack.c.l.b16 %v8152
      %v8285 = vunpack.c.l.b16 %v8153
      %v8286 = vunpack.c.l.b16 %v8154
      %v8287 = vunpack.c.l.b16 %v8155
      %v8288 = vunpack.c.l.b16 %v8156
      %v8289 = vunpack.c.l.b16 %v8157
      %v8290 = vunpack.c.l.b16 %v8158
      %v8291 = vunpack.c.l.b16 %v8159
      %v8292 = vunpack.c.l.b16 %v8160
      %v8293 = vunpack.c.l.b16 %v8161
      %v8294 = vunpack.c.l.b16 %v8162
      %v8295 = vunpack.c.l.b16 %v8163
      %v8296 = vunpack.c.l.b16 %v8164
      %v8297 = vunpack.c.l.b16 %v8165
      %v8298 = vunpack.c.l.b16 %v8166
      %v8299 = vunpack.c.l.b16 %v8167
      %v8300 = vunpack.c.l.b16 %v8168
      %v8301 = vunpack.c.l.b16 %v8169
      %v8302 = vpack.c.b16 %v8239, %v8238
      %v8303 = vpack.c.b16 %v8241, %v8240
      %v8304 = vpack.c.b16 %v8243, %v8242
      %v8305 = vpack.c.b16 %v8245, %v8244
      %v8306 = vpack.c.b16 %v8247, %v8246
      %v8307 = vpack.c.b16 %v8249, %v8248
      %v8308 = vpack.c.b16 %v8251, %v8250
      %v8309 = vpack.c.b16 %v8253, %v8252
      %v8310 = vpack.c.b16 %v8255, %v8254
      %v8311 = vpack.c.b16 %v8257, %v8256
      %v8312 = vpack.c.b16 %v8259, %v8258
      %v8313 = vpack.c.b16 %v8261, %v8260
      %v8314 = vpack.c.b16 %v8263, %v8262
      %v8315 = vpack.c.b16 %v8265, %v8264
      %v8316 = vpack.c.b16 %v8267, %v8266
      %v8317 = vpack.c.b16 %v8269, %v8268
      %v8318 = vpack.c.b16 %v8271, %v8270
      %v8319 = vpack.c.b16 %v8273, %v8272
      %v8320 = vpack.c.b16 %v8275, %v8274
      %v8321 = vpack.c.b16 %v8277, %v8276
      %v8322 = vpack.c.b16 %v8279, %v8278
      %v8323 = vpack.c.b16 %v8281, %v8280
      %v8324 = vpack.c.b16 %v8283, %v8282
      %v8325 = vpack.c.b16 %v8285, %v8284
      %v8326 = vpack.c.b16 %v8287, %v8286
      %v8327 = vpack.c.b16 %v8289, %v8288
      %v8328 = vpack.c.b16 %v8291, %v8290
      %v8329 = vpack.c.b16 %v8293, %v8292
      %v8330 = vpack.c.b16 %v8295, %v8294
      %v8331 = vpack.c.b16 %v8297, %v8296
      %v8332 = vpack.c.b16 %v8299, %v8298
      %v8333 = vpack.c.b16 %v8301, %v8300
      %8366 = vmatpush.bf16.msra.mxu0 %v8309
      %8367 = vmatpush.bf16.msra.mxu0 %v8308
      %8368 = vmatpush.bf16.msra.mxu0 %v8307
      %8369 = vmatpush.bf16.msra.mxu0 %v8306
      %8370 = vmatpush.bf16.msra.mxu0 %v8305
      %8371 = vmatpush.bf16.msra.mxu0 %v8304
      %8372 = vmatpush.bf16.msra.mxu0 %v8303
      %8373 = vmatpush.bf16.msra.mxu0 %v8302
      %8374 = vmatmul.bf16.gmra.mxu0 %v8102
      %v8375 = vpop.f32.mrf.mxu0
      %v8376 = vadd.f32 %v8172, %v8375
      %v8377 = vpop.f32.mrf.mxu0
      %v8378 = vadd.f32 %v8172, %v8377
      %8379 = vdwg.mxu0
      %8380 = vmatpush.bf16.msra.mxu0 %v8317
      %8381 = vmatpush.bf16.msra.mxu0 %v8316
      %8382 = vmatpush.bf16.msra.mxu0 %v8315
      %8383 = vmatpush.bf16.msra.mxu0 %v8314
      %8384 = vmatpush.bf16.msra.mxu0 %v8313
      %8385 = vmatpush.bf16.msra.mxu0 %v8312
      %8386 = vmatpush.bf16.msra.mxu0 %v8311
      %8387 = vmatpush.bf16.msra.mxu0 %v8310
      %8388 = vmatmul.bf16.gmra.mxu0 %v8103
      %v8389 = vpop.f32.mrf.mxu0
      %v8390 = vadd.f32 %v8376, %v8389
      %v8391 = vpop.f32.mrf.mxu0
      %v8392 = vadd.f32 %v8378, %v8391
      %8393 = vdwg.mxu0
      %8394 = vmatpush.bf16.msra.mxu0 %v8325
      %8395 = vmatpush.bf16.msra.mxu0 %v8324
      %8396 = vmatpush.bf16.msra.mxu0 %v8323
      %8397 = vmatpush.bf16.msra.mxu0 %v8322
      %8398 = vmatpush.bf16.msra.mxu0 %v8321
      %8399 = vmatpush.bf16.msra.mxu0 %v8320
      %8400 = vmatpush.bf16.msra.mxu0 %v8319
      %8401 = vmatpush.bf16.msra.mxu0 %v8318
      %8402 = vmatmul.bf16.gmra.mxu0 %v8104
      %v8403 = vpop.f32.mrf.mxu0
      %v8404 = vadd.f32 %v8390, %v8403
      %v8405 = vpop.f32.mrf.mxu0
      %v8406 = vadd.f32 %v8392, %v8405
      %8407 = vdwg.mxu0
      %8408 = vmatpush.bf16.msra.mxu0 %v8333
      %8409 = vmatpush.bf16.msra.mxu0 %v8332
      %8410 = vmatpush.bf16.msra.mxu0 %v8331
      %8411 = vmatpush.bf16.msra.mxu0 %v8330
      %8412 = vmatpush.bf16.msra.mxu0 %v8329
      %8413 = vmatpush.bf16.msra.mxu0 %v8328
      %8414 = vmatpush.bf16.msra.mxu0 %v8327
      %8415 = vmatpush.bf16.msra.mxu0 %v8326
      %8416 = vmatmul.bf16.gmra.mxu0 %v8105
      %v8417 = vpop.f32.mrf.mxu0
      %v8418 = vadd.f32 %v8404, %v8417
      %v8419 = vpop.f32.mrf.mxu0
      %v8420 = vadd.f32 %v8406, %v8419
      %8421 = vdwg.mxu0
      %v8422 = vxor.u32 %v8418, 2147483648
      %v8423 = vxor.u32 %v8420, 2147483648
      %v8424 = vmul.f32 %v8422, 1.442695
      %v8425 = vpow.pop %v8424
      %v8426 = vmul.f32 %v8423, 1.442695
      %v8427 = vpow.pop %v8426
      %v8428 = vadd.f32 %v8425, 1.0
      %v8429 = vadd.f32 %v8427, 1.0
      %v8430 = vrcp.pop %v8428
      %v8431 = vmul.f32 %v8428, %v8430
      %v8432 = vsub.f32 1.0, %v8431
      %v8433 = vmul.f32 %v8430, %v8432
      %v8434 = vadd.f32 %v8430, %v8433
      %vm8435 = vweird.f32 %v8428
      %vm8436 = vweird.f32 %v8430
      %vm8437 = vmor %vm8435, %vm8436
      %v8438 = vsel %vm8437, %v8430, %v8434
      %v8439 = vand.u32 2147483647, %v8428
      %vm8440 = vcmp.eq.f32.partialorder %v8439, 8.507059e+37
      %v8441 = vand.u32 %v8428, 2147483648
      %v8442 = vor.u32 1.1754944e-38, %v8441
      %v8443 = vsel %vm8440, %v8442, %v8438
      %v8444 = vmul.f32 1.0, %v8443
      %v8445 = vrcp.pop %v8429
      %v8446 = vmul.f32 %v8429, %v8445
      %v8447 = vsub.f32 1.0, %v8446
      %v8448 = vmul.f32 %v8445, %v8447
      %v8449 = vadd.f32 %v8445, %v8448
      %vm8450 = vweird.f32 %v8429
      %vm8451 = vweird.f32 %v8445
      %vm8452 = vmor %vm8450, %vm8451
      %v8453 = vsel %vm8452, %v8445, %v8449
      %v8454 = vand.u32 2147483647, %v8429
      %vm8455 = vcmp.eq.f32.partialorder %v8454, 8.507059e+37
      %v8456 = vand.u32 %v8429, 2147483648
      %v8457 = vor.u32 1.1754944e-38, %v8456
      %v8458 = vsel %vm8455, %v8457, %v8453
      %v8459 = vmul.f32 1.0, %v8458
      %v8460 = vpack.c.bf16 %v8459, %v8444
      %v8461 = vld [vmem:[#allocation25] sm:$0xf]
      %v8462 = vld [vmem:[#allocation25 + $0x4] sm:$0xf]
      %v8463 = vld [vmem:[#allocation25 + $0x8] sm:$0xf]
      %v8464 = vld [vmem:[#allocation25 + $0xc] sm:$0xf]
      %v8465 = vld [vmem:[#allocation25 + $0x10] sm:$0xf]
      %v8466 = vld [vmem:[#allocation25 + $0x14] sm:$0xf]
      %v8467 = vld [vmem:[#allocation25 + $0x18] sm:$0xf]
      %v8468 = vld [vmem:[#allocation25 + $0x1c] sm:$0xf]
      %v8469 = vld [vmem:[#allocation25 + $0x20] sm:$0xf]
      %v8470 = vld [vmem:[#allocation25 + $0x24] sm:$0xf]
      %v8471 = vld [vmem:[#allocation25 + $0x28] sm:$0xf]
      %v8472 = vld [vmem:[#allocation25 + $0x2c] sm:$0xf]
      %v8473 = vld [vmem:[#allocation25 + $0x30] sm:$0xf]
      %v8474 = vld [vmem:[#allocation25 + $0x34] sm:$0xf]
      %v8475 = vld [vmem:[#allocation25 + $0x38] sm:$0xf]
      %v8476 = vld [vmem:[#allocation25 + $0x3c] sm:$0xf]
      %v8477 = vld [vmem:[%s16] sm:$0x1]
      %v8479 = vperm.slane %v8477, 0
      %v8497 = vunpack.c.l.b16 %v8461
      %v8498 = vunpack.c.l.b16 %v8462
      %v8499 = vunpack.c.l.b16 %v8463
      %v8500 = vunpack.c.l.b16 %v8464
      %v8501 = vunpack.c.l.b16 %v8465
      %v8502 = vunpack.c.l.b16 %v8466
      %v8503 = vunpack.c.l.b16 %v8467
      %v8504 = vunpack.c.l.b16 %v8468
      %v8505 = vunpack.c.l.b16 %v8469
      %v8506 = vunpack.c.l.b16 %v8470
      %v8507 = vunpack.c.l.b16 %v8471
      %v8508 = vunpack.c.l.b16 %v8472
      %v8509 = vunpack.c.l.b16 %v8473
      %v8510 = vunpack.c.l.b16 %v8474
      %v8511 = vunpack.c.l.b16 %v8475
      %v8512 = vunpack.c.l.b16 %v8476
      %v8513 = vpack.c.b16 %v8498, %v8497
      %v8514 = vpack.c.b16 %v8500, %v8499
      %v8515 = vpack.c.b16 %v8502, %v8501
      %v8516 = vpack.c.b16 %v8504, %v8503
      %v8517 = vpack.c.b16 %v8506, %v8505
      %v8518 = vpack.c.b16 %v8508, %v8507
      %v8519 = vpack.c.b16 %v8510, %v8509
      %v8520 = vpack.c.b16 %v8512, %v8511
      %8529 = vmatpush.bf16.msra.mxu0 %v8520
      %8530 = vmatpush.bf16.msra.mxu0 %v8519
      %8531 = vmatpush.bf16.msra.mxu0 %v8518
      %8532 = vmatpush.bf16.msra.mxu0 %v8517
      %8533 = vmatpush.bf16.msra.mxu0 %v8516
      %8534 = vmatpush.bf16.msra.mxu0 %v8515
      %8535 = vmatpush.bf16.msra.mxu0 %v8514
      %8536 = vmatpush.bf16.msra.mxu0 %v8513
      %8537 = vmatmul.bf16.gmra.mxu0 %v8460
      %v8538 = vpop.f32.mrf.mxu0
      %v8539 = vadd.f32 %v8479, %v8538
      %v8540 = vpop.f32.mrf.mxu0
      %v8541 = vadd.f32 %v8479, %v8540
      %8542 = vdwg.mxu0
      %v8543 = vxor.u32 %v8539, 2147483648
      %v8544 = vxor.u32 %v8541, 2147483648
      %v8545 = vmul.f32 %v8543, 1.442695
      %v8546 = vpow.pop %v8545
      %v8547 = vmul.f32 %v8544, 1.442695
      %v8548 = vpow.pop %v8547
      %v8549 = vadd.f32 %v8546, 1.0
      %v8550 = vadd.f32 %v8548, 1.0
      %v8551 = vrcp.pop %v8549
      %v8552 = vmul.f32 %v8549, %v8551
      %v8553 = vsub.f32 1.0, %v8552
      %v8554 = vmul.f32 %v8551, %v8553
      %v8555 = vadd.f32 %v8551, %v8554
      %vm8556 = vweird.f32 %v8549
      %vm8557 = vweird.f32 %v8551
      %vm8558 = vmor %vm8556, %vm8557
      %v8559 = vsel %vm8558, %v8551, %v8555
      %v8560 = vand.u32 2147483647, %v8549
      %vm8561 = vcmp.eq.f32.partialorder %v8560, 8.507059e+37
      %v8562 = vand.u32 %v8549, 2147483648
      %v8563 = vor.u32 1.1754944e-38, %v8562
      %v8564 = vsel %vm8561, %v8563, %v8559
      %v8565 = vmul.f32 1.0, %v8564
      %v8566 = vrcp.pop %v8550
      %v8567 = vmul.f32 %v8550, %v8566
      %v8568 = vsub.f32 1.0, %v8567
      %v8569 = vmul.f32 %v8566, %v8568
      %v8570 = vadd.f32 %v8566, %v8569
      %vm8571 = vweird.f32 %v8550
      %vm8572 = vweird.f32 %v8566
      %vm8573 = vmor %vm8571, %vm8572
      %v8574 = vsel %vm8573, %v8566, %v8570
      %v8575 = vand.u32 2147483647, %v8550
      %vm8576 = vcmp.eq.f32.partialorder %v8575, 8.507059e+37
      %v8577 = vand.u32 %v8550, 2147483648
      %v8578 = vor.u32 1.1754944e-38, %v8577
      %v8579 = vsel %vm8576, %v8578, %v8574
      %v8580 = vmul.f32 1.0, %v8579
      %v8581 = vpack.c.bf16 %v8565, %v8565
      %v8582 = vpack.c.bf16 %v8580, %v8580
      %8583 = vst [vmem:[#allocation26] sm:$0xf] %v8581
      %8584 = vst [vmem:[#allocation26 + $0x4] sm:$0xf] %v8582
    $region129: #{tpu_custom_call.1} parent=1 // pred_fallthru
      _
    // Predicated region
    $region130: #{tpu_custom_call.1} parent=1 // pred_check
      _
    $region131: #{tpu_custom_call.1} parent=1 // pred_check_branch
      %8586 = sbr.rel (0) target = $region133
    $region132: #{tpu_custom_call.1} parent=1 // pred_region
      %8588 = vsyncadd [#allocation7], 0
      %s8589 = sshll.u32 [#allocation26], 4
      %s8590 = int_to_ptr.vmem [resolvable:$true] %s8589
      %s8591 = sshll.u32 %s17, 4
      %s8592 = int_to_ptr.hbm [resolvable:$true] %s8591
      %8597 = dma.vmem_to_hbm [thread:$0]  %s8590, 128, %s8592, [#allocation7], 64, 64, 4
    $region133: #{tpu_custom_call.1} parent=1 // pred_fallthru
      _
    // Predicated region
    $region134: #{tpu_custom_call.1} parent=1 // pred_check
      _
    $region135: #{tpu_custom_call.1} parent=1 // pred_check_branch
      %8599 = sbr.rel (0) target = $region137
    $region136: #{tpu_custom_call.1} parent=1 // pred_region
      %8601 = dma.done [#allocation7], 128
    $region137: #{tpu_custom_call.1} parent=1 // pred_fallthru
      _
    %8602 = vsyncpa [#allocation6], 1
    %8603 = vsyncpa [#allocation9], 1
    %8604 = vsyncpa [#allocation12], 1
    %8605 = vsyncpa [#allocation15], 1
    %8606 = vsyncpa [#allocation18], 1
    %8607 = vsyncpa [#allocation21], 1
    %8608 = vsyncpa [#allocation24], 1
    %8609 = vsyncpa [#allocation7], 1

</llo_original>
